<compile_context>
chip_gen: v7x
topology: tpu7x:2x2x1
jax: 0.10.0
libtpu: 0.0.40
codegen_flags: <defaults>
</compile_context>

<pallas_src>
import functools

import jax
import jax.numpy as jnp
from jax.experimental import pallas as pl
from jax.experimental.pallas import tpu as pltpu

CAPACITY = 32
LATENT_DIM = 8
LEAKY_SLOPE = 0.2


def _round_up(x, m):
    return (x + m - 1) // m * m


# ----------------------------- Pallas kernels ------------------------------

def _gemm_bias_act_kernel(act, a_ref, b_ref, bias_ref, o_ref):
    acc = jnp.dot(a_ref[...], b_ref[...], preferred_element_type=jnp.float32)
    acc = acc + bias_ref[...]                       # (1, N) broadcast
    if act == "leaky_relu":
        acc = jnp.where(acc >= 0, acc, LEAKY_SLOPE * acc)
    elif act == "sigmoid":
        acc = 1.0 / (1.0 + jnp.exp(-acc))           # exp on EUP slot
    o_ref[...] = acc.astype(o_ref.dtype)


def gemm_bias_act(a, b, bias, act="none", out_dtype=jnp.float32, tile_m=512):
    """out = act(a @ b + bias).  a:(M,K), b:(K,N), bias:(N,).

    bf16 MXU operands, f32 accumulate + epilogue.  M is grid-tiled (tiles are
    multiples of 16 rows, capped at `tile_m`) and marked "parallel" so large
    batches pipeline and shard across TensorCores; tiny M -> single tile.
    """
    M, K = a.shape
    K2, N = b.shape
    assert K == K2
    a = a.astype(jnp.bfloat16)
    b = b.astype(jnp.bfloat16)
    bias2 = bias.reshape(1, N).astype(jnp.float32)

    tm = min(tile_m, _round_up(M, 16))
    m_pad = _round_up(M, tm)
    if m_pad != M:
        a = jnp.pad(a, ((0, m_pad - M), (0, 0)))

    out = pl.pallas_call(
        functools.partial(_gemm_bias_act_kernel, act),
        out_shape=jax.ShapeDtypeStruct((m_pad, N), out_dtype),
        grid=(m_pad // tm,),
        in_specs=[
            pl.BlockSpec((tm, K), lambda i: (i, 0)),
            pl.BlockSpec((K, N), lambda i: (0, 0)),   # weights resident
            pl.BlockSpec((1, N), lambda i: (0, 0)),
        ],
        out_specs=pl.BlockSpec((tm, N), lambda i: (i, 0)),
        compiler_params=pltpu.CompilerParams(
            dimension_semantics=("parallel",)),
    )(a, b, bias2)
    return out[:M] if m_pad != M else out


def _latent_kernel(flat_ref, wm_ref, bm_ref, wv_ref, bv_ref, eps_ref,
                   wd_ref, bd_ref, mean_ref, logvar_ref, d_ref):
    """fc_mean + fc_var + reparameterize + decoder fc1, fused in one launch.

    `flat` is DMA'd to VMEM once and reused by both encoder FC matmuls."""
    flat = flat_ref[...]
    mean = jnp.dot(flat, wm_ref[...],
                   preferred_element_type=jnp.float32) + bm_ref[...]
    log_var = jnp.dot(flat, wv_ref[...],
                      preferred_element_type=jnp.float32) + bv_ref[...]
    mean_ref[...] = mean
    logvar_ref[...] = log_var
    # z = mean + exp(0.5 * log_var) * eps
    z = mean + jnp.exp(0.5 * log_var) * eps_ref[...]
    d = jnp.dot(z.astype(jnp.bfloat16), wd_ref[...],
                preferred_element_type=jnp.float32) + bd_ref[...]
    d_ref[...] = jnp.where(d >= 0, d, LEAKY_SLOPE * d).astype(d_ref.dtype)


def latent_block(flat, wm, bm, wv, bv, eps, wd, bd):
    B, KF = flat.shape
    L = wm.shape[1]
    DH = wd.shape[1]

    def full(r, c):
        return pl.BlockSpec((r, c), lambda i: (0, 0))

    mean, log_var, d = pl.pallas_call(
        _latent_kernel,
        out_shape=(
            jax.ShapeDtypeStruct((B, L), jnp.float32),
            jax.ShapeDtypeStruct((B, L), jnp.float32),
            jax.ShapeDtypeStruct((B, DH), jnp.bfloat16),   # lane-dense (3136)
        ),
        grid=(1,),
        in_specs=[
            full(B, KF), full(KF, L), full(1, L), full(KF, L), full(1, L),
            full(B, L), full(L, DH), full(1, DH),
        ],
        out_specs=(full(B, L), full(B, L), full(B, DH)),
    )(flat.astype(jnp.bfloat16), wm, bm, wv, bv,
      eps.astype(jnp.float32), wd, bd)
    return mean, log_var, d


# ------------------------------ JAX glue ops --------------------------------

def im2col_nhwc(x, k, stride, pad):
    """x: (B, H, W, C) -> patches (B*Ho*Wo, k*k*C), Ho, Wo.

    Column order is (kh, kw, c); weight packers below use the same order."""
    B, H, W, C = x.shape
    xp = jnp.pad(x, ((0, 0), (pad, pad), (pad, pad), (0, 0)))
    Ho = (H + 2 * pad - k) // stride + 1
    Wo = (W + 2 * pad - k) // stride + 1
    cols = []
    for i in range(k):
        for j in range(k):
            cols.append(xp[:, i:i + stride * Ho:stride,
                           j:j + stride * Wo:stride, :])
    p = jnp.stack(cols, axis=3)                   # (B, Ho, Wo, k*k, C)
    return p.reshape(B * Ho * Wo, k * k * C), Ho, Wo


def conv2d_nhwc(x, wmat, bias, k, stride, pad, act, out_dtype=jnp.bfloat16):
    B = x.shape[0]
    outC = wmat.shape[1]
    p, Ho, Wo = im2col_nhwc(x, k, stride, pad)
    y = gemm_bias_act(p, wmat, bias, act, out_dtype)       # (B*Ho*Wo, outC)
    return y.reshape(B, Ho, Wo, outC)                      # NHWC, no transpose


def conv_transpose2d_nhwc(x, wmat, bias4, act, out_dtype=jnp.bfloat16):
    """ConvTranspose2d(stride=2, k=4, pad=1) via subpixel decomposition:
    3x3 stride-1 pad-1 im2col of the UN-dilated input, one GEMM with columns
    (parity_y, parity_x, outC), then depth-to-space.  No dilated zeros."""
    B, H, W, _ = x.shape
    outC = wmat.shape[1] // 4
    p, _, _ = im2col_nhwc(x, 3, 1, 1)                      # (B*H*W, 9*inC)
    y = gemm_bias_act(p, wmat, bias4, act, out_dtype)      # (B*H*W, 4*outC)
    y = y.reshape(B, H, W, 2, 2, outC)
    y = y.transpose(0, 1, 3, 2, 4, 5).reshape(B, 2 * H, 2 * W, outC)
    return y


# ------------------------ weight packing (done once) ------------------------

def pack_conv_weight(w):
    """PyTorch Conv2d weight (outC, inC, kH, kW) -> (kH*kW*inC, outC) bf16."""
    outC, inC, kH, kW = w.shape
    return jnp.transpose(w, (2, 3, 1, 0)).reshape(
        kH * kW * inC, outC).astype(jnp.bfloat16)


# (parity, 3x3-window offset) -> 4x4 kernel tap, for stride=2, k=4, pad=1:
#   out[2m+r] = sum_d in[m+d] * W[..., tap(r, d)], zero if (r, d) not listed.
_TAP = {(0, -1): 3, (0, 0): 1, (1, 0): 2, (1, 1): 0}


def pack_convT_weight(wT):
    """PyTorch ConvTranspose2d weight (inC, outC, 4, 4) -> subpixel GEMM
    matrix (9*inC, 4*outC).  Rows: (dy, dx, c); cols: (ry, rx, o)."""
    inC, outC = wT.shape[0], wT.shape[1]
    w = jnp.zeros((3, 3, inC, 2, 2, outC), jnp.float32)
    for (ry, dy), ky in _TAP.items():
        for (rx, dx), kx in _TAP.items():
            w = w.at[dy + 1, dx + 1, :, ry, rx, :].set(wT[:, :, ky, kx])
    return w.reshape(9 * inC, 4 * outC).astype(jnp.bfloat16)


def init_params(key):
    c = CAPACITY
    ks = jax.random.split(key, 14)

    def u(k, shape, fan_in):
        bound = 1.0 / jnp.sqrt(float(fan_in))
        return jax.random.uniform(k, shape, jnp.float32, -bound, bound)

    flat = 2 * c * 7 * 7
    return {
        # Encoder (PyTorch layouts)
        "enc_conv1_w": u(ks[0], (c, 1, 4, 4), 1 * 16),
        "enc_conv1_b": u(ks[1], (c,), 1 * 16),
        "enc_conv2_w": u(ks[2], (2 * c, c, 4, 4), c * 16),
        "enc_conv2_b": u(ks[3], (2 * c,), c * 16),
        "fc_mean_w":   u(ks[4], (flat, LATENT_DIM), flat),   # stored (in, out)
        "fc_mean_b":   u(ks[5], (LATENT_DIM,), flat),
        "fc_var_w":    u(ks[6], (flat, LATENT_DIM), flat),
        "fc_var_b":    u(ks[7], (LATENT_DIM,), flat),
        # Decoder
        "dec_fc1_w":   u(ks[8], (LATENT_DIM, flat), LATENT_DIM),
        "dec_fc1_b":   u(ks[9], (flat,), LATENT_DIM),
        "dec_convT2_w": u(ks[10], (2 * c, c, 4, 4), 2 * c * 16),  # (in,out,kH,kW)
        "dec_convT2_b": u(ks[11], (c,), 2 * c * 16),
        "dec_convT1_w": u(ks[12], (c, 1, 4, 4), c * 16),
        "dec_convT1_b": u(ks[13], (1,), c * 16),
    }


def convert_params(p):
    """One-time repack of PyTorch-layout weights into GEMM-ready matrices.

    NOTE: activations are NHWC, so the encoder flatten / decoder un-flatten
    use (H, W, C) order instead of PyTorch's (C, H, W).  With the random
    weights generated in this script that is an equivalent re-parameterization;
    loading a real PyTorch checkpoint would additionally require permuting the
    rows of fc_mean/fc_var and the columns of dec_fc1 accordingly."""
    L = LATENT_DIM
    flat = 2 * CAPACITY * 7 * 7
    return {
        "conv1_w": pack_conv_weight(p["enc_conv1_w"]),
        "conv1_b": p["enc_conv1_b"].astype(jnp.float32),
        "conv2_w": pack_conv_weight(p["enc_conv2_w"]),
        "conv2_b": p["enc_conv2_b"].astype(jnp.float32),
        "fc_mean_w": p["fc_mean_w"].astype(jnp.bfloat16),
        "fc_mean_b": p["fc_mean_b"].reshape(1, L).astype(jnp.float32),
        "fc_var_w": p["fc_var_w"].astype(jnp.bfloat16),
        "fc_var_b": p["fc_var_b"].reshape(1, L).astype(jnp.float32),
        "dec_fc1_w": p["dec_fc1_w"].astype(jnp.bfloat16),
        "dec_fc1_b": p["dec_fc1_b"].reshape(1, flat).astype(jnp.float32),
        "convT2_w": pack_convT_weight(p["dec_convT2_w"]),   # (576, 128)
        "convT2_b": jnp.tile(p["dec_convT2_b"], 4).astype(jnp.float32),
        "convT1_w": pack_convT_weight(p["dec_convT1_w"]),   # (288, 4)
        "convT1_b": jnp.tile(p["dec_convT1_b"], 4).astype(jnp.float32),
    }


# ------------------------------ VAE forward ---------------------------------

def vae_forward(gp, x, eps):
    c = CAPACITY
    B = x.shape[0]

    # NCHW -> NHWC once (input C = 1, so this is effectively a reshape).
    h = jnp.transpose(x, (0, 2, 3, 1))

    # --- Encoder ---
    h = conv2d_nhwc(h, gp["conv1_w"], gp["conv1_b"], 4, 2, 1, "leaky_relu")
    h = conv2d_nhwc(h, gp["conv2_w"], gp["conv2_b"], 4, 2, 1, "leaky_relu")
    flat = h.reshape(B, 7 * 7 * 2 * c)             # NHWC flatten (see note)

    # --- fc_mean + fc_var + reparameterize + decoder fc1 (single launch) ---
    mean, log_var, d = latent_block(
        flat, gp["fc_mean_w"], gp["fc_mean_b"],
        gp["fc_var_w"], gp["fc_var_b"], eps,
        gp["dec_fc1_w"], gp["dec_fc1_b"])

    # --- Decoder ---
    d = d.reshape(B, 7, 7, 2 * c)                  # NHWC un-flatten (see note)
    d = conv_transpose2d_nhwc(d, gp["convT2_w"], gp["convT2_b"], "leaky_relu")
    # Final conv-transpose has outC = 1 (GEMM N = 4); output is only ~6 KB so
    # the narrow store is negligible at this size.
    x_hat = conv_transpose2d_nhwc(d, gp["convT1_w"], gp["convT1_b"],
                                  "sigmoid", out_dtype=jnp.float32)
    x_hat = jnp.transpose(x_hat, (0, 3, 1, 2))     # back to NCHW (C = 1)
    return x_hat, mean, log_var


# ---------------------------------- main -------------------------------------

if __name__ == "__main__":
    key = jax.random.PRNGKey(0)
    pkey, xkey, ekey = jax.random.split(key, 3)

    params = init_params(pkey)
    gparams = convert_params(params)     # one-time weight repack (outside jit)

    # Spatial size 28 is implied by the 2*c*7*7 flatten in the module.
    x = jax.random.normal(xkey, (2, 1, 28, 28), jnp.float32)
    # torch.randn_like epsilon -> deterministic explicit epsilon input.
    eps = jax.random.normal(ekey, (2, LATENT_DIM), jnp.float32)

    x_hat, mean, log_var = jax.jit(vae_forward)(gparams, x, eps)
    jax.block_until_ready((x_hat, mean, log_var))

    assert x_hat.shape == (2, 1, 28, 28)
    assert mean.shape == (2, LATENT_DIM)
    assert log_var.shape == (2, LATENT_DIM)
    assert bool(jnp.all(jnp.isfinite(x_hat)))
    assert bool(jnp.all((x_hat >= 0) & (x_hat <= 1)))   # sigmoid output range

    print("KERNEL_OK")
</pallas_src>

<mosaic_0001>
module attributes {stable_mosaic.version = 11 : i64} {
  func.func @_gemm_bias_act_kernel(%arg0: i32, %arg1: memref<400x16xbf16, #tpu.memory_space<vmem>>, %arg2: memref<16x32xbf16, #tpu.memory_space<vmem>>, %arg3: memref<1x32xf32, #tpu.memory_space<vmem>>, %arg4: memref<400x32xbf16, #tpu.memory_space<vmem>>) attributes {dimension_semantics = [#tpu.dimension_semantics<parallel>], iteration_bounds = array<i64: 1>, scalar_prefetch = 0 : i64, scratch_operands = 0 : i64, tpu.core_type = #tpu.core_type<tc>, window_params = [{transform_indices = @transform_0, window_bounds = array<i64: 400, 16>}, {pipeline_mode = #tpu.pipeline_mode<synchronous>, transform_indices = @transform_1, window_bounds = array<i64: 16, 32>}, {pipeline_mode = #tpu.pipeline_mode<synchronous>, transform_indices = @transform_2, window_bounds = array<i64: 1, 32>}, {transform_indices = @transform_3, window_bounds = array<i64: 400, 32>}]} {
    %c0 = arith.constant 0 : index
    %c0_0 = arith.constant 0 : index
    %0 = vector.load %arg1[%c0, %c0_0] : memref<400x16xbf16, #tpu.memory_space<vmem>>, vector<400x16xbf16>
    %c0_1 = arith.constant 0 : index
    %c0_2 = arith.constant 0 : index
    %1 = vector.load %arg2[%c0_1, %c0_2] : memref<16x32xbf16, #tpu.memory_space<vmem>>, vector<16x32xbf16>
    %cst = arith.constant dense<0.000000e+00> : vector<400x32xf32>
    %2 = tpu.matmul %0, %1, %cst {dimension_numbers = #tpu.dot_dimension_numbers<[1], [0], [0], [1], [0, 0, 1, 1], [], []>} : vector<400x16xbf16>, vector<16x32xbf16>, vector<400x32xf32> -> vector<400x32xf32>
    %c0_3 = arith.constant 0 : index
    %c0_4 = arith.constant 0 : index
    %3 = vector.load %arg3[%c0_3, %c0_4] : memref<1x32xf32, #tpu.memory_space<vmem>>, vector<1x32xf32>
    %4 = vector.broadcast %3 : vector<1x32xf32> to vector<400x32xf32>
    %5 = arith.addf %2, %4 : vector<400x32xf32>
    %cst_5 = arith.constant 0.000000e+00 : f32
    %6 = vector.broadcast %cst_5 : f32 to vector<400x32xf32>
    %7 = arith.cmpf oge, %5, %6 : vector<400x32xf32>
    %cst_6 = arith.constant 2.000000e-01 : f32
    %8 = vector.broadcast %cst_6 : f32 to vector<400x32xf32>
    %9 = arith.mulf %8, %5 : vector<400x32xf32>
    %10 = arith.select %7, %5, %9 : vector<400x32xi1>, vector<400x32xf32>
    %11 = arith.truncf %10 : vector<400x32xf32> to vector<400x32xbf16>
    %c0_7 = arith.constant 0 : index
    %c0_8 = arith.constant 0 : index
    %12 = vector.load %arg4[%c0_7, %c0_8] : memref<400x32xbf16, #tpu.memory_space<vmem>>, vector<400x32xbf16>
    tpu.vector_store %arg4[%c0_7, %c0_8], %11 {strides = array<i32>} : memref<400x32xbf16, #tpu.memory_space<vmem>>, vector<400x32xbf16>,
    return
  }
  func.func @transform_0(%arg0: i32) -> (i32, i32) {
    %c0_i32 = arith.constant 0 : i32
    %c0_i32_0 = arith.constant 0 : i32
    return %arg0, %c0_i32 : i32, i32
  }
  func.func @transform_1(%arg0: i32) -> (i32, i32) {
    %c0_i32 = arith.constant 0 : i32
    %c0_i32_0 = arith.constant 0 : i32
    %c0_i32_1 = arith.constant 0 : i32
    return %c0_i32, %c0_i32_0 : i32, i32
  }
  func.func @transform_2(%arg0: i32) -> (i32, i32) {
    %c0_i32 = arith.constant 0 : i32
    %c0_i32_0 = arith.constant 0 : i32
    %c0_i32_1 = arith.constant 0 : i32
    return %c0_i32, %c0_i32_0 : i32, i32
  }
  func.func @transform_3(%arg0: i32) -> (i32, i32) {
    %c0_i32 = arith.constant 0 : i32
    %c0_i32_0 = arith.constant 0 : i32
    return %arg0, %c0_i32 : i32, i32
  }
}

module attributes {stable_mosaic.version = 11 : i64} {
  func.func @_gemm_bias_act_kernel(%arg0: i32, %arg1: memref<112x512xbf16, #tpu.memory_space<vmem>>, %arg2: memref<512x64xbf16, #tpu.memory_space<vmem>>, %arg3: memref<1x64xf32, #tpu.memory_space<vmem>>, %arg4: memref<112x64xbf16, #tpu.memory_space<vmem>>) attributes {dimension_semantics = [#tpu.dimension_semantics<parallel>], iteration_bounds = array<i64: 1>, scalar_prefetch = 0 : i64, scratch_operands = 0 : i64, tpu.core_type = #tpu.core_type<tc>, window_params = [{transform_indices = @transform_0, window_bounds = array<i64: 112, 512>}, {pipeline_mode = #tpu.pipeline_mode<synchronous>, transform_indices = @transform_1, window_bounds = array<i64: 512, 64>}, {pipeline_mode = #tpu.pipeline_mode<synchronous>, transform_indices = @transform_2, window_bounds = array<i64: 1, 64>}, {transform_indices = @transform_3, window_bounds = array<i64: 112, 64>}]} {
    %c0 = arith.constant 0 : index
    %c0_0 = arith.constant 0 : index
    %0 = vector.load %arg1[%c0, %c0_0] : memref<112x512xbf16, #tpu.memory_space<vmem>>, vector<112x512xbf16>
    %c0_1 = arith.constant 0 : index
    %c0_2 = arith.constant 0 : index
    %1 = vector.load %arg2[%c0_1, %c0_2] : memref<512x64xbf16, #tpu.memory_space<vmem>>, vector<512x64xbf16>
    %cst = arith.constant dense<0.000000e+00> : vector<112x64xf32>
    %2 = tpu.matmul %0, %1, %cst {dimension_numbers = #tpu.dot_dimension_numbers<[1], [0], [0], [1], [0, 0, 1, 1], [], []>} : vector<112x512xbf16>, vector<512x64xbf16>, vector<112x64xf32> -> vector<112x64xf32>
    %c0_3 = arith.constant 0 : index
    %c0_4 = arith.constant 0 : index
    %3 = vector.load %arg3[%c0_3, %c0_4] : memref<1x64xf32, #tpu.memory_space<vmem>>, vector<1x64xf32>
    %4 = vector.broadcast %3 : vector<1x64xf32> to vector<112x64xf32>
    %5 = arith.addf %2, %4 : vector<112x64xf32>
    %cst_5 = arith.constant 0.000000e+00 : f32
    %6 = vector.broadcast %cst_5 : f32 to vector<112x64xf32>
    %7 = arith.cmpf oge, %5, %6 : vector<112x64xf32>
    %cst_6 = arith.constant 2.000000e-01 : f32
    %8 = vector.broadcast %cst_6 : f32 to vector<112x64xf32>
    %9 = arith.mulf %8, %5 : vector<112x64xf32>
    %10 = arith.select %7, %5, %9 : vector<112x64xi1>, vector<112x64xf32>
    %11 = arith.truncf %10 : vector<112x64xf32> to vector<112x64xbf16>
    %c0_7 = arith.constant 0 : index
    %c0_8 = arith.constant 0 : index
    %12 = vector.load %arg4[%c0_7, %c0_8] : memref<112x64xbf16, #tpu.memory_space<vmem>>, vector<112x64xbf16>
    tpu.vector_store %arg4[%c0_7, %c0_8], %11 {strides = array<i32>} : memref<112x64xbf16, #tpu.memory_space<vmem>>, vector<112x64xbf16>,
    return
  }
  func.func @transform_0(%arg0: i32) -> (i32, i32) {
    %c0_i32 = arith.constant 0 : i32
    %c0_i32_0 = arith.constant 0 : i32
    return %arg0, %c0_i32 : i32, i32
  }
  func.func @transform_1(%arg0: i32) -> (i32, i32) {
    %c0_i32 = arith.constant 0 : i32
    %c0_i32_0 = arith.constant 0 : i32
    %c0_i32_1 = arith.constant 0 : i32
    return %c0_i32, %c0_i32_0 : i32, i32
  }
  func.func @transform_2(%arg0: i32) -> (i32, i32) {
    %c0_i32 = arith.constant 0 : i32
    %c0_i32_0 = arith.constant 0 : i32
    %c0_i32_1 = arith.constant 0 : i32
    return %c0_i32, %c0_i32_0 : i32, i32
  }
  func.func @transform_3(%arg0: i32) -> (i32, i32) {
    %c0_i32 = arith.constant 0 : i32
    %c0_i32_0 = arith.constant 0 : i32
    return %arg0, %c0_i32 : i32, i32
  }
}

module attributes {stable_mosaic.version = 11 : i64} {
  func.func @_latent_kernel(%arg0: i32, %arg1: memref<2x3136xbf16, #tpu.memory_space<vmem>>, %arg2: memref<3136x8xbf16, #tpu.memory_space<vmem>>, %arg3: memref<1x8xf32, #tpu.memory_space<vmem>>, %arg4: memref<3136x8xbf16, #tpu.memory_space<vmem>>, %arg5: memref<1x8xf32, #tpu.memory_space<vmem>>, %arg6: memref<2x8xf32, #tpu.memory_space<vmem>>, %arg7: memref<8x3136xbf16, #tpu.memory_space<vmem>>, %arg8: memref<1x3136xf32, #tpu.memory_space<vmem>>, %arg9: memref<2x8xf32, #tpu.memory_space<vmem>>, %arg10: memref<2x8xf32, #tpu.memory_space<vmem>>, %arg11: memref<2x3136xbf16, #tpu.memory_space<vmem>>) attributes {dimension_semantics = [#tpu.dimension_semantics<arbitrary>], iteration_bounds = array<i64: 1>, scalar_prefetch = 0 : i64, scratch_operands = 0 : i64, tpu.core_type = #tpu.core_type<tc>, window_params = [{pipeline_mode = #tpu.pipeline_mode<synchronous>, transform_indices = @transform_0, window_bounds = array<i64: 2, 3136>}, {pipeline_mode = #tpu.pipeline_mode<synchronous>, transform_indices = @transform_1, window_bounds = array<i64: 3136, 8>}, {pipeline_mode = #tpu.pipeline_mode<synchronous>, transform_indices = @transform_2, window_bounds = array<i64: 1, 8>}, {pipeline_mode = #tpu.pipeline_mode<synchronous>, transform_indices = @transform_3, window_bounds = array<i64: 3136, 8>}, {pipeline_mode = #tpu.pipeline_mode<synchronous>, transform_indices = @transform_4, window_bounds = array<i64: 1, 8>}, {pipeline_mode = #tpu.pipeline_mode<synchronous>, transform_indices = @transform_5, window_bounds = array<i64: 2, 8>}, {pipeline_mode = #tpu.pipeline_mode<synchronous>, transform_indices = @transform_6, window_bounds = array<i64: 8, 3136>}, {pipeline_mode = #tpu.pipeline_mode<synchronous>, transform_indices = @transform_7, window_bounds = array<i64: 1, 3136>}, {pipeline_mode = #tpu.pipeline_mode<synchronous>, transform_indices = @transform_8, window_bounds = array<i64: 2, 8>}, {pipeline_mode = #tpu.pipeline_mode<synchronous>, transform_indices = @transform_9, window_bounds = array<i64: 2, 8>}, {pipeline_mode = #tpu.pipeline_mode<synchronous>, transform_indices = @transform_10, window_bounds = array<i64: 2, 3136>}]} {
    %c0 = arith.constant 0 : index
    %c0_0 = arith.constant 0 : index
    %0 = vector.load %arg1[%c0, %c0_0] : memref<2x3136xbf16, #tpu.memory_space<vmem>>, vector<2x3136xbf16>
    %c0_1 = arith.constant 0 : index
    %c0_2 = arith.constant 0 : index
    %1 = vector.load %arg2[%c0_1, %c0_2] : memref<3136x8xbf16, #tpu.memory_space<vmem>>, vector<3136x8xbf16>
    %cst = arith.constant dense<0.000000e+00> : vector<2x8xf32>
    %2 = tpu.matmul %0, %1, %cst {dimension_numbers = #tpu.dot_dimension_numbers<[1], [0], [0], [1], [0, 0, 1, 1], [], []>} : vector<2x3136xbf16>, vector<3136x8xbf16>, vector<2x8xf32> -> vector<2x8xf32>
    %c0_3 = arith.constant 0 : index
    %c0_4 = arith.constant 0 : index
    %3 = vector.load %arg3[%c0_3, %c0_4] : memref<1x8xf32, #tpu.memory_space<vmem>>, vector<1x8xf32>
    %4 = vector.broadcast %3 : vector<1x8xf32> to vector<2x8xf32>
    %5 = arith.addf %2, %4 : vector<2x8xf32>
    %c0_5 = arith.constant 0 : index
    %c0_6 = arith.constant 0 : index
    %6 = vector.load %arg4[%c0_5, %c0_6] : memref<3136x8xbf16, #tpu.memory_space<vmem>>, vector<3136x8xbf16>
    %cst_7 = arith.constant dense<0.000000e+00> : vector<2x8xf32>
    %7 = tpu.matmul %0, %6, %cst_7 {dimension_numbers = #tpu.dot_dimension_numbers<[1], [0], [0], [1], [0, 0, 1, 1], [], []>} : vector<2x3136xbf16>, vector<3136x8xbf16>, vector<2x8xf32> -> vector<2x8xf32>
    %c0_8 = arith.constant 0 : index
    %c0_9 = arith.constant 0 : index
    %8 = vector.load %arg5[%c0_8, %c0_9] : memref<1x8xf32, #tpu.memory_space<vmem>>, vector<1x8xf32>
    %9 = vector.broadcast %8 : vector<1x8xf32> to vector<2x8xf32>
    %10 = arith.addf %7, %9 : vector<2x8xf32>
    %c0_10 = arith.constant 0 : index
    %c0_11 = arith.constant 0 : index
    %11 = vector.load %arg9[%c0_10, %c0_11] : memref<2x8xf32, #tpu.memory_space<vmem>>, vector<2x8xf32>
    tpu.vector_store %arg9[%c0_10, %c0_11], %5 {strides = array<i32>} : memref<2x8xf32, #tpu.memory_space<vmem>>, vector<2x8xf32>,
    %c0_12 = arith.constant 0 : index
    %c0_13 = arith.constant 0 : index
    %12 = vector.load %arg10[%c0_12, %c0_13] : memref<2x8xf32, #tpu.memory_space<vmem>>, vector<2x8xf32>
    tpu.vector_store %arg10[%c0_12, %c0_13], %10 {strides = array<i32>} : memref<2x8xf32, #tpu.memory_space<vmem>>, vector<2x8xf32>,
    %cst_14 = arith.constant 5.000000e-01 : f32
    %13 = vector.broadcast %cst_14 : f32 to vector<2x8xf32>
    %14 = arith.mulf %13, %10 : vector<2x8xf32>
    %15 = math.exp %14 : vector<2x8xf32>
    %c0_15 = arith.constant 0 : index
    %c0_16 = arith.constant 0 : index
    %16 = vector.load %arg6[%c0_15, %c0_16] : memref<2x8xf32, #tpu.memory_space<vmem>>, vector<2x8xf32>
    %17 = arith.mulf %15, %16 : vector<2x8xf32>
    %18 = arith.addf %5, %17 : vector<2x8xf32>
    %19 = arith.truncf %18 : vector<2x8xf32> to vector<2x8xbf16>
    %c0_17 = arith.constant 0 : index
    %c0_18 = arith.constant 0 : index
    %20 = vector.load %arg7[%c0_17, %c0_18] : memref<8x3136xbf16, #tpu.memory_space<vmem>>, vector<8x3136xbf16>
    %cst_19 = arith.constant dense<0.000000e+00> : vector<2x3136xf32>
    %21 = tpu.matmul %19, %20, %cst_19 {dimension_numbers = #tpu.dot_dimension_numbers<[1], [0], [0], [1], [0, 0, 1, 1], [], []>} : vector<2x8xbf16>, vector<8x3136xbf16>, vector<2x3136xf32> -> vector<2x3136xf32>
    %c0_20 = arith.constant 0 : index
    %c0_21 = arith.constant 0 : index
    %22 = vector.load %arg8[%c0_20, %c0_21] : memref<1x3136xf32, #tpu.memory_space<vmem>>, vector<1x3136xf32>
    %23 = vector.broadcast %22 : vector<1x3136xf32> to vector<2x3136xf32>
    %24 = arith.addf %21, %23 : vector<2x3136xf32>
    %cst_22 = arith.constant 0.000000e+00 : f32
    %25 = vector.broadcast %cst_22 : f32 to vector<2x3136xf32>
    %26 = arith.cmpf oge, %24, %25 : vector<2x3136xf32>
    %cst_23 = arith.constant 2.000000e-01 : f32
    %27 = vector.broadcast %cst_23 : f32 to vector<2x3136xf32>
    %28 = arith.mulf %27, %24 : vector<2x3136xf32>
    %29 = arith.select %26, %24, %28 : vector<2x3136xi1>, vector<2x3136xf32>
    %30 = arith.truncf %29 : vector<2x3136xf32> to vector<2x3136xbf16>
    %c0_24 = arith.constant 0 : index
    %c0_25 = arith.constant 0 : index
    %31 = vector.load %arg11[%c0_24, %c0_25] : memref<2x3136xbf16, #tpu.memory_space<vmem>>, vector<2x3136xbf16>
    tpu.vector_store %arg11[%c0_24, %c0_25], %30 {strides = array<i32>} : memref<2x3136xbf16, #tpu.memory_space<vmem>>, vector<2x3136xbf16>,
    return
  }
  func.func @transform_0(%arg0: i32) -> (i32, i32) {
    %c0_i32 = arith.constant 0 : i32
    %c0_i32_0 = arith.constant 0 : i32
    %c0_i32_1 = arith.constant 0 : i32
    return %c0_i32, %c0_i32_0 : i32, i32
  }
  func.func @transform_1(%arg0: i32) -> (i32, i32) {
    %c0_i32 = arith.constant 0 : i32
    %c0_i32_0 = arith.constant 0 : i32
    %c0_i32_1 = arith.constant 0 : i32
    return %c0_i32, %c0_i32_0 : i32, i32
  }
  func.func @transform_2(%arg0: i32) -> (i32, i32) {
    %c0_i32 = arith.constant 0 : i32
    %c0_i32_0 = arith.constant 0 : i32
    %c0_i32_1 = arith.constant 0 : i32
    return %c0_i32, %c0_i32_0 : i32, i32
  }
  func.func @transform_3(%arg0: i32) -> (i32, i32) {
    %c0_i32 = arith.constant 0 : i32
    %c0_i32_0 = arith.constant 0 : i32
    %c0_i32_1 = arith.constant 0 : i32
    return %c0_i32, %c0_i32_0 : i32, i32
  }
  func.func @transform_4(%arg0: i32) -> (i32, i32) {
    %c0_i32 = arith.constant 0 : i32
    %c0_i32_0 = arith.constant 0 : i32
    %c0_i32_1 = arith.constant 0 : i32
    return %c0_i32, %c0_i32_0 : i32, i32
  }
  func.func @transform_5(%arg0: i32) -> (i32, i32) {
    %c0_i32 = arith.constant 0 : i32
    %c0_i32_0 = arith.constant 0 : i32
    %c0_i32_1 = arith.constant 0 : i32
    return %c0_i32, %c0_i32_0 : i32, i32
  }
  func.func @transform_6(%arg0: i32) -> (i32, i32) {
    %c0_i32 = arith.constant 0 : i32
    %c0_i32_0 = arith.constant 0 : i32
    %c0_i32_1 = arith.constant 0 : i32
    return %c0_i32, %c0_i32_0 : i32, i32
  }
  func.func @transform_7(%arg0: i32) -> (i32, i32) {
    %c0_i32 = arith.constant 0 : i32
    %c0_i32_0 = arith.constant 0 : i32
    %c0_i32_1 = arith.constant 0 : i32
    return %c0_i32, %c0_i32_0 : i32, i32
  }
  func.func @transform_8(%arg0: i32) -> (i32, i32) {
    %c0_i32 = arith.constant 0 : i32
    %c0_i32_0 = arith.constant 0 : i32
    %c0_i32_1 = arith.constant 0 : i32
    return %c0_i32, %c0_i32_0 : i32, i32
  }
  func.func @transform_9(%arg0: i32) -> (i32, i32) {
    %c0_i32 = arith.constant 0 : i32
    %c0_i32_0 = arith.constant 0 : i32
    %c0_i32_1 = arith.constant 0 : i32
    return %c0_i32, %c0_i32_0 : i32, i32
  }
  func.func @transform_10(%arg0: i32) -> (i32, i32) {
    %c0_i32 = arith.constant 0 : i32
    %c0_i32_0 = arith.constant 0 : i32
    %c0_i32_1 = arith.constant 0 : i32
    return %c0_i32, %c0_i32_0 : i32, i32
  }
}

module attributes {stable_mosaic.version = 11 : i64} {
  func.func @_gemm_bias_act_kernel(%arg0: i32, %arg1: memref<112x576xbf16, #tpu.memory_space<vmem>>, %arg2: memref<576x128xbf16, #tpu.memory_space<vmem>>, %arg3: memref<1x128xf32, #tpu.memory_space<vmem>>, %arg4: memref<112x128xbf16, #tpu.memory_space<vmem>>) attributes {dimension_semantics = [#tpu.dimension_semantics<parallel>], iteration_bounds = array<i64: 1>, scalar_prefetch = 0 : i64, scratch_operands = 0 : i64, tpu.core_type = #tpu.core_type<tc>, window_params = [{transform_indices = @transform_0, window_bounds = array<i64: 112, 576>}, {pipeline_mode = #tpu.pipeline_mode<synchronous>, transform_indices = @transform_1, window_bounds = array<i64: 576, 128>}, {pipeline_mode = #tpu.pipeline_mode<synchronous>, transform_indices = @transform_2, window_bounds = array<i64: 1, 128>}, {transform_indices = @transform_3, window_bounds = array<i64: 112, 128>}]} {
    %c0 = arith.constant 0 : index
    %c0_0 = arith.constant 0 : index
    %0 = vector.load %arg1[%c0, %c0_0] : memref<112x576xbf16, #tpu.memory_space<vmem>>, vector<112x576xbf16>
    %c0_1 = arith.constant 0 : index
    %c0_2 = arith.constant 0 : index
    %1 = vector.load %arg2[%c0_1, %c0_2] : memref<576x128xbf16, #tpu.memory_space<vmem>>, vector<576x128xbf16>
    %cst = arith.constant dense<0.000000e+00> : vector<112x128xf32>
    %2 = tpu.matmul %0, %1, %cst {dimension_numbers = #tpu.dot_dimension_numbers<[1], [0], [0], [1], [0, 0, 1, 1], [], []>} : vector<112x576xbf16>, vector<576x128xbf16>, vector<112x128xf32> -> vector<112x128xf32>
    %c0_3 = arith.constant 0 : index
    %c0_4 = arith.constant 0 : index
    %3 = vector.load %arg3[%c0_3, %c0_4] : memref<1x128xf32, #tpu.memory_space<vmem>>, vector<1x128xf32>
    %4 = vector.broadcast %3 : vector<1x128xf32> to vector<112x128xf32>
    %5 = arith.addf %2, %4 : vector<112x128xf32>
    %cst_5 = arith.constant 0.000000e+00 : f32
    %6 = vector.broadcast %cst_5 : f32 to vector<112x128xf32>
    %7 = arith.cmpf oge, %5, %6 : vector<112x128xf32>
    %cst_6 = arith.constant 2.000000e-01 : f32
    %8 = vector.broadcast %cst_6 : f32 to vector<112x128xf32>
    %9 = arith.mulf %8, %5 : vector<112x128xf32>
    %10 = arith.select %7, %5, %9 : vector<112x128xi1>, vector<112x128xf32>
    %11 = arith.truncf %10 : vector<112x128xf32> to vector<112x128xbf16>
    %c0_7 = arith.constant 0 : index
    %c0_8 = arith.constant 0 : index
    %12 = vector.load %arg4[%c0_7, %c0_8] : memref<112x128xbf16, #tpu.memory_space<vmem>>, vector<112x128xbf16>
    tpu.vector_store %arg4[%c0_7, %c0_8], %11 {strides = array<i32>} : memref<112x128xbf16, #tpu.memory_space<vmem>>, vector<112x128xbf16>,
    return
  }
  func.func @transform_0(%arg0: i32) -> (i32, i32) {
    %c0_i32 = arith.constant 0 : i32
    %c0_i32_0 = arith.constant 0 : i32
    return %arg0, %c0_i32 : i32, i32
  }
  func.func @transform_1(%arg0: i32) -> (i32, i32) {
    %c0_i32 = arith.constant 0 : i32
    %c0_i32_0 = arith.constant 0 : i32
    %c0_i32_1 = arith.constant 0 : i32
    return %c0_i32, %c0_i32_0 : i32, i32
  }
  func.func @transform_2(%arg0: i32) -> (i32, i32) {
    %c0_i32 = arith.constant 0 : i32
    %c0_i32_0 = arith.constant 0 : i32
    %c0_i32_1 = arith.constant 0 : i32
    return %c0_i32, %c0_i32_0 : i32, i32
  }
  func.func @transform_3(%arg0: i32) -> (i32, i32) {
    %c0_i32 = arith.constant 0 : i32
    %c0_i32_0 = arith.constant 0 : i32
    return %arg0, %c0_i32 : i32, i32
  }
}

module attributes {stable_mosaic.version = 11 : i64} {
  func.func @_gemm_bias_act_kernel(%arg0: i32, %arg1: memref<400x288xbf16, #tpu.memory_space<vmem>>, %arg2: memref<288x4xbf16, #tpu.memory_space<vmem>>, %arg3: memref<1x4xf32, #tpu.memory_space<vmem>>, %arg4: memref<400x4xf32, #tpu.memory_space<vmem>>) attributes {dimension_semantics = [#tpu.dimension_semantics<parallel>], iteration_bounds = array<i64: 1>, scalar_prefetch = 0 : i64, scratch_operands = 0 : i64, tpu.core_type = #tpu.core_type<tc>, window_params = [{transform_indices = @transform_0, window_bounds = array<i64: 400, 288>}, {pipeline_mode = #tpu.pipeline_mode<synchronous>, transform_indices = @transform_1, window_bounds = array<i64: 288, 4>}, {pipeline_mode = #tpu.pipeline_mode<synchronous>, transform_indices = @transform_2, window_bounds = array<i64: 1, 4>}, {transform_indices = @transform_3, window_bounds = array<i64: 400, 4>}]} {
    %c0 = arith.constant 0 : index
    %c0_0 = arith.constant 0 : index
    %0 = vector.load %arg1[%c0, %c0_0] : memref<400x288xbf16, #tpu.memory_space<vmem>>, vector<400x288xbf16>
    %c0_1 = arith.constant 0 : index
    %c0_2 = arith.constant 0 : index
    %1 = vector.load %arg2[%c0_1, %c0_2] : memref<288x4xbf16, #tpu.memory_space<vmem>>, vector<288x4xbf16>
    %cst = arith.constant dense<0.000000e+00> : vector<400x4xf32>
    %2 = tpu.matmul %0, %1, %cst {dimension_numbers = #tpu.dot_dimension_numbers<[1], [0], [0], [1], [0, 0, 1, 1], [], []>} : vector<400x288xbf16>, vector<288x4xbf16>, vector<400x4xf32> -> vector<400x4xf32>
    %c0_3 = arith.constant 0 : index
    %c0_4 = arith.constant 0 : index
    %3 = vector.load %arg3[%c0_3, %c0_4] : memref<1x4xf32, #tpu.memory_space<vmem>>, vector<1x4xf32>
    %4 = vector.broadcast %3 : vector<1x4xf32> to vector<400x4xf32>
    %5 = arith.addf %2, %4 : vector<400x4xf32>
    %cst_5 = arith.constant 0.000000e+00 : f32
    %6 = vector.broadcast %cst_5 : f32 to vector<400x4xf32>
    %7 = arith.subf %6, %5 : vector<400x4xf32>
    %8 = math.exp %7 : vector<400x4xf32>
    %cst_6 = arith.constant 1.000000e+00 : f32
    %9 = vector.broadcast %cst_6 : f32 to vector<400x4xf32>
    %10 = arith.addf %9, %8 : vector<400x4xf32>
    %cst_7 = arith.constant 1.000000e+00 : f32
    %11 = vector.broadcast %cst_7 : f32 to vector<400x4xf32>
    %12 = arith.divf %11, %10 : vector<400x4xf32>
    %c0_8 = arith.constant 0 : index
    %c0_9 = arith.constant 0 : index
    %13 = vector.load %arg4[%c0_8, %c0_9] : memref<400x4xf32, #tpu.memory_space<vmem>>, vector<400x4xf32>
    tpu.vector_store %arg4[%c0_8, %c0_9], %12 {strides = array<i32>} : memref<400x4xf32, #tpu.memory_space<vmem>>, vector<400x4xf32>,
    return
  }
  func.func @transform_0(%arg0: i32) -> (i32, i32) {
    %c0_i32 = arith.constant 0 : i32
    %c0_i32_0 = arith.constant 0 : i32
    return %arg0, %c0_i32 : i32, i32
  }
  func.func @transform_1(%arg0: i32) -> (i32, i32) {
    %c0_i32 = arith.constant 0 : i32
    %c0_i32_0 = arith.constant 0 : i32
    %c0_i32_1 = arith.constant 0 : i32
    return %c0_i32, %c0_i32_0 : i32, i32
  }
  func.func @transform_2(%arg0: i32) -> (i32, i32) {
    %c0_i32 = arith.constant 0 : i32
    %c0_i32_0 = arith.constant 0 : i32
    %c0_i32_1 = arith.constant 0 : i32
    return %c0_i32, %c0_i32_0 : i32, i32
  }
  func.func @transform_3(%arg0: i32) -> (i32, i32) {
    %c0_i32 = arith.constant 0 : i32
    %c0_i32_0 = arith.constant 0 : i32
    return %arg0, %c0_i32 : i32, i32
  }
}

</mosaic_0001>

<llo_original>
// kernel: vae_forward.5
$region0: #{vae_forward.5}
  #allocation0 [shape = 'u32[]', space=smem, size = 0x4, offset = 0x4, fixed_abs, tag = 'smem constant byte address 0x4 - core index']
  #allocation1 [shape = 'u32[144,128]{1,0:T(1,128)}', space=vmem, size = 0x12000, scoped, tag = 'internal scratch']
  %s0 = inlined_call_operand.vmem [shape: bf16[400,16], index: 0, kind: input, shape index: {}]
  %s1 = inlined_call_operand.hbm [shape: bf16[16,32], index: 1, kind: input, shape index: {}]
  %s2 = inlined_call_operand.hbm [shape: f32[1,32], index: 2, kind: input, shape index: {}]
  %s3 = inlined_call_operand.vmem [shape: bf16[400,32], index: 3, kind: output, shape index: {}]
  %s4 = sld [smem:[#allocation0]]
  $region30: #{vae_forward.5} parent=0
    _
  %s6 = ssub.s32 1, %s4
  %s7 = scalar_select 0, %s6, %s4
  $region1: #{vae_forward.5} parent=0
    #allocation2 [shape = 'u8[4096]{0}', space=vmem, size = 0x1000, scoped, tag = 'input window, operand 1, single buffered']
    #allocation3 [shape = 's32[1]{0}', space=sflag, size = 0x4, scoped, tag = 'scoped memory for vae_forward.5']
    #allocation4 [shape = 'u8[512]{0}', space=vmem, size = 0x400, scoped, tag = 'input window, operand 2, single buffered']
    #allocation5 [shape = 's32[1]{0}', space=sflag, size = 0x4, scoped, tag = 'scoped memory for vae_forward.5']
    %8 = vsyncpa [#allocation3], 0
    %9 = vsyncpa [#allocation5], 0
    // Predicated region
    $region2: #{vae_forward.5} parent=1 // pred_check
      _
    $region3: #{vae_forward.5} parent=1 // pred_check_branch
      %11 = sbr.rel (0) target = $region5
    $region4: #{vae_forward.5} parent=1 // pred_region
      _
    $region5: #{vae_forward.5} parent=1 // pred_fallthru
      _
    // Predicated region
    $region6: #{vae_forward.5} parent=1 // pred_check
      _
    $region7: #{vae_forward.5} parent=1 // pred_check_branch
      %13 = sbr.rel (0) target = $region9
    $region8: #{vae_forward.5} parent=1 // pred_region
      %s15 = ssub.s32 128, 128
      %16 = vsyncadd [#allocation3], %s15
      %s17 = sshll.u32 [#allocation2], 4
      %s18 = int_to_ptr.vmem [resolvable:$true] %s17
      %23 = dma.hbm_to_vmem [thread:$0]  %s1, 128, %s18, [#allocation3], 64, 64, 4
    $region9: #{vae_forward.5} parent=1 // pred_fallthru
      _
    // Predicated region
    $region10: #{vae_forward.5} parent=1 // pred_check
      _
    $region11: #{vae_forward.5} parent=1 // pred_check_branch
      %25 = sbr.rel (0) target = $region13
    $region12: #{vae_forward.5} parent=1 // pred_region
      %s27 = ssub.s32 16, 16
      %28 = vsyncadd [#allocation5], %s27
      %s30 = sshll.u32 [#allocation4], 4
      %s31 = int_to_ptr.vmem [resolvable:$true] %s30
      %33 = dma.hbm_to_vmem [thread:$0]  %s2, 16, %s31, [#allocation5]
    $region13: #{vae_forward.5} parent=1 // pred_fallthru
      _
    // Predicated region
    $region14: #{vae_forward.5} parent=1 // pred_check
      _
    $region15: #{vae_forward.5} parent=1 // pred_check_branch
      %35 = sbr.rel (0) target = $region17
    $region16: #{vae_forward.5} parent=1 // pred_region
      %36 = dma.done [#allocation3], 128
    $region17: #{vae_forward.5} parent=1 // pred_fallthru
      _
    // Predicated region
    $region18: #{vae_forward.5} parent=1 // pred_check
      _
    $region19: #{vae_forward.5} parent=1 // pred_check_branch
      %38 = sbr.rel (0) target = $region21
    $region20: #{vae_forward.5} parent=1 // pred_region
      %39 = dma.done [#allocation5], 16
    $region21: #{vae_forward.5} parent=1 // pred_fallthru
      _
    %v41 = vld [vmem:[%s0] sm:$0xf]
    %v42 = vld [vmem:[%s0 + $0x4] sm:$0xf]
    %v43 = vld [vmem:[%s0 + $0x8] sm:$0xf]
    %v44 = vld [vmem:[%s0 + $0xc] sm:$0xf]
    %v45 = vld [vmem:[%s0 + $0x10] sm:$0xf]
    %v46 = vld [vmem:[%s0 + $0x14] sm:$0xf]
    %v47 = vld [vmem:[%s0 + $0x18] sm:$0xf]
    %v48 = vld [vmem:[%s0 + $0x1c] sm:$0xf]
    %v49 = vld [vmem:[%s0 + $0x20] sm:$0xf]
    %v50 = vld [vmem:[%s0 + $0x24] sm:$0xf]
    %v51 = vld [vmem:[%s0 + $0x28] sm:$0xf]
    %v52 = vld [vmem:[%s0 + $0x2c] sm:$0xf]
    %v53 = vld [vmem:[%s0 + $0x30] sm:$0xf]
    %v54 = vld [vmem:[%s0 + $0x34] sm:$0xf]
    %v55 = vld [vmem:[%s0 + $0x38] sm:$0xf]
    %v56 = vld [vmem:[%s0 + $0x3c] sm:$0xf]
    %v57 = vld [vmem:[%s0 + $0x40] sm:$0xf]
    %v58 = vld [vmem:[%s0 + $0x44] sm:$0xf]
    %v59 = vld [vmem:[%s0 + $0x48] sm:$0xf]
    %v60 = vld [vmem:[%s0 + $0x4c] sm:$0xf]
    %v61 = vld [vmem:[%s0 + $0x50] sm:$0xf]
    %v62 = vld [vmem:[%s0 + $0x54] sm:$0xf]
    %v63 = vld [vmem:[%s0 + $0x58] sm:$0xf]
    %v64 = vld [vmem:[%s0 + $0x5c] sm:$0xf]
    %v65 = vld [vmem:[%s0 + $0x60] sm:$0xf]
    %v66 = vld [vmem:[%s0 + $0x64] sm:$0xf]
    %v67 = vld [vmem:[%s0 + $0x68] sm:$0xf]
    %v68 = vld [vmem:[%s0 + $0x6c] sm:$0xf]
    %v69 = vld [vmem:[%s0 + $0x70] sm:$0xf]
    %v70 = vld [vmem:[%s0 + $0x74] sm:$0xf]
    %v71 = vld [vmem:[%s0 + $0x78] sm:$0xf]
    %v72 = vld [vmem:[%s0 + $0x7c] sm:$0xf]
    %v73 = vld [vmem:[%s0 + $0x80] sm:$0xf]
    %v74 = vld [vmem:[%s0 + $0x84] sm:$0xf]
    %v75 = vld [vmem:[%s0 + $0x88] sm:$0xf]
    %v76 = vld [vmem:[%s0 + $0x8c] sm:$0xf]
    %v77 = vld [vmem:[%s0 + $0x90] sm:$0xf]
    %v78 = vld [vmem:[%s0 + $0x94] sm:$0xf]
    %v79 = vld [vmem:[%s0 + $0x98] sm:$0xf]
    %v80 = vld [vmem:[%s0 + $0x9c] sm:$0xf]
    %v81 = vld [vmem:[%s0 + $0xa0] sm:$0xf]
    %v82 = vld [vmem:[%s0 + $0xa4] sm:$0xf]
    %v83 = vld [vmem:[%s0 + $0xa8] sm:$0xf]
    %v84 = vld [vmem:[%s0 + $0xac] sm:$0xf]
    %v85 = vld [vmem:[%s0 + $0xb0] sm:$0xf]
    %v86 = vld [vmem:[%s0 + $0xb4] sm:$0xf]
    %v87 = vld [vmem:[%s0 + $0xb8] sm:$0xf]
    %v88 = vld [vmem:[%s0 + $0xbc] sm:$0xf]
    %v89 = vld [vmem:[%s0 + $0xc0] sm:$0xf]
    %v90 = vld [vmem:[%s0 + $0xc4] sm:$0xf]
    %v91 = vld [vmem:[#allocation2] sm:$0xf]
    %v92 = vld [vmem:[#allocation2 + $0x4] sm:$0xf]
    %v93 = vld [vmem:[#allocation4] sm:$0x1]
    %v95 = vlaneseq
    %v96 = vshrl.u32 %v95, 7
    %v97 = vsub.s32 0, %v96
    %v98 = vrot.slane %v93, %v97
    %v150 = vunpack.c.l.b16 %v41
    %v151 = vunpack.c.l.b16 %v42
    %v152 = vunpack.c.l.b16 %v43
    %v153 = vunpack.c.l.b16 %v44
    %v154 = vunpack.c.l.b16 %v45
    %v155 = vunpack.c.l.b16 %v46
    %v156 = vunpack.c.l.b16 %v47
    %v157 = vunpack.c.l.b16 %v48
    %v158 = vunpack.c.l.b16 %v49
    %v159 = vunpack.c.l.b16 %v50
    %v160 = vunpack.c.l.b16 %v51
    %v161 = vunpack.c.l.b16 %v52
    %v162 = vunpack.c.l.b16 %v53
    %v163 = vunpack.c.l.b16 %v54
    %v164 = vunpack.c.l.b16 %v55
    %v165 = vunpack.c.l.b16 %v56
    %v166 = vunpack.c.l.b16 %v57
    %v167 = vunpack.c.l.b16 %v58
    %v168 = vunpack.c.l.b16 %v59
    %v169 = vunpack.c.l.b16 %v60
    %v170 = vunpack.c.l.b16 %v61
    %v171 = vunpack.c.l.b16 %v62
    %v172 = vunpack.c.l.b16 %v63
    %v173 = vunpack.c.l.b16 %v64
    %v174 = vunpack.c.l.b16 %v65
    %v175 = vunpack.c.l.b16 %v66
    %v176 = vunpack.c.l.b16 %v67
    %v177 = vunpack.c.l.b16 %v68
    %v178 = vunpack.c.l.b16 %v69
    %v179 = vunpack.c.l.b16 %v70
    %v180 = vunpack.c.l.b16 %v71
    %v181 = vunpack.c.l.b16 %v72
    %v182 = vunpack.c.l.b16 %v73
    %v183 = vunpack.c.l.b16 %v74
    %v184 = vunpack.c.l.b16 %v75
    %v185 = vunpack.c.l.b16 %v76
    %v186 = vunpack.c.l.b16 %v77
    %v187 = vunpack.c.l.b16 %v78
    %v188 = vunpack.c.l.b16 %v79
    %v189 = vunpack.c.l.b16 %v80
    %v190 = vunpack.c.l.b16 %v81
    %v191 = vunpack.c.l.b16 %v82
    %v192 = vunpack.c.l.b16 %v83
    %v193 = vunpack.c.l.b16 %v84
    %v194 = vunpack.c.l.b16 %v85
    %v195 = vunpack.c.l.b16 %v86
    %v196 = vunpack.c.l.b16 %v87
    %v197 = vunpack.c.l.b16 %v88
    %v198 = vunpack.c.l.b16 %v89
    %v199 = vunpack.c.l.b16 %v90
    %v200 = vpack.c.b16 %v151, %v150
    %v201 = vpack.c.b16 %v153, %v152
    %v202 = vpack.c.b16 %v155, %v154
    %v203 = vpack.c.b16 %v157, %v156
    %v204 = vpack.c.b16 %v159, %v158
    %v205 = vpack.c.b16 %v161, %v160
    %v206 = vpack.c.b16 %v163, %v162
    %v207 = vpack.c.b16 %v165, %v164
    %v208 = vpack.c.b16 %v167, %v166
    %v209 = vpack.c.b16 %v169, %v168
    %v210 = vpack.c.b16 %v171, %v170
    %v211 = vpack.c.b16 %v173, %v172
    %v212 = vpack.c.b16 %v175, %v174
    %v213 = vpack.c.b16 %v177, %v176
    %v214 = vpack.c.b16 %v179, %v178
    %v215 = vpack.c.b16 %v181, %v180
    %v216 = vpack.c.b16 %v183, %v182
    %v217 = vpack.c.b16 %v185, %v184
    %v218 = vpack.c.b16 %v187, %v186
    %v219 = vpack.c.b16 %v189, %v188
    %v220 = vpack.c.b16 %v191, %v190
    %v221 = vpack.c.b16 %v193, %v192
    %v222 = vpack.c.b16 %v195, %v194
    %v223 = vpack.c.b16 %v197, %v196
    %v224 = vpack.c.b16 %v199, %v198
    %v227 = vunpack.c.l.b16 %v91
    %v228 = vunpack.c.l.b16 %v92
    %v229 = vpack.c.b16 %v228, %v227
    %vm231 = vcmask 130048
    %v233 = vsel %vm231, %v200, 0
    %v236 = vsel %vm231, %v201, 0
    %v239 = vsel %vm231, %v202, 0
    %v242 = vsel %vm231, %v203, 0
    %v245 = vsel %vm231, %v204, 0
    %v248 = vsel %vm231, %v205, 0
    %v251 = vsel %vm231, %v206, 0
    %v254 = vsel %vm231, %v207, 0
    %v257 = vsel %vm231, %v208, 0
    %v260 = vsel %vm231, %v209, 0
    %v263 = vsel %vm231, %v210, 0
    %v266 = vsel %vm231, %v211, 0
    %v269 = vsel %vm231, %v212, 0
    %v272 = vsel %vm231, %v213, 0
    %v275 = vsel %vm231, %v214, 0
    %v278 = vsel %vm231, %v215, 0
    %v281 = vsel %vm231, %v216, 0
    %v284 = vsel %vm231, %v217, 0
    %v287 = vsel %vm231, %v218, 0
    %v290 = vsel %vm231, %v219, 0
    %v293 = vsel %vm231, %v220, 0
    %v296 = vsel %vm231, %v221, 0
    %v299 = vsel %vm231, %v222, 0
    %v302 = vsel %vm231, %v223, 0
    %v305 = vsel %vm231, %v224, 0
    %307 = vmatprep.subr.bf16.mxu0 0
    %308 = vmatpush1.bf16.msra.mxu0 %v229
    %309 = vmatprep.subr.bf16.mxu0 0
    %310 = vmatpush1.bf16.msra.mxu0 0
    %311 = vmatprep.subr.bf16.mxu0 0
    %312 = vmatpush1.bf16.msra.mxu0 0
    %313 = vmatprep.subr.bf16.mxu0 0
    %314 = vmatpush1.bf16.msra.mxu0 0
    %315 = vmatprep.subr.bf16.mxu0 0
    %316 = vmatpush1.bf16.msra.mxu0 0
    %317 = vmatprep.subr.bf16.mxu0 0
    %318 = vmatpush1.bf16.msra.mxu0 0
    %319 = vmatprep.subr.bf16.mxu0 0
    %320 = vmatpush1.bf16.msra.mxu0 0
    %321 = vmatprep.subr.bf16.mxu0 0
    %322 = vmatpush1.bf16.msra.mxu0 0
    %323 = vmatprep.subr.bf16.mxu0 0
    %324 = vmatpush1.bf16.msra.mxu0 0
    %325 = vmatprep.subr.bf16.mxu0 0
    %326 = vmatpush1.bf16.msra.mxu0 0
    %327 = vmatprep.subr.bf16.mxu0 0
    %328 = vmatpush1.bf16.msra.mxu0 0
    %329 = vmatprep.subr.bf16.mxu0 0
    %330 = vmatpush1.bf16.msra.mxu0 0
    %331 = vmatprep.subr.bf16.mxu0 0
    %332 = vmatpush1.bf16.msra.mxu0 0
    %333 = vmatprep.subr.bf16.mxu0 0
    %334 = vmatpush1.bf16.msra.mxu0 0
    %335 = vmatprep.subr.bf16.mxu0 0
    %336 = vmatpush1.bf16.msra.mxu0 0
    %337 = vmatprep.subr.bf16.mxu0 0
    %338 = vmatpush1.bf16.msra.mxu0 0
    %339 = vmatprep.mubr.bf16.mxu0 0
    %340 = vmatmul.mubr.bf16.gmra.mrb[0].mxu0 %v233
    %v341 = vpop.f32.mrb[0].mxu0
    %v342 = vadd.f32 %v98, %v341
    %v343 = vpop.f32.mrb[0].mxu0
    %v344 = vpop.f32.mrb[0].mxu0
    %v345 = vadd.f32 %v98, %v344
    %v346 = vpop.f32.mrb[0].mxu0
    %347 = vmatprep.mubr.bf16.mxu0 0
    %348 = vmatmul.mubr.bf16.gmra.mrb[0].mxu0 %v236
    %v349 = vpop.f32.mrb[0].mxu0
    %v350 = vadd.f32 %v98, %v349
    %v351 = vpop.f32.mrb[0].mxu0
    %v352 = vpop.f32.mrb[0].mxu0
    %v353 = vadd.f32 %v98, %v352
    %v354 = vpop.f32.mrb[0].mxu0
    %355 = vmatprep.mubr.bf16.mxu0 0
    %356 = vmatmul.mubr.bf16.gmra.mrb[0].mxu0 %v239
    %v357 = vpop.f32.mrb[0].mxu0
    %v358 = vadd.f32 %v98, %v357
    %v359 = vpop.f32.mrb[0].mxu0
    %v360 = vpop.f32.mrb[0].mxu0
    %v361 = vadd.f32 %v98, %v360
    %v362 = vpop.f32.mrb[0].mxu0
    %363 = vmatprep.mubr.bf16.mxu0 0
    %364 = vmatmul.mubr.bf16.gmra.mrb[0].mxu0 %v242
    %v365 = vpop.f32.mrb[0].mxu0
    %v366 = vadd.f32 %v98, %v365
    %v367 = vpop.f32.mrb[0].mxu0
    %v368 = vpop.f32.mrb[0].mxu0
    %v369 = vadd.f32 %v98, %v368
    %v370 = vpop.f32.mrb[0].mxu0
    %371 = vmatprep.mubr.bf16.mxu0 0
    %372 = vmatmul.mubr.bf16.gmra.mrb[0].mxu0 %v245
    %v373 = vpop.f32.mrb[0].mxu0
    %v374 = vadd.f32 %v98, %v373
    %v375 = vpop.f32.mrb[0].mxu0
    %v376 = vpop.f32.mrb[0].mxu0
    %v377 = vadd.f32 %v98, %v376
    %v378 = vpop.f32.mrb[0].mxu0
    %379 = vmatprep.mubr.bf16.mxu0 0
    %380 = vmatmul.mubr.bf16.gmra.mrb[0].mxu0 %v248
    %v381 = vpop.f32.mrb[0].mxu0
    %v382 = vadd.f32 %v98, %v381
    %v383 = vpop.f32.mrb[0].mxu0
    %v384 = vpop.f32.mrb[0].mxu0
    %v385 = vadd.f32 %v98, %v384
    %v386 = vpop.f32.mrb[0].mxu0
    %387 = vmatprep.mubr.bf16.mxu0 0
    %388 = vmatmul.mubr.bf16.gmra.mrb[0].mxu0 %v251
    %v389 = vpop.f32.mrb[0].mxu0
    %v390 = vadd.f32 %v98, %v389
    %v391 = vpop.f32.mrb[0].mxu0
    %v392 = vpop.f32.mrb[0].mxu0
    %v393 = vadd.f32 %v98, %v392
    %v394 = vpop.f32.mrb[0].mxu0
    %395 = vmatprep.mubr.bf16.mxu0 0
    %396 = vmatmul.mubr.bf16.gmra.mrb[0].mxu0 %v254
    %v397 = vpop.f32.mrb[0].mxu0
    %v398 = vadd.f32 %v98, %v397
    %v399 = vpop.f32.mrb[0].mxu0
    %v400 = vpop.f32.mrb[0].mxu0
    %v401 = vadd.f32 %v98, %v400
    %v402 = vpop.f32.mrb[0].mxu0
    %403 = vmatprep.mubr.bf16.mxu0 0
    %404 = vmatmul.mubr.bf16.gmra.mrb[0].mxu0 %v257
    %v405 = vpop.f32.mrb[0].mxu0
    %v406 = vadd.f32 %v98, %v405
    %v407 = vpop.f32.mrb[0].mxu0
    %v408 = vpop.f32.mrb[0].mxu0
    %v409 = vadd.f32 %v98, %v408
    %v410 = vpop.f32.mrb[0].mxu0
    %411 = vmatprep.mubr.bf16.mxu0 0
    %412 = vmatmul.mubr.bf16.gmra.mrb[0].mxu0 %v260
    %v413 = vpop.f32.mrb[0].mxu0
    %v414 = vadd.f32 %v98, %v413
    %v415 = vpop.f32.mrb[0].mxu0
    %v416 = vpop.f32.mrb[0].mxu0
    %v417 = vadd.f32 %v98, %v416
    %v418 = vpop.f32.mrb[0].mxu0
    %419 = vmatprep.mubr.bf16.mxu0 0
    %420 = vmatmul.mubr.bf16.gmra.mrb[0].mxu0 %v263
    %v421 = vpop.f32.mrb[0].mxu0
    %v422 = vadd.f32 %v98, %v421
    %v423 = vpop.f32.mrb[0].mxu0
    %v424 = vpop.f32.mrb[0].mxu0
    %v425 = vadd.f32 %v98, %v424
    %v426 = vpop.f32.mrb[0].mxu0
    %427 = vmatprep.mubr.bf16.mxu0 0
    %428 = vmatmul.mubr.bf16.gmra.mrb[0].mxu0 %v266
    %v429 = vpop.f32.mrb[0].mxu0
    %v430 = vadd.f32 %v98, %v429
    %v431 = vpop.f32.mrb[0].mxu0
    %v432 = vpop.f32.mrb[0].mxu0
    %v433 = vadd.f32 %v98, %v432
    %v434 = vpop.f32.mrb[0].mxu0
    %435 = vmatprep.mubr.bf16.mxu0 0
    %436 = vmatmul.mubr.bf16.gmra.mrb[0].mxu0 %v269
    %v437 = vpop.f32.mrb[0].mxu0
    %v438 = vadd.f32 %v98, %v437
    %v439 = vpop.f32.mrb[0].mxu0
    %v440 = vpop.f32.mrb[0].mxu0
    %v441 = vadd.f32 %v98, %v440
    %v442 = vpop.f32.mrb[0].mxu0
    %443 = vmatprep.mubr.bf16.mxu0 0
    %444 = vmatmul.mubr.bf16.gmra.mrb[0].mxu0 %v272
    %v445 = vpop.f32.mrb[0].mxu0
    %v446 = vadd.f32 %v98, %v445
    %v447 = vpop.f32.mrb[0].mxu0
    %v448 = vpop.f32.mrb[0].mxu0
    %v449 = vadd.f32 %v98, %v448
    %v450 = vpop.f32.mrb[0].mxu0
    %451 = vmatprep.mubr.bf16.mxu0 0
    %452 = vmatmul.mubr.bf16.gmra.mrb[0].mxu0 %v275
    %v453 = vpop.f32.mrb[0].mxu0
    %v454 = vadd.f32 %v98, %v453
    %v455 = vpop.f32.mrb[0].mxu0
    %v456 = vpop.f32.mrb[0].mxu0
    %v457 = vadd.f32 %v98, %v456
    %v458 = vpop.f32.mrb[0].mxu0
    %459 = vmatprep.mubr.bf16.mxu0 0
    %460 = vmatmul.mubr.bf16.gmra.mrb[0].mxu0 %v278
    %v461 = vpop.f32.mrb[0].mxu0
    %v462 = vadd.f32 %v98, %v461
    %v463 = vpop.f32.mrb[0].mxu0
    %v464 = vpop.f32.mrb[0].mxu0
    %v465 = vadd.f32 %v98, %v464
    %v466 = vpop.f32.mrb[0].mxu0
    %467 = vmatprep.mubr.bf16.mxu0 0
    %468 = vmatmul.mubr.bf16.gmra.mrb[0].mxu0 %v281
    %v469 = vpop.f32.mrb[0].mxu0
    %v470 = vadd.f32 %v98, %v469
    %v471 = vpop.f32.mrb[0].mxu0
    %v472 = vpop.f32.mrb[0].mxu0
    %v473 = vadd.f32 %v98, %v472
    %v474 = vpop.f32.mrb[0].mxu0
    %475 = vmatprep.mubr.bf16.mxu0 0
    %476 = vmatmul.mubr.bf16.gmra.mrb[0].mxu0 %v284
    %v477 = vpop.f32.mrb[0].mxu0
    %v478 = vadd.f32 %v98, %v477
    %v479 = vpop.f32.mrb[0].mxu0
    %v480 = vpop.f32.mrb[0].mxu0
    %v481 = vadd.f32 %v98, %v480
    %v482 = vpop.f32.mrb[0].mxu0
    %483 = vmatprep.mubr.bf16.mxu0 0
    %484 = vmatmul.mubr.bf16.gmra.mrb[0].mxu0 %v287
    %v485 = vpop.f32.mrb[0].mxu0
    %v486 = vadd.f32 %v98, %v485
    %v487 = vpop.f32.mrb[0].mxu0
    %v488 = vpop.f32.mrb[0].mxu0
    %v489 = vadd.f32 %v98, %v488
    %v490 = vpop.f32.mrb[0].mxu0
    %491 = vmatprep.mubr.bf16.mxu0 0
    %492 = vmatmul.mubr.bf16.gmra.mrb[0].mxu0 %v290
    %v493 = vpop.f32.mrb[0].mxu0
    %v494 = vadd.f32 %v98, %v493
    %v495 = vpop.f32.mrb[0].mxu0
    %v496 = vpop.f32.mrb[0].mxu0
    %v497 = vadd.f32 %v98, %v496
    %v498 = vpop.f32.mrb[0].mxu0
    %499 = vmatprep.mubr.bf16.mxu0 0
    %500 = vmatmul.mubr.bf16.gmra.mrb[0].mxu0 %v293
    %v501 = vpop.f32.mrb[0].mxu0
    %v502 = vadd.f32 %v98, %v501
    %v503 = vpop.f32.mrb[0].mxu0
    %v504 = vpop.f32.mrb[0].mxu0
    %v505 = vadd.f32 %v98, %v504
    %v506 = vpop.f32.mrb[0].mxu0
    %507 = vmatprep.mubr.bf16.mxu0 0
    %508 = vmatmul.mubr.bf16.gmra.mrb[0].mxu0 %v296
    %v509 = vpop.f32.mrb[0].mxu0
    %v510 = vadd.f32 %v98, %v509
    %v511 = vpop.f32.mrb[0].mxu0
    %v512 = vpop.f32.mrb[0].mxu0
    %v513 = vadd.f32 %v98, %v512
    %v514 = vpop.f32.mrb[0].mxu0
    %515 = vmatprep.mubr.bf16.mxu0 0
    %516 = vmatmul.mubr.bf16.gmra.mrb[0].mxu0 %v299
    %v517 = vpop.f32.mrb[0].mxu0
    %v518 = vadd.f32 %v98, %v517
    %v519 = vpop.f32.mrb[0].mxu0
    %v520 = vpop.f32.mrb[0].mxu0
    %v521 = vadd.f32 %v98, %v520
    %v522 = vpop.f32.mrb[0].mxu0
    %523 = vmatprep.mubr.bf16.mxu0 0
    %524 = vmatmul.mubr.bf16.gmra.mrb[0].mxu0 %v302
    %v525 = vpop.f32.mrb[0].mxu0
    %v526 = vadd.f32 %v98, %v525
    %v527 = vpop.f32.mrb[0].mxu0
    %v528 = vpop.f32.mrb[0].mxu0
    %v529 = vadd.f32 %v98, %v528
    %v530 = vpop.f32.mrb[0].mxu0
    %531 = vmatprep.mubr.bf16.mxu0 0
    %532 = vmatmul.mubr.bf16.gmra.mrb[0].mxu0 %v305
    %v533 = vpop.f32.mrb[0].mxu0
    %v534 = vadd.f32 %v98, %v533
    %v535 = vpop.f32.mrb[0].mxu0
    %v536 = vpop.f32.mrb[0].mxu0
    %v537 = vadd.f32 %v98, %v536
    %v538 = vpop.f32.mrb[0].mxu0
    %539 = vdwg.mxu0
    %vm540 = vcmp.ge.f32.partialorder %v342, 0.0
    %vm541 = vcmp.ge.f32.partialorder %v345, 0.0
    %vm542 = vcmp.ge.f32.partialorder %v350, 0.0
    %vm543 = vcmp.ge.f32.partialorder %v353, 0.0
    %vm544 = vcmp.ge.f32.partialorder %v358, 0.0
    %vm545 = vcmp.ge.f32.partialorder %v361, 0.0
    %vm546 = vcmp.ge.f32.partialorder %v366, 0.0
    %vm547 = vcmp.ge.f32.partialorder %v369, 0.0
    %vm548 = vcmp.ge.f32.partialorder %v374, 0.0
    %vm549 = vcmp.ge.f32.partialorder %v377, 0.0
    %vm550 = vcmp.ge.f32.partialorder %v382, 0.0
    %vm551 = vcmp.ge.f32.partialorder %v385, 0.0
    %vm552 = vcmp.ge.f32.partialorder %v390, 0.0
    %vm553 = vcmp.ge.f32.partialorder %v393, 0.0
    %vm554 = vcmp.ge.f32.partialorder %v398, 0.0
    %vm555 = vcmp.ge.f32.partialorder %v401, 0.0
    %vm556 = vcmp.ge.f32.partialorder %v406, 0.0
    %vm557 = vcmp.ge.f32.partialorder %v409, 0.0
    %vm558 = vcmp.ge.f32.partialorder %v414, 0.0
    %vm559 = vcmp.ge.f32.partialorder %v417, 0.0
    %vm560 = vcmp.ge.f32.partialorder %v422, 0.0
    %vm561 = vcmp.ge.f32.partialorder %v425, 0.0
    %vm562 = vcmp.ge.f32.partialorder %v430, 0.0
    %vm563 = vcmp.ge.f32.partialorder %v433, 0.0
    %vm564 = vcmp.ge.f32.partialorder %v438, 0.0
    %vm565 = vcmp.ge.f32.partialorder %v441, 0.0
    %vm566 = vcmp.ge.f32.partialorder %v446, 0.0
    %vm567 = vcmp.ge.f32.partialorder %v449, 0.0
    %vm568 = vcmp.ge.f32.partialorder %v454, 0.0
    %vm569 = vcmp.ge.f32.partialorder %v457, 0.0
    %vm570 = vcmp.ge.f32.partialorder %v462, 0.0
    %vm571 = vcmp.ge.f32.partialorder %v465, 0.0
    %vm572 = vcmp.ge.f32.partialorder %v470, 0.0
    %vm573 = vcmp.ge.f32.partialorder %v473, 0.0
    %vm574 = vcmp.ge.f32.partialorder %v478, 0.0
    %vm575 = vcmp.ge.f32.partialorder %v481, 0.0
    %vm576 = vcmp.ge.f32.partialorder %v486, 0.0
    %vm577 = vcmp.ge.f32.partialorder %v489, 0.0
    %vm578 = vcmp.ge.f32.partialorder %v494, 0.0
    %vm579 = vcmp.ge.f32.partialorder %v497, 0.0
    %vm580 = vcmp.ge.f32.partialorder %v502, 0.0
    %vm581 = vcmp.ge.f32.partialorder %v505, 0.0
    %vm582 = vcmp.ge.f32.partialorder %v510, 0.0
    %vm583 = vcmp.ge.f32.partialorder %v513, 0.0
    %vm584 = vcmp.ge.f32.partialorder %v518, 0.0
    %vm585 = vcmp.ge.f32.partialorder %v521, 0.0
    %vm586 = vcmp.ge.f32.partialorder %v526, 0.0
    %vm587 = vcmp.ge.f32.partialorder %v529, 0.0
    %vm588 = vcmp.ge.f32.partialorder %v534, 0.0
    %vm589 = vcmp.ge.f32.partialorder %v537, 0.0
    %v590 = vmul.f32 %v342, 0.2
    %v591 = vmul.f32 %v345, 0.2
    %v592 = vmul.f32 %v350, 0.2
    %v593 = vmul.f32 %v353, 0.2
    %v594 = vmul.f32 %v358, 0.2
    %v595 = vmul.f32 %v361, 0.2
    %v596 = vmul.f32 %v366, 0.2
    %v597 = vmul.f32 %v369, 0.2
    %v598 = vmul.f32 %v374, 0.2
    %v599 = vmul.f32 %v377, 0.2
    %v600 = vmul.f32 %v382, 0.2
    %v601 = vmul.f32 %v385, 0.2
    %v602 = vmul.f32 %v390, 0.2
    %v603 = vmul.f32 %v393, 0.2
    %v604 = vmul.f32 %v398, 0.2
    %v605 = vmul.f32 %v401, 0.2
    %v606 = vmul.f32 %v406, 0.2
    %v607 = vmul.f32 %v409, 0.2
    %v608 = vmul.f32 %v414, 0.2
    %v609 = vmul.f32 %v417, 0.2
    %v610 = vmul.f32 %v422, 0.2
    %v611 = vmul.f32 %v425, 0.2
    %v612 = vmul.f32 %v430, 0.2
    %v613 = vmul.f32 %v433, 0.2
    %v614 = vmul.f32 %v438, 0.2
    %v615 = vmul.f32 %v441, 0.2
    %v616 = vmul.f32 %v446, 0.2
    %v617 = vmul.f32 %v449, 0.2
    %v618 = vmul.f32 %v454, 0.2
    %v619 = vmul.f32 %v457, 0.2
    %v620 = vmul.f32 %v462, 0.2
    %v621 = vmul.f32 %v465, 0.2
    %v622 = vmul.f32 %v470, 0.2
    %v623 = vmul.f32 %v473, 0.2
    %v624 = vmul.f32 %v478, 0.2
    %v625 = vmul.f32 %v481, 0.2
    %v626 = vmul.f32 %v486, 0.2
    %v627 = vmul.f32 %v489, 0.2
    %v628 = vmul.f32 %v494, 0.2
    %v629 = vmul.f32 %v497, 0.2
    %v630 = vmul.f32 %v502, 0.2
    %v631 = vmul.f32 %v505, 0.2
    %v632 = vmul.f32 %v510, 0.2
    %v633 = vmul.f32 %v513, 0.2
    %v634 = vmul.f32 %v518, 0.2
    %v635 = vmul.f32 %v521, 0.2
    %v636 = vmul.f32 %v526, 0.2
    %v637 = vmul.f32 %v529, 0.2
    %v638 = vmul.f32 %v534, 0.2
    %v639 = vmul.f32 %v537, 0.2
    %v640 = vsel %vm540, %v342, %v590
    %v641 = vsel %vm541, %v345, %v591
    %v642 = vsel %vm542, %v350, %v592
    %v643 = vsel %vm543, %v353, %v593
    %v644 = vsel %vm544, %v358, %v594
    %v645 = vsel %vm545, %v361, %v595
    %v646 = vsel %vm546, %v366, %v596
    %v647 = vsel %vm547, %v369, %v597
    %v648 = vsel %vm548, %v374, %v598
    %v649 = vsel %vm549, %v377, %v599
    %v650 = vsel %vm550, %v382, %v600
    %v651 = vsel %vm551, %v385, %v601
    %v652 = vsel %vm552, %v390, %v602
    %v653 = vsel %vm553, %v393, %v603
    %v654 = vsel %vm554, %v398, %v604
    %v655 = vsel %vm555, %v401, %v605
    %v656 = vsel %vm556, %v406, %v606
    %v657 = vsel %vm557, %v409, %v607
    %v658 = vsel %vm558, %v414, %v608
    %v659 = vsel %vm559, %v417, %v609
    %v660 = vsel %vm560, %v422, %v610
    %v661 = vsel %vm561, %v425, %v611
    %v662 = vsel %vm562, %v430, %v612
    %v663 = vsel %vm563, %v433, %v613
    %v664 = vsel %vm564, %v438, %v614
    %v665 = vsel %vm565, %v441, %v615
    %v666 = vsel %vm566, %v446, %v616
    %v667 = vsel %vm567, %v449, %v617
    %v668 = vsel %vm568, %v454, %v618
    %v669 = vsel %vm569, %v457, %v619
    %v670 = vsel %vm570, %v462, %v620
    %v671 = vsel %vm571, %v465, %v621
    %v672 = vsel %vm572, %v470, %v622
    %v673 = vsel %vm573, %v473, %v623
    %v674 = vsel %vm574, %v478, %v624
    %v675 = vsel %vm575, %v481, %v625
    %v676 = vsel %vm576, %v486, %v626
    %v677 = vsel %vm577, %v489, %v627
    %v678 = vsel %vm578, %v494, %v628
    %v679 = vsel %vm579, %v497, %v629
    %v680 = vsel %vm580, %v502, %v630
    %v681 = vsel %vm581, %v505, %v631
    %v682 = vsel %vm582, %v510, %v632
    %v683 = vsel %vm583, %v513, %v633
    %v684 = vsel %vm584, %v518, %v634
    %v685 = vsel %vm585, %v521, %v635
    %v686 = vsel %vm586, %v526, %v636
    %v687 = vsel %vm587, %v529, %v637
    %v688 = vsel %vm588, %v534, %v638
    %v689 = vsel %vm589, %v537, %v639
    %v690 = vpack.c.bf16 %v641, %v640
    %v691 = vpack.c.bf16 %v643, %v642
    %v692 = vpack.c.bf16 %v645, %v644
    %v693 = vpack.c.bf16 %v647, %v646
    %v694 = vpack.c.bf16 %v649, %v648
    %v695 = vpack.c.bf16 %v651, %v650
    %v696 = vpack.c.bf16 %v653, %v652
    %v697 = vpack.c.bf16 %v655, %v654
    %v698 = vpack.c.bf16 %v657, %v656
    %v699 = vpack.c.bf16 %v659, %v658
    %v700 = vpack.c.bf16 %v661, %v660
    %v701 = vpack.c.bf16 %v663, %v662
    %v702 = vpack.c.bf16 %v665, %v664
    %v703 = vpack.c.bf16 %v667, %v666
    %v704 = vpack.c.bf16 %v669, %v668
    %v705 = vpack.c.bf16 %v671, %v670
    %v706 = vpack.c.bf16 %v673, %v672
    %v707 = vpack.c.bf16 %v675, %v674
    %v708 = vpack.c.bf16 %v677, %v676
    %v709 = vpack.c.bf16 %v679, %v678
    %v710 = vpack.c.bf16 %v681, %v680
    %v711 = vpack.c.bf16 %v683, %v682
    %v712 = vpack.c.bf16 %v685, %v684
    %v713 = vpack.c.bf16 %v687, %v686
    %v714 = vpack.c.bf16 %v689, %v688
    %v740 = vunpack.c.l.b16 %v690
    %v741 = vunpack.c.h.b16 %v690
    %v742 = vunpack.c.l.b16 %v691
    %v743 = vunpack.c.h.b16 %v691
    %v744 = vunpack.c.l.b16 %v692
    %v745 = vunpack.c.h.b16 %v692
    %v746 = vunpack.c.l.b16 %v693
    %v747 = vunpack.c.h.b16 %v693
    %v748 = vunpack.c.l.b16 %v694
    %v749 = vunpack.c.h.b16 %v694
    %v750 = vunpack.c.l.b16 %v695
    %v751 = vunpack.c.h.b16 %v695
    %v752 = vunpack.c.l.b16 %v696
    %v753 = vunpack.c.h.b16 %v696
    %v754 = vunpack.c.l.b16 %v697
    %v755 = vunpack.c.h.b16 %v697
    %v756 = vunpack.c.l.b16 %v698
    %v757 = vunpack.c.h.b16 %v698
    %v758 = vunpack.c.l.b16 %v699
    %v759 = vunpack.c.h.b16 %v699
    %v760 = vunpack.c.l.b16 %v700
    %v761 = vunpack.c.h.b16 %v700
    %v762 = vunpack.c.l.b16 %v701
    %v763 = vunpack.c.h.b16 %v701
    %v764 = vunpack.c.l.b16 %v702
    %v765 = vunpack.c.h.b16 %v702
    %v766 = vunpack.c.l.b16 %v703
    %v767 = vunpack.c.h.b16 %v703
    %v768 = vunpack.c.l.b16 %v704
    %v769 = vunpack.c.h.b16 %v704
    %v770 = vunpack.c.l.b16 %v705
    %v771 = vunpack.c.h.b16 %v705
    %v772 = vunpack.c.l.b16 %v706
    %v773 = vunpack.c.h.b16 %v706
    %v774 = vunpack.c.l.b16 %v707
    %v775 = vunpack.c.h.b16 %v707
    %v776 = vunpack.c.l.b16 %v708
    %v777 = vunpack.c.h.b16 %v708
    %v778 = vunpack.c.l.b16 %v709
    %v779 = vunpack.c.h.b16 %v709
    %v780 = vunpack.c.l.b16 %v710
    %v781 = vunpack.c.h.b16 %v710
    %v782 = vunpack.c.l.b16 %v711
    %v783 = vunpack.c.h.b16 %v711
    %v784 = vunpack.c.l.b16 %v712
    %v785 = vunpack.c.h.b16 %v712
    %v786 = vunpack.c.l.b16 %v713
    %v787 = vunpack.c.h.b16 %v713
    %v788 = vunpack.c.l.b16 %v714
    %v789 = vunpack.c.h.b16 %v714
    %v790 = vpack.c.b16 %v740, %v740
    %v791 = vpack.c.b16 %v741, %v741
    %v792 = vpack.c.b16 %v742, %v742
    %v793 = vpack.c.b16 %v743, %v743
    %v794 = vpack.c.b16 %v744, %v744
    %v795 = vpack.c.b16 %v745, %v745
    %v796 = vpack.c.b16 %v746, %v746
    %v797 = vpack.c.b16 %v747, %v747
    %v798 = vpack.c.b16 %v748, %v748
    %v799 = vpack.c.b16 %v749, %v749
    %v800 = vpack.c.b16 %v750, %v750
    %v801 = vpack.c.b16 %v751, %v751
    %v802 = vpack.c.b16 %v752, %v752
    %v803 = vpack.c.b16 %v753, %v753
    %v804 = vpack.c.b16 %v754, %v754
    %v805 = vpack.c.b16 %v755, %v755
    %v806 = vpack.c.b16 %v756, %v756
    %v807 = vpack.c.b16 %v757, %v757
    %v808 = vpack.c.b16 %v758, %v758
    %v809 = vpack.c.b16 %v759, %v759
    %v810 = vpack.c.b16 %v760, %v760
    %v811 = vpack.c.b16 %v761, %v761
    %v812 = vpack.c.b16 %v762, %v762
    %v813 = vpack.c.b16 %v763, %v763
    %v814 = vpack.c.b16 %v764, %v764
    %v815 = vpack.c.b16 %v765, %v765
    %v816 = vpack.c.b16 %v766, %v766
    %v817 = vpack.c.b16 %v767, %v767
    %v818 = vpack.c.b16 %v768, %v768
    %v819 = vpack.c.b16 %v769, %v769
    %v820 = vpack.c.b16 %v770, %v770
    %v821 = vpack.c.b16 %v771, %v771
    %v822 = vpack.c.b16 %v772, %v772
    %v823 = vpack.c.b16 %v773, %v773
    %v824 = vpack.c.b16 %v774, %v774
    %v825 = vpack.c.b16 %v775, %v775
    %v826 = vpack.c.b16 %v776, %v776
    %v827 = vpack.c.b16 %v777, %v777
    %v828 = vpack.c.b16 %v778, %v778
    %v829 = vpack.c.b16 %v779, %v779
    %v830 = vpack.c.b16 %v780, %v780
    %v831 = vpack.c.b16 %v781, %v781
    %v832 = vpack.c.b16 %v782, %v782
    %v833 = vpack.c.b16 %v783, %v783
    %v834 = vpack.c.b16 %v784, %v784
    %v835 = vpack.c.b16 %v785, %v785
    %v836 = vpack.c.b16 %v786, %v786
    %v837 = vpack.c.b16 %v787, %v787
    %v838 = vpack.c.b16 %v788, %v788
    %v839 = vpack.c.b16 %v789, %v789
    %vm890 = vcmask 257024
    %891 = vst.msk [vmem:[%s3] sm:$0xf] %vm890, %v790
    %892 = vst.msk [vmem:[%s3 + $0x4] sm:$0xf] %vm890, %v791
    %893 = vst.msk [vmem:[%s3 + $0x8] sm:$0xf] %vm890, %v792
    %894 = vst.msk [vmem:[%s3 + $0xc] sm:$0xf] %vm890, %v793
    %895 = vst.msk [vmem:[%s3 + $0x10] sm:$0xf] %vm890, %v794
    %896 = vst.msk [vmem:[%s3 + $0x14] sm:$0xf] %vm890, %v795
    %897 = vst.msk [vmem:[%s3 + $0x18] sm:$0xf] %vm890, %v796
    %898 = vst.msk [vmem:[%s3 + $0x1c] sm:$0xf] %vm890, %v797
    %899 = vst.msk [vmem:[%s3 + $0x20] sm:$0xf] %vm890, %v798
    %900 = vst.msk [vmem:[%s3 + $0x24] sm:$0xf] %vm890, %v799
    %901 = vst.msk [vmem:[%s3 + $0x28] sm:$0xf] %vm890, %v800
    %902 = vst.msk [vmem:[%s3 + $0x2c] sm:$0xf] %vm890, %v801
    %903 = vst.msk [vmem:[%s3 + $0x30] sm:$0xf] %vm890, %v802
    %904 = vst.msk [vmem:[%s3 + $0x34] sm:$0xf] %vm890, %v803
    %905 = vst.msk [vmem:[%s3 + $0x38] sm:$0xf] %vm890, %v804
    %906 = vst.msk [vmem:[%s3 + $0x3c] sm:$0xf] %vm890, %v805
    %907 = vst.msk [vmem:[%s3 + $0x40] sm:$0xf] %vm890, %v806
    %908 = vst.msk [vmem:[%s3 + $0x44] sm:$0xf] %vm890, %v807
    %909 = vst.msk [vmem:[%s3 + $0x48] sm:$0xf] %vm890, %v808
    %910 = vst.msk [vmem:[%s3 + $0x4c] sm:$0xf] %vm890, %v809
    %911 = vst.msk [vmem:[%s3 + $0x50] sm:$0xf] %vm890, %v810
    %912 = vst.msk [vmem:[%s3 + $0x54] sm:$0xf] %vm890, %v811
    %913 = vst.msk [vmem:[%s3 + $0x58] sm:$0xf] %vm890, %v812
    %914 = vst.msk [vmem:[%s3 + $0x5c] sm:$0xf] %vm890, %v813
    %915 = vst.msk [vmem:[%s3 + $0x60] sm:$0xf] %vm890, %v814
    %916 = vst.msk [vmem:[%s3 + $0x64] sm:$0xf] %vm890, %v815
    %917 = vst.msk [vmem:[%s3 + $0x68] sm:$0xf] %vm890, %v816
    %918 = vst.msk [vmem:[%s3 + $0x6c] sm:$0xf] %vm890, %v817
    %919 = vst.msk [vmem:[%s3 + $0x70] sm:$0xf] %vm890, %v818
    %920 = vst.msk [vmem:[%s3 + $0x74] sm:$0xf] %vm890, %v819
    %921 = vst.msk [vmem:[%s3 + $0x78] sm:$0xf] %vm890, %v820
    %922 = vst.msk [vmem:[%s3 + $0x7c] sm:$0xf] %vm890, %v821
    %923 = vst.msk [vmem:[%s3 + $0x80] sm:$0xf] %vm890, %v822
    %924 = vst.msk [vmem:[%s3 + $0x84] sm:$0xf] %vm890, %v823
    %925 = vst.msk [vmem:[%s3 + $0x88] sm:$0xf] %vm890, %v824
    %926 = vst.msk [vmem:[%s3 + $0x8c] sm:$0xf] %vm890, %v825
    %927 = vst.msk [vmem:[%s3 + $0x90] sm:$0xf] %vm890, %v826
    %928 = vst.msk [vmem:[%s3 + $0x94] sm:$0xf] %vm890, %v827
    %929 = vst.msk [vmem:[%s3 + $0x98] sm:$0xf] %vm890, %v828
    %930 = vst.msk [vmem:[%s3 + $0x9c] sm:$0xf] %vm890, %v829
    %931 = vst.msk [vmem:[%s3 + $0xa0] sm:$0xf] %vm890, %v830
    %932 = vst.msk [vmem:[%s3 + $0xa4] sm:$0xf] %vm890, %v831
    %933 = vst.msk [vmem:[%s3 + $0xa8] sm:$0xf] %vm890, %v832
    %934 = vst.msk [vmem:[%s3 + $0xac] sm:$0xf] %vm890, %v833
    %935 = vst.msk [vmem:[%s3 + $0xb0] sm:$0xf] %vm890, %v834
    %936 = vst.msk [vmem:[%s3 + $0xb4] sm:$0xf] %vm890, %v835
    %937 = vst.msk [vmem:[%s3 + $0xb8] sm:$0xf] %vm890, %v836
    %938 = vst.msk [vmem:[%s3 + $0xbc] sm:$0xf] %vm890, %v837
    %939 = vst.msk [vmem:[%s3 + $0xc0] sm:$0xf] %vm890, %v838
    %940 = vst.msk [vmem:[%s3 + $0xc4] sm:$0xf] %vm890, %v839
    // Predicated region
    $region22: #{vae_forward.5} parent=1 // pred_check
      _
    $region23: #{vae_forward.5} parent=1 // pred_check_branch
      %942 = sbr.rel (0) target = $region25
    $region24: #{vae_forward.5} parent=1 // pred_region
      _
    $region25: #{vae_forward.5} parent=1 // pred_fallthru
      _
    // Predicated region
    $region26: #{vae_forward.5} parent=1 // pred_check
      _
    $region27: #{vae_forward.5} parent=1 // pred_check_branch
      %944 = sbr.rel (0) target = $region29
    $region28: #{vae_forward.5} parent=1 // pred_region
      _
    $region29: #{vae_forward.5} parent=1 // pred_fallthru
      _
    %945 = vsyncpa [#allocation3], 1
    %946 = vsyncpa [#allocation5], 1

// kernel: vae_forward.6
$region0: #{vae_forward.6}
  #allocation0 [shape = 'u32[]', space=smem, size = 0x4, offset = 0x4, fixed_abs, tag = 'smem constant byte address 0x4 - core index']
  #allocation1 [shape = 'u32[144,128]{1,0:T(1,128)}', space=vmem, size = 0x12000, scoped, tag = 'internal scratch']
  %s0 = inlined_call_operand.vmem [shape: bf16[112,512], index: 0, kind: input, shape index: {}]
  %s1 = inlined_call_operand.vmem [shape: bf16[512,64], index: 1, kind: input, shape index: {}]
  %s2 = inlined_call_operand.vmem [shape: f32[1,64], index: 2, kind: input, shape index: {}]
  %s3 = inlined_call_operand.vmem [shape: bf16[112,64], index: 3, kind: output, shape index: {}]
  %s4 = sld [smem:[#allocation0]]
  $region22: #{vae_forward.6} parent=0
    _
  %s6 = ssub.s32 1, %s4
  %s7 = scalar_select 0, %s6, %s4
  // Predicated region
  $region2: #{vae_forward.6} parent=0 // pred_check
    _
  $region3: #{vae_forward.6} parent=0 // pred_check_branch
    %9 = sbr.rel (0) target = $region5
  $region4: #{vae_forward.6} parent=0 // pred_region
    _
  $region5: #{vae_forward.6} parent=0 // pred_fallthru
    _
  // Predicated region
  $region6: #{vae_forward.6} parent=0 // pred_check
    _
  $region7: #{vae_forward.6} parent=0 // pred_check_branch
    %11 = sbr.rel (0) target = $region9
  $region8: #{vae_forward.6} parent=0 // pred_region
    _
  $region9: #{vae_forward.6} parent=0 // pred_fallthru
    _
  // Predicated region
  $region10: #{vae_forward.6} parent=0 // pred_check
    _
  $region11: #{vae_forward.6} parent=0 // pred_check_branch
    %13 = sbr.rel (0) target = $region13
  $region12: #{vae_forward.6} parent=0 // pred_region
    _
  $region13: #{vae_forward.6} parent=0 // pred_fallthru
    _
  %v15 = vld [vmem:[%s0] sm:$0xff]
  %v16 = vld [vmem:[%s0 + $0x8] sm:$0xff]
  %v17 = vld [vmem:[%s0 + $0x10] sm:$0xff]
  %v18 = vld [vmem:[%s0 + $0x18] sm:$0xff]
  %v19 = vld [vmem:[%s0 + $0x20] sm:$0xff]
  %v20 = vld [vmem:[%s0 + $0x28] sm:$0xff]
  %v21 = vld [vmem:[%s0 + $0x30] sm:$0xff]
  %v22 = vld [vmem:[%s0 + $0x38] sm:$0xff]
  %v23 = vld [vmem:[%s0 + $0x40] sm:$0xff]
  %v24 = vld [vmem:[%s0 + $0x48] sm:$0xff]
  %v25 = vld [vmem:[%s0 + $0x50] sm:$0xff]
  %v26 = vld [vmem:[%s0 + $0x58] sm:$0xff]
  %v27 = vld [vmem:[%s0 + $0x60] sm:$0xff]
  %v28 = vld [vmem:[%s0 + $0x68] sm:$0xff]
  %v29 = vld [vmem:[%s0 + $0x70] sm:$0xff]
  %v30 = vld [vmem:[%s0 + $0x78] sm:$0xff]
  %v31 = vld [vmem:[%s0 + $0x80] sm:$0xff]
  %v32 = vld [vmem:[%s0 + $0x88] sm:$0xff]
  %v33 = vld [vmem:[%s0 + $0x90] sm:$0xff]
  %v34 = vld [vmem:[%s0 + $0x98] sm:$0xff]
  %v35 = vld [vmem:[%s0 + $0xa0] sm:$0xff]
  %v36 = vld [vmem:[%s0 + $0xa8] sm:$0xff]
  %v37 = vld [vmem:[%s0 + $0xb0] sm:$0xff]
  %v38 = vld [vmem:[%s0 + $0xb8] sm:$0xff]
  %v39 = vld [vmem:[%s0 + $0xc0] sm:$0xff]
  %v40 = vld [vmem:[%s0 + $0xc8] sm:$0xff]
  %v41 = vld [vmem:[%s0 + $0xd0] sm:$0xff]
  %v42 = vld [vmem:[%s0 + $0xd8] sm:$0xff]
  %v43 = vld [vmem:[%s1] sm:$0xf]
  %v44 = vld [vmem:[%s1 + $0x4] sm:$0xf]
  %v45 = vld [vmem:[%s1 + $0x8] sm:$0xf]
  %v46 = vld [vmem:[%s1 + $0xc] sm:$0xf]
  %v47 = vld [vmem:[%s1 + $0x10] sm:$0xf]
  %v48 = vld [vmem:[%s1 + $0x14] sm:$0xf]
  %v49 = vld [vmem:[%s1 + $0x18] sm:$0xf]
  %v50 = vld [vmem:[%s1 + $0x1c] sm:$0xf]
  %v51 = vld [vmem:[%s1 + $0x20] sm:$0xf]
  %v52 = vld [vmem:[%s1 + $0x24] sm:$0xf]
  %v53 = vld [vmem:[%s1 + $0x28] sm:$0xf]
  %v54 = vld [vmem:[%s1 + $0x2c] sm:$0xf]
  %v55 = vld [vmem:[%s1 + $0x30] sm:$0xf]
  %v56 = vld [vmem:[%s1 + $0x34] sm:$0xf]
  %v57 = vld [vmem:[%s1 + $0x38] sm:$0xf]
  %v58 = vld [vmem:[%s1 + $0x3c] sm:$0xf]
  %v59 = vld [vmem:[%s1 + $0x40] sm:$0xf]
  %v60 = vld [vmem:[%s1 + $0x44] sm:$0xf]
  %v61 = vld [vmem:[%s1 + $0x48] sm:$0xf]
  %v62 = vld [vmem:[%s1 + $0x4c] sm:$0xf]
  %v63 = vld [vmem:[%s1 + $0x50] sm:$0xf]
  %v64 = vld [vmem:[%s1 + $0x54] sm:$0xf]
  %v65 = vld [vmem:[%s1 + $0x58] sm:$0xf]
  %v66 = vld [vmem:[%s1 + $0x5c] sm:$0xf]
  %v67 = vld [vmem:[%s1 + $0x60] sm:$0xf]
  %v68 = vld [vmem:[%s1 + $0x64] sm:$0xf]
  %v69 = vld [vmem:[%s1 + $0x68] sm:$0xf]
  %v70 = vld [vmem:[%s1 + $0x6c] sm:$0xf]
  %v71 = vld [vmem:[%s1 + $0x70] sm:$0xf]
  %v72 = vld [vmem:[%s1 + $0x74] sm:$0xf]
  %v73 = vld [vmem:[%s1 + $0x78] sm:$0xf]
  %v74 = vld [vmem:[%s1 + $0x7c] sm:$0xf]
  %v75 = vld [vmem:[%s1 + $0x80] sm:$0xf]
  %v76 = vld [vmem:[%s1 + $0x84] sm:$0xf]
  %v77 = vld [vmem:[%s1 + $0x88] sm:$0xf]
  %v78 = vld [vmem:[%s1 + $0x8c] sm:$0xf]
  %v79 = vld [vmem:[%s1 + $0x90] sm:$0xf]
  %v80 = vld [vmem:[%s1 + $0x94] sm:$0xf]
  %v81 = vld [vmem:[%s1 + $0x98] sm:$0xf]
  %v82 = vld [vmem:[%s1 + $0x9c] sm:$0xf]
  %v83 = vld [vmem:[%s1 + $0xa0] sm:$0xf]
  %v84 = vld [vmem:[%s1 + $0xa4] sm:$0xf]
  %v85 = vld [vmem:[%s1 + $0xa8] sm:$0xf]
  %v86 = vld [vmem:[%s1 + $0xac] sm:$0xf]
  %v87 = vld [vmem:[%s1 + $0xb0] sm:$0xf]
  %v88 = vld [vmem:[%s1 + $0xb4] sm:$0xf]
  %v89 = vld [vmem:[%s1 + $0xb8] sm:$0xf]
  %v90 = vld [vmem:[%s1 + $0xbc] sm:$0xf]
  %v91 = vld [vmem:[%s1 + $0xc0] sm:$0xf]
  %v92 = vld [vmem:[%s1 + $0xc4] sm:$0xf]
  %v93 = vld [vmem:[%s1 + $0xc8] sm:$0xf]
  %v94 = vld [vmem:[%s1 + $0xcc] sm:$0xf]
  %v95 = vld [vmem:[%s1 + $0xd0] sm:$0xf]
  %v96 = vld [vmem:[%s1 + $0xd4] sm:$0xf]
  %v97 = vld [vmem:[%s1 + $0xd8] sm:$0xf]
  %v98 = vld [vmem:[%s1 + $0xdc] sm:$0xf]
  %v99 = vld [vmem:[%s1 + $0xe0] sm:$0xf]
  %v100 = vld [vmem:[%s1 + $0xe4] sm:$0xf]
  %v101 = vld [vmem:[%s1 + $0xe8] sm:$0xf]
  %v102 = vld [vmem:[%s1 + $0xec] sm:$0xf]
  %v103 = vld [vmem:[%s1 + $0xf0] sm:$0xf]
  %v104 = vld [vmem:[%s1 + $0xf4] sm:$0xf]
  %v105 = vld [vmem:[%s1 + $0xf8] sm:$0xf]
  %v106 = vld [vmem:[%s1 + $0xfc] sm:$0xf]
  %v107 = vld [vmem:[%s2] sm:$0x1]
  %v109 = vlaneseq
  %v110 = vshrl.u32 %v109, 7
  %v111 = vsub.s32 0, %v110
  %v112 = vrot.slane %v107, %v111
  %v142 = vunpack.c.l.b16 %v15
  %v143 = vunpack.c.h.b16 %v15
  %v144 = vunpack.c.l.b16 %v16
  %v145 = vunpack.c.h.b16 %v16
  %v146 = vunpack.c.l.b16 %v17
  %v147 = vunpack.c.h.b16 %v17
  %v148 = vunpack.c.l.b16 %v18
  %v149 = vunpack.c.h.b16 %v18
  %v150 = vunpack.c.l.b16 %v19
  %v151 = vunpack.c.h.b16 %v19
  %v152 = vunpack.c.l.b16 %v20
  %v153 = vunpack.c.h.b16 %v20
  %v154 = vunpack.c.l.b16 %v21
  %v155 = vunpack.c.h.b16 %v21
  %v156 = vunpack.c.l.b16 %v22
  %v157 = vunpack.c.h.b16 %v22
  %v158 = vunpack.c.l.b16 %v23
  %v159 = vunpack.c.h.b16 %v23
  %v160 = vunpack.c.l.b16 %v24
  %v161 = vunpack.c.h.b16 %v24
  %v162 = vunpack.c.l.b16 %v25
  %v163 = vunpack.c.h.b16 %v25
  %v164 = vunpack.c.l.b16 %v26
  %v165 = vunpack.c.h.b16 %v26
  %v166 = vunpack.c.l.b16 %v27
  %v167 = vunpack.c.h.b16 %v27
  %v168 = vunpack.c.l.b16 %v28
  %v169 = vunpack.c.h.b16 %v28
  %v170 = vunpack.c.l.b16 %v29
  %v171 = vunpack.c.h.b16 %v29
  %v172 = vunpack.c.l.b16 %v30
  %v173 = vunpack.c.h.b16 %v30
  %v174 = vunpack.c.l.b16 %v31
  %v175 = vunpack.c.h.b16 %v31
  %v176 = vunpack.c.l.b16 %v32
  %v177 = vunpack.c.h.b16 %v32
  %v178 = vunpack.c.l.b16 %v33
  %v179 = vunpack.c.h.b16 %v33
  %v180 = vunpack.c.l.b16 %v34
  %v181 = vunpack.c.h.b16 %v34
  %v182 = vunpack.c.l.b16 %v35
  %v183 = vunpack.c.h.b16 %v35
  %v184 = vunpack.c.l.b16 %v36
  %v185 = vunpack.c.h.b16 %v36
  %v186 = vunpack.c.l.b16 %v37
  %v187 = vunpack.c.h.b16 %v37
  %v188 = vunpack.c.l.b16 %v38
  %v189 = vunpack.c.h.b16 %v38
  %v190 = vunpack.c.l.b16 %v39
  %v191 = vunpack.c.h.b16 %v39
  %v192 = vunpack.c.l.b16 %v40
  %v193 = vunpack.c.h.b16 %v40
  %v194 = vunpack.c.l.b16 %v41
  %v195 = vunpack.c.h.b16 %v41
  %v196 = vunpack.c.l.b16 %v42
  %v197 = vunpack.c.h.b16 %v42
  %v198 = vpack.c.b16 %v146, %v142
  %v199 = vpack.c.b16 %v147, %v143
  %v200 = vpack.c.b16 %v148, %v144
  %v201 = vpack.c.b16 %v149, %v145
  %v202 = vpack.c.b16 %v154, %v150
  %v203 = vpack.c.b16 %v155, %v151
  %v204 = vpack.c.b16 %v156, %v152
  %v205 = vpack.c.b16 %v157, %v153
  %v206 = vpack.c.b16 %v162, %v158
  %v207 = vpack.c.b16 %v163, %v159
  %v208 = vpack.c.b16 %v164, %v160
  %v209 = vpack.c.b16 %v165, %v161
  %v210 = vpack.c.b16 %v170, %v166
  %v211 = vpack.c.b16 %v171, %v167
  %v212 = vpack.c.b16 %v172, %v168
  %v213 = vpack.c.b16 %v173, %v169
  %v214 = vpack.c.b16 %v178, %v174
  %v215 = vpack.c.b16 %v179, %v175
  %v216 = vpack.c.b16 %v180, %v176
  %v217 = vpack.c.b16 %v181, %v177
  %v218 = vpack.c.b16 %v186, %v182
  %v219 = vpack.c.b16 %v187, %v183
  %v220 = vpack.c.b16 %v188, %v184
  %v221 = vpack.c.b16 %v189, %v185
  %v222 = vpack.c.b16 %v194, %v190
  %v223 = vpack.c.b16 %v195, %v191
  %v224 = vpack.c.b16 %v196, %v192
  %v225 = vpack.c.b16 %v197, %v193
  %v318 = vunpack.c.l.b16 %v43
  %v319 = vunpack.c.l.b16 %v44
  %v320 = vunpack.c.l.b16 %v45
  %v321 = vunpack.c.l.b16 %v46
  %v322 = vunpack.c.l.b16 %v47
  %v323 = vunpack.c.l.b16 %v48
  %v324 = vunpack.c.l.b16 %v49
  %v325 = vunpack.c.l.b16 %v50
  %v326 = vunpack.c.l.b16 %v51
  %v327 = vunpack.c.l.b16 %v52
  %v328 = vunpack.c.l.b16 %v53
  %v329 = vunpack.c.l.b16 %v54
  %v330 = vunpack.c.l.b16 %v55
  %v331 = vunpack.c.l.b16 %v56
  %v332 = vunpack.c.l.b16 %v57
  %v333 = vunpack.c.l.b16 %v58
  %v334 = vunpack.c.l.b16 %v59
  %v335 = vunpack.c.l.b16 %v60
  %v336 = vunpack.c.l.b16 %v61
  %v337 = vunpack.c.l.b16 %v62
  %v338 = vunpack.c.l.b16 %v63
  %v339 = vunpack.c.l.b16 %v64
  %v340 = vunpack.c.l.b16 %v65
  %v341 = vunpack.c.l.b16 %v66
  %v342 = vunpack.c.l.b16 %v67
  %v343 = vunpack.c.l.b16 %v68
  %v344 = vunpack.c.l.b16 %v69
  %v345 = vunpack.c.l.b16 %v70
  %v346 = vunpack.c.l.b16 %v71
  %v347 = vunpack.c.l.b16 %v72
  %v348 = vunpack.c.l.b16 %v73
  %v349 = vunpack.c.l.b16 %v74
  %v350 = vunpack.c.l.b16 %v75
  %v351 = vunpack.c.l.b16 %v76
  %v352 = vunpack.c.l.b16 %v77
  %v353 = vunpack.c.l.b16 %v78
  %v354 = vunpack.c.l.b16 %v79
  %v355 = vunpack.c.l.b16 %v80
  %v356 = vunpack.c.l.b16 %v81
  %v357 = vunpack.c.l.b16 %v82
  %v358 = vunpack.c.l.b16 %v83
  %v359 = vunpack.c.l.b16 %v84
  %v360 = vunpack.c.l.b16 %v85
  %v361 = vunpack.c.l.b16 %v86
  %v362 = vunpack.c.l.b16 %v87
  %v363 = vunpack.c.l.b16 %v88
  %v364 = vunpack.c.l.b16 %v89
  %v365 = vunpack.c.l.b16 %v90
  %v366 = vunpack.c.l.b16 %v91
  %v367 = vunpack.c.l.b16 %v92
  %v368 = vunpack.c.l.b16 %v93
  %v369 = vunpack.c.l.b16 %v94
  %v370 = vunpack.c.l.b16 %v95
  %v371 = vunpack.c.l.b16 %v96
  %v372 = vunpack.c.l.b16 %v97
  %v373 = vunpack.c.l.b16 %v98
  %v374 = vunpack.c.l.b16 %v99
  %v375 = vunpack.c.l.b16 %v100
  %v376 = vunpack.c.l.b16 %v101
  %v377 = vunpack.c.l.b16 %v102
  %v378 = vunpack.c.l.b16 %v103
  %v379 = vunpack.c.l.b16 %v104
  %v380 = vunpack.c.l.b16 %v105
  %v381 = vunpack.c.l.b16 %v106
  %v382 = vpack.c.b16 %v319, %v318
  %v383 = vpack.c.b16 %v321, %v320
  %v384 = vpack.c.b16 %v323, %v322
  %v385 = vpack.c.b16 %v325, %v324
  %v386 = vpack.c.b16 %v327, %v326
  %v387 = vpack.c.b16 %v329, %v328
  %v388 = vpack.c.b16 %v331, %v330
  %v389 = vpack.c.b16 %v333, %v332
  %v390 = vpack.c.b16 %v335, %v334
  %v391 = vpack.c.b16 %v337, %v336
  %v392 = vpack.c.b16 %v339, %v338
  %v393 = vpack.c.b16 %v341, %v340
  %v394 = vpack.c.b16 %v343, %v342
  %v395 = vpack.c.b16 %v345, %v344
  %v396 = vpack.c.b16 %v347, %v346
  %v397 = vpack.c.b16 %v349, %v348
  %v398 = vpack.c.b16 %v351, %v350
  %v399 = vpack.c.b16 %v353, %v352
  %v400 = vpack.c.b16 %v355, %v354
  %v401 = vpack.c.b16 %v357, %v356
  %v402 = vpack.c.b16 %v359, %v358
  %v403 = vpack.c.b16 %v361, %v360
  %v404 = vpack.c.b16 %v363, %v362
  %v405 = vpack.c.b16 %v365, %v364
  %v406 = vpack.c.b16 %v367, %v366
  %v407 = vpack.c.b16 %v369, %v368
  %v408 = vpack.c.b16 %v371, %v370
  %v409 = vpack.c.b16 %v373, %v372
  %v410 = vpack.c.b16 %v375, %v374
  %v411 = vpack.c.b16 %v377, %v376
  %v412 = vpack.c.b16 %v379, %v378
  %v413 = vpack.c.b16 %v381, %v380
  %446 = vmatprep.subr.bf16.mxu0 0
  %447 = vmatpush1.bf16.msra.mxu0 %v382
  %448 = vmatprep.subr.bf16.mxu0 0
  %449 = vmatpush1.bf16.msra.mxu0 %v383
  %450 = vmatprep.subr.bf16.mxu0 0
  %451 = vmatpush1.bf16.msra.mxu0 %v384
  %452 = vmatprep.subr.bf16.mxu0 0
  %453 = vmatpush1.bf16.msra.mxu0 %v385
  %454 = vmatprep.subr.bf16.mxu0 0
  %455 = vmatpush1.bf16.msra.mxu0 %v386
  %456 = vmatprep.subr.bf16.mxu0 0
  %457 = vmatpush1.bf16.msra.mxu0 %v387
  %458 = vmatprep.subr.bf16.mxu0 0
  %459 = vmatpush1.bf16.msra.mxu0 %v388
  %460 = vmatprep.subr.bf16.mxu0 0
  %461 = vmatpush1.bf16.msra.mxu0 %v389
  %462 = vmatprep.subr.bf16.mxu0 0
  %463 = vmatpush1.bf16.msra.mxu0 %v390
  %464 = vmatprep.subr.bf16.mxu0 0
  %465 = vmatpush1.bf16.msra.mxu0 %v391
  %466 = vmatprep.subr.bf16.mxu0 0
  %467 = vmatpush1.bf16.msra.mxu0 %v392
  %468 = vmatprep.subr.bf16.mxu0 0
  %469 = vmatpush1.bf16.msra.mxu0 %v393
  %470 = vmatprep.subr.bf16.mxu0 0
  %471 = vmatpush1.bf16.msra.mxu0 %v394
  %472 = vmatprep.subr.bf16.mxu0 0
  %473 = vmatpush1.bf16.msra.mxu0 %v395
  %474 = vmatprep.subr.bf16.mxu0 0
  %475 = vmatpush1.bf16.msra.mxu0 %v396
  %476 = vmatprep.subr.bf16.mxu0 0
  %477 = vmatpush1.bf16.msra.mxu0 %v397
  %478 = vmatprep.mubr.bf16.mxu0 %v199
  %479 = vmatmul.mubr.bf16.gmra.mrb[0].mxu0 %v198
  %v480 = vpop.f32.mrb[0].mxu0
  %v481 = vadd.f32 %v112, %v480
  %v482 = vpop.f32.mrb[0].mxu0
  %v483 = vpop.f32.mrb[0].mxu0
  %v484 = vadd.f32 %v112, %v483
  %v485 = vpop.f32.mrb[0].mxu0
  %486 = vmatprep.mubr.bf16.mxu0 %v203
  %487 = vmatmul.mubr.bf16.gmra.mrb[0].mxu0 %v202
  %v488 = vpop.f32.mrb[0].mxu0
  %v489 = vadd.f32 %v112, %v488
  %v490 = vpop.f32.mrb[0].mxu0
  %v491 = vpop.f32.mrb[0].mxu0
  %v492 = vadd.f32 %v112, %v491
  %v493 = vpop.f32.mrb[0].mxu0
  %494 = vmatprep.mubr.bf16.mxu0 %v207
  %495 = vmatmul.mubr.bf16.gmra.mrb[0].mxu0 %v206
  %v496 = vpop.f32.mrb[0].mxu0
  %v497 = vadd.f32 %v112, %v496
  %v498 = vpop.f32.mrb[0].mxu0
  %v499 = vpop.f32.mrb[0].mxu0
  %v500 = vadd.f32 %v112, %v499
  %v501 = vpop.f32.mrb[0].mxu0
  %502 = vmatprep.mubr.bf16.mxu0 %v211
  %503 = vmatmul.mubr.bf16.gmra.mrb[0].mxu0 %v210
  %v504 = vpop.f32.mrb[0].mxu0
  %v505 = vadd.f32 %v112, %v504
  %v506 = vpop.f32.mrb[0].mxu0
  %v507 = vpop.f32.mrb[0].mxu0
  %v508 = vadd.f32 %v112, %v507
  %v509 = vpop.f32.mrb[0].mxu0
  %510 = vmatprep.mubr.bf16.mxu0 %v215
  %511 = vmatmul.mubr.bf16.gmra.mrb[0].mxu0 %v214
  %v512 = vpop.f32.mrb[0].mxu0
  %v513 = vadd.f32 %v112, %v512
  %v514 = vpop.f32.mrb[0].mxu0
  %v515 = vpop.f32.mrb[0].mxu0
  %v516 = vadd.f32 %v112, %v515
  %v517 = vpop.f32.mrb[0].mxu0
  %518 = vmatprep.mubr.bf16.mxu0 %v219
  %519 = vmatmul.mubr.bf16.gmra.mrb[0].mxu0 %v218
  %v520 = vpop.f32.mrb[0].mxu0
  %v521 = vadd.f32 %v112, %v520
  %v522 = vpop.f32.mrb[0].mxu0
  %v523 = vpop.f32.mrb[0].mxu0
  %v524 = vadd.f32 %v112, %v523
  %v525 = vpop.f32.mrb[0].mxu0
  %526 = vmatprep.mubr.bf16.mxu0 %v223
  %527 = vmatmul.mubr.bf16.gmra.mrb[0].mxu0 %v222
  %v528 = vpop.f32.mrb[0].mxu0
  %v529 = vadd.f32 %v112, %v528
  %v530 = vpop.f32.mrb[0].mxu0
  %v531 = vpop.f32.mrb[0].mxu0
  %v532 = vadd.f32 %v112, %v531
  %v533 = vpop.f32.mrb[0].mxu0
  %534 = vdwg.mxu0
  %535 = vmatprep.subr.bf16.mxu0 0
  %536 = vmatpush1.bf16.msra.mxu0 %v398
  %537 = vmatprep.subr.bf16.mxu0 0
  %538 = vmatpush1.bf16.msra.mxu0 %v399
  %539 = vmatprep.subr.bf16.mxu0 0
  %540 = vmatpush1.bf16.msra.mxu0 %v400
  %541 = vmatprep.subr.bf16.mxu0 0
  %542 = vmatpush1.bf16.msra.mxu0 %v401
  %543 = vmatprep.subr.bf16.mxu0 0
  %544 = vmatpush1.bf16.msra.mxu0 %v402
  %545 = vmatprep.subr.bf16.mxu0 0
  %546 = vmatpush1.bf16.msra.mxu0 %v403
  %547 = vmatprep.subr.bf16.mxu0 0
  %548 = vmatpush1.bf16.msra.mxu0 %v404
  %549 = vmatprep.subr.bf16.mxu0 0
  %550 = vmatpush1.bf16.msra.mxu0 %v405
  %551 = vmatprep.subr.bf16.mxu0 0
  %552 = vmatpush1.bf16.msra.mxu0 %v406
  %553 = vmatprep.subr.bf16.mxu0 0
  %554 = vmatpush1.bf16.msra.mxu0 %v407
  %555 = vmatprep.subr.bf16.mxu0 0
  %556 = vmatpush1.bf16.msra.mxu0 %v408
  %557 = vmatprep.subr.bf16.mxu0 0
  %558 = vmatpush1.bf16.msra.mxu0 %v409
  %559 = vmatprep.subr.bf16.mxu0 0
  %560 = vmatpush1.bf16.msra.mxu0 %v410
  %561 = vmatprep.subr.bf16.mxu0 0
  %562 = vmatpush1.bf16.msra.mxu0 %v411
  %563 = vmatprep.subr.bf16.mxu0 0
  %564 = vmatpush1.bf16.msra.mxu0 %v412
  %565 = vmatprep.subr.bf16.mxu0 0
  %566 = vmatpush1.bf16.msra.mxu0 %v413
  %567 = vmatprep.mubr.bf16.mxu0 %v201
  %568 = vmatmul.mubr.bf16.gmra.mrb[0].mxu0 %v200
  %v569 = vpop.f32.mrb[0].mxu0
  %v570 = vadd.f32 %v481, %v569
  %v571 = vpop.f32.mrb[0].mxu0
  %v572 = vpop.f32.mrb[0].mxu0
  %v573 = vadd.f32 %v484, %v572
  %v574 = vpop.f32.mrb[0].mxu0
  %575 = vmatprep.mubr.bf16.mxu0 %v205
  %576 = vmatmul.mubr.bf16.gmra.mrb[0].mxu0 %v204
  %v577 = vpop.f32.mrb[0].mxu0
  %v578 = vadd.f32 %v489, %v577
  %v579 = vpop.f32.mrb[0].mxu0
  %v580 = vpop.f32.mrb[0].mxu0
  %v581 = vadd.f32 %v492, %v580
  %v582 = vpop.f32.mrb[0].mxu0
  %583 = vmatprep.mubr.bf16.mxu0 %v209
  %584 = vmatmul.mubr.bf16.gmra.mrb[0].mxu0 %v208
  %v585 = vpop.f32.mrb[0].mxu0
  %v586 = vadd.f32 %v497, %v585
  %v587 = vpop.f32.mrb[0].mxu0
  %v588 = vpop.f32.mrb[0].mxu0
  %v589 = vadd.f32 %v500, %v588
  %v590 = vpop.f32.mrb[0].mxu0
  %591 = vmatprep.mubr.bf16.mxu0 %v213
  %592 = vmatmul.mubr.bf16.gmra.mrb[0].mxu0 %v212
  %v593 = vpop.f32.mrb[0].mxu0
  %v594 = vadd.f32 %v505, %v593
  %v595 = vpop.f32.mrb[0].mxu0
  %v596 = vpop.f32.mrb[0].mxu0
  %v597 = vadd.f32 %v508, %v596
  %v598 = vpop.f32.mrb[0].mxu0
  %599 = vmatprep.mubr.bf16.mxu0 %v217
  %600 = vmatmul.mubr.bf16.gmra.mrb[0].mxu0 %v216
  %v601 = vpop.f32.mrb[0].mxu0
  %v602 = vadd.f32 %v513, %v601
  %v603 = vpop.f32.mrb[0].mxu0
  %v604 = vpop.f32.mrb[0].mxu0
  %v605 = vadd.f32 %v516, %v604
  %v606 = vpop.f32.mrb[0].mxu0
  %607 = vmatprep.mubr.bf16.mxu0 %v221
  %608 = vmatmul.mubr.bf16.gmra.mrb[0].mxu0 %v220
  %v609 = vpop.f32.mrb[0].mxu0
  %v610 = vadd.f32 %v521, %v609
  %v611 = vpop.f32.mrb[0].mxu0
  %v612 = vpop.f32.mrb[0].mxu0
  %v613 = vadd.f32 %v524, %v612
  %v614 = vpop.f32.mrb[0].mxu0
  %615 = vmatprep.mubr.bf16.mxu0 %v225
  %616 = vmatmul.mubr.bf16.gmra.mrb[0].mxu0 %v224
  %v617 = vpop.f32.mrb[0].mxu0
  %v618 = vadd.f32 %v529, %v617
  %v619 = vpop.f32.mrb[0].mxu0
  %v620 = vpop.f32.mrb[0].mxu0
  %v621 = vadd.f32 %v532, %v620
  %v622 = vpop.f32.mrb[0].mxu0
  %623 = vdwg.mxu0
  %vm624 = vcmp.ge.f32.partialorder %v570, 0.0
  %vm625 = vcmp.ge.f32.partialorder %v573, 0.0
  %vm626 = vcmp.ge.f32.partialorder %v578, 0.0
  %vm627 = vcmp.ge.f32.partialorder %v581, 0.0
  %vm628 = vcmp.ge.f32.partialorder %v586, 0.0
  %vm629 = vcmp.ge.f32.partialorder %v589, 0.0
  %vm630 = vcmp.ge.f32.partialorder %v594, 0.0
  %vm631 = vcmp.ge.f32.partialorder %v597, 0.0
  %vm632 = vcmp.ge.f32.partialorder %v602, 0.0
  %vm633 = vcmp.ge.f32.partialorder %v605, 0.0
  %vm634 = vcmp.ge.f32.partialorder %v610, 0.0
  %vm635 = vcmp.ge.f32.partialorder %v613, 0.0
  %vm636 = vcmp.ge.f32.partialorder %v618, 0.0
  %vm637 = vcmp.ge.f32.partialorder %v621, 0.0
  %v638 = vmul.f32 %v570, 0.2
  %v639 = vmul.f32 %v573, 0.2
  %v640 = vmul.f32 %v578, 0.2
  %v641 = vmul.f32 %v581, 0.2
  %v642 = vmul.f32 %v586, 0.2
  %v643 = vmul.f32 %v589, 0.2
  %v644 = vmul.f32 %v594, 0.2
  %v645 = vmul.f32 %v597, 0.2
  %v646 = vmul.f32 %v602, 0.2
  %v647 = vmul.f32 %v605, 0.2
  %v648 = vmul.f32 %v610, 0.2
  %v649 = vmul.f32 %v613, 0.2
  %v650 = vmul.f32 %v618, 0.2
  %v651 = vmul.f32 %v621, 0.2
  %v652 = vsel %vm624, %v570, %v638
  %v653 = vsel %vm625, %v573, %v639
  %v654 = vsel %vm626, %v578, %v640
  %v655 = vsel %vm627, %v581, %v641
  %v656 = vsel %vm628, %v586, %v642
  %v657 = vsel %vm629, %v589, %v643
  %v658 = vsel %vm630, %v594, %v644
  %v659 = vsel %vm631, %v597, %v645
  %v660 = vsel %vm632, %v602, %v646
  %v661 = vsel %vm633, %v605, %v647
  %v662 = vsel %vm634, %v610, %v648
  %v663 = vsel %vm635, %v613, %v649
  %v664 = vsel %vm636, %v618, %v650
  %v665 = vsel %vm637, %v621, %v651
  %v666 = vpack.c.bf16 %v653, %v652
  %v667 = vpack.c.bf16 %v655, %v654
  %v668 = vpack.c.bf16 %v657, %v656
  %v669 = vpack.c.bf16 %v659, %v658
  %v670 = vpack.c.bf16 %v661, %v660
  %v671 = vpack.c.bf16 %v663, %v662
  %v672 = vpack.c.bf16 %v665, %v664
  %v680 = vunpack.c.l.b16 %v666
  %v681 = vunpack.c.h.b16 %v666
  %v682 = vunpack.c.l.b16 %v667
  %v683 = vunpack.c.h.b16 %v667
  %v684 = vunpack.c.l.b16 %v668
  %v685 = vunpack.c.h.b16 %v668
  %v686 = vunpack.c.l.b16 %v669
  %v687 = vunpack.c.h.b16 %v669
  %v688 = vunpack.c.l.b16 %v670
  %v689 = vunpack.c.h.b16 %v670
  %v690 = vunpack.c.l.b16 %v671
  %v691 = vunpack.c.h.b16 %v671
  %v692 = vunpack.c.l.b16 %v672
  %v693 = vunpack.c.h.b16 %v672
  %v694 = vpack.c.b16 %v680, %v680
  %v695 = vpack.c.b16 %v681, %v681
  %v696 = vpack.c.b16 %v682, %v682
  %v697 = vpack.c.b16 %v683, %v683
  %v698 = vpack.c.b16 %v684, %v684
  %v699 = vpack.c.b16 %v685, %v685
  %v700 = vpack.c.b16 %v686, %v686
  %v701 = vpack.c.b16 %v687, %v687
  %v702 = vpack.c.b16 %v688, %v688
  %v703 = vpack.c.b16 %v689, %v689
  %v704 = vpack.c.b16 %v690, %v690
  %v705 = vpack.c.b16 %v691, %v691
  %v706 = vpack.c.b16 %v692, %v692
  %v707 = vpack.c.b16 %v693, %v693
  %vm722 = vcmask 519168
  %723 = vst.msk [vmem:[%s3] sm:$0xf] %vm722, %v694
  %724 = vst.msk [vmem:[%s3 + $0x4] sm:$0xf] %vm722, %v695
  %725 = vst.msk [vmem:[%s3 + $0x8] sm:$0xf] %vm722, %v696
  %726 = vst.msk [vmem:[%s3 + $0xc] sm:$0xf] %vm722, %v697
  %727 = vst.msk [vmem:[%s3 + $0x10] sm:$0xf] %vm722, %v698
  %728 = vst.msk [vmem:[%s3 + $0x14] sm:$0xf] %vm722, %v699
  %729 = vst.msk [vmem:[%s3 + $0x18] sm:$0xf] %vm722, %v700
  %730 = vst.msk [vmem:[%s3 + $0x1c] sm:$0xf] %vm722, %v701
  %731 = vst.msk [vmem:[%s3 + $0x20] sm:$0xf] %vm722, %v702
  %732 = vst.msk [vmem:[%s3 + $0x24] sm:$0xf] %vm722, %v703
  %733 = vst.msk [vmem:[%s3 + $0x28] sm:$0xf] %vm722, %v704
  %734 = vst.msk [vmem:[%s3 + $0x2c] sm:$0xf] %vm722, %v705
  %735 = vst.msk [vmem:[%s3 + $0x30] sm:$0xf] %vm722, %v706
  %736 = vst.msk [vmem:[%s3 + $0x34] sm:$0xf] %vm722, %v707
  // Predicated region
  $region14: #{vae_forward.6} parent=0 // pred_check
    _
  $region15: #{vae_forward.6} parent=0 // pred_check_branch
    %738 = sbr.rel (0) target = $region17
  $region16: #{vae_forward.6} parent=0 // pred_region
    _
  $region17: #{vae_forward.6} parent=0 // pred_fallthru
    _
  // Predicated region
  $region18: #{vae_forward.6} parent=0 // pred_check
    _
  $region19: #{vae_forward.6} parent=0 // pred_check_branch
    %740 = sbr.rel (0) target = $region21
  $region20: #{vae_forward.6} parent=0 // pred_region
    _
  $region21: #{vae_forward.6} parent=0 // pred_fallthru
    _

// kernel: vae_forward.8
$region0: #{vae_forward.8}
  #allocation0 [shape = 'u32[]', space=smem, size = 0x4, offset = 0x4, fixed_abs, tag = 'smem constant byte address 0x4 - core index']
  #allocation1 [shape = 'u32[144,128]{1,0:T(1,128)}', space=vmem, size = 0x12000, scoped, tag = 'internal scratch']
  %s0 = inlined_call_operand.vmem [shape: bf16[112,576], index: 0, kind: input, shape index: {}]
  %s1 = inlined_call_operand.vmem [shape: bf16[576,128], index: 1, kind: input, shape index: {}]
  %s2 = inlined_call_operand.vmem [shape: f32[1,128], index: 2, kind: input, shape index: {}]
  %s3 = inlined_call_operand.vmem [shape: bf16[112,128], index: 3, kind: output, shape index: {}]
  %s4 = sld [smem:[#allocation0]]
  $region22: #{vae_forward.8} parent=0
    _
  %s6 = ssub.s32 1, %s4
  %s7 = scalar_select 0, %s6, %s4
  // Predicated region
  $region2: #{vae_forward.8} parent=0 // pred_check
    _
  $region3: #{vae_forward.8} parent=0 // pred_check_branch
    %9 = sbr.rel (0) target = $region5
  $region4: #{vae_forward.8} parent=0 // pred_region
    _
  $region5: #{vae_forward.8} parent=0 // pred_fallthru
    _
  // Predicated region
  $region6: #{vae_forward.8} parent=0 // pred_check
    _
  $region7: #{vae_forward.8} parent=0 // pred_check_branch
    %11 = sbr.rel (0) target = $region9
  $region8: #{vae_forward.8} parent=0 // pred_region
    _
  $region9: #{vae_forward.8} parent=0 // pred_fallthru
    _
  // Predicated region
  $region10: #{vae_forward.8} parent=0 // pred_check
    _
  $region11: #{vae_forward.8} parent=0 // pred_check_branch
    %13 = sbr.rel (0) target = $region13
  $region12: #{vae_forward.8} parent=0 // pred_region
    _
  $region13: #{vae_forward.8} parent=0 // pred_fallthru
    _
  %v15 = vld [vmem:[%s0] sm:$0xff]
  %v16 = vld [vmem:[%s0 + $0x8] sm:$0xff]
  %v17 = vld [vmem:[%s0 + $0x10] sm:$0xf]
  %v18 = vld [vmem:[%s0 + $0x14] sm:$0xff]
  %v19 = vld [vmem:[%s0 + $0x1c] sm:$0xff]
  %v20 = vld [vmem:[%s0 + $0x24] sm:$0xf]
  %v21 = vld [vmem:[%s0 + $0x28] sm:$0xff]
  %v22 = vld [vmem:[%s0 + $0x30] sm:$0xff]
  %v23 = vld [vmem:[%s0 + $0x38] sm:$0xf]
  %v24 = vld [vmem:[%s0 + $0x3c] sm:$0xff]
  %v25 = vld [vmem:[%s0 + $0x44] sm:$0xff]
  %v26 = vld [vmem:[%s0 + $0x4c] sm:$0xf]
  %v27 = vld [vmem:[%s0 + $0x50] sm:$0xff]
  %v28 = vld [vmem:[%s0 + $0x58] sm:$0xff]
  %v29 = vld [vmem:[%s0 + $0x60] sm:$0xf]
  %v30 = vld [vmem:[%s0 + $0x64] sm:$0xff]
  %v31 = vld [vmem:[%s0 + $0x6c] sm:$0xff]
  %v32 = vld [vmem:[%s0 + $0x74] sm:$0xf]
  %v33 = vld [vmem:[%s0 + $0x78] sm:$0xff]
  %v34 = vld [vmem:[%s0 + $0x80] sm:$0xff]
  %v35 = vld [vmem:[%s0 + $0x88] sm:$0xf]
  %v36 = vld [vmem:[%s0 + $0x8c] sm:$0xff]
  %v37 = vld [vmem:[%s0 + $0x94] sm:$0xff]
  %v38 = vld [vmem:[%s0 + $0x9c] sm:$0xf]
  %v39 = vld [vmem:[%s0 + $0xa0] sm:$0xff]
  %v40 = vld [vmem:[%s0 + $0xa8] sm:$0xff]
  %v41 = vld [vmem:[%s0 + $0xb0] sm:$0xf]
  %v42 = vld [vmem:[%s0 + $0xb4] sm:$0xff]
  %v43 = vld [vmem:[%s0 + $0xbc] sm:$0xff]
  %v44 = vld [vmem:[%s0 + $0xc4] sm:$0xf]
  %v45 = vld [vmem:[%s0 + $0xc8] sm:$0xff]
  %v46 = vld [vmem:[%s0 + $0xd0] sm:$0xff]
  %v47 = vld [vmem:[%s0 + $0xd8] sm:$0xf]
  %v48 = vld [vmem:[%s0 + $0xdc] sm:$0xff]
  %v49 = vld [vmem:[%s0 + $0xe4] sm:$0xff]
  %v50 = vld [vmem:[%s0 + $0xec] sm:$0xf]
  %v51 = vld [vmem:[%s0 + $0xf0] sm:$0xff]
  %v52 = vld [vmem:[%s0 + $0xf8] sm:$0xff]
  %v53 = vld [vmem:[%s0 + $0x100] sm:$0xf]
  %v54 = vld [vmem:[%s0 + $0x104] sm:$0xff]
  %v55 = vld [vmem:[%s0 + $0x10c] sm:$0xff]
  %v56 = vld [vmem:[%s0 + $0x114] sm:$0xf]
  %v57 = vld [vmem:[%s1] sm:$0xf]
  %v58 = vld [vmem:[%s1 + $0x4] sm:$0xf]
  %v59 = vld [vmem:[%s1 + $0x8] sm:$0xf]
  %v60 = vld [vmem:[%s1 + $0xc] sm:$0xf]
  %v61 = vld [vmem:[%s1 + $0x10] sm:$0xf]
  %v62 = vld [vmem:[%s1 + $0x14] sm:$0xf]
  %v63 = vld [vmem:[%s1 + $0x18] sm:$0xf]
  %v64 = vld [vmem:[%s1 + $0x1c] sm:$0xf]
  %v65 = vld [vmem:[%s1 + $0x20] sm:$0xf]
  %v66 = vld [vmem:[%s1 + $0x24] sm:$0xf]
  %v67 = vld [vmem:[%s1 + $0x28] sm:$0xf]
  %v68 = vld [vmem:[%s1 + $0x2c] sm:$0xf]
  %v69 = vld [vmem:[%s1 + $0x30] sm:$0xf]
  %v70 = vld [vmem:[%s1 + $0x34] sm:$0xf]
  %v71 = vld [vmem:[%s1 + $0x38] sm:$0xf]
  %v72 = vld [vmem:[%s1 + $0x3c] sm:$0xf]
  %v73 = vld [vmem:[%s1 + $0x40] sm:$0xf]
  %v74 = vld [vmem:[%s1 + $0x44] sm:$0xf]
  %v75 = vld [vmem:[%s1 + $0x48] sm:$0xf]
  %v76 = vld [vmem:[%s1 + $0x4c] sm:$0xf]
  %v77 = vld [vmem:[%s1 + $0x50] sm:$0xf]
  %v78 = vld [vmem:[%s1 + $0x54] sm:$0xf]
  %v79 = vld [vmem:[%s1 + $0x58] sm:$0xf]
  %v80 = vld [vmem:[%s1 + $0x5c] sm:$0xf]
  %v81 = vld [vmem:[%s1 + $0x60] sm:$0xf]
  %v82 = vld [vmem:[%s1 + $0x64] sm:$0xf]
  %v83 = vld [vmem:[%s1 + $0x68] sm:$0xf]
  %v84 = vld [vmem:[%s1 + $0x6c] sm:$0xf]
  %v85 = vld [vmem:[%s1 + $0x70] sm:$0xf]
  %v86 = vld [vmem:[%s1 + $0x74] sm:$0xf]
  %v87 = vld [vmem:[%s1 + $0x78] sm:$0xf]
  %v88 = vld [vmem:[%s1 + $0x7c] sm:$0xf]
  %v89 = vld [vmem:[%s1 + $0x80] sm:$0xf]
  %v90 = vld [vmem:[%s1 + $0x84] sm:$0xf]
  %v91 = vld [vmem:[%s1 + $0x88] sm:$0xf]
  %v92 = vld [vmem:[%s1 + $0x8c] sm:$0xf]
  %v93 = vld [vmem:[%s1 + $0x90] sm:$0xf]
  %v94 = vld [vmem:[%s1 + $0x94] sm:$0xf]
  %v95 = vld [vmem:[%s1 + $0x98] sm:$0xf]
  %v96 = vld [vmem:[%s1 + $0x9c] sm:$0xf]
  %v97 = vld [vmem:[%s1 + $0xa0] sm:$0xf]
  %v98 = vld [vmem:[%s1 + $0xa4] sm:$0xf]
  %v99 = vld [vmem:[%s1 + $0xa8] sm:$0xf]
  %v100 = vld [vmem:[%s1 + $0xac] sm:$0xf]
  %v101 = vld [vmem:[%s1 + $0xb0] sm:$0xf]
  %v102 = vld [vmem:[%s1 + $0xb4] sm:$0xf]
  %v103 = vld [vmem:[%s1 + $0xb8] sm:$0xf]
  %v104 = vld [vmem:[%s1 + $0xbc] sm:$0xf]
  %v105 = vld [vmem:[%s1 + $0xc0] sm:$0xf]
  %v106 = vld [vmem:[%s1 + $0xc4] sm:$0xf]
  %v107 = vld [vmem:[%s1 + $0xc8] sm:$0xf]
  %v108 = vld [vmem:[%s1 + $0xcc] sm:$0xf]
  %v109 = vld [vmem:[%s1 + $0xd0] sm:$0xf]
  %v110 = vld [vmem:[%s1 + $0xd4] sm:$0xf]
  %v111 = vld [vmem:[%s1 + $0xd8] sm:$0xf]
  %v112 = vld [vmem:[%s1 + $0xdc] sm:$0xf]
  %v113 = vld [vmem:[%s1 + $0xe0] sm:$0xf]
  %v114 = vld [vmem:[%s1 + $0xe4] sm:$0xf]
  %v115 = vld [vmem:[%s1 + $0xe8] sm:$0xf]
  %v116 = vld [vmem:[%s1 + $0xec] sm:$0xf]
  %v117 = vld [vmem:[%s1 + $0xf0] sm:$0xf]
  %v118 = vld [vmem:[%s1 + $0xf4] sm:$0xf]
  %v119 = vld [vmem:[%s1 + $0xf8] sm:$0xf]
  %v120 = vld [vmem:[%s1 + $0xfc] sm:$0xf]
  %v121 = vld [vmem:[%s1 + $0x100] sm:$0xf]
  %v122 = vld [vmem:[%s1 + $0x104] sm:$0xf]
  %v123 = vld [vmem:[%s1 + $0x108] sm:$0xf]
  %v124 = vld [vmem:[%s1 + $0x10c] sm:$0xf]
  %v125 = vld [vmem:[%s1 + $0x110] sm:$0xf]
  %v126 = vld [vmem:[%s1 + $0x114] sm:$0xf]
  %v127 = vld [vmem:[%s1 + $0x118] sm:$0xf]
  %v128 = vld [vmem:[%s1 + $0x11c] sm:$0xf]
  %v129 = vld [vmem:[%s2] sm:$0x1]
  %v131 = vlaneseq
  %v132 = vshrl.u32 %v131, 7
  %v133 = vsub.s32 0, %v132
  %v134 = vrot.slane %v129, %v133
  %v178 = vunpack.c.l.b16 %v15
  %v179 = vunpack.c.h.b16 %v15
  %v180 = vunpack.c.l.b16 %v16
  %v181 = vunpack.c.h.b16 %v16
  %v182 = vunpack.c.l.b16 %v17
  %v183 = vunpack.c.l.b16 %v18
  %v184 = vunpack.c.h.b16 %v18
  %v185 = vunpack.c.l.b16 %v19
  %v186 = vunpack.c.h.b16 %v19
  %v187 = vunpack.c.l.b16 %v20
  %v188 = vunpack.c.l.b16 %v21
  %v189 = vunpack.c.h.b16 %v21
  %v190 = vunpack.c.l.b16 %v22
  %v191 = vunpack.c.h.b16 %v22
  %v192 = vunpack.c.l.b16 %v23
  %v193 = vunpack.c.l.b16 %v24
  %v194 = vunpack.c.h.b16 %v24
  %v195 = vunpack.c.l.b16 %v25
  %v196 = vunpack.c.h.b16 %v25
  %v197 = vunpack.c.l.b16 %v26
  %v198 = vunpack.c.l.b16 %v27
  %v199 = vunpack.c.h.b16 %v27
  %v200 = vunpack.c.l.b16 %v28
  %v201 = vunpack.c.h.b16 %v28
  %v202 = vunpack.c.l.b16 %v29
  %v203 = vunpack.c.l.b16 %v30
  %v204 = vunpack.c.h.b16 %v30
  %v205 = vunpack.c.l.b16 %v31
  %v206 = vunpack.c.h.b16 %v31
  %v207 = vunpack.c.l.b16 %v32
  %v208 = vunpack.c.l.b16 %v33
  %v209 = vunpack.c.h.b16 %v33
  %v210 = vunpack.c.l.b16 %v34
  %v211 = vunpack.c.h.b16 %v34
  %v212 = vunpack.c.l.b16 %v35
  %v213 = vunpack.c.l.b16 %v36
  %v214 = vunpack.c.h.b16 %v36
  %v215 = vunpack.c.l.b16 %v37
  %v216 = vunpack.c.h.b16 %v37
  %v217 = vunpack.c.l.b16 %v38
  %v218 = vunpack.c.l.b16 %v39
  %v219 = vunpack.c.h.b16 %v39
  %v220 = vunpack.c.l.b16 %v40
  %v221 = vunpack.c.h.b16 %v40
  %v222 = vunpack.c.l.b16 %v41
  %v223 = vunpack.c.l.b16 %v42
  %v224 = vunpack.c.h.b16 %v42
  %v225 = vunpack.c.l.b16 %v43
  %v226 = vunpack.c.h.b16 %v43
  %v227 = vunpack.c.l.b16 %v44
  %v228 = vunpack.c.l.b16 %v45
  %v229 = vunpack.c.h.b16 %v45
  %v230 = vunpack.c.l.b16 %v46
  %v231 = vunpack.c.h.b16 %v46
  %v232 = vunpack.c.l.b16 %v47
  %v233 = vunpack.c.l.b16 %v48
  %v234 = vunpack.c.h.b16 %v48
  %v235 = vunpack.c.l.b16 %v49
  %v236 = vunpack.c.h.b16 %v49
  %v237 = vunpack.c.l.b16 %v50
  %v238 = vunpack.c.l.b16 %v51
  %v239 = vunpack.c.h.b16 %v51
  %v240 = vunpack.c.l.b16 %v52
  %v241 = vunpack.c.h.b16 %v52
  %v242 = vunpack.c.l.b16 %v53
  %v243 = vunpack.c.l.b16 %v54
  %v244 = vunpack.c.h.b16 %v54
  %v245 = vunpack.c.l.b16 %v55
  %v246 = vunpack.c.h.b16 %v55
  %v247 = vunpack.c.l.b16 %v56
  %v248 = vpack.c.b16 %v183, %v178
  %v249 = vpack.c.b16 %v184, %v179
  %v250 = vpack.c.b16 %v185, %v180
  %v251 = vpack.c.b16 %v186, %v181
  %v252 = vpack.c.b16 %v187, %v182
  %v253 = vpack.c.b16 %v193, %v188
  %v254 = vpack.c.b16 %v194, %v189
  %v255 = vpack.c.b16 %v195, %v190
  %v256 = vpack.c.b16 %v196, %v191
  %v257 = vpack.c.b16 %v197, %v192
  %v258 = vpack.c.b16 %v203, %v198
  %v259 = vpack.c.b16 %v204, %v199
  %v260 = vpack.c.b16 %v205, %v200
  %v261 = vpack.c.b16 %v206, %v201
  %v262 = vpack.c.b16 %v207, %v202
  %v263 = vpack.c.b16 %v213, %v208
  %v264 = vpack.c.b16 %v214, %v209
  %v265 = vpack.c.b16 %v215, %v210
  %v266 = vpack.c.b16 %v216, %v211
  %v267 = vpack.c.b16 %v217, %v212
  %v268 = vpack.c.b16 %v223, %v218
  %v269 = vpack.c.b16 %v224, %v219
  %v270 = vpack.c.b16 %v225, %v220
  %v271 = vpack.c.b16 %v226, %v221
  %v272 = vpack.c.b16 %v227, %v222
  %v273 = vpack.c.b16 %v233, %v228
  %v274 = vpack.c.b16 %v234, %v229
  %v275 = vpack.c.b16 %v235, %v230
  %v276 = vpack.c.b16 %v236, %v231
  %v277 = vpack.c.b16 %v237, %v232
  %v278 = vpack.c.b16 %v243, %v238
  %v279 = vpack.c.b16 %v244, %v239
  %v280 = vpack.c.b16 %v245, %v240
  %v281 = vpack.c.b16 %v246, %v241
  %v282 = vpack.c.b16 %v247, %v242
  %v383 = vunpack.c.l.b16 %v57
  %v384 = vunpack.c.l.b16 %v58
  %v385 = vunpack.c.l.b16 %v59
  %v386 = vunpack.c.l.b16 %v60
  %v387 = vunpack.c.l.b16 %v61
  %v388 = vunpack.c.l.b16 %v62
  %v389 = vunpack.c.l.b16 %v63
  %v390 = vunpack.c.l.b16 %v64
  %v391 = vunpack.c.l.b16 %v65
  %v392 = vunpack.c.l.b16 %v66
  %v393 = vunpack.c.l.b16 %v67
  %v394 = vunpack.c.l.b16 %v68
  %v395 = vunpack.c.l.b16 %v69
  %v396 = vunpack.c.l.b16 %v70
  %v397 = vunpack.c.l.b16 %v71
  %v398 = vunpack.c.l.b16 %v72
  %v399 = vunpack.c.l.b16 %v73
  %v400 = vunpack.c.l.b16 %v74
  %v401 = vunpack.c.l.b16 %v75
  %v402 = vunpack.c.l.b16 %v76
  %v403 = vunpack.c.l.b16 %v77
  %v404 = vunpack.c.l.b16 %v78
  %v405 = vunpack.c.l.b16 %v79
  %v406 = vunpack.c.l.b16 %v80
  %v407 = vunpack.c.l.b16 %v81
  %v408 = vunpack.c.l.b16 %v82
  %v409 = vunpack.c.l.b16 %v83
  %v410 = vunpack.c.l.b16 %v84
  %v411 = vunpack.c.l.b16 %v85
  %v412 = vunpack.c.l.b16 %v86
  %v413 = vunpack.c.l.b16 %v87
  %v414 = vunpack.c.l.b16 %v88
  %v415 = vunpack.c.l.b16 %v89
  %v416 = vunpack.c.l.b16 %v90
  %v417 = vunpack.c.l.b16 %v91
  %v418 = vunpack.c.l.b16 %v92
  %v419 = vunpack.c.l.b16 %v93
  %v420 = vunpack.c.l.b16 %v94
  %v421 = vunpack.c.l.b16 %v95
  %v422 = vunpack.c.l.b16 %v96
  %v423 = vunpack.c.l.b16 %v97
  %v424 = vunpack.c.l.b16 %v98
  %v425 = vunpack.c.l.b16 %v99
  %v426 = vunpack.c.l.b16 %v100
  %v427 = vunpack.c.l.b16 %v101
  %v428 = vunpack.c.l.b16 %v102
  %v429 = vunpack.c.l.b16 %v103
  %v430 = vunpack.c.l.b16 %v104
  %v431 = vunpack.c.l.b16 %v105
  %v432 = vunpack.c.l.b16 %v106
  %v433 = vunpack.c.l.b16 %v107
  %v434 = vunpack.c.l.b16 %v108
  %v435 = vunpack.c.l.b16 %v109
  %v436 = vunpack.c.l.b16 %v110
  %v437 = vunpack.c.l.b16 %v111
  %v438 = vunpack.c.l.b16 %v112
  %v439 = vunpack.c.l.b16 %v113
  %v440 = vunpack.c.l.b16 %v114
  %v441 = vunpack.c.l.b16 %v115
  %v442 = vunpack.c.l.b16 %v116
  %v443 = vunpack.c.l.b16 %v117
  %v444 = vunpack.c.l.b16 %v118
  %v445 = vunpack.c.l.b16 %v119
  %v446 = vunpack.c.l.b16 %v120
  %v447 = vunpack.c.l.b16 %v121
  %v448 = vunpack.c.l.b16 %v122
  %v449 = vunpack.c.l.b16 %v123
  %v450 = vunpack.c.l.b16 %v124
  %v451 = vunpack.c.l.b16 %v125
  %v452 = vunpack.c.l.b16 %v126
  %v453 = vunpack.c.l.b16 %v127
  %v454 = vunpack.c.l.b16 %v128
  %v455 = vpack.c.b16 %v384, %v383
  %v456 = vpack.c.b16 %v386, %v385
  %v457 = vpack.c.b16 %v388, %v387
  %v458 = vpack.c.b16 %v390, %v389
  %v459 = vpack.c.b16 %v392, %v391
  %v460 = vpack.c.b16 %v394, %v393
  %v461 = vpack.c.b16 %v396, %v395
  %v462 = vpack.c.b16 %v398, %v397
  %v463 = vpack.c.b16 %v400, %v399
  %v464 = vpack.c.b16 %v402, %v401
  %v465 = vpack.c.b16 %v404, %v403
  %v466 = vpack.c.b16 %v406, %v405
  %v467 = vpack.c.b16 %v408, %v407
  %v468 = vpack.c.b16 %v410, %v409
  %v469 = vpack.c.b16 %v412, %v411
  %v470 = vpack.c.b16 %v414, %v413
  %v471 = vpack.c.b16 %v416, %v415
  %v472 = vpack.c.b16 %v418, %v417
  %v473 = vpack.c.b16 %v420, %v419
  %v474 = vpack.c.b16 %v422, %v421
  %v475 = vpack.c.b16 %v424, %v423
  %v476 = vpack.c.b16 %v426, %v425
  %v477 = vpack.c.b16 %v428, %v427
  %v478 = vpack.c.b16 %v430, %v429
  %v479 = vpack.c.b16 %v432, %v431
  %v480 = vpack.c.b16 %v434, %v433
  %v481 = vpack.c.b16 %v436, %v435
  %v482 = vpack.c.b16 %v438, %v437
  %v483 = vpack.c.b16 %v440, %v439
  %v484 = vpack.c.b16 %v442, %v441
  %v485 = vpack.c.b16 %v444, %v443
  %v486 = vpack.c.b16 %v446, %v445
  %v487 = vpack.c.b16 %v448, %v447
  %v488 = vpack.c.b16 %v450, %v449
  %v489 = vpack.c.b16 %v452, %v451
  %v490 = vpack.c.b16 %v454, %v453
  %vm527 = vcmask 523264
  %v529 = vsel %vm527, %v252, 0
  %v532 = vsel %vm527, %v257, 0
  %v535 = vsel %vm527, %v262, 0
  %v538 = vsel %vm527, %v267, 0
  %v541 = vsel %vm527, %v272, 0
  %v544 = vsel %vm527, %v277, 0
  %v547 = vsel %vm527, %v282, 0
  %549 = vmatprep.subr.bf16.mxu0 0
  %550 = vmatpush1.bf16.msra.mxu0 %v455
  %551 = vmatprep.subr.bf16.mxu0 0
  %552 = vmatpush1.bf16.msra.mxu0 %v456
  %553 = vmatprep.subr.bf16.mxu0 0
  %554 = vmatpush1.bf16.msra.mxu0 %v457
  %555 = vmatprep.subr.bf16.mxu0 0
  %556 = vmatpush1.bf16.msra.mxu0 %v458
  %557 = vmatprep.subr.bf16.mxu0 0
  %558 = vmatpush1.bf16.msra.mxu0 %v459
  %559 = vmatprep.subr.bf16.mxu0 0
  %560 = vmatpush1.bf16.msra.mxu0 %v460
  %561 = vmatprep.subr.bf16.mxu0 0
  %562 = vmatpush1.bf16.msra.mxu0 %v461
  %563 = vmatprep.subr.bf16.mxu0 0
  %564 = vmatpush1.bf16.msra.mxu0 %v462
  %565 = vmatprep.subr.bf16.mxu0 0
  %566 = vmatpush1.bf16.msra.mxu0 %v463
  %567 = vmatprep.subr.bf16.mxu0 0
  %568 = vmatpush1.bf16.msra.mxu0 %v464
  %569 = vmatprep.subr.bf16.mxu0 0
  %570 = vmatpush1.bf16.msra.mxu0 %v465
  %571 = vmatprep.subr.bf16.mxu0 0
  %572 = vmatpush1.bf16.msra.mxu0 %v466
  %573 = vmatprep.subr.bf16.mxu0 0
  %574 = vmatpush1.bf16.msra.mxu0 %v467
  %575 = vmatprep.subr.bf16.mxu0 0
  %576 = vmatpush1.bf16.msra.mxu0 %v468
  %577 = vmatprep.subr.bf16.mxu0 0
  %578 = vmatpush1.bf16.msra.mxu0 %v469
  %579 = vmatprep.subr.bf16.mxu0 0
  %580 = vmatpush1.bf16.msra.mxu0 %v470
  %581 = vmatprep.mubr.bf16.mxu0 %v249
  %582 = vmatmul.mubr.bf16.gmra.mrb[0].mxu0 %v248
  %v583 = vpop.f32.mrb[0].mxu0
  %v584 = vadd.f32 %v134, %v583
  %v585 = vpop.f32.mrb[0].mxu0
  %v586 = vpop.f32.mrb[0].mxu0
  %v587 = vadd.f32 %v134, %v586
  %v588 = vpop.f32.mrb[0].mxu0
  %589 = vmatprep.mubr.bf16.mxu0 %v254
  %590 = vmatmul.mubr.bf16.gmra.mrb[0].mxu0 %v253
  %v591 = vpop.f32.mrb[0].mxu0
  %v592 = vadd.f32 %v134, %v591
  %v593 = vpop.f32.mrb[0].mxu0
  %v594 = vpop.f32.mrb[0].mxu0
  %v595 = vadd.f32 %v134, %v594
  %v596 = vpop.f32.mrb[0].mxu0
  %597 = vmatprep.mubr.bf16.mxu0 %v259
  %598 = vmatmul.mubr.bf16.gmra.mrb[0].mxu0 %v258
  %v599 = vpop.f32.mrb[0].mxu0
  %v600 = vadd.f32 %v134, %v599
  %v601 = vpop.f32.mrb[0].mxu0
  %v602 = vpop.f32.mrb[0].mxu0
  %v603 = vadd.f32 %v134, %v602
  %v604 = vpop.f32.mrb[0].mxu0
  %605 = vmatprep.mubr.bf16.mxu0 %v264
  %606 = vmatmul.mubr.bf16.gmra.mrb[0].mxu0 %v263
  %v607 = vpop.f32.mrb[0].mxu0
  %v608 = vadd.f32 %v134, %v607
  %v609 = vpop.f32.mrb[0].mxu0
  %v610 = vpop.f32.mrb[0].mxu0
  %v611 = vadd.f32 %v134, %v610
  %v612 = vpop.f32.mrb[0].mxu0
  %613 = vmatprep.mubr.bf16.mxu0 %v269
  %614 = vmatmul.mubr.bf16.gmra.mrb[0].mxu0 %v268
  %v615 = vpop.f32.mrb[0].mxu0
  %v616 = vadd.f32 %v134, %v615
  %v617 = vpop.f32.mrb[0].mxu0
  %v618 = vpop.f32.mrb[0].mxu0
  %v619 = vadd.f32 %v134, %v618
  %v620 = vpop.f32.mrb[0].mxu0
  %621 = vmatprep.mubr.bf16.mxu0 %v274
  %622 = vmatmul.mubr.bf16.gmra.mrb[0].mxu0 %v273
  %v623 = vpop.f32.mrb[0].mxu0
  %v624 = vadd.f32 %v134, %v623
  %v625 = vpop.f32.mrb[0].mxu0
  %v626 = vpop.f32.mrb[0].mxu0
  %v627 = vadd.f32 %v134, %v626
  %v628 = vpop.f32.mrb[0].mxu0
  %629 = vmatprep.mubr.bf16.mxu0 %v279
  %630 = vmatmul.mubr.bf16.gmra.mrb[0].mxu0 %v278
  %v631 = vpop.f32.mrb[0].mxu0
  %v632 = vadd.f32 %v134, %v631
  %v633 = vpop.f32.mrb[0].mxu0
  %v634 = vpop.f32.mrb[0].mxu0
  %v635 = vadd.f32 %v134, %v634
  %v636 = vpop.f32.mrb[0].mxu0
  %637 = vdwg.mxu0
  %638 = vmatprep.subr.bf16.mxu0 0
  %639 = vmatpush1.bf16.msra.mxu0 %v471
  %640 = vmatprep.subr.bf16.mxu0 0
  %641 = vmatpush1.bf16.msra.mxu0 %v472
  %642 = vmatprep.subr.bf16.mxu0 0
  %643 = vmatpush1.bf16.msra.mxu0 %v473
  %644 = vmatprep.subr.bf16.mxu0 0
  %645 = vmatpush1.bf16.msra.mxu0 %v474
  %646 = vmatprep.subr.bf16.mxu0 0
  %647 = vmatpush1.bf16.msra.mxu0 %v475
  %648 = vmatprep.subr.bf16.mxu0 0
  %649 = vmatpush1.bf16.msra.mxu0 %v476
  %650 = vmatprep.subr.bf16.mxu0 0
  %651 = vmatpush1.bf16.msra.mxu0 %v477
  %652 = vmatprep.subr.bf16.mxu0 0
  %653 = vmatpush1.bf16.msra.mxu0 %v478
  %654 = vmatprep.subr.bf16.mxu0 0
  %655 = vmatpush1.bf16.msra.mxu0 %v479
  %656 = vmatprep.subr.bf16.mxu0 0
  %657 = vmatpush1.bf16.msra.mxu0 %v480
  %658 = vmatprep.subr.bf16.mxu0 0
  %659 = vmatpush1.bf16.msra.mxu0 %v481
  %660 = vmatprep.subr.bf16.mxu0 0
  %661 = vmatpush1.bf16.msra.mxu0 %v482
  %662 = vmatprep.subr.bf16.mxu0 0
  %663 = vmatpush1.bf16.msra.mxu0 %v483
  %664 = vmatprep.subr.bf16.mxu0 0
  %665 = vmatpush1.bf16.msra.mxu0 %v484
  %666 = vmatprep.subr.bf16.mxu0 0
  %667 = vmatpush1.bf16.msra.mxu0 %v485
  %668 = vmatprep.subr.bf16.mxu0 0
  %669 = vmatpush1.bf16.msra.mxu0 %v486
  %670 = vmatprep.mubr.bf16.mxu0 %v251
  %671 = vmatmul.mubr.bf16.gmra.mrb[0].mxu0 %v250
  %v672 = vpop.f32.mrb[0].mxu0
  %v673 = vadd.f32 %v584, %v672
  %v674 = vpop.f32.mrb[0].mxu0
  %v675 = vpop.f32.mrb[0].mxu0
  %v676 = vadd.f32 %v587, %v675
  %v677 = vpop.f32.mrb[0].mxu0
  %678 = vmatprep.mubr.bf16.mxu0 %v256
  %679 = vmatmul.mubr.bf16.gmra.mrb[0].mxu0 %v255
  %v680 = vpop.f32.mrb[0].mxu0
  %v681 = vadd.f32 %v592, %v680
  %v682 = vpop.f32.mrb[0].mxu0
  %v683 = vpop.f32.mrb[0].mxu0
  %v684 = vadd.f32 %v595, %v683
  %v685 = vpop.f32.mrb[0].mxu0
  %686 = vmatprep.mubr.bf16.mxu0 %v261
  %687 = vmatmul.mubr.bf16.gmra.mrb[0].mxu0 %v260
  %v688 = vpop.f32.mrb[0].mxu0
  %v689 = vadd.f32 %v600, %v688
  %v690 = vpop.f32.mrb[0].mxu0
  %v691 = vpop.f32.mrb[0].mxu0
  %v692 = vadd.f32 %v603, %v691
  %v693 = vpop.f32.mrb[0].mxu0
  %694 = vmatprep.mubr.bf16.mxu0 %v266
  %695 = vmatmul.mubr.bf16.gmra.mrb[0].mxu0 %v265
  %v696 = vpop.f32.mrb[0].mxu0
  %v697 = vadd.f32 %v608, %v696
  %v698 = vpop.f32.mrb[0].mxu0
  %v699 = vpop.f32.mrb[0].mxu0
  %v700 = vadd.f32 %v611, %v699
  %v701 = vpop.f32.mrb[0].mxu0
  %702 = vmatprep.mubr.bf16.mxu0 %v271
  %703 = vmatmul.mubr.bf16.gmra.mrb[0].mxu0 %v270
  %v704 = vpop.f32.mrb[0].mxu0
  %v705 = vadd.f32 %v616, %v704
  %v706 = vpop.f32.mrb[0].mxu0
  %v707 = vpop.f32.mrb[0].mxu0
  %v708 = vadd.f32 %v619, %v707
  %v709 = vpop.f32.mrb[0].mxu0
  %710 = vmatprep.mubr.bf16.mxu0 %v276
  %711 = vmatmul.mubr.bf16.gmra.mrb[0].mxu0 %v275
  %v712 = vpop.f32.mrb[0].mxu0
  %v713 = vadd.f32 %v624, %v712
  %v714 = vpop.f32.mrb[0].mxu0
  %v715 = vpop.f32.mrb[0].mxu0
  %v716 = vadd.f32 %v627, %v715
  %v717 = vpop.f32.mrb[0].mxu0
  %718 = vmatprep.mubr.bf16.mxu0 %v281
  %719 = vmatmul.mubr.bf16.gmra.mrb[0].mxu0 %v280
  %v720 = vpop.f32.mrb[0].mxu0
  %v721 = vadd.f32 %v632, %v720
  %v722 = vpop.f32.mrb[0].mxu0
  %v723 = vpop.f32.mrb[0].mxu0
  %v724 = vadd.f32 %v635, %v723
  %v725 = vpop.f32.mrb[0].mxu0
  %726 = vdwg.mxu0
  %727 = vmatprep.subr.bf16.mxu0 0
  %728 = vmatpush1.bf16.msra.mxu0 %v487
  %729 = vmatprep.subr.bf16.mxu0 0
  %730 = vmatpush1.bf16.msra.mxu0 %v488
  %731 = vmatprep.subr.bf16.mxu0 0
  %732 = vmatpush1.bf16.msra.mxu0 %v489
  %733 = vmatprep.subr.bf16.mxu0 0
  %734 = vmatpush1.bf16.msra.mxu0 %v490
  %735 = vmatprep.subr.bf16.mxu0 0
  %736 = vmatpush1.bf16.msra.mxu0 0
  %737 = vmatprep.subr.bf16.mxu0 0
  %738 = vmatpush1.bf16.msra.mxu0 0
  %739 = vmatprep.subr.bf16.mxu0 0
  %740 = vmatpush1.bf16.msra.mxu0 0
  %741 = vmatprep.subr.bf16.mxu0 0
  %742 = vmatpush1.bf16.msra.mxu0 0
  %743 = vmatprep.subr.bf16.mxu0 0
  %744 = vmatpush1.bf16.msra.mxu0 0
  %745 = vmatprep.subr.bf16.mxu0 0
  %746 = vmatpush1.bf16.msra.mxu0 0
  %747 = vmatprep.subr.bf16.mxu0 0
  %748 = vmatpush1.bf16.msra.mxu0 0
  %749 = vmatprep.subr.bf16.mxu0 0
  %750 = vmatpush1.bf16.msra.mxu0 0
  %751 = vmatprep.subr.bf16.mxu0 0
  %752 = vmatpush1.bf16.msra.mxu0 0
  %753 = vmatprep.subr.bf16.mxu0 0
  %754 = vmatpush1.bf16.msra.mxu0 0
  %755 = vmatprep.subr.bf16.mxu0 0
  %756 = vmatpush1.bf16.msra.mxu0 0
  %757 = vmatprep.subr.bf16.mxu0 0
  %758 = vmatpush1.bf16.msra.mxu0 0
  %759 = vmatprep.mubr.bf16.mxu0 0
  %760 = vmatmul.mubr.bf16.gmra.mrb[0].mxu0 %v529
  %v761 = vpop.f32.mrb[0].mxu0
  %v762 = vadd.f32 %v673, %v761
  %v763 = vpop.f32.mrb[0].mxu0
  %v764 = vpop.f32.mrb[0].mxu0
  %v765 = vadd.f32 %v676, %v764
  %v766 = vpop.f32.mrb[0].mxu0
  %767 = vmatprep.mubr.bf16.mxu0 0
  %768 = vmatmul.mubr.bf16.gmra.mrb[0].mxu0 %v532
  %v769 = vpop.f32.mrb[0].mxu0
  %v770 = vadd.f32 %v681, %v769
  %v771 = vpop.f32.mrb[0].mxu0
  %v772 = vpop.f32.mrb[0].mxu0
  %v773 = vadd.f32 %v684, %v772
  %v774 = vpop.f32.mrb[0].mxu0
  %775 = vmatprep.mubr.bf16.mxu0 0
  %776 = vmatmul.mubr.bf16.gmra.mrb[0].mxu0 %v535
  %v777 = vpop.f32.mrb[0].mxu0
  %v778 = vadd.f32 %v689, %v777
  %v779 = vpop.f32.mrb[0].mxu0
  %v780 = vpop.f32.mrb[0].mxu0
  %v781 = vadd.f32 %v692, %v780
  %v782 = vpop.f32.mrb[0].mxu0
  %783 = vmatprep.mubr.bf16.mxu0 0
  %784 = vmatmul.mubr.bf16.gmra.mrb[0].mxu0 %v538
  %v785 = vpop.f32.mrb[0].mxu0
  %v786 = vadd.f32 %v697, %v785
  %v787 = vpop.f32.mrb[0].mxu0
  %v788 = vpop.f32.mrb[0].mxu0
  %v789 = vadd.f32 %v700, %v788
  %v790 = vpop.f32.mrb[0].mxu0
  %791 = vmatprep.mubr.bf16.mxu0 0
  %792 = vmatmul.mubr.bf16.gmra.mrb[0].mxu0 %v541
  %v793 = vpop.f32.mrb[0].mxu0
  %v794 = vadd.f32 %v705, %v793
  %v795 = vpop.f32.mrb[0].mxu0
  %v796 = vpop.f32.mrb[0].mxu0
  %v797 = vadd.f32 %v708, %v796
  %v798 = vpop.f32.mrb[0].mxu0
  %799 = vmatprep.mubr.bf16.mxu0 0
  %800 = vmatmul.mubr.bf16.gmra.mrb[0].mxu0 %v544
  %v801 = vpop.f32.mrb[0].mxu0
  %v802 = vadd.f32 %v713, %v801
  %v803 = vpop.f32.mrb[0].mxu0
  %v804 = vpop.f32.mrb[0].mxu0
  %v805 = vadd.f32 %v716, %v804
  %v806 = vpop.f32.mrb[0].mxu0
  %807 = vmatprep.mubr.bf16.mxu0 0
  %808 = vmatmul.mubr.bf16.gmra.mrb[0].mxu0 %v547
  %v809 = vpop.f32.mrb[0].mxu0
  %v810 = vadd.f32 %v721, %v809
  %v811 = vpop.f32.mrb[0].mxu0
  %v812 = vpop.f32.mrb[0].mxu0
  %v813 = vadd.f32 %v724, %v812
  %v814 = vpop.f32.mrb[0].mxu0
  %815 = vdwg.mxu0
  %vm816 = vcmp.ge.f32.partialorder %v762, 0.0
  %vm817 = vcmp.ge.f32.partialorder %v765, 0.0
  %vm818 = vcmp.ge.f32.partialorder %v770, 0.0
  %vm819 = vcmp.ge.f32.partialorder %v773, 0.0
  %vm820 = vcmp.ge.f32.partialorder %v778, 0.0
  %vm821 = vcmp.ge.f32.partialorder %v781, 0.0
  %vm822 = vcmp.ge.f32.partialorder %v786, 0.0
  %vm823 = vcmp.ge.f32.partialorder %v789, 0.0
  %vm824 = vcmp.ge.f32.partialorder %v794, 0.0
  %vm825 = vcmp.ge.f32.partialorder %v797, 0.0
  %vm826 = vcmp.ge.f32.partialorder %v802, 0.0
  %vm827 = vcmp.ge.f32.partialorder %v805, 0.0
  %vm828 = vcmp.ge.f32.partialorder %v810, 0.0
  %vm829 = vcmp.ge.f32.partialorder %v813, 0.0
  %v830 = vmul.f32 %v762, 0.2
  %v831 = vmul.f32 %v765, 0.2
  %v832 = vmul.f32 %v770, 0.2
  %v833 = vmul.f32 %v773, 0.2
  %v834 = vmul.f32 %v778, 0.2
  %v835 = vmul.f32 %v781, 0.2
  %v836 = vmul.f32 %v786, 0.2
  %v837 = vmul.f32 %v789, 0.2
  %v838 = vmul.f32 %v794, 0.2
  %v839 = vmul.f32 %v797, 0.2
  %v840 = vmul.f32 %v802, 0.2
  %v841 = vmul.f32 %v805, 0.2
  %v842 = vmul.f32 %v810, 0.2
  %v843 = vmul.f32 %v813, 0.2
  %v844 = vsel %vm816, %v762, %v830
  %v845 = vsel %vm817, %v765, %v831
  %v846 = vsel %vm818, %v770, %v832
  %v847 = vsel %vm819, %v773, %v833
  %v848 = vsel %vm820, %v778, %v834
  %v849 = vsel %vm821, %v781, %v835
  %v850 = vsel %vm822, %v786, %v836
  %v851 = vsel %vm823, %v789, %v837
  %v852 = vsel %vm824, %v794, %v838
  %v853 = vsel %vm825, %v797, %v839
  %v854 = vsel %vm826, %v802, %v840
  %v855 = vsel %vm827, %v805, %v841
  %v856 = vsel %vm828, %v810, %v842
  %v857 = vsel %vm829, %v813, %v843
  %v858 = vpack.c.bf16 %v845, %v844
  %v859 = vpack.c.bf16 %v847, %v846
  %v860 = vpack.c.bf16 %v849, %v848
  %v861 = vpack.c.bf16 %v851, %v850
  %v862 = vpack.c.bf16 %v853, %v852
  %v863 = vpack.c.bf16 %v855, %v854
  %v864 = vpack.c.bf16 %v857, %v856
  %v872 = vunpack.c.l.b16 %v858
  %v873 = vunpack.c.h.b16 %v858
  %v874 = vunpack.c.l.b16 %v859
  %v875 = vunpack.c.h.b16 %v859
  %v876 = vunpack.c.l.b16 %v860
  %v877 = vunpack.c.h.b16 %v860
  %v878 = vunpack.c.l.b16 %v861
  %v879 = vunpack.c.h.b16 %v861
  %v880 = vunpack.c.l.b16 %v862
  %v881 = vunpack.c.h.b16 %v862
  %v882 = vunpack.c.l.b16 %v863
  %v883 = vunpack.c.h.b16 %v863
  %v884 = vunpack.c.l.b16 %v864
  %v885 = vunpack.c.h.b16 %v864
  %v886 = vpack.c.b16 %v872, %v872
  %v887 = vpack.c.b16 %v873, %v873
  %v888 = vpack.c.b16 %v874, %v874
  %v889 = vpack.c.b16 %v875, %v875
  %v890 = vpack.c.b16 %v876, %v876
  %v891 = vpack.c.b16 %v877, %v877
  %v892 = vpack.c.b16 %v878, %v878
  %v893 = vpack.c.b16 %v879, %v879
  %v894 = vpack.c.b16 %v880, %v880
  %v895 = vpack.c.b16 %v881, %v881
  %v896 = vpack.c.b16 %v882, %v882
  %v897 = vpack.c.b16 %v883, %v883
  %v898 = vpack.c.b16 %v884, %v884
  %v899 = vpack.c.b16 %v885, %v885
  %914 = vst [vmem:[%s3] sm:$0xf] %v886
  %915 = vst [vmem:[%s3 + $0x4] sm:$0xf] %v887
  %916 = vst [vmem:[%s3 + $0x8] sm:$0xf] %v888
  %917 = vst [vmem:[%s3 + $0xc] sm:$0xf] %v889
  %918 = vst [vmem:[%s3 + $0x10] sm:$0xf] %v890
  %919 = vst [vmem:[%s3 + $0x14] sm:$0xf] %v891
  %920 = vst [vmem:[%s3 + $0x18] sm:$0xf] %v892
  %921 = vst [vmem:[%s3 + $0x1c] sm:$0xf] %v893
  %922 = vst [vmem:[%s3 + $0x20] sm:$0xf] %v894
  %923 = vst [vmem:[%s3 + $0x24] sm:$0xf] %v895
  %924 = vst [vmem:[%s3 + $0x28] sm:$0xf] %v896
  %925 = vst [vmem:[%s3 + $0x2c] sm:$0xf] %v897
  %926 = vst [vmem:[%s3 + $0x30] sm:$0xf] %v898
  %927 = vst [vmem:[%s3 + $0x34] sm:$0xf] %v899
  // Predicated region
  $region14: #{vae_forward.8} parent=0 // pred_check
    _
  $region15: #{vae_forward.8} parent=0 // pred_check_branch
    %929 = sbr.rel (0) target = $region17
  $region16: #{vae_forward.8} parent=0 // pred_region
    _
  $region17: #{vae_forward.8} parent=0 // pred_fallthru
    _
  // Predicated region
  $region18: #{vae_forward.8} parent=0 // pred_check
    _
  $region19: #{vae_forward.8} parent=0 // pred_check_branch
    %931 = sbr.rel (0) target = $region21
  $region20: #{vae_forward.8} parent=0 // pred_region
    _
  $region21: #{vae_forward.8} parent=0 // pred_fallthru
    _

// kernel: vae_forward.7
$region0: #{vae_forward.7}
  #allocation0 [shape = 'u32[]', space=smem, size = 0x4, offset = 0x4, fixed_abs, tag = 'smem constant byte address 0x4 - core index']
  #allocation1 [shape = 'u32[144,128]{1,0:T(1,128)}', space=vmem, size = 0x12000, scoped, tag = 'internal scratch']
  %s0 = inlined_call_operand.vmem [shape: bf16[2,3136], index: 0, kind: input, shape index: {}]
  %s1 = inlined_call_operand.vmem [shape: bf16[3136,8], index: 1, kind: input, shape index: {}]
  %s2 = inlined_call_operand.vmem [shape: f32[1,8], index: 2, kind: input, shape index: {}]
  %s3 = inlined_call_operand.vmem [shape: bf16[3136,8], index: 3, kind: input, shape index: {}]
  %s4 = inlined_call_operand.vmem [shape: f32[1,8], index: 4, kind: input, shape index: {}]
  %s5 = inlined_call_operand.vmem [shape: f32[2,8], index: 5, kind: input, shape index: {}]
  %s6 = inlined_call_operand.vmem [shape: bf16[8,3136], index: 6, kind: input, shape index: {}]
  %s7 = inlined_call_operand.vmem [shape: f32[1,3136], index: 7, kind: input, shape index: {}]
  %s8 = inlined_call_operand.hbm [shape: f32[2,8], index: 8, kind: output, shape index: {0}]
  %s9 = inlined_call_operand.hbm [shape: f32[2,8], index: 9, kind: output, shape index: {1}]
  %s10 = inlined_call_operand.vmem [shape: bf16[2,3136], index: 10, kind: output, shape index: {2}]
  %11 = xla_tuple %s8, %s9, %s10
  %s12 = sld [smem:[#allocation0]]
  $region58: #{vae_forward.7} parent=0
    _
  %s14 = ssub.s32 1, %s12
  %s15 = scalar_select 0, %s14, %s12
  $region1: #{vae_forward.7} parent=0
    #allocation2 [shape = 'u8[1024]{0}', space=vmem, size = 0x400, scoped, tag = 'output window, operand 0, single buffered']
    #allocation3 [shape = 's32[1]{0}', space=sflag, size = 0x4, scoped, tag = 'scoped memory for vae_forward.7']
    #allocation4 [shape = 'u8[1024]{0}', space=vmem, size = 0x400, scoped, tag = 'output window, operand 1, single buffered']
    #allocation5 [shape = 's32[1]{0}', space=sflag, size = 0x4, scoped, tag = 'scoped memory for vae_forward.7']
    %16 = vsyncpa [#allocation3], 0
    %17 = vsyncpa [#allocation5], 0
    // Predicated region
    $region2: #{vae_forward.7} parent=1 // pred_check
      _
    $region3: #{vae_forward.7} parent=1 // pred_check_branch
      %19 = sbr.rel (0) target = $region5
    $region4: #{vae_forward.7} parent=1 // pred_region
      _
    $region5: #{vae_forward.7} parent=1 // pred_fallthru
      _
    // Predicated region
    $region6: #{vae_forward.7} parent=1 // pred_check
      _
    $region7: #{vae_forward.7} parent=1 // pred_check_branch
      %21 = sbr.rel (0) target = $region9
    $region8: #{vae_forward.7} parent=1 // pred_region
      _
    $region9: #{vae_forward.7} parent=1 // pred_fallthru
      _
    // Predicated region
    $region10: #{vae_forward.7} parent=1 // pred_check
      _
    $region11: #{vae_forward.7} parent=1 // pred_check_branch
      %23 = sbr.rel (0) target = $region13
    $region12: #{vae_forward.7} parent=1 // pred_region
      _
    $region13: #{vae_forward.7} parent=1 // pred_fallthru
      _
    // Predicated region
    $region14: #{vae_forward.7} parent=1 // pred_check
      _
    $region15: #{vae_forward.7} parent=1 // pred_check_branch
      %25 = sbr.rel (0) target = $region17
    $region16: #{vae_forward.7} parent=1 // pred_region
      _
    $region17: #{vae_forward.7} parent=1 // pred_fallthru
      _
    // Predicated region
    $region18: #{vae_forward.7} parent=1 // pred_check
      _
    $region19: #{vae_forward.7} parent=1 // pred_check_branch
      %27 = sbr.rel (0) target = $region21
    $region20: #{vae_forward.7} parent=1 // pred_region
      _
    $region21: #{vae_forward.7} parent=1 // pred_fallthru
      _
    // Predicated region
    $region22: #{vae_forward.7} parent=1 // pred_check
      _
    $region23: #{vae_forward.7} parent=1 // pred_check_branch
      %29 = sbr.rel (0) target = $region25
    $region24: #{vae_forward.7} parent=1 // pred_region
      _
    $region25: #{vae_forward.7} parent=1 // pred_fallthru
      _
    // Predicated region
    $region26: #{vae_forward.7} parent=1 // pred_check
      _
    $region27: #{vae_forward.7} parent=1 // pred_check_branch
      %31 = sbr.rel (0) target = $region29
    $region28: #{vae_forward.7} parent=1 // pred_region
      _
    $region29: #{vae_forward.7} parent=1 // pred_fallthru
      _
    // Predicated region
    $region30: #{vae_forward.7} parent=1 // pred_check
      _
    $region31: #{vae_forward.7} parent=1 // pred_check_branch
      %33 = sbr.rel (0) target = $region33
    $region32: #{vae_forward.7} parent=1 // pred_region
      _
    $region33: #{vae_forward.7} parent=1 // pred_fallthru
      _
    %v35 = vld [vmem:[%s0] sm:$0xff]
    %v36 = vld [vmem:[%s0 + $0x8] sm:$0xff]
    %v37 = vld [vmem:[%s0 + $0x10] sm:$0xff]
    %v38 = vld [vmem:[%s0 + $0x18] sm:$0x1]
    %v39 = vld [vmem:[%s1] sm:$0xf]
    %v40 = vld [vmem:[%s1 + $0x4] sm:$0xf]
    %v41 = vld [vmem:[%s1 + $0x8] sm:$0xf]
    %v42 = vld [vmem:[%s1 + $0xc] sm:$0xf]
    %v43 = vld [vmem:[%s1 + $0x10] sm:$0xf]
    %v44 = vld [vmem:[%s1 + $0x14] sm:$0xf]
    %v45 = vld [vmem:[%s1 + $0x18] sm:$0xf]
    %v46 = vld [vmem:[%s1 + $0x1c] sm:$0xf]
    %v47 = vld [vmem:[%s1 + $0x20] sm:$0xf]
    %v48 = vld [vmem:[%s1 + $0x24] sm:$0xf]
    %v49 = vld [vmem:[%s1 + $0x28] sm:$0xf]
    %v50 = vld [vmem:[%s1 + $0x2c] sm:$0xf]
    %v51 = vld [vmem:[%s1 + $0x30] sm:$0xf]
    %v52 = vld [vmem:[%s1 + $0x34] sm:$0xf]
    %v53 = vld [vmem:[%s1 + $0x38] sm:$0xf]
    %v54 = vld [vmem:[%s1 + $0x3c] sm:$0xf]
    %v55 = vld [vmem:[%s1 + $0x40] sm:$0xf]
    %v56 = vld [vmem:[%s1 + $0x44] sm:$0xf]
    %v57 = vld [vmem:[%s1 + $0x48] sm:$0xf]
    %v58 = vld [vmem:[%s1 + $0x4c] sm:$0xf]
    %v59 = vld [vmem:[%s1 + $0x50] sm:$0xf]
    %v60 = vld [vmem:[%s1 + $0x54] sm:$0xf]
    %v61 = vld [vmem:[%s1 + $0x58] sm:$0xf]
    %v62 = vld [vmem:[%s1 + $0x5c] sm:$0xf]
    %v63 = vld [vmem:[%s1 + $0x60] sm:$0xf]
    %v64 = vld [vmem:[%s1 + $0x64] sm:$0xf]
    %v65 = vld [vmem:[%s1 + $0x68] sm:$0xf]
    %v66 = vld [vmem:[%s1 + $0x6c] sm:$0xf]
    %v67 = vld [vmem:[%s1 + $0x70] sm:$0xf]
    %v68 = vld [vmem:[%s1 + $0x74] sm:$0xf]
    %v69 = vld [vmem:[%s1 + $0x78] sm:$0xf]
    %v70 = vld [vmem:[%s1 + $0x7c] sm:$0xf]
    %v71 = vld [vmem:[%s1 + $0x80] sm:$0xf]
    %v72 = vld [vmem:[%s1 + $0x84] sm:$0xf]
    %v73 = vld [vmem:[%s1 + $0x88] sm:$0xf]
    %v74 = vld [vmem:[%s1 + $0x8c] sm:$0xf]
    %v75 = vld [vmem:[%s1 + $0x90] sm:$0xf]
    %v76 = vld [vmem:[%s1 + $0x94] sm:$0xf]
    %v77 = vld [vmem:[%s1 + $0x98] sm:$0xf]
    %v78 = vld [vmem:[%s1 + $0x9c] sm:$0xf]
    %v79 = vld [vmem:[%s1 + $0xa0] sm:$0xf]
    %v80 = vld [vmem:[%s1 + $0xa4] sm:$0xf]
    %v81 = vld [vmem:[%s1 + $0xa8] sm:$0xf]
    %v82 = vld [vmem:[%s1 + $0xac] sm:$0xf]
    %v83 = vld [vmem:[%s1 + $0xb0] sm:$0xf]
    %v84 = vld [vmem:[%s1 + $0xb4] sm:$0xf]
    %v85 = vld [vmem:[%s1 + $0xb8] sm:$0xf]
    %v86 = vld [vmem:[%s1 + $0xbc] sm:$0xf]
    %v87 = vld [vmem:[%s1 + $0xc0] sm:$0xf]
    %v88 = vld [vmem:[%s1 + $0xc4] sm:$0xf]
    %v89 = vld [vmem:[%s1 + $0xc8] sm:$0xf]
    %v90 = vld [vmem:[%s1 + $0xcc] sm:$0xf]
    %v91 = vld [vmem:[%s1 + $0xd0] sm:$0xf]
    %v92 = vld [vmem:[%s1 + $0xd4] sm:$0xf]
    %v93 = vld [vmem:[%s1 + $0xd8] sm:$0xf]
    %v94 = vld [vmem:[%s1 + $0xdc] sm:$0xf]
    %v95 = vld [vmem:[%s1 + $0xe0] sm:$0xf]
    %v96 = vld [vmem:[%s1 + $0xe4] sm:$0xf]
    %v97 = vld [vmem:[%s1 + $0xe8] sm:$0xf]
    %v98 = vld [vmem:[%s1 + $0xec] sm:$0xf]
    %v99 = vld [vmem:[%s1 + $0xf0] sm:$0xf]
    %v100 = vld [vmem:[%s1 + $0xf4] sm:$0xf]
    %v101 = vld [vmem:[%s1 + $0xf8] sm:$0xf]
    %v102 = vld [vmem:[%s1 + $0xfc] sm:$0xf]
    %v103 = vld [vmem:[%s1 + $0x100] sm:$0xf]
    %v104 = vld [vmem:[%s1 + $0x104] sm:$0xf]
    %v105 = vld [vmem:[%s1 + $0x108] sm:$0xf]
    %v106 = vld [vmem:[%s1 + $0x10c] sm:$0xf]
    %v107 = vld [vmem:[%s1 + $0x110] sm:$0xf]
    %v108 = vld [vmem:[%s1 + $0x114] sm:$0xf]
    %v109 = vld [vmem:[%s1 + $0x118] sm:$0xf]
    %v110 = vld [vmem:[%s1 + $0x11c] sm:$0xf]
    %v111 = vld [vmem:[%s1 + $0x120] sm:$0xf]
    %v112 = vld [vmem:[%s1 + $0x124] sm:$0xf]
    %v113 = vld [vmem:[%s1 + $0x128] sm:$0xf]
    %v114 = vld [vmem:[%s1 + $0x12c] sm:$0xf]
    %v115 = vld [vmem:[%s1 + $0x130] sm:$0xf]
    %v116 = vld [vmem:[%s1 + $0x134] sm:$0xf]
    %v117 = vld [vmem:[%s1 + $0x138] sm:$0xf]
    %v118 = vld [vmem:[%s1 + $0x13c] sm:$0xf]
    %v119 = vld [vmem:[%s1 + $0x140] sm:$0xf]
    %v120 = vld [vmem:[%s1 + $0x144] sm:$0xf]
    %v121 = vld [vmem:[%s1 + $0x148] sm:$0xf]
    %v122 = vld [vmem:[%s1 + $0x14c] sm:$0xf]
    %v123 = vld [vmem:[%s1 + $0x150] sm:$0xf]
    %v124 = vld [vmem:[%s1 + $0x154] sm:$0xf]
    %v125 = vld [vmem:[%s1 + $0x158] sm:$0xf]
    %v126 = vld [vmem:[%s1 + $0x15c] sm:$0xf]
    %v127 = vld [vmem:[%s1 + $0x160] sm:$0xf]
    %v128 = vld [vmem:[%s1 + $0x164] sm:$0xf]
    %v129 = vld [vmem:[%s1 + $0x168] sm:$0xf]
    %v130 = vld [vmem:[%s1 + $0x16c] sm:$0xf]
    %v131 = vld [vmem:[%s1 + $0x170] sm:$0xf]
    %v132 = vld [vmem:[%s1 + $0x174] sm:$0xf]
    %v133 = vld [vmem:[%s1 + $0x178] sm:$0xf]
    %v134 = vld [vmem:[%s1 + $0x17c] sm:$0xf]
    %v135 = vld [vmem:[%s1 + $0x180] sm:$0xf]
    %v136 = vld [vmem:[%s1 + $0x184] sm:$0xf]
    %v137 = vld [vmem:[%s1 + $0x188] sm:$0xf]
    %v138 = vld [vmem:[%s1 + $0x18c] sm:$0xf]
    %v139 = vld [vmem:[%s1 + $0x190] sm:$0xf]
    %v140 = vld [vmem:[%s1 + $0x194] sm:$0xf]
    %v141 = vld [vmem:[%s1 + $0x198] sm:$0xf]
    %v142 = vld [vmem:[%s1 + $0x19c] sm:$0xf]
    %v143 = vld [vmem:[%s1 + $0x1a0] sm:$0xf]
    %v144 = vld [vmem:[%s1 + $0x1a4] sm:$0xf]
    %v145 = vld [vmem:[%s1 + $0x1a8] sm:$0xf]
    %v146 = vld [vmem:[%s1 + $0x1ac] sm:$0xf]
    %v147 = vld [vmem:[%s1 + $0x1b0] sm:$0xf]
    %v148 = vld [vmem:[%s1 + $0x1b4] sm:$0xf]
    %v149 = vld [vmem:[%s1 + $0x1b8] sm:$0xf]
    %v150 = vld [vmem:[%s1 + $0x1bc] sm:$0xf]
    %v151 = vld [vmem:[%s1 + $0x1c0] sm:$0xf]
    %v152 = vld [vmem:[%s1 + $0x1c4] sm:$0xf]
    %v153 = vld [vmem:[%s1 + $0x1c8] sm:$0xf]
    %v154 = vld [vmem:[%s1 + $0x1cc] sm:$0xf]
    %v155 = vld [vmem:[%s1 + $0x1d0] sm:$0xf]
    %v156 = vld [vmem:[%s1 + $0x1d4] sm:$0xf]
    %v157 = vld [vmem:[%s1 + $0x1d8] sm:$0xf]
    %v158 = vld [vmem:[%s1 + $0x1dc] sm:$0xf]
    %v159 = vld [vmem:[%s1 + $0x1e0] sm:$0xf]
    %v160 = vld [vmem:[%s1 + $0x1e4] sm:$0xf]
    %v161 = vld [vmem:[%s1 + $0x1e8] sm:$0xf]
    %v162 = vld [vmem:[%s1 + $0x1ec] sm:$0xf]
    %v163 = vld [vmem:[%s1 + $0x1f0] sm:$0xf]
    %v164 = vld [vmem:[%s1 + $0x1f4] sm:$0xf]
    %v165 = vld [vmem:[%s1 + $0x1f8] sm:$0xf]
    %v166 = vld [vmem:[%s1 + $0x1fc] sm:$0xf]
    %v167 = vld [vmem:[%s1 + $0x200] sm:$0xf]
    %v168 = vld [vmem:[%s1 + $0x204] sm:$0xf]
    %v169 = vld [vmem:[%s1 + $0x208] sm:$0xf]
    %v170 = vld [vmem:[%s1 + $0x20c] sm:$0xf]
    %v171 = vld [vmem:[%s1 + $0x210] sm:$0xf]
    %v172 = vld [vmem:[%s1 + $0x214] sm:$0xf]
    %v173 = vld [vmem:[%s1 + $0x218] sm:$0xf]
    %v174 = vld [vmem:[%s1 + $0x21c] sm:$0xf]
    %v175 = vld [vmem:[%s1 + $0x220] sm:$0xf]
    %v176 = vld [vmem:[%s1 + $0x224] sm:$0xf]
    %v177 = vld [vmem:[%s1 + $0x228] sm:$0xf]
    %v178 = vld [vmem:[%s1 + $0x22c] sm:$0xf]
    %v179 = vld [vmem:[%s1 + $0x230] sm:$0xf]
    %v180 = vld [vmem:[%s1 + $0x234] sm:$0xf]
    %v181 = vld [vmem:[%s1 + $0x238] sm:$0xf]
    %v182 = vld [vmem:[%s1 + $0x23c] sm:$0xf]
    %v183 = vld [vmem:[%s1 + $0x240] sm:$0xf]
    %v184 = vld [vmem:[%s1 + $0x244] sm:$0xf]
    %v185 = vld [vmem:[%s1 + $0x248] sm:$0xf]
    %v186 = vld [vmem:[%s1 + $0x24c] sm:$0xf]
    %v187 = vld [vmem:[%s1 + $0x250] sm:$0xf]
    %v188 = vld [vmem:[%s1 + $0x254] sm:$0xf]
    %v189 = vld [vmem:[%s1 + $0x258] sm:$0xf]
    %v190 = vld [vmem:[%s1 + $0x25c] sm:$0xf]
    %v191 = vld [vmem:[%s1 + $0x260] sm:$0xf]
    %v192 = vld [vmem:[%s1 + $0x264] sm:$0xf]
    %v193 = vld [vmem:[%s1 + $0x268] sm:$0xf]
    %v194 = vld [vmem:[%s1 + $0x26c] sm:$0xf]
    %v195 = vld [vmem:[%s1 + $0x270] sm:$0xf]
    %v196 = vld [vmem:[%s1 + $0x274] sm:$0xf]
    %v197 = vld [vmem:[%s1 + $0x278] sm:$0xf]
    %v198 = vld [vmem:[%s1 + $0x27c] sm:$0xf]
    %v199 = vld [vmem:[%s1 + $0x280] sm:$0xf]
    %v200 = vld [vmem:[%s1 + $0x284] sm:$0xf]
    %v201 = vld [vmem:[%s1 + $0x288] sm:$0xf]
    %v202 = vld [vmem:[%s1 + $0x28c] sm:$0xf]
    %v203 = vld [vmem:[%s1 + $0x290] sm:$0xf]
    %v204 = vld [vmem:[%s1 + $0x294] sm:$0xf]
    %v205 = vld [vmem:[%s1 + $0x298] sm:$0xf]
    %v206 = vld [vmem:[%s1 + $0x29c] sm:$0xf]
    %v207 = vld [vmem:[%s1 + $0x2a0] sm:$0xf]
    %v208 = vld [vmem:[%s1 + $0x2a4] sm:$0xf]
    %v209 = vld [vmem:[%s1 + $0x2a8] sm:$0xf]
    %v210 = vld [vmem:[%s1 + $0x2ac] sm:$0xf]
    %v211 = vld [vmem:[%s1 + $0x2b0] sm:$0xf]
    %v212 = vld [vmem:[%s1 + $0x2b4] sm:$0xf]
    %v213 = vld [vmem:[%s1 + $0x2b8] sm:$0xf]
    %v214 = vld [vmem:[%s1 + $0x2bc] sm:$0xf]
    %v215 = vld [vmem:[%s1 + $0x2c0] sm:$0xf]
    %v216 = vld [vmem:[%s1 + $0x2c4] sm:$0xf]
    %v217 = vld [vmem:[%s1 + $0x2c8] sm:$0xf]
    %v218 = vld [vmem:[%s1 + $0x2cc] sm:$0xf]
    %v219 = vld [vmem:[%s1 + $0x2d0] sm:$0xf]
    %v220 = vld [vmem:[%s1 + $0x2d4] sm:$0xf]
    %v221 = vld [vmem:[%s1 + $0x2d8] sm:$0xf]
    %v222 = vld [vmem:[%s1 + $0x2dc] sm:$0xf]
    %v223 = vld [vmem:[%s1 + $0x2e0] sm:$0xf]
    %v224 = vld [vmem:[%s1 + $0x2e4] sm:$0xf]
    %v225 = vld [vmem:[%s1 + $0x2e8] sm:$0xf]
    %v226 = vld [vmem:[%s1 + $0x2ec] sm:$0xf]
    %v227 = vld [vmem:[%s1 + $0x2f0] sm:$0xf]
    %v228 = vld [vmem:[%s1 + $0x2f4] sm:$0xf]
    %v229 = vld [vmem:[%s1 + $0x2f8] sm:$0xf]
    %v230 = vld [vmem:[%s1 + $0x2fc] sm:$0xf]
    %v231 = vld [vmem:[%s1 + $0x300] sm:$0xf]
    %v232 = vld [vmem:[%s1 + $0x304] sm:$0xf]
    %v233 = vld [vmem:[%s1 + $0x308] sm:$0xf]
    %v234 = vld [vmem:[%s1 + $0x30c] sm:$0xf]
    %v235 = vld [vmem:[%s1 + $0x310] sm:$0xf]
    %v236 = vld [vmem:[%s1 + $0x314] sm:$0xf]
    %v237 = vld [vmem:[%s1 + $0x318] sm:$0xf]
    %v238 = vld [vmem:[%s1 + $0x31c] sm:$0xf]
    %v239 = vld [vmem:[%s1 + $0x320] sm:$0xf]
    %v240 = vld [vmem:[%s1 + $0x324] sm:$0xf]
    %v241 = vld [vmem:[%s1 + $0x328] sm:$0xf]
    %v242 = vld [vmem:[%s1 + $0x32c] sm:$0xf]
    %v243 = vld [vmem:[%s1 + $0x330] sm:$0xf]
    %v244 = vld [vmem:[%s1 + $0x334] sm:$0xf]
    %v245 = vld [vmem:[%s1 + $0x338] sm:$0xf]
    %v246 = vld [vmem:[%s1 + $0x33c] sm:$0xf]
    %v247 = vld [vmem:[%s1 + $0x340] sm:$0xf]
    %v248 = vld [vmem:[%s1 + $0x344] sm:$0xf]
    %v249 = vld [vmem:[%s1 + $0x348] sm:$0xf]
    %v250 = vld [vmem:[%s1 + $0x34c] sm:$0xf]
    %v251 = vld [vmem:[%s1 + $0x350] sm:$0xf]
    %v252 = vld [vmem:[%s1 + $0x354] sm:$0xf]
    %v253 = vld [vmem:[%s1 + $0x358] sm:$0xf]
    %v254 = vld [vmem:[%s1 + $0x35c] sm:$0xf]
    %v255 = vld [vmem:[%s1 + $0x360] sm:$0xf]
    %v256 = vld [vmem:[%s1 + $0x364] sm:$0xf]
    %v257 = vld [vmem:[%s1 + $0x368] sm:$0xf]
    %v258 = vld [vmem:[%s1 + $0x36c] sm:$0xf]
    %v259 = vld [vmem:[%s1 + $0x370] sm:$0xf]
    %v260 = vld [vmem:[%s1 + $0x374] sm:$0xf]
    %v261 = vld [vmem:[%s1 + $0x378] sm:$0xf]
    %v262 = vld [vmem:[%s1 + $0x37c] sm:$0xf]
    %v263 = vld [vmem:[%s1 + $0x380] sm:$0xf]
    %v264 = vld [vmem:[%s1 + $0x384] sm:$0xf]
    %v265 = vld [vmem:[%s1 + $0x388] sm:$0xf]
    %v266 = vld [vmem:[%s1 + $0x38c] sm:$0xf]
    %v267 = vld [vmem:[%s1 + $0x390] sm:$0xf]
    %v268 = vld [vmem:[%s1 + $0x394] sm:$0xf]
    %v269 = vld [vmem:[%s1 + $0x398] sm:$0xf]
    %v270 = vld [vmem:[%s1 + $0x39c] sm:$0xf]
    %v271 = vld [vmem:[%s1 + $0x3a0] sm:$0xf]
    %v272 = vld [vmem:[%s1 + $0x3a4] sm:$0xf]
    %v273 = vld [vmem:[%s1 + $0x3a8] sm:$0xf]
    %v274 = vld [vmem:[%s1 + $0x3ac] sm:$0xf]
    %v275 = vld [vmem:[%s1 + $0x3b0] sm:$0xf]
    %v276 = vld [vmem:[%s1 + $0x3b4] sm:$0xf]
    %v277 = vld [vmem:[%s1 + $0x3b8] sm:$0xf]
    %v278 = vld [vmem:[%s1 + $0x3bc] sm:$0xf]
    %v279 = vld [vmem:[%s1 + $0x3c0] sm:$0xf]
    %v280 = vld [vmem:[%s1 + $0x3c4] sm:$0xf]
    %v281 = vld [vmem:[%s1 + $0x3c8] sm:$0xf]
    %v282 = vld [vmem:[%s1 + $0x3cc] sm:$0xf]
    %v283 = vld [vmem:[%s1 + $0x3d0] sm:$0xf]
    %v284 = vld [vmem:[%s1 + $0x3d4] sm:$0xf]
    %v285 = vld [vmem:[%s1 + $0x3d8] sm:$0xf]
    %v286 = vld [vmem:[%s1 + $0x3dc] sm:$0xf]
    %v287 = vld [vmem:[%s1 + $0x3e0] sm:$0xf]
    %v288 = vld [vmem:[%s1 + $0x3e4] sm:$0xf]
    %v289 = vld [vmem:[%s1 + $0x3e8] sm:$0xf]
    %v290 = vld [vmem:[%s1 + $0x3ec] sm:$0xf]
    %v291 = vld [vmem:[%s1 + $0x3f0] sm:$0xf]
    %v292 = vld [vmem:[%s1 + $0x3f4] sm:$0xf]
    %v293 = vld [vmem:[%s1 + $0x3f8] sm:$0xf]
    %v294 = vld [vmem:[%s1 + $0x3fc] sm:$0xf]
    %v295 = vld [vmem:[%s1 + $0x400] sm:$0xf]
    %v296 = vld [vmem:[%s1 + $0x404] sm:$0xf]
    %v297 = vld [vmem:[%s1 + $0x408] sm:$0xf]
    %v298 = vld [vmem:[%s1 + $0x40c] sm:$0xf]
    %v299 = vld [vmem:[%s1 + $0x410] sm:$0xf]
    %v300 = vld [vmem:[%s1 + $0x414] sm:$0xf]
    %v301 = vld [vmem:[%s1 + $0x418] sm:$0xf]
    %v302 = vld [vmem:[%s1 + $0x41c] sm:$0xf]
    %v303 = vld [vmem:[%s1 + $0x420] sm:$0xf]
    %v304 = vld [vmem:[%s1 + $0x424] sm:$0xf]
    %v305 = vld [vmem:[%s1 + $0x428] sm:$0xf]
    %v306 = vld [vmem:[%s1 + $0x42c] sm:$0xf]
    %v307 = vld [vmem:[%s1 + $0x430] sm:$0xf]
    %v308 = vld [vmem:[%s1 + $0x434] sm:$0xf]
    %v309 = vld [vmem:[%s1 + $0x438] sm:$0xf]
    %v310 = vld [vmem:[%s1 + $0x43c] sm:$0xf]
    %v311 = vld [vmem:[%s1 + $0x440] sm:$0xf]
    %v312 = vld [vmem:[%s1 + $0x444] sm:$0xf]
    %v313 = vld [vmem:[%s1 + $0x448] sm:$0xf]
    %v314 = vld [vmem:[%s1 + $0x44c] sm:$0xf]
    %v315 = vld [vmem:[%s1 + $0x450] sm:$0xf]
    %v316 = vld [vmem:[%s1 + $0x454] sm:$0xf]
    %v317 = vld [vmem:[%s1 + $0x458] sm:$0xf]
    %v318 = vld [vmem:[%s1 + $0x45c] sm:$0xf]
    %v319 = vld [vmem:[%s1 + $0x460] sm:$0xf]
    %v320 = vld [vmem:[%s1 + $0x464] sm:$0xf]
    %v321 = vld [vmem:[%s1 + $0x468] sm:$0xf]
    %v322 = vld [vmem:[%s1 + $0x46c] sm:$0xf]
    %v323 = vld [vmem:[%s1 + $0x470] sm:$0xf]
    %v324 = vld [vmem:[%s1 + $0x474] sm:$0xf]
    %v325 = vld [vmem:[%s1 + $0x478] sm:$0xf]
    %v326 = vld [vmem:[%s1 + $0x47c] sm:$0xf]
    %v327 = vld [vmem:[%s1 + $0x480] sm:$0xf]
    %v328 = vld [vmem:[%s1 + $0x484] sm:$0xf]
    %v329 = vld [vmem:[%s1 + $0x488] sm:$0xf]
    %v330 = vld [vmem:[%s1 + $0x48c] sm:$0xf]
    %v331 = vld [vmem:[%s1 + $0x490] sm:$0xf]
    %v332 = vld [vmem:[%s1 + $0x494] sm:$0xf]
    %v333 = vld [vmem:[%s1 + $0x498] sm:$0xf]
    %v334 = vld [vmem:[%s1 + $0x49c] sm:$0xf]
    %v335 = vld [vmem:[%s1 + $0x4a0] sm:$0xf]
    %v336 = vld [vmem:[%s1 + $0x4a4] sm:$0xf]
    %v337 = vld [vmem:[%s1 + $0x4a8] sm:$0xf]
    %v338 = vld [vmem:[%s1 + $0x4ac] sm:$0xf]
    %v339 = vld [vmem:[%s1 + $0x4b0] sm:$0xf]
    %v340 = vld [vmem:[%s1 + $0x4b4] sm:$0xf]
    %v341 = vld [vmem:[%s1 + $0x4b8] sm:$0xf]
    %v342 = vld [vmem:[%s1 + $0x4bc] sm:$0xf]
    %v343 = vld [vmem:[%s1 + $0x4c0] sm:$0xf]
    %v344 = vld [vmem:[%s1 + $0x4c4] sm:$0xf]
    %v345 = vld [vmem:[%s1 + $0x4c8] sm:$0xf]
    %v346 = vld [vmem:[%s1 + $0x4cc] sm:$0xf]
    %v347 = vld [vmem:[%s1 + $0x4d0] sm:$0xf]
    %v348 = vld [vmem:[%s1 + $0x4d4] sm:$0xf]
    %v349 = vld [vmem:[%s1 + $0x4d8] sm:$0xf]
    %v350 = vld [vmem:[%s1 + $0x4dc] sm:$0xf]
    %v351 = vld [vmem:[%s1 + $0x4e0] sm:$0xf]
    %v352 = vld [vmem:[%s1 + $0x4e4] sm:$0xf]
    %v353 = vld [vmem:[%s1 + $0x4e8] sm:$0xf]
    %v354 = vld [vmem:[%s1 + $0x4ec] sm:$0xf]
    %v355 = vld [vmem:[%s1 + $0x4f0] sm:$0xf]
    %v356 = vld [vmem:[%s1 + $0x4f4] sm:$0xf]
    %v357 = vld [vmem:[%s1 + $0x4f8] sm:$0xf]
    %v358 = vld [vmem:[%s1 + $0x4fc] sm:$0xf]
    %v359 = vld [vmem:[%s1 + $0x500] sm:$0xf]
    %v360 = vld [vmem:[%s1 + $0x504] sm:$0xf]
    %v361 = vld [vmem:[%s1 + $0x508] sm:$0xf]
    %v362 = vld [vmem:[%s1 + $0x50c] sm:$0xf]
    %v363 = vld [vmem:[%s1 + $0x510] sm:$0xf]
    %v364 = vld [vmem:[%s1 + $0x514] sm:$0xf]
    %v365 = vld [vmem:[%s1 + $0x518] sm:$0xf]
    %v366 = vld [vmem:[%s1 + $0x51c] sm:$0xf]
    %v367 = vld [vmem:[%s1 + $0x520] sm:$0xf]
    %v368 = vld [vmem:[%s1 + $0x524] sm:$0xf]
    %v369 = vld [vmem:[%s1 + $0x528] sm:$0xf]
    %v370 = vld [vmem:[%s1 + $0x52c] sm:$0xf]
    %v371 = vld [vmem:[%s1 + $0x530] sm:$0xf]
    %v372 = vld [vmem:[%s1 + $0x534] sm:$0xf]
    %v373 = vld [vmem:[%s1 + $0x538] sm:$0xf]
    %v374 = vld [vmem:[%s1 + $0x53c] sm:$0xf]
    %v375 = vld [vmem:[%s1 + $0x540] sm:$0xf]
    %v376 = vld [vmem:[%s1 + $0x544] sm:$0xf]
    %v377 = vld [vmem:[%s1 + $0x548] sm:$0xf]
    %v378 = vld [vmem:[%s1 + $0x54c] sm:$0xf]
    %v379 = vld [vmem:[%s1 + $0x550] sm:$0xf]
    %v380 = vld [vmem:[%s1 + $0x554] sm:$0xf]
    %v381 = vld [vmem:[%s1 + $0x558] sm:$0xf]
    %v382 = vld [vmem:[%s1 + $0x55c] sm:$0xf]
    %v383 = vld [vmem:[%s1 + $0x560] sm:$0xf]
    %v384 = vld [vmem:[%s1 + $0x564] sm:$0xf]
    %v385 = vld [vmem:[%s1 + $0x568] sm:$0xf]
    %v386 = vld [vmem:[%s1 + $0x56c] sm:$0xf]
    %v387 = vld [vmem:[%s1 + $0x570] sm:$0xf]
    %v388 = vld [vmem:[%s1 + $0x574] sm:$0xf]
    %v389 = vld [vmem:[%s1 + $0x578] sm:$0xf]
    %v390 = vld [vmem:[%s1 + $0x57c] sm:$0xf]
    %v391 = vld [vmem:[%s1 + $0x580] sm:$0xf]
    %v392 = vld [vmem:[%s1 + $0x584] sm:$0xf]
    %v393 = vld [vmem:[%s1 + $0x588] sm:$0xf]
    %v394 = vld [vmem:[%s1 + $0x58c] sm:$0xf]
    %v395 = vld [vmem:[%s1 + $0x590] sm:$0xf]
    %v396 = vld [vmem:[%s1 + $0x594] sm:$0xf]
    %v397 = vld [vmem:[%s1 + $0x598] sm:$0xf]
    %v398 = vld [vmem:[%s1 + $0x59c] sm:$0xf]
    %v399 = vld [vmem:[%s1 + $0x5a0] sm:$0xf]
    %v400 = vld [vmem:[%s1 + $0x5a4] sm:$0xf]
    %v401 = vld [vmem:[%s1 + $0x5a8] sm:$0xf]
    %v402 = vld [vmem:[%s1 + $0x5ac] sm:$0xf]
    %v403 = vld [vmem:[%s1 + $0x5b0] sm:$0xf]
    %v404 = vld [vmem:[%s1 + $0x5b4] sm:$0xf]
    %v405 = vld [vmem:[%s1 + $0x5b8] sm:$0xf]
    %v406 = vld [vmem:[%s1 + $0x5bc] sm:$0xf]
    %v407 = vld [vmem:[%s1 + $0x5c0] sm:$0xf]
    %v408 = vld [vmem:[%s1 + $0x5c4] sm:$0xf]
    %v409 = vld [vmem:[%s1 + $0x5c8] sm:$0xf]
    %v410 = vld [vmem:[%s1 + $0x5cc] sm:$0xf]
    %v411 = vld [vmem:[%s1 + $0x5d0] sm:$0xf]
    %v412 = vld [vmem:[%s1 + $0x5d4] sm:$0xf]
    %v413 = vld [vmem:[%s1 + $0x5d8] sm:$0xf]
    %v414 = vld [vmem:[%s1 + $0x5dc] sm:$0xf]
    %v415 = vld [vmem:[%s1 + $0x5e0] sm:$0xf]
    %v416 = vld [vmem:[%s1 + $0x5e4] sm:$0xf]
    %v417 = vld [vmem:[%s1 + $0x5e8] sm:$0xf]
    %v418 = vld [vmem:[%s1 + $0x5ec] sm:$0xf]
    %v419 = vld [vmem:[%s1 + $0x5f0] sm:$0xf]
    %v420 = vld [vmem:[%s1 + $0x5f4] sm:$0xf]
    %v421 = vld [vmem:[%s1 + $0x5f8] sm:$0xf]
    %v422 = vld [vmem:[%s1 + $0x5fc] sm:$0xf]
    %v423 = vld [vmem:[%s1 + $0x600] sm:$0xf]
    %v424 = vld [vmem:[%s1 + $0x604] sm:$0xf]
    %v425 = vld [vmem:[%s1 + $0x608] sm:$0xf]
    %v426 = vld [vmem:[%s1 + $0x60c] sm:$0xf]
    %v427 = vld [vmem:[%s1 + $0x610] sm:$0xf]
    %v428 = vld [vmem:[%s1 + $0x614] sm:$0xf]
    %v429 = vld [vmem:[%s1 + $0x618] sm:$0xf]
    %v430 = vld [vmem:[%s1 + $0x61c] sm:$0xf]
    %v431 = vld [vmem:[%s2] sm:$0x1]
    %v433 = vlaneseq
    %v434 = vshrl.u32 %v433, 7
    %v435 = vsub.s32 0, %v434
    %v436 = vrot.slane %v431, %v435
    %v442 = vcombine.high %v35, %v35
    %v444 = vunpack.c.l.s4 1966171168
    %v445 = vunpack.c.0.s8 %v444
    %v446 = vlaneseq
    %v447 = vshrl.u32 %v446, 7
    %v448 = vsub.s32 %v445, %v447
    %v449 = vrot.slane %v35, %v448
    %v451 = vunpack.c.l.s4 1966171168
    %v452 = vunpack.c.0.s8 %v451
    %v453 = vlaneseq
    %v454 = vshrl.u32 %v453, 7
    %v455 = vsub.s32 %v452, %v454
    %v456 = vrot.slane %v442, %v455
    %v457 = vcombine.high %v449, %v449
    %v458 = vcombine.high %v456, %v456
    %v460 = vunpack.c.l.s4 1966171168
    %v461 = vunpack.c.0.s8 %v460
    %v462 = vlaneseq
    %v463 = vshrl.u32 %v462, 7
    %v464 = vsub.s32 %v461, %v463
    %v465 = vrot.slane %v449, %v464
    %v467 = vunpack.c.l.s4 1966171168
    %v468 = vunpack.c.0.s8 %v467
    %v469 = vlaneseq
    %v470 = vshrl.u32 %v469, 7
    %v471 = vsub.s32 %v468, %v470
    %v472 = vrot.slane %v456, %v471
    %v474 = vunpack.c.l.s4 1966171168
    %v475 = vunpack.c.0.s8 %v474
    %v476 = vlaneseq
    %v477 = vshrl.u32 %v476, 7
    %v478 = vsub.s32 %v475, %v477
    %v479 = vrot.slane %v457, %v478
    %v481 = vunpack.c.l.s4 1966171168
    %v482 = vunpack.c.0.s8 %v481
    %v483 = vlaneseq
    %v484 = vshrl.u32 %v483, 7
    %v485 = vsub.s32 %v482, %v484
    %v486 = vrot.slane %v458, %v485
    %v487 = vcombine.high %v465, %v465
    %v488 = vcombine.high %v472, %v472
    %v489 = vcombine.high %v479, %v479
    %v490 = vcombine.high %v486, %v486
    %v491 = vcombine.high %v36, %v36
    %v493 = vunpack.c.l.s4 1966171168
    %v494 = vunpack.c.0.s8 %v493
    %v495 = vlaneseq
    %v496 = vshrl.u32 %v495, 7
    %v497 = vsub.s32 %v494, %v496
    %v498 = vrot.slane %v36, %v497
    %v500 = vunpack.c.l.s4 1966171168
    %v501 = vunpack.c.0.s8 %v500
    %v502 = vlaneseq
    %v503 = vshrl.u32 %v502, 7
    %v504 = vsub.s32 %v501, %v503
    %v505 = vrot.slane %v491, %v504
    %v506 = vcombine.high %v498, %v498
    %v507 = vcombine.high %v505, %v505
    %v509 = vunpack.c.l.s4 1966171168
    %v510 = vunpack.c.0.s8 %v509
    %v511 = vlaneseq
    %v512 = vshrl.u32 %v511, 7
    %v513 = vsub.s32 %v510, %v512
    %v514 = vrot.slane %v498, %v513
    %v516 = vunpack.c.l.s4 1966171168
    %v517 = vunpack.c.0.s8 %v516
    %v518 = vlaneseq
    %v519 = vshrl.u32 %v518, 7
    %v520 = vsub.s32 %v517, %v519
    %v521 = vrot.slane %v505, %v520
    %v523 = vunpack.c.l.s4 1966171168
    %v524 = vunpack.c.0.s8 %v523
    %v525 = vlaneseq
    %v526 = vshrl.u32 %v525, 7
    %v527 = vsub.s32 %v524, %v526
    %v528 = vrot.slane %v506, %v527
    %v530 = vunpack.c.l.s4 1966171168
    %v531 = vunpack.c.0.s8 %v530
    %v532 = vlaneseq
    %v533 = vshrl.u32 %v532, 7
    %v534 = vsub.s32 %v531, %v533
    %v535 = vrot.slane %v507, %v534
    %v536 = vcombine.high %v514, %v514
    %v537 = vcombine.high %v521, %v521
    %v538 = vcombine.high %v528, %v528
    %v539 = vcombine.high %v535, %v535
    %v540 = vcombine.high %v37, %v37
    %v542 = vunpack.c.l.s4 1966171168
    %v543 = vunpack.c.0.s8 %v542
    %v544 = vlaneseq
    %v545 = vshrl.u32 %v544, 7
    %v546 = vsub.s32 %v543, %v545
    %v547 = vrot.slane %v37, %v546
    %v549 = vunpack.c.l.s4 1966171168
    %v550 = vunpack.c.0.s8 %v549
    %v551 = vlaneseq
    %v552 = vshrl.u32 %v551, 7
    %v553 = vsub.s32 %v550, %v552
    %v554 = vrot.slane %v540, %v553
    %v555 = vcombine.high %v547, %v547
    %v556 = vcombine.high %v554, %v554
    %v558 = vunpack.c.l.s4 1966171168
    %v559 = vunpack.c.0.s8 %v558
    %v560 = vlaneseq
    %v561 = vshrl.u32 %v560, 7
    %v562 = vsub.s32 %v559, %v561
    %v563 = vrot.slane %v547, %v562
    %v565 = vunpack.c.l.s4 1966171168
    %v566 = vunpack.c.0.s8 %v565
    %v567 = vlaneseq
    %v568 = vshrl.u32 %v567, 7
    %v569 = vsub.s32 %v566, %v568
    %v570 = vrot.slane %v554, %v569
    %v572 = vunpack.c.l.s4 1966171168
    %v573 = vunpack.c.0.s8 %v572
    %v574 = vlaneseq
    %v575 = vshrl.u32 %v574, 7
    %v576 = vsub.s32 %v573, %v575
    %v577 = vrot.slane %v555, %v576
    %v579 = vunpack.c.l.s4 1966171168
    %v580 = vunpack.c.0.s8 %v579
    %v581 = vlaneseq
    %v582 = vshrl.u32 %v581, 7
    %v583 = vsub.s32 %v580, %v582
    %v584 = vrot.slane %v556, %v583
    %v585 = vcombine.high %v563, %v563
    %v586 = vcombine.high %v570, %v570
    %v587 = vcombine.high %v577, %v577
    %v588 = vcombine.high %v584, %v584
    %v590 = vunpack.c.l.s4 1966171168
    %v591 = vunpack.c.0.s8 %v590
    %v592 = vlaneseq
    %v593 = vshrl.u32 %v592, 7
    %v594 = vsub.s32 %v591, %v593
    %v595 = vrot.slane %v38, %v594
    %v597 = vunpack.c.l.s4 1966171168
    %v598 = vunpack.c.0.s8 %v597
    %v599 = vlaneseq
    %v600 = vshrl.u32 %v599, 7
    %v601 = vsub.s32 %v598, %v600
    %v602 = vrot.slane %v595, %v601
    %v1019 = vunpack.c.l.b16 %v39
    %v1020 = vunpack.c.l.b16 %v40
    %v1021 = vunpack.c.l.b16 %v41
    %v1022 = vunpack.c.l.b16 %v42
    %v1023 = vunpack.c.l.b16 %v43
    %v1024 = vunpack.c.l.b16 %v44
    %v1025 = vunpack.c.l.b16 %v45
    %v1026 = vunpack.c.l.b16 %v46
    %v1027 = vunpack.c.l.b16 %v47
    %v1028 = vunpack.c.l.b16 %v48
    %v1029 = vunpack.c.l.b16 %v49
    %v1030 = vunpack.c.l.b16 %v50
    %v1031 = vunpack.c.l.b16 %v51
    %v1032 = vunpack.c.l.b16 %v52
    %v1033 = vunpack.c.l.b16 %v53
    %v1034 = vunpack.c.l.b16 %v54
    %v1035 = vunpack.c.l.b16 %v55
    %v1036 = vunpack.c.l.b16 %v56
    %v1037 = vunpack.c.l.b16 %v57
    %v1038 = vunpack.c.l.b16 %v58
    %v1039 = vunpack.c.l.b16 %v59
    %v1040 = vunpack.c.l.b16 %v60
    %v1041 = vunpack.c.l.b16 %v61
    %v1042 = vunpack.c.l.b16 %v62
    %v1043 = vunpack.c.l.b16 %v63
    %v1044 = vunpack.c.l.b16 %v64
    %v1045 = vunpack.c.l.b16 %v65
    %v1046 = vunpack.c.l.b16 %v66
    %v1047 = vunpack.c.l.b16 %v67
    %v1048 = vunpack.c.l.b16 %v68
    %v1049 = vunpack.c.l.b16 %v69
    %v1050 = vunpack.c.l.b16 %v70
    %v1051 = vunpack.c.l.b16 %v71
    %v1052 = vunpack.c.l.b16 %v72
    %v1053 = vunpack.c.l.b16 %v73
    %v1054 = vunpack.c.l.b16 %v74
    %v1055 = vunpack.c.l.b16 %v75
    %v1056 = vunpack.c.l.b16 %v76
    %v1057 = vunpack.c.l.b16 %v77
    %v1058 = vunpack.c.l.b16 %v78
    %v1059 = vunpack.c.l.b16 %v79
    %v1060 = vunpack.c.l.b16 %v80
    %v1061 = vunpack.c.l.b16 %v81
    %v1062 = vunpack.c.l.b16 %v82
    %v1063 = vunpack.c.l.b16 %v83
    %v1064 = vunpack.c.l.b16 %v84
    %v1065 = vunpack.c.l.b16 %v85
    %v1066 = vunpack.c.l.b16 %v86
    %v1067 = vunpack.c.l.b16 %v87
    %v1068 = vunpack.c.l.b16 %v88
    %v1069 = vunpack.c.l.b16 %v89
    %v1070 = vunpack.c.l.b16 %v90
    %v1071 = vunpack.c.l.b16 %v91
    %v1072 = vunpack.c.l.b16 %v92
    %v1073 = vunpack.c.l.b16 %v93
    %v1074 = vunpack.c.l.b16 %v94
    %v1075 = vunpack.c.l.b16 %v95
    %v1076 = vunpack.c.l.b16 %v96
    %v1077 = vunpack.c.l.b16 %v97
    %v1078 = vunpack.c.l.b16 %v98
    %v1079 = vunpack.c.l.b16 %v99
    %v1080 = vunpack.c.l.b16 %v100
    %v1081 = vunpack.c.l.b16 %v101
    %v1082 = vunpack.c.l.b16 %v102
    %v1083 = vunpack.c.l.b16 %v103
    %v1084 = vunpack.c.l.b16 %v104
    %v1085 = vunpack.c.l.b16 %v105
    %v1086 = vunpack.c.l.b16 %v106
    %v1087 = vunpack.c.l.b16 %v107
    %v1088 = vunpack.c.l.b16 %v108
    %v1089 = vunpack.c.l.b16 %v109
    %v1090 = vunpack.c.l.b16 %v110
    %v1091 = vunpack.c.l.b16 %v111
    %v1092 = vunpack.c.l.b16 %v112
    %v1093 = vunpack.c.l.b16 %v113
    %v1094 = vunpack.c.l.b16 %v114
    %v1095 = vunpack.c.l.b16 %v115
    %v1096 = vunpack.c.l.b16 %v116
    %v1097 = vunpack.c.l.b16 %v117
    %v1098 = vunpack.c.l.b16 %v118
    %v1099 = vunpack.c.l.b16 %v119
    %v1100 = vunpack.c.l.b16 %v120
    %v1101 = vunpack.c.l.b16 %v121
    %v1102 = vunpack.c.l.b16 %v122
    %v1103 = vunpack.c.l.b16 %v123
    %v1104 = vunpack.c.l.b16 %v124
    %v1105 = vunpack.c.l.b16 %v125
    %v1106 = vunpack.c.l.b16 %v126
    %v1107 = vunpack.c.l.b16 %v127
    %v1108 = vunpack.c.l.b16 %v128
    %v1109 = vunpack.c.l.b16 %v129
    %v1110 = vunpack.c.l.b16 %v130
    %v1111 = vunpack.c.l.b16 %v131
    %v1112 = vunpack.c.l.b16 %v132
    %v1113 = vunpack.c.l.b16 %v133
    %v1114 = vunpack.c.l.b16 %v134
    %v1115 = vunpack.c.l.b16 %v135
    %v1116 = vunpack.c.l.b16 %v136
    %v1117 = vunpack.c.l.b16 %v137
    %v1118 = vunpack.c.l.b16 %v138
    %v1119 = vunpack.c.l.b16 %v139
    %v1120 = vunpack.c.l.b16 %v140
    %v1121 = vunpack.c.l.b16 %v141
    %v1122 = vunpack.c.l.b16 %v142
    %v1123 = vunpack.c.l.b16 %v143
    %v1124 = vunpack.c.l.b16 %v144
    %v1125 = vunpack.c.l.b16 %v145
    %v1126 = vunpack.c.l.b16 %v146
    %v1127 = vunpack.c.l.b16 %v147
    %v1128 = vunpack.c.l.b16 %v148
    %v1129 = vunpack.c.l.b16 %v149
    %v1130 = vunpack.c.l.b16 %v150
    %v1131 = vunpack.c.l.b16 %v151
    %v1132 = vunpack.c.l.b16 %v152
    %v1133 = vunpack.c.l.b16 %v153
    %v1134 = vunpack.c.l.b16 %v154
    %v1135 = vunpack.c.l.b16 %v155
    %v1136 = vunpack.c.l.b16 %v156
    %v1137 = vunpack.c.l.b16 %v157
    %v1138 = vunpack.c.l.b16 %v158
    %v1139 = vunpack.c.l.b16 %v159
    %v1140 = vunpack.c.l.b16 %v160
    %v1141 = vunpack.c.l.b16 %v161
    %v1142 = vunpack.c.l.b16 %v162
    %v1143 = vunpack.c.l.b16 %v163
    %v1144 = vunpack.c.l.b16 %v164
    %v1145 = vunpack.c.l.b16 %v165
    %v1146 = vunpack.c.l.b16 %v166
    %v1147 = vunpack.c.l.b16 %v167
    %v1148 = vunpack.c.l.b16 %v168
    %v1149 = vunpack.c.l.b16 %v169
    %v1150 = vunpack.c.l.b16 %v170
    %v1151 = vunpack.c.l.b16 %v171
    %v1152 = vunpack.c.l.b16 %v172
    %v1153 = vunpack.c.l.b16 %v173
    %v1154 = vunpack.c.l.b16 %v174
    %v1155 = vunpack.c.l.b16 %v175
    %v1156 = vunpack.c.l.b16 %v176
    %v1157 = vunpack.c.l.b16 %v177
    %v1158 = vunpack.c.l.b16 %v178
    %v1159 = vunpack.c.l.b16 %v179
    %v1160 = vunpack.c.l.b16 %v180
    %v1161 = vunpack.c.l.b16 %v181
    %v1162 = vunpack.c.l.b16 %v182
    %v1163 = vunpack.c.l.b16 %v183
    %v1164 = vunpack.c.l.b16 %v184
    %v1165 = vunpack.c.l.b16 %v185
    %v1166 = vunpack.c.l.b16 %v186
    %v1167 = vunpack.c.l.b16 %v187
    %v1168 = vunpack.c.l.b16 %v188
    %v1169 = vunpack.c.l.b16 %v189
    %v1170 = vunpack.c.l.b16 %v190
    %v1171 = vunpack.c.l.b16 %v191
    %v1172 = vunpack.c.l.b16 %v192
    %v1173 = vunpack.c.l.b16 %v193
    %v1174 = vunpack.c.l.b16 %v194
    %v1175 = vunpack.c.l.b16 %v195
    %v1176 = vunpack.c.l.b16 %v196
    %v1177 = vunpack.c.l.b16 %v197
    %v1178 = vunpack.c.l.b16 %v198
    %v1179 = vunpack.c.l.b16 %v199
    %v1180 = vunpack.c.l.b16 %v200
    %v1181 = vunpack.c.l.b16 %v201
    %v1182 = vunpack.c.l.b16 %v202
    %v1183 = vunpack.c.l.b16 %v203
    %v1184 = vunpack.c.l.b16 %v204
    %v1185 = vunpack.c.l.b16 %v205
    %v1186 = vunpack.c.l.b16 %v206
    %v1187 = vunpack.c.l.b16 %v207
    %v1188 = vunpack.c.l.b16 %v208
    %v1189 = vunpack.c.l.b16 %v209
    %v1190 = vunpack.c.l.b16 %v210
    %v1191 = vunpack.c.l.b16 %v211
    %v1192 = vunpack.c.l.b16 %v212
    %v1193 = vunpack.c.l.b16 %v213
    %v1194 = vunpack.c.l.b16 %v214
    %v1195 = vunpack.c.l.b16 %v215
    %v1196 = vunpack.c.l.b16 %v216
    %v1197 = vunpack.c.l.b16 %v217
    %v1198 = vunpack.c.l.b16 %v218
    %v1199 = vunpack.c.l.b16 %v219
    %v1200 = vunpack.c.l.b16 %v220
    %v1201 = vunpack.c.l.b16 %v221
    %v1202 = vunpack.c.l.b16 %v222
    %v1203 = vunpack.c.l.b16 %v223
    %v1204 = vunpack.c.l.b16 %v224
    %v1205 = vunpack.c.l.b16 %v225
    %v1206 = vunpack.c.l.b16 %v226
    %v1207 = vunpack.c.l.b16 %v227
    %v1208 = vunpack.c.l.b16 %v228
    %v1209 = vunpack.c.l.b16 %v229
    %v1210 = vunpack.c.l.b16 %v230
    %v1211 = vunpack.c.l.b16 %v231
    %v1212 = vunpack.c.l.b16 %v232
    %v1213 = vunpack.c.l.b16 %v233
    %v1214 = vunpack.c.l.b16 %v234
    %v1215 = vunpack.c.l.b16 %v235
    %v1216 = vunpack.c.l.b16 %v236
    %v1217 = vunpack.c.l.b16 %v237
    %v1218 = vunpack.c.l.b16 %v238
    %v1219 = vunpack.c.l.b16 %v239
    %v1220 = vunpack.c.l.b16 %v240
    %v1221 = vunpack.c.l.b16 %v241
    %v1222 = vunpack.c.l.b16 %v242
    %v1223 = vunpack.c.l.b16 %v243
    %v1224 = vunpack.c.l.b16 %v244
    %v1225 = vunpack.c.l.b16 %v245
    %v1226 = vunpack.c.l.b16 %v246
    %v1227 = vunpack.c.l.b16 %v247
    %v1228 = vunpack.c.l.b16 %v248
    %v1229 = vunpack.c.l.b16 %v249
    %v1230 = vunpack.c.l.b16 %v250
    %v1231 = vunpack.c.l.b16 %v251
    %v1232 = vunpack.c.l.b16 %v252
    %v1233 = vunpack.c.l.b16 %v253
    %v1234 = vunpack.c.l.b16 %v254
    %v1235 = vunpack.c.l.b16 %v255
    %v1236 = vunpack.c.l.b16 %v256
    %v1237 = vunpack.c.l.b16 %v257
    %v1238 = vunpack.c.l.b16 %v258
    %v1239 = vunpack.c.l.b16 %v259
    %v1240 = vunpack.c.l.b16 %v260
    %v1241 = vunpack.c.l.b16 %v261
    %v1242 = vunpack.c.l.b16 %v262
    %v1243 = vunpack.c.l.b16 %v263
    %v1244 = vunpack.c.l.b16 %v264
    %v1245 = vunpack.c.l.b16 %v265
    %v1246 = vunpack.c.l.b16 %v266
    %v1247 = vunpack.c.l.b16 %v267
    %v1248 = vunpack.c.l.b16 %v268
    %v1249 = vunpack.c.l.b16 %v269
    %v1250 = vunpack.c.l.b16 %v270
    %v1251 = vunpack.c.l.b16 %v271
    %v1252 = vunpack.c.l.b16 %v272
    %v1253 = vunpack.c.l.b16 %v273
    %v1254 = vunpack.c.l.b16 %v274
    %v1255 = vunpack.c.l.b16 %v275
    %v1256 = vunpack.c.l.b16 %v276
    %v1257 = vunpack.c.l.b16 %v277
    %v1258 = vunpack.c.l.b16 %v278
    %v1259 = vunpack.c.l.b16 %v279
    %v1260 = vunpack.c.l.b16 %v280
    %v1261 = vunpack.c.l.b16 %v281
    %v1262 = vunpack.c.l.b16 %v282
    %v1263 = vunpack.c.l.b16 %v283
    %v1264 = vunpack.c.l.b16 %v284
    %v1265 = vunpack.c.l.b16 %v285
    %v1266 = vunpack.c.l.b16 %v286
    %v1267 = vunpack.c.l.b16 %v287
    %v1268 = vunpack.c.l.b16 %v288
    %v1269 = vunpack.c.l.b16 %v289
    %v1270 = vunpack.c.l.b16 %v290
    %v1271 = vunpack.c.l.b16 %v291
    %v1272 = vunpack.c.l.b16 %v292
    %v1273 = vunpack.c.l.b16 %v293
    %v1274 = vunpack.c.l.b16 %v294
    %v1275 = vunpack.c.l.b16 %v295
    %v1276 = vunpack.c.l.b16 %v296
    %v1277 = vunpack.c.l.b16 %v297
    %v1278 = vunpack.c.l.b16 %v298
    %v1279 = vunpack.c.l.b16 %v299
    %v1280 = vunpack.c.l.b16 %v300
    %v1281 = vunpack.c.l.b16 %v301
    %v1282 = vunpack.c.l.b16 %v302
    %v1283 = vunpack.c.l.b16 %v303
    %v1284 = vunpack.c.l.b16 %v304
    %v1285 = vunpack.c.l.b16 %v305
    %v1286 = vunpack.c.l.b16 %v306
    %v1287 = vunpack.c.l.b16 %v307
    %v1288 = vunpack.c.l.b16 %v308
    %v1289 = vunpack.c.l.b16 %v309
    %v1290 = vunpack.c.l.b16 %v310
    %v1291 = vunpack.c.l.b16 %v311
    %v1292 = vunpack.c.l.b16 %v312
    %v1293 = vunpack.c.l.b16 %v313
    %v1294 = vunpack.c.l.b16 %v314
    %v1295 = vunpack.c.l.b16 %v315
    %v1296 = vunpack.c.l.b16 %v316
    %v1297 = vunpack.c.l.b16 %v317
    %v1298 = vunpack.c.l.b16 %v318
    %v1299 = vunpack.c.l.b16 %v319
    %v1300 = vunpack.c.l.b16 %v320
    %v1301 = vunpack.c.l.b16 %v321
    %v1302 = vunpack.c.l.b16 %v322
    %v1303 = vunpack.c.l.b16 %v323
    %v1304 = vunpack.c.l.b16 %v324
    %v1305 = vunpack.c.l.b16 %v325
    %v1306 = vunpack.c.l.b16 %v326
    %v1307 = vunpack.c.l.b16 %v327
    %v1308 = vunpack.c.l.b16 %v328
    %v1309 = vunpack.c.l.b16 %v329
    %v1310 = vunpack.c.l.b16 %v330
    %v1311 = vunpack.c.l.b16 %v331
    %v1312 = vunpack.c.l.b16 %v332
    %v1313 = vunpack.c.l.b16 %v333
    %v1314 = vunpack.c.l.b16 %v334
    %v1315 = vunpack.c.l.b16 %v335
    %v1316 = vunpack.c.l.b16 %v336
    %v1317 = vunpack.c.l.b16 %v337
    %v1318 = vunpack.c.l.b16 %v338
    %v1319 = vunpack.c.l.b16 %v339
    %v1320 = vunpack.c.l.b16 %v340
    %v1321 = vunpack.c.l.b16 %v341
    %v1322 = vunpack.c.l.b16 %v342
    %v1323 = vunpack.c.l.b16 %v343
    %v1324 = vunpack.c.l.b16 %v344
    %v1325 = vunpack.c.l.b16 %v345
    %v1326 = vunpack.c.l.b16 %v346
    %v1327 = vunpack.c.l.b16 %v347
    %v1328 = vunpack.c.l.b16 %v348
    %v1329 = vunpack.c.l.b16 %v349
    %v1330 = vunpack.c.l.b16 %v350
    %v1331 = vunpack.c.l.b16 %v351
    %v1332 = vunpack.c.l.b16 %v352
    %v1333 = vunpack.c.l.b16 %v353
    %v1334 = vunpack.c.l.b16 %v354
    %v1335 = vunpack.c.l.b16 %v355
    %v1336 = vunpack.c.l.b16 %v356
    %v1337 = vunpack.c.l.b16 %v357
    %v1338 = vunpack.c.l.b16 %v358
    %v1339 = vunpack.c.l.b16 %v359
    %v1340 = vunpack.c.l.b16 %v360
    %v1341 = vunpack.c.l.b16 %v361
    %v1342 = vunpack.c.l.b16 %v362
    %v1343 = vunpack.c.l.b16 %v363
    %v1344 = vunpack.c.l.b16 %v364
    %v1345 = vunpack.c.l.b16 %v365
    %v1346 = vunpack.c.l.b16 %v366
    %v1347 = vunpack.c.l.b16 %v367
    %v1348 = vunpack.c.l.b16 %v368
    %v1349 = vunpack.c.l.b16 %v369
    %v1350 = vunpack.c.l.b16 %v370
    %v1351 = vunpack.c.l.b16 %v371
    %v1352 = vunpack.c.l.b16 %v372
    %v1353 = vunpack.c.l.b16 %v373
    %v1354 = vunpack.c.l.b16 %v374
    %v1355 = vunpack.c.l.b16 %v375
    %v1356 = vunpack.c.l.b16 %v376
    %v1357 = vunpack.c.l.b16 %v377
    %v1358 = vunpack.c.l.b16 %v378
    %v1359 = vunpack.c.l.b16 %v379
    %v1360 = vunpack.c.l.b16 %v380
    %v1361 = vunpack.c.l.b16 %v381
    %v1362 = vunpack.c.l.b16 %v382
    %v1363 = vunpack.c.l.b16 %v383
    %v1364 = vunpack.c.l.b16 %v384
    %v1365 = vunpack.c.l.b16 %v385
    %v1366 = vunpack.c.l.b16 %v386
    %v1367 = vunpack.c.l.b16 %v387
    %v1368 = vunpack.c.l.b16 %v388
    %v1369 = vunpack.c.l.b16 %v389
    %v1370 = vunpack.c.l.b16 %v390
    %v1371 = vunpack.c.l.b16 %v391
    %v1372 = vunpack.c.l.b16 %v392
    %v1373 = vunpack.c.l.b16 %v393
    %v1374 = vunpack.c.l.b16 %v394
    %v1375 = vunpack.c.l.b16 %v395
    %v1376 = vunpack.c.l.b16 %v396
    %v1377 = vunpack.c.l.b16 %v397
    %v1378 = vunpack.c.l.b16 %v398
    %v1379 = vunpack.c.l.b16 %v399
    %v1380 = vunpack.c.l.b16 %v400
    %v1381 = vunpack.c.l.b16 %v401
    %v1382 = vunpack.c.l.b16 %v402
    %v1383 = vunpack.c.l.b16 %v403
    %v1384 = vunpack.c.l.b16 %v404
    %v1385 = vunpack.c.l.b16 %v405
    %v1386 = vunpack.c.l.b16 %v406
    %v1387 = vunpack.c.l.b16 %v407
    %v1388 = vunpack.c.l.b16 %v408
    %v1389 = vunpack.c.l.b16 %v409
    %v1390 = vunpack.c.l.b16 %v410
    %v1391 = vunpack.c.l.b16 %v411
    %v1392 = vunpack.c.l.b16 %v412
    %v1393 = vunpack.c.l.b16 %v413
    %v1394 = vunpack.c.l.b16 %v414
    %v1395 = vunpack.c.l.b16 %v415
    %v1396 = vunpack.c.l.b16 %v416
    %v1397 = vunpack.c.l.b16 %v417
    %v1398 = vunpack.c.l.b16 %v418
    %v1399 = vunpack.c.l.b16 %v419
    %v1400 = vunpack.c.l.b16 %v420
    %v1401 = vunpack.c.l.b16 %v421
    %v1402 = vunpack.c.l.b16 %v422
    %v1403 = vunpack.c.l.b16 %v423
    %v1404 = vunpack.c.l.b16 %v424
    %v1405 = vunpack.c.l.b16 %v425
    %v1406 = vunpack.c.l.b16 %v426
    %v1407 = vunpack.c.l.b16 %v427
    %v1408 = vunpack.c.l.b16 %v428
    %v1409 = vunpack.c.l.b16 %v429
    %v1410 = vunpack.c.l.b16 %v430
    %v1411 = vpack.c.b16 %v1020, %v1019
    %v1412 = vpack.c.b16 %v1022, %v1021
    %v1413 = vpack.c.b16 %v1024, %v1023
    %v1414 = vpack.c.b16 %v1026, %v1025
    %v1415 = vpack.c.b16 %v1028, %v1027
    %v1416 = vpack.c.b16 %v1030, %v1029
    %v1417 = vpack.c.b16 %v1032, %v1031
    %v1418 = vpack.c.b16 %v1034, %v1033
    %v1419 = vpack.c.b16 %v1036, %v1035
    %v1420 = vpack.c.b16 %v1038, %v1037
    %v1421 = vpack.c.b16 %v1040, %v1039
    %v1422 = vpack.c.b16 %v1042, %v1041
    %v1423 = vpack.c.b16 %v1044, %v1043
    %v1424 = vpack.c.b16 %v1046, %v1045
    %v1425 = vpack.c.b16 %v1048, %v1047
    %v1426 = vpack.c.b16 %v1050, %v1049
    %v1427 = vpack.c.b16 %v1052, %v1051
    %v1428 = vpack.c.b16 %v1054, %v1053
    %v1429 = vpack.c.b16 %v1056, %v1055
    %v1430 = vpack.c.b16 %v1058, %v1057
    %v1431 = vpack.c.b16 %v1060, %v1059
    %v1432 = vpack.c.b16 %v1062, %v1061
    %v1433 = vpack.c.b16 %v1064, %v1063
    %v1434 = vpack.c.b16 %v1066, %v1065
    %v1435 = vpack.c.b16 %v1068, %v1067
    %v1436 = vpack.c.b16 %v1070, %v1069
    %v1437 = vpack.c.b16 %v1072, %v1071
    %v1438 = vpack.c.b16 %v1074, %v1073
    %v1439 = vpack.c.b16 %v1076, %v1075
    %v1440 = vpack.c.b16 %v1078, %v1077
    %v1441 = vpack.c.b16 %v1080, %v1079
    %v1442 = vpack.c.b16 %v1082, %v1081
    %v1443 = vpack.c.b16 %v1084, %v1083
    %v1444 = vpack.c.b16 %v1086, %v1085
    %v1445 = vpack.c.b16 %v1088, %v1087
    %v1446 = vpack.c.b16 %v1090, %v1089
    %v1447 = vpack.c.b16 %v1092, %v1091
    %v1448 = vpack.c.b16 %v1094, %v1093
    %v1449 = vpack.c.b16 %v1096, %v1095
    %v1450 = vpack.c.b16 %v1098, %v1097
    %v1451 = vpack.c.b16 %v1100, %v1099
    %v1452 = vpack.c.b16 %v1102, %v1101
    %v1453 = vpack.c.b16 %v1104, %v1103
    %v1454 = vpack.c.b16 %v1106, %v1105
    %v1455 = vpack.c.b16 %v1108, %v1107
    %v1456 = vpack.c.b16 %v1110, %v1109
    %v1457 = vpack.c.b16 %v1112, %v1111
    %v1458 = vpack.c.b16 %v1114, %v1113
    %v1459 = vpack.c.b16 %v1116, %v1115
    %v1460 = vpack.c.b16 %v1118, %v1117
    %v1461 = vpack.c.b16 %v1120, %v1119
    %v1462 = vpack.c.b16 %v1122, %v1121
    %v1463 = vpack.c.b16 %v1124, %v1123
    %v1464 = vpack.c.b16 %v1126, %v1125
    %v1465 = vpack.c.b16 %v1128, %v1127
    %v1466 = vpack.c.b16 %v1130, %v1129
    %v1467 = vpack.c.b16 %v1132, %v1131
    %v1468 = vpack.c.b16 %v1134, %v1133
    %v1469 = vpack.c.b16 %v1136, %v1135
    %v1470 = vpack.c.b16 %v1138, %v1137
    %v1471 = vpack.c.b16 %v1140, %v1139
    %v1472 = vpack.c.b16 %v1142, %v1141
    %v1473 = vpack.c.b16 %v1144, %v1143
    %v1474 = vpack.c.b16 %v1146, %v1145
    %v1475 = vpack.c.b16 %v1148, %v1147
    %v1476 = vpack.c.b16 %v1150, %v1149
    %v1477 = vpack.c.b16 %v1152, %v1151
    %v1478 = vpack.c.b16 %v1154, %v1153
    %v1479 = vpack.c.b16 %v1156, %v1155
    %v1480 = vpack.c.b16 %v1158, %v1157
    %v1481 = vpack.c.b16 %v1160, %v1159
    %v1482 = vpack.c.b16 %v1162, %v1161
    %v1483 = vpack.c.b16 %v1164, %v1163
    %v1484 = vpack.c.b16 %v1166, %v1165
    %v1485 = vpack.c.b16 %v1168, %v1167
    %v1486 = vpack.c.b16 %v1170, %v1169
    %v1487 = vpack.c.b16 %v1172, %v1171
    %v1488 = vpack.c.b16 %v1174, %v1173
    %v1489 = vpack.c.b16 %v1176, %v1175
    %v1490 = vpack.c.b16 %v1178, %v1177
    %v1491 = vpack.c.b16 %v1180, %v1179
    %v1492 = vpack.c.b16 %v1182, %v1181
    %v1493 = vpack.c.b16 %v1184, %v1183
    %v1494 = vpack.c.b16 %v1186, %v1185
    %v1495 = vpack.c.b16 %v1188, %v1187
    %v1496 = vpack.c.b16 %v1190, %v1189
    %v1497 = vpack.c.b16 %v1192, %v1191
    %v1498 = vpack.c.b16 %v1194, %v1193
    %v1499 = vpack.c.b16 %v1196, %v1195
    %v1500 = vpack.c.b16 %v1198, %v1197
    %v1501 = vpack.c.b16 %v1200, %v1199
    %v1502 = vpack.c.b16 %v1202, %v1201
    %v1503 = vpack.c.b16 %v1204, %v1203
    %v1504 = vpack.c.b16 %v1206, %v1205
    %v1505 = vpack.c.b16 %v1208, %v1207
    %v1506 = vpack.c.b16 %v1210, %v1209
    %v1507 = vpack.c.b16 %v1212, %v1211
    %v1508 = vpack.c.b16 %v1214, %v1213
    %v1509 = vpack.c.b16 %v1216, %v1215
    %v1510 = vpack.c.b16 %v1218, %v1217
    %v1511 = vpack.c.b16 %v1220, %v1219
    %v1512 = vpack.c.b16 %v1222, %v1221
    %v1513 = vpack.c.b16 %v1224, %v1223
    %v1514 = vpack.c.b16 %v1226, %v1225
    %v1515 = vpack.c.b16 %v1228, %v1227
    %v1516 = vpack.c.b16 %v1230, %v1229
    %v1517 = vpack.c.b16 %v1232, %v1231
    %v1518 = vpack.c.b16 %v1234, %v1233
    %v1519 = vpack.c.b16 %v1236, %v1235
    %v1520 = vpack.c.b16 %v1238, %v1237
    %v1521 = vpack.c.b16 %v1240, %v1239
    %v1522 = vpack.c.b16 %v1242, %v1241
    %v1523 = vpack.c.b16 %v1244, %v1243
    %v1524 = vpack.c.b16 %v1246, %v1245
    %v1525 = vpack.c.b16 %v1248, %v1247
    %v1526 = vpack.c.b16 %v1250, %v1249
    %v1527 = vpack.c.b16 %v1252, %v1251
    %v1528 = vpack.c.b16 %v1254, %v1253
    %v1529 = vpack.c.b16 %v1256, %v1255
    %v1530 = vpack.c.b16 %v1258, %v1257
    %v1531 = vpack.c.b16 %v1260, %v1259
    %v1532 = vpack.c.b16 %v1262, %v1261
    %v1533 = vpack.c.b16 %v1264, %v1263
    %v1534 = vpack.c.b16 %v1266, %v1265
    %v1535 = vpack.c.b16 %v1268, %v1267
    %v1536 = vpack.c.b16 %v1270, %v1269
    %v1537 = vpack.c.b16 %v1272, %v1271
    %v1538 = vpack.c.b16 %v1274, %v1273
    %v1539 = vpack.c.b16 %v1276, %v1275
    %v1540 = vpack.c.b16 %v1278, %v1277
    %v1541 = vpack.c.b16 %v1280, %v1279
    %v1542 = vpack.c.b16 %v1282, %v1281
    %v1543 = vpack.c.b16 %v1284, %v1283
    %v1544 = vpack.c.b16 %v1286, %v1285
    %v1545 = vpack.c.b16 %v1288, %v1287
    %v1546 = vpack.c.b16 %v1290, %v1289
    %v1547 = vpack.c.b16 %v1292, %v1291
    %v1548 = vpack.c.b16 %v1294, %v1293
    %v1549 = vpack.c.b16 %v1296, %v1295
    %v1550 = vpack.c.b16 %v1298, %v1297
    %v1551 = vpack.c.b16 %v1300, %v1299
    %v1552 = vpack.c.b16 %v1302, %v1301
    %v1553 = vpack.c.b16 %v1304, %v1303
    %v1554 = vpack.c.b16 %v1306, %v1305
    %v1555 = vpack.c.b16 %v1308, %v1307
    %v1556 = vpack.c.b16 %v1310, %v1309
    %v1557 = vpack.c.b16 %v1312, %v1311
    %v1558 = vpack.c.b16 %v1314, %v1313
    %v1559 = vpack.c.b16 %v1316, %v1315
    %v1560 = vpack.c.b16 %v1318, %v1317
    %v1561 = vpack.c.b16 %v1320, %v1319
    %v1562 = vpack.c.b16 %v1322, %v1321
    %v1563 = vpack.c.b16 %v1324, %v1323
    %v1564 = vpack.c.b16 %v1326, %v1325
    %v1565 = vpack.c.b16 %v1328, %v1327
    %v1566 = vpack.c.b16 %v1330, %v1329
    %v1567 = vpack.c.b16 %v1332, %v1331
    %v1568 = vpack.c.b16 %v1334, %v1333
    %v1569 = vpack.c.b16 %v1336, %v1335
    %v1570 = vpack.c.b16 %v1338, %v1337
    %v1571 = vpack.c.b16 %v1340, %v1339
    %v1572 = vpack.c.b16 %v1342, %v1341
    %v1573 = vpack.c.b16 %v1344, %v1343
    %v1574 = vpack.c.b16 %v1346, %v1345
    %v1575 = vpack.c.b16 %v1348, %v1347
    %v1576 = vpack.c.b16 %v1350, %v1349
    %v1577 = vpack.c.b16 %v1352, %v1351
    %v1578 = vpack.c.b16 %v1354, %v1353
    %v1579 = vpack.c.b16 %v1356, %v1355
    %v1580 = vpack.c.b16 %v1358, %v1357
    %v1581 = vpack.c.b16 %v1360, %v1359
    %v1582 = vpack.c.b16 %v1362, %v1361
    %v1583 = vpack.c.b16 %v1364, %v1363
    %v1584 = vpack.c.b16 %v1366, %v1365
    %v1585 = vpack.c.b16 %v1368, %v1367
    %v1586 = vpack.c.b16 %v1370, %v1369
    %v1587 = vpack.c.b16 %v1372, %v1371
    %v1588 = vpack.c.b16 %v1374, %v1373
    %v1589 = vpack.c.b16 %v1376, %v1375
    %v1590 = vpack.c.b16 %v1378, %v1377
    %v1591 = vpack.c.b16 %v1380, %v1379
    %v1592 = vpack.c.b16 %v1382, %v1381
    %v1593 = vpack.c.b16 %v1384, %v1383
    %v1594 = vpack.c.b16 %v1386, %v1385
    %v1595 = vpack.c.b16 %v1388, %v1387
    %v1596 = vpack.c.b16 %v1390, %v1389
    %v1597 = vpack.c.b16 %v1392, %v1391
    %v1598 = vpack.c.b16 %v1394, %v1393
    %v1599 = vpack.c.b16 %v1396, %v1395
    %v1600 = vpack.c.b16 %v1398, %v1397
    %v1601 = vpack.c.b16 %v1400, %v1399
    %v1602 = vpack.c.b16 %v1402, %v1401
    %v1603 = vpack.c.b16 %v1404, %v1403
    %v1604 = vpack.c.b16 %v1406, %v1405
    %v1605 = vpack.c.b16 %v1408, %v1407
    %v1606 = vpack.c.b16 %v1410, %v1409
    %vm1803 = vcmask 523264
    %v1805 = vsel %vm1803, %v602, 0
    %1807 = vmatprep.subr.bf16.mxu0 0
    %1808 = vmatpush1.bf16.msra.mxu0 %v1411
    %1809 = vmatprep.subr.bf16.mxu0 0
    %1810 = vmatpush1.bf16.msra.mxu0 %v1412
    %1811 = vmatprep.subr.bf16.mxu0 0
    %1812 = vmatpush1.bf16.msra.mxu0 %v1413
    %1813 = vmatprep.subr.bf16.mxu0 0
    %1814 = vmatpush1.bf16.msra.mxu0 %v1414
    %1815 = vmatprep.subr.bf16.mxu0 0
    %1816 = vmatpush1.bf16.msra.mxu0 %v1415
    %1817 = vmatprep.subr.bf16.mxu0 0
    %1818 = vmatpush1.bf16.msra.mxu0 %v1416
    %1819 = vmatprep.subr.bf16.mxu0 0
    %1820 = vmatpush1.bf16.msra.mxu0 %v1417
    %1821 = vmatprep.subr.bf16.mxu0 0
    %1822 = vmatpush1.bf16.msra.mxu0 %v1418
    %1823 = vmatprep.subr.bf16.mxu0 0
    %1824 = vmatpush1.bf16.msra.mxu0 %v1419
    %1825 = vmatprep.subr.bf16.mxu0 0
    %1826 = vmatpush1.bf16.msra.mxu0 %v1420
    %1827 = vmatprep.subr.bf16.mxu0 0
    %1828 = vmatpush1.bf16.msra.mxu0 %v1421
    %1829 = vmatprep.subr.bf16.mxu0 0
    %1830 = vmatpush1.bf16.msra.mxu0 %v1422
    %1831 = vmatprep.subr.bf16.mxu0 0
    %1832 = vmatpush1.bf16.msra.mxu0 %v1423
    %1833 = vmatprep.subr.bf16.mxu0 0
    %1834 = vmatpush1.bf16.msra.mxu0 %v1424
    %1835 = vmatprep.subr.bf16.mxu0 0
    %1836 = vmatpush1.bf16.msra.mxu0 %v1425
    %1837 = vmatprep.subr.bf16.mxu0 0
    %1838 = vmatpush1.bf16.msra.mxu0 %v1426
    %1839 = vmatprep.mubr.bf16.mxu0 %v479
    %1840 = vmatmul.mubr.bf16.gmra.mrb[0].mxu0 %v465
    %v1841 = vpop.f32.mrb[0].mxu0
    %v1842 = vadd.f32 %v436, %v1841
    %v1843 = vpop.f32.mrb[0].mxu0
    %v1844 = vpop.f32.mrb[0].mxu0
    %v1845 = vpop.f32.mrb[0].mxu0
    %1846 = vdwg.mxu0
    %1847 = vmatprep.subr.bf16.mxu0 0
    %1848 = vmatpush1.bf16.msra.mxu0 %v1427
    %1849 = vmatprep.subr.bf16.mxu0 0
    %1850 = vmatpush1.bf16.msra.mxu0 %v1428
    %1851 = vmatprep.subr.bf16.mxu0 0
    %1852 = vmatpush1.bf16.msra.mxu0 %v1429
    %1853 = vmatprep.subr.bf16.mxu0 0
    %1854 = vmatpush1.bf16.msra.mxu0 %v1430
    %1855 = vmatprep.subr.bf16.mxu0 0
    %1856 = vmatpush1.bf16.msra.mxu0 %v1431
    %1857 = vmatprep.subr.bf16.mxu0 0
    %1858 = vmatpush1.bf16.msra.mxu0 %v1432
    %1859 = vmatprep.subr.bf16.mxu0 0
    %1860 = vmatpush1.bf16.msra.mxu0 %v1433
    %1861 = vmatprep.subr.bf16.mxu0 0
    %1862 = vmatpush1.bf16.msra.mxu0 %v1434
    %1863 = vmatprep.subr.bf16.mxu0 0
    %1864 = vmatpush1.bf16.msra.mxu0 %v1435
    %1865 = vmatprep.subr.bf16.mxu0 0
    %1866 = vmatpush1.bf16.msra.mxu0 %v1436
    %1867 = vmatprep.subr.bf16.mxu0 0
    %1868 = vmatpush1.bf16.msra.mxu0 %v1437
    %1869 = vmatprep.subr.bf16.mxu0 0
    %1870 = vmatpush1.bf16.msra.mxu0 %v1438
    %1871 = vmatprep.subr.bf16.mxu0 0
    %1872 = vmatpush1.bf16.msra.mxu0 %v1439
    %1873 = vmatprep.subr.bf16.mxu0 0
    %1874 = vmatpush1.bf16.msra.mxu0 %v1440
    %1875 = vmatprep.subr.bf16.mxu0 0
    %1876 = vmatpush1.bf16.msra.mxu0 %v1441
    %1877 = vmatprep.subr.bf16.mxu0 0
    %1878 = vmatpush1.bf16.msra.mxu0 %v1442
    %1879 = vmatprep.mubr.bf16.mxu0 %v489
    %1880 = vmatmul.mubr.bf16.gmra.mrb[0].mxu0 %v487
    %v1881 = vpop.f32.mrb[0].mxu0
    %v1882 = vadd.f32 %v1842, %v1881
    %v1883 = vpop.f32.mrb[0].mxu0
    %v1884 = vpop.f32.mrb[0].mxu0
    %v1885 = vpop.f32.mrb[0].mxu0
    %1886 = vdwg.mxu0
    %1887 = vmatprep.subr.bf16.mxu0 0
    %1888 = vmatpush1.bf16.msra.mxu0 %v1443
    %1889 = vmatprep.subr.bf16.mxu0 0
    %1890 = vmatpush1.bf16.msra.mxu0 %v1444
    %1891 = vmatprep.subr.bf16.mxu0 0
    %1892 = vmatpush1.bf16.msra.mxu0 %v1445
    %1893 = vmatprep.subr.bf16.mxu0 0
    %1894 = vmatpush1.bf16.msra.mxu0 %v1446
    %1895 = vmatprep.subr.bf16.mxu0 0
    %1896 = vmatpush1.bf16.msra.mxu0 %v1447
    %1897 = vmatprep.subr.bf16.mxu0 0
    %1898 = vmatpush1.bf16.msra.mxu0 %v1448
    %1899 = vmatprep.subr.bf16.mxu0 0
    %1900 = vmatpush1.bf16.msra.mxu0 %v1449
    %1901 = vmatprep.subr.bf16.mxu0 0
    %1902 = vmatpush1.bf16.msra.mxu0 %v1450
    %1903 = vmatprep.subr.bf16.mxu0 0
    %1904 = vmatpush1.bf16.msra.mxu0 %v1451
    %1905 = vmatprep.subr.bf16.mxu0 0
    %1906 = vmatpush1.bf16.msra.mxu0 %v1452
    %1907 = vmatprep.subr.bf16.mxu0 0
    %1908 = vmatpush1.bf16.msra.mxu0 %v1453
    %1909 = vmatprep.subr.bf16.mxu0 0
    %1910 = vmatpush1.bf16.msra.mxu0 %v1454
    %1911 = vmatprep.subr.bf16.mxu0 0
    %1912 = vmatpush1.bf16.msra.mxu0 %v1455
    %1913 = vmatprep.subr.bf16.mxu0 0
    %1914 = vmatpush1.bf16.msra.mxu0 %v1456
    %1915 = vmatprep.subr.bf16.mxu0 0
    %1916 = vmatpush1.bf16.msra.mxu0 %v1457
    %1917 = vmatprep.subr.bf16.mxu0 0
    %1918 = vmatpush1.bf16.msra.mxu0 %v1458
    %1919 = vmatprep.mubr.bf16.mxu0 %v486
    %1920 = vmatmul.mubr.bf16.gmra.mrb[0].mxu0 %v472
    %v1921 = vpop.f32.mrb[0].mxu0
    %v1922 = vadd.f32 %v1882, %v1921
    %v1923 = vpop.f32.mrb[0].mxu0
    %v1924 = vpop.f32.mrb[0].mxu0
    %v1925 = vpop.f32.mrb[0].mxu0
    %1926 = vdwg.mxu0
    %1927 = vmatprep.subr.bf16.mxu0 0
    %1928 = vmatpush1.bf16.msra.mxu0 %v1459
    %1929 = vmatprep.subr.bf16.mxu0 0
    %1930 = vmatpush1.bf16.msra.mxu0 %v1460
    %1931 = vmatprep.subr.bf16.mxu0 0
    %1932 = vmatpush1.bf16.msra.mxu0 %v1461
    %1933 = vmatprep.subr.bf16.mxu0 0
    %1934 = vmatpush1.bf16.msra.mxu0 %v1462
    %1935 = vmatprep.subr.bf16.mxu0 0
    %1936 = vmatpush1.bf16.msra.mxu0 %v1463
    %1937 = vmatprep.subr.bf16.mxu0 0
    %1938 = vmatpush1.bf16.msra.mxu0 %v1464
    %1939 = vmatprep.subr.bf16.mxu0 0
    %1940 = vmatpush1.bf16.msra.mxu0 %v1465
    %1941 = vmatprep.subr.bf16.mxu0 0
    %1942 = vmatpush1.bf16.msra.mxu0 %v1466
    %1943 = vmatprep.subr.bf16.mxu0 0
    %1944 = vmatpush1.bf16.msra.mxu0 %v1467
    %1945 = vmatprep.subr.bf16.mxu0 0
    %1946 = vmatpush1.bf16.msra.mxu0 %v1468
    %1947 = vmatprep.subr.bf16.mxu0 0
    %1948 = vmatpush1.bf16.msra.mxu0 %v1469
    %1949 = vmatprep.subr.bf16.mxu0 0
    %1950 = vmatpush1.bf16.msra.mxu0 %v1470
    %1951 = vmatprep.subr.bf16.mxu0 0
    %1952 = vmatpush1.bf16.msra.mxu0 %v1471
    %1953 = vmatprep.subr.bf16.mxu0 0
    %1954 = vmatpush1.bf16.msra.mxu0 %v1472
    %1955 = vmatprep.subr.bf16.mxu0 0
    %1956 = vmatpush1.bf16.msra.mxu0 %v1473
    %1957 = vmatprep.subr.bf16.mxu0 0
    %1958 = vmatpush1.bf16.msra.mxu0 %v1474
    %1959 = vmatprep.mubr.bf16.mxu0 %v490
    %1960 = vmatmul.mubr.bf16.gmra.mrb[0].mxu0 %v488
    %v1961 = vpop.f32.mrb[0].mxu0
    %v1962 = vadd.f32 %v1922, %v1961
    %v1963 = vpop.f32.mrb[0].mxu0
    %v1964 = vpop.f32.mrb[0].mxu0
    %v1965 = vpop.f32.mrb[0].mxu0
    %1966 = vdwg.mxu0
    %1967 = vmatprep.subr.bf16.mxu0 0
    %1968 = vmatpush1.bf16.msra.mxu0 %v1475
    %1969 = vmatprep.subr.bf16.mxu0 0
    %1970 = vmatpush1.bf16.msra.mxu0 %v1476
    %1971 = vmatprep.subr.bf16.mxu0 0
    %1972 = vmatpush1.bf16.msra.mxu0 %v1477
    %1973 = vmatprep.subr.bf16.mxu0 0
    %1974 = vmatpush1.bf16.msra.mxu0 %v1478
    %1975 = vmatprep.subr.bf16.mxu0 0
    %1976 = vmatpush1.bf16.msra.mxu0 %v1479
    %1977 = vmatprep.subr.bf16.mxu0 0
    %1978 = vmatpush1.bf16.msra.mxu0 %v1480
    %1979 = vmatprep.subr.bf16.mxu0 0
    %1980 = vmatpush1.bf16.msra.mxu0 %v1481
    %1981 = vmatprep.subr.bf16.mxu0 0
    %1982 = vmatpush1.bf16.msra.mxu0 %v1482
    %1983 = vmatprep.subr.bf16.mxu0 0
    %1984 = vmatpush1.bf16.msra.mxu0 %v1483
    %1985 = vmatprep.subr.bf16.mxu0 0
    %1986 = vmatpush1.bf16.msra.mxu0 %v1484
    %1987 = vmatprep.subr.bf16.mxu0 0
    %1988 = vmatpush1.bf16.msra.mxu0 %v1485
    %1989 = vmatprep.subr.bf16.mxu0 0
    %1990 = vmatpush1.bf16.msra.mxu0 %v1486
    %1991 = vmatprep.subr.bf16.mxu0 0
    %1992 = vmatpush1.bf16.msra.mxu0 %v1487
    %1993 = vmatprep.subr.bf16.mxu0 0
    %1994 = vmatpush1.bf16.msra.mxu0 %v1488
    %1995 = vmatprep.subr.bf16.mxu0 0
    %1996 = vmatpush1.bf16.msra.mxu0 %v1489
    %1997 = vmatprep.subr.bf16.mxu0 0
    %1998 = vmatpush1.bf16.msra.mxu0 %v1490
    %1999 = vmatprep.mubr.bf16.mxu0 %v528
    %2000 = vmatmul.mubr.bf16.gmra.mrb[0].mxu0 %v514
    %v2001 = vpop.f32.mrb[0].mxu0
    %v2002 = vadd.f32 %v1962, %v2001
    %v2003 = vpop.f32.mrb[0].mxu0
    %v2004 = vpop.f32.mrb[0].mxu0
    %v2005 = vpop.f32.mrb[0].mxu0
    %2006 = vdwg.mxu0
    %2007 = vmatprep.subr.bf16.mxu0 0
    %2008 = vmatpush1.bf16.msra.mxu0 %v1491
    %2009 = vmatprep.subr.bf16.mxu0 0
    %2010 = vmatpush1.bf16.msra.mxu0 %v1492
    %2011 = vmatprep.subr.bf16.mxu0 0
    %2012 = vmatpush1.bf16.msra.mxu0 %v1493
    %2013 = vmatprep.subr.bf16.mxu0 0
    %2014 = vmatpush1.bf16.msra.mxu0 %v1494
    %2015 = vmatprep.subr.bf16.mxu0 0
    %2016 = vmatpush1.bf16.msra.mxu0 %v1495
    %2017 = vmatprep.subr.bf16.mxu0 0
    %2018 = vmatpush1.bf16.msra.mxu0 %v1496
    %2019 = vmatprep.subr.bf16.mxu0 0
    %2020 = vmatpush1.bf16.msra.mxu0 %v1497
    %2021 = vmatprep.subr.bf16.mxu0 0
    %2022 = vmatpush1.bf16.msra.mxu0 %v1498
    %2023 = vmatprep.subr.bf16.mxu0 0
    %2024 = vmatpush1.bf16.msra.mxu0 %v1499
    %2025 = vmatprep.subr.bf16.mxu0 0
    %2026 = vmatpush1.bf16.msra.mxu0 %v1500
    %2027 = vmatprep.subr.bf16.mxu0 0
    %2028 = vmatpush1.bf16.msra.mxu0 %v1501
    %2029 = vmatprep.subr.bf16.mxu0 0
    %2030 = vmatpush1.bf16.msra.mxu0 %v1502
    %2031 = vmatprep.subr.bf16.mxu0 0
    %2032 = vmatpush1.bf16.msra.mxu0 %v1503
    %2033 = vmatprep.subr.bf16.mxu0 0
    %2034 = vmatpush1.bf16.msra.mxu0 %v1504
    %2035 = vmatprep.subr.bf16.mxu0 0
    %2036 = vmatpush1.bf16.msra.mxu0 %v1505
    %2037 = vmatprep.subr.bf16.mxu0 0
    %2038 = vmatpush1.bf16.msra.mxu0 %v1506
    %2039 = vmatprep.mubr.bf16.mxu0 %v538
    %2040 = vmatmul.mubr.bf16.gmra.mrb[0].mxu0 %v536
    %v2041 = vpop.f32.mrb[0].mxu0
    %v2042 = vadd.f32 %v2002, %v2041
    %v2043 = vpop.f32.mrb[0].mxu0
    %v2044 = vpop.f32.mrb[0].mxu0
    %v2045 = vpop.f32.mrb[0].mxu0
    %2046 = vdwg.mxu0
    %2047 = vmatprep.subr.bf16.mxu0 0
    %2048 = vmatpush1.bf16.msra.mxu0 %v1507
    %2049 = vmatprep.subr.bf16.mxu0 0
    %2050 = vmatpush1.bf16.msra.mxu0 %v1508
    %2051 = vmatprep.subr.bf16.mxu0 0
    %2052 = vmatpush1.bf16.msra.mxu0 %v1509
    %2053 = vmatprep.subr.bf16.mxu0 0
    %2054 = vmatpush1.bf16.msra.mxu0 %v1510
    %2055 = vmatprep.subr.bf16.mxu0 0
    %2056 = vmatpush1.bf16.msra.mxu0 %v1511
    %2057 = vmatprep.subr.bf16.mxu0 0
    %2058 = vmatpush1.bf16.msra.mxu0 %v1512
    %2059 = vmatprep.subr.bf16.mxu0 0
    %2060 = vmatpush1.bf16.msra.mxu0 %v1513
    %2061 = vmatprep.subr.bf16.mxu0 0
    %2062 = vmatpush1.bf16.msra.mxu0 %v1514
    %2063 = vmatprep.subr.bf16.mxu0 0
    %2064 = vmatpush1.bf16.msra.mxu0 %v1515
    %2065 = vmatprep.subr.bf16.mxu0 0
    %2066 = vmatpush1.bf16.msra.mxu0 %v1516
    %2067 = vmatprep.subr.bf16.mxu0 0
    %2068 = vmatpush1.bf16.msra.mxu0 %v1517
    %2069 = vmatprep.subr.bf16.mxu0 0
    %2070 = vmatpush1.bf16.msra.mxu0 %v1518
    %2071 = vmatprep.subr.bf16.mxu0 0
    %2072 = vmatpush1.bf16.msra.mxu0 %v1519
    %2073 = vmatprep.subr.bf16.mxu0 0
    %2074 = vmatpush1.bf16.msra.mxu0 %v1520
    %2075 = vmatprep.subr.bf16.mxu0 0
    %2076 = vmatpush1.bf16.msra.mxu0 %v1521
    %2077 = vmatprep.subr.bf16.mxu0 0
    %2078 = vmatpush1.bf16.msra.mxu0 %v1522
    %2079 = vmatprep.mubr.bf16.mxu0 %v535
    %2080 = vmatmul.mubr.bf16.gmra.mrb[0].mxu0 %v521
    %v2081 = vpop.f32.mrb[0].mxu0
    %v2082 = vadd.f32 %v2042, %v2081
    %v2083 = vpop.f32.mrb[0].mxu0
    %v2084 = vpop.f32.mrb[0].mxu0
    %v2085 = vpop.f32.mrb[0].mxu0
    %2086 = vdwg.mxu0
    %2087 = vmatprep.subr.bf16.mxu0 0
    %2088 = vmatpush1.bf16.msra.mxu0 %v1523
    %2089 = vmatprep.subr.bf16.mxu0 0
    %2090 = vmatpush1.bf16.msra.mxu0 %v1524
    %2091 = vmatprep.subr.bf16.mxu0 0
    %2092 = vmatpush1.bf16.msra.mxu0 %v1525
    %2093 = vmatprep.subr.bf16.mxu0 0
    %2094 = vmatpush1.bf16.msra.mxu0 %v1526
    %2095 = vmatprep.subr.bf16.mxu0 0
    %2096 = vmatpush1.bf16.msra.mxu0 %v1527
    %2097 = vmatprep.subr.bf16.mxu0 0
    %2098 = vmatpush1.bf16.msra.mxu0 %v1528
    %2099 = vmatprep.subr.bf16.mxu0 0
    %2100 = vmatpush1.bf16.msra.mxu0 %v1529
    %2101 = vmatprep.subr.bf16.mxu0 0
    %2102 = vmatpush1.bf16.msra.mxu0 %v1530
    %2103 = vmatprep.subr.bf16.mxu0 0
    %2104 = vmatpush1.bf16.msra.mxu0 %v1531
    %2105 = vmatprep.subr.bf16.mxu0 0
    %2106 = vmatpush1.bf16.msra.mxu0 %v1532
    %2107 = vmatprep.subr.bf16.mxu0 0
    %2108 = vmatpush1.bf16.msra.mxu0 %v1533
    %2109 = vmatprep.subr.bf16.mxu0 0
    %2110 = vmatpush1.bf16.msra.mxu0 %v1534
    %2111 = vmatprep.subr.bf16.mxu0 0
    %2112 = vmatpush1.bf16.msra.mxu0 %v1535
    %2113 = vmatprep.subr.bf16.mxu0 0
    %2114 = vmatpush1.bf16.msra.mxu0 %v1536
    %2115 = vmatprep.subr.bf16.mxu0 0
    %2116 = vmatpush1.bf16.msra.mxu0 %v1537
    %2117 = vmatprep.subr.bf16.mxu0 0
    %2118 = vmatpush1.bf16.msra.mxu0 %v1538
    %2119 = vmatprep.mubr.bf16.mxu0 %v539
    %2120 = vmatmul.mubr.bf16.gmra.mrb[0].mxu0 %v537
    %v2121 = vpop.f32.mrb[0].mxu0
    %v2122 = vadd.f32 %v2082, %v2121
    %v2123 = vpop.f32.mrb[0].mxu0
    %v2124 = vpop.f32.mrb[0].mxu0
    %v2125 = vpop.f32.mrb[0].mxu0
    %2126 = vdwg.mxu0
    %2127 = vmatprep.subr.bf16.mxu0 0
    %2128 = vmatpush1.bf16.msra.mxu0 %v1539
    %2129 = vmatprep.subr.bf16.mxu0 0
    %2130 = vmatpush1.bf16.msra.mxu0 %v1540
    %2131 = vmatprep.subr.bf16.mxu0 0
    %2132 = vmatpush1.bf16.msra.mxu0 %v1541
    %2133 = vmatprep.subr.bf16.mxu0 0
    %2134 = vmatpush1.bf16.msra.mxu0 %v1542
    %2135 = vmatprep.subr.bf16.mxu0 0
    %2136 = vmatpush1.bf16.msra.mxu0 %v1543
    %2137 = vmatprep.subr.bf16.mxu0 0
    %2138 = vmatpush1.bf16.msra.mxu0 %v1544
    %2139 = vmatprep.subr.bf16.mxu0 0
    %2140 = vmatpush1.bf16.msra.mxu0 %v1545
    %2141 = vmatprep.subr.bf16.mxu0 0
    %2142 = vmatpush1.bf16.msra.mxu0 %v1546
    %2143 = vmatprep.subr.bf16.mxu0 0
    %2144 = vmatpush1.bf16.msra.mxu0 %v1547
    %2145 = vmatprep.subr.bf16.mxu0 0
    %2146 = vmatpush1.bf16.msra.mxu0 %v1548
    %2147 = vmatprep.subr.bf16.mxu0 0
    %2148 = vmatpush1.bf16.msra.mxu0 %v1549
    %2149 = vmatprep.subr.bf16.mxu0 0
    %2150 = vmatpush1.bf16.msra.mxu0 %v1550
    %2151 = vmatprep.subr.bf16.mxu0 0
    %2152 = vmatpush1.bf16.msra.mxu0 %v1551
    %2153 = vmatprep.subr.bf16.mxu0 0
    %2154 = vmatpush1.bf16.msra.mxu0 %v1552
    %2155 = vmatprep.subr.bf16.mxu0 0
    %2156 = vmatpush1.bf16.msra.mxu0 %v1553
    %2157 = vmatprep.subr.bf16.mxu0 0
    %2158 = vmatpush1.bf16.msra.mxu0 %v1554
    %2159 = vmatprep.mubr.bf16.mxu0 %v577
    %2160 = vmatmul.mubr.bf16.gmra.mrb[0].mxu0 %v563
    %v2161 = vpop.f32.mrb[0].mxu0
    %v2162 = vadd.f32 %v2122, %v2161
    %v2163 = vpop.f32.mrb[0].mxu0
    %v2164 = vpop.f32.mrb[0].mxu0
    %v2165 = vpop.f32.mrb[0].mxu0
    %2166 = vdwg.mxu0
    %2167 = vmatprep.subr.bf16.mxu0 0
    %2168 = vmatpush1.bf16.msra.mxu0 %v1555
    %2169 = vmatprep.subr.bf16.mxu0 0
    %2170 = vmatpush1.bf16.msra.mxu0 %v1556
    %2171 = vmatprep.subr.bf16.mxu0 0
    %2172 = vmatpush1.bf16.msra.mxu0 %v1557
    %2173 = vmatprep.subr.bf16.mxu0 0
    %2174 = vmatpush1.bf16.msra.mxu0 %v1558
    %2175 = vmatprep.subr.bf16.mxu0 0
    %2176 = vmatpush1.bf16.msra.mxu0 %v1559
    %2177 = vmatprep.subr.bf16.mxu0 0
    %2178 = vmatpush1.bf16.msra.mxu0 %v1560
    %2179 = vmatprep.subr.bf16.mxu0 0
    %2180 = vmatpush1.bf16.msra.mxu0 %v1561
    %2181 = vmatprep.subr.bf16.mxu0 0
    %2182 = vmatpush1.bf16.msra.mxu0 %v1562
    %2183 = vmatprep.subr.bf16.mxu0 0
    %2184 = vmatpush1.bf16.msra.mxu0 %v1563
    %2185 = vmatprep.subr.bf16.mxu0 0
    %2186 = vmatpush1.bf16.msra.mxu0 %v1564
    %2187 = vmatprep.subr.bf16.mxu0 0
    %2188 = vmatpush1.bf16.msra.mxu0 %v1565
    %2189 = vmatprep.subr.bf16.mxu0 0
    %2190 = vmatpush1.bf16.msra.mxu0 %v1566
    %2191 = vmatprep.subr.bf16.mxu0 0
    %2192 = vmatpush1.bf16.msra.mxu0 %v1567
    %2193 = vmatprep.subr.bf16.mxu0 0
    %2194 = vmatpush1.bf16.msra.mxu0 %v1568
    %2195 = vmatprep.subr.bf16.mxu0 0
    %2196 = vmatpush1.bf16.msra.mxu0 %v1569
    %2197 = vmatprep.subr.bf16.mxu0 0
    %2198 = vmatpush1.bf16.msra.mxu0 %v1570
    %2199 = vmatprep.mubr.bf16.mxu0 %v587
    %2200 = vmatmul.mubr.bf16.gmra.mrb[0].mxu0 %v585
    %v2201 = vpop.f32.mrb[0].mxu0
    %v2202 = vadd.f32 %v2162, %v2201
    %v2203 = vpop.f32.mrb[0].mxu0
    %v2204 = vpop.f32.mrb[0].mxu0
    %v2205 = vpop.f32.mrb[0].mxu0
    %2206 = vdwg.mxu0
    %2207 = vmatprep.subr.bf16.mxu0 0
    %2208 = vmatpush1.bf16.msra.mxu0 %v1571
    %2209 = vmatprep.subr.bf16.mxu0 0
    %2210 = vmatpush1.bf16.msra.mxu0 %v1572
    %2211 = vmatprep.subr.bf16.mxu0 0
    %2212 = vmatpush1.bf16.msra.mxu0 %v1573
    %2213 = vmatprep.subr.bf16.mxu0 0
    %2214 = vmatpush1.bf16.msra.mxu0 %v1574
    %2215 = vmatprep.subr.bf16.mxu0 0
    %2216 = vmatpush1.bf16.msra.mxu0 %v1575
    %2217 = vmatprep.subr.bf16.mxu0 0
    %2218 = vmatpush1.bf16.msra.mxu0 %v1576
    %2219 = vmatprep.subr.bf16.mxu0 0
    %2220 = vmatpush1.bf16.msra.mxu0 %v1577
    %2221 = vmatprep.subr.bf16.mxu0 0
    %2222 = vmatpush1.bf16.msra.mxu0 %v1578
    %2223 = vmatprep.subr.bf16.mxu0 0
    %2224 = vmatpush1.bf16.msra.mxu0 %v1579
    %2225 = vmatprep.subr.bf16.mxu0 0
    %2226 = vmatpush1.bf16.msra.mxu0 %v1580
    %2227 = vmatprep.subr.bf16.mxu0 0
    %2228 = vmatpush1.bf16.msra.mxu0 %v1581
    %2229 = vmatprep.subr.bf16.mxu0 0
    %2230 = vmatpush1.bf16.msra.mxu0 %v1582
    %2231 = vmatprep.subr.bf16.mxu0 0
    %2232 = vmatpush1.bf16.msra.mxu0 %v1583
    %2233 = vmatprep.subr.bf16.mxu0 0
    %2234 = vmatpush1.bf16.msra.mxu0 %v1584
    %2235 = vmatprep.subr.bf16.mxu0 0
    %2236 = vmatpush1.bf16.msra.mxu0 %v1585
    %2237 = vmatprep.subr.bf16.mxu0 0
    %2238 = vmatpush1.bf16.msra.mxu0 %v1586
    %2239 = vmatprep.mubr.bf16.mxu0 %v584
    %2240 = vmatmul.mubr.bf16.gmra.mrb[0].mxu0 %v570
    %v2241 = vpop.f32.mrb[0].mxu0
    %v2242 = vadd.f32 %v2202, %v2241
    %v2243 = vpop.f32.mrb[0].mxu0
    %v2244 = vpop.f32.mrb[0].mxu0
    %v2245 = vpop.f32.mrb[0].mxu0
    %2246 = vdwg.mxu0
    %2247 = vmatprep.subr.bf16.mxu0 0
    %2248 = vmatpush1.bf16.msra.mxu0 %v1587
    %2249 = vmatprep.subr.bf16.mxu0 0
    %2250 = vmatpush1.bf16.msra.mxu0 %v1588
    %2251 = vmatprep.subr.bf16.mxu0 0
    %2252 = vmatpush1.bf16.msra.mxu0 %v1589
    %2253 = vmatprep.subr.bf16.mxu0 0
    %2254 = vmatpush1.bf16.msra.mxu0 %v1590
    %2255 = vmatprep.subr.bf16.mxu0 0
    %2256 = vmatpush1.bf16.msra.mxu0 %v1591
    %2257 = vmatprep.subr.bf16.mxu0 0
    %2258 = vmatpush1.bf16.msra.mxu0 %v1592
    %2259 = vmatprep.subr.bf16.mxu0 0
    %2260 = vmatpush1.bf16.msra.mxu0 %v1593
    %2261 = vmatprep.subr.bf16.mxu0 0
    %2262 = vmatpush1.bf16.msra.mxu0 %v1594
    %2263 = vmatprep.subr.bf16.mxu0 0
    %2264 = vmatpush1.bf16.msra.mxu0 %v1595
    %2265 = vmatprep.subr.bf16.mxu0 0
    %2266 = vmatpush1.bf16.msra.mxu0 %v1596
    %2267 = vmatprep.subr.bf16.mxu0 0
    %2268 = vmatpush1.bf16.msra.mxu0 %v1597
    %2269 = vmatprep.subr.bf16.mxu0 0
    %2270 = vmatpush1.bf16.msra.mxu0 %v1598
    %2271 = vmatprep.subr.bf16.mxu0 0
    %2272 = vmatpush1.bf16.msra.mxu0 %v1599
    %2273 = vmatprep.subr.bf16.mxu0 0
    %2274 = vmatpush1.bf16.msra.mxu0 %v1600
    %2275 = vmatprep.subr.bf16.mxu0 0
    %2276 = vmatpush1.bf16.msra.mxu0 %v1601
    %2277 = vmatprep.subr.bf16.mxu0 0
    %2278 = vmatpush1.bf16.msra.mxu0 %v1602
    %2279 = vmatprep.mubr.bf16.mxu0 %v588
    %2280 = vmatmul.mubr.bf16.gmra.mrb[0].mxu0 %v586
    %v2281 = vpop.f32.mrb[0].mxu0
    %v2282 = vadd.f32 %v2242, %v2281
    %v2283 = vpop.f32.mrb[0].mxu0
    %v2284 = vpop.f32.mrb[0].mxu0
    %v2285 = vpop.f32.mrb[0].mxu0
    %2286 = vdwg.mxu0
    %2287 = vmatprep.subr.bf16.mxu0 0
    %2288 = vmatpush1.bf16.msra.mxu0 %v1603
    %2289 = vmatprep.subr.bf16.mxu0 0
    %2290 = vmatpush1.bf16.msra.mxu0 %v1604
    %2291 = vmatprep.subr.bf16.mxu0 0
    %2292 = vmatpush1.bf16.msra.mxu0 %v1605
    %2293 = vmatprep.subr.bf16.mxu0 0
    %2294 = vmatpush1.bf16.msra.mxu0 %v1606
    %2295 = vmatprep.subr.bf16.mxu0 0
    %2296 = vmatpush1.bf16.msra.mxu0 0
    %2297 = vmatprep.subr.bf16.mxu0 0
    %2298 = vmatpush1.bf16.msra.mxu0 0
    %2299 = vmatprep.subr.bf16.mxu0 0
    %2300 = vmatpush1.bf16.msra.mxu0 0
    %2301 = vmatprep.subr.bf16.mxu0 0
    %2302 = vmatpush1.bf16.msra.mxu0 0
    %2303 = vmatprep.subr.bf16.mxu0 0
    %2304 = vmatpush1.bf16.msra.mxu0 0
    %2305 = vmatprep.subr.bf16.mxu0 0
    %2306 = vmatpush1.bf16.msra.mxu0 0
    %2307 = vmatprep.subr.bf16.mxu0 0
    %2308 = vmatpush1.bf16.msra.mxu0 0
    %2309 = vmatprep.subr.bf16.mxu0 0
    %2310 = vmatpush1.bf16.msra.mxu0 0
    %2311 = vmatprep.subr.bf16.mxu0 0
    %2312 = vmatpush1.bf16.msra.mxu0 0
    %2313 = vmatprep.subr.bf16.mxu0 0
    %2314 = vmatpush1.bf16.msra.mxu0 0
    %2315 = vmatprep.subr.bf16.mxu0 0
    %2316 = vmatpush1.bf16.msra.mxu0 0
    %2317 = vmatprep.subr.bf16.mxu0 0
    %2318 = vmatpush1.bf16.msra.mxu0 0
    %2319 = vmatprep.mubr.bf16.mxu0 0
    %2320 = vmatmul.mubr.bf16.gmra.mrb[0].mxu0 %v1805
    %v2321 = vpop.f32.mrb[0].mxu0
    %v2322 = vadd.f32 %v2282, %v2321
    %v2323 = vpop.f32.mrb[0].mxu0
    %v2324 = vpop.f32.mrb[0].mxu0
    %v2325 = vpop.f32.mrb[0].mxu0
    %2326 = vdwg.mxu0
    %v2327 = vld [vmem:[%s3] sm:$0xf]
    %v2328 = vld [vmem:[%s3 + $0x4] sm:$0xf]
    %v2329 = vld [vmem:[%s3 + $0x8] sm:$0xf]
    %v2330 = vld [vmem:[%s3 + $0xc] sm:$0xf]
    %v2331 = vld [vmem:[%s3 + $0x10] sm:$0xf]
    %v2332 = vld [vmem:[%s3 + $0x14] sm:$0xf]
    %v2333 = vld [vmem:[%s3 + $0x18] sm:$0xf]
    %v2334 = vld [vmem:[%s3 + $0x1c] sm:$0xf]
    %v2335 = vld [vmem:[%s3 + $0x20] sm:$0xf]
    %v2336 = vld [vmem:[%s3 + $0x24] sm:$0xf]
    %v2337 = vld [vmem:[%s3 + $0x28] sm:$0xf]
    %v2338 = vld [vmem:[%s3 + $0x2c] sm:$0xf]
    %v2339 = vld [vmem:[%s3 + $0x30] sm:$0xf]
    %v2340 = vld [vmem:[%s3 + $0x34] sm:$0xf]
    %v2341 = vld [vmem:[%s3 + $0x38] sm:$0xf]
    %v2342 = vld [vmem:[%s3 + $0x3c] sm:$0xf]
    %v2343 = vld [vmem:[%s3 + $0x40] sm:$0xf]
    %v2344 = vld [vmem:[%s3 + $0x44] sm:$0xf]
    %v2345 = vld [vmem:[%s3 + $0x48] sm:$0xf]
    %v2346 = vld [vmem:[%s3 + $0x4c] sm:$0xf]
    %v2347 = vld [vmem:[%s3 + $0x50] sm:$0xf]
    %v2348 = vld [vmem:[%s3 + $0x54] sm:$0xf]
    %v2349 = vld [vmem:[%s3 + $0x58] sm:$0xf]
    %v2350 = vld [vmem:[%s3 + $0x5c] sm:$0xf]
    %v2351 = vld [vmem:[%s3 + $0x60] sm:$0xf]
    %v2352 = vld [vmem:[%s3 + $0x64] sm:$0xf]
    %v2353 = vld [vmem:[%s3 + $0x68] sm:$0xf]
    %v2354 = vld [vmem:[%s3 + $0x6c] sm:$0xf]
    %v2355 = vld [vmem:[%s3 + $0x70] sm:$0xf]
    %v2356 = vld [vmem:[%s3 + $0x74] sm:$0xf]
    %v2357 = vld [vmem:[%s3 + $0x78] sm:$0xf]
    %v2358 = vld [vmem:[%s3 + $0x7c] sm:$0xf]
    %v2359 = vld [vmem:[%s3 + $0x80] sm:$0xf]
    %v2360 = vld [vmem:[%s3 + $0x84] sm:$0xf]
    %v2361 = vld [vmem:[%s3 + $0x88] sm:$0xf]
    %v2362 = vld [vmem:[%s3 + $0x8c] sm:$0xf]
    %v2363 = vld [vmem:[%s3 + $0x90] sm:$0xf]
    %v2364 = vld [vmem:[%s3 + $0x94] sm:$0xf]
    %v2365 = vld [vmem:[%s3 + $0x98] sm:$0xf]
    %v2366 = vld [vmem:[%s3 + $0x9c] sm:$0xf]
    %v2367 = vld [vmem:[%s3 + $0xa0] sm:$0xf]
    %v2368 = vld [vmem:[%s3 + $0xa4] sm:$0xf]
    %v2369 = vld [vmem:[%s3 + $0xa8] sm:$0xf]
    %v2370 = vld [vmem:[%s3 + $0xac] sm:$0xf]
    %v2371 = vld [vmem:[%s3 + $0xb0] sm:$0xf]
    %v2372 = vld [vmem:[%s3 + $0xb4] sm:$0xf]
    %v2373 = vld [vmem:[%s3 + $0xb8] sm:$0xf]
    %v2374 = vld [vmem:[%s3 + $0xbc] sm:$0xf]
    %v2375 = vld [vmem:[%s3 + $0xc0] sm:$0xf]
    %v2376 = vld [vmem:[%s3 + $0xc4] sm:$0xf]
    %v2377 = vld [vmem:[%s3 + $0xc8] sm:$0xf]
    %v2378 = vld [vmem:[%s3 + $0xcc] sm:$0xf]
    %v2379 = vld [vmem:[%s3 + $0xd0] sm:$0xf]
    %v2380 = vld [vmem:[%s3 + $0xd4] sm:$0xf]
    %v2381 = vld [vmem:[%s3 + $0xd8] sm:$0xf]
    %v2382 = vld [vmem:[%s3 + $0xdc] sm:$0xf]
    %v2383 = vld [vmem:[%s3 + $0xe0] sm:$0xf]
    %v2384 = vld [vmem:[%s3 + $0xe4] sm:$0xf]
    %v2385 = vld [vmem:[%s3 + $0xe8] sm:$0xf]
    %v2386 = vld [vmem:[%s3 + $0xec] sm:$0xf]
    %v2387 = vld [vmem:[%s3 + $0xf0] sm:$0xf]
    %v2388 = vld [vmem:[%s3 + $0xf4] sm:$0xf]
    %v2389 = vld [vmem:[%s3 + $0xf8] sm:$0xf]
    %v2390 = vld [vmem:[%s3 + $0xfc] sm:$0xf]
    %v2391 = vld [vmem:[%s3 + $0x100] sm:$0xf]
    %v2392 = vld [vmem:[%s3 + $0x104] sm:$0xf]
    %v2393 = vld [vmem:[%s3 + $0x108] sm:$0xf]
    %v2394 = vld [vmem:[%s3 + $0x10c] sm:$0xf]
    %v2395 = vld [vmem:[%s3 + $0x110] sm:$0xf]
    %v2396 = vld [vmem:[%s3 + $0x114] sm:$0xf]
    %v2397 = vld [vmem:[%s3 + $0x118] sm:$0xf]
    %v2398 = vld [vmem:[%s3 + $0x11c] sm:$0xf]
    %v2399 = vld [vmem:[%s3 + $0x120] sm:$0xf]
    %v2400 = vld [vmem:[%s3 + $0x124] sm:$0xf]
    %v2401 = vld [vmem:[%s3 + $0x128] sm:$0xf]
    %v2402 = vld [vmem:[%s3 + $0x12c] sm:$0xf]
    %v2403 = vld [vmem:[%s3 + $0x130] sm:$0xf]
    %v2404 = vld [vmem:[%s3 + $0x134] sm:$0xf]
    %v2405 = vld [vmem:[%s3 + $0x138] sm:$0xf]
    %v2406 = vld [vmem:[%s3 + $0x13c] sm:$0xf]
    %v2407 = vld [vmem:[%s3 + $0x140] sm:$0xf]
    %v2408 = vld [vmem:[%s3 + $0x144] sm:$0xf]
    %v2409 = vld [vmem:[%s3 + $0x148] sm:$0xf]
    %v2410 = vld [vmem:[%s3 + $0x14c] sm:$0xf]
    %v2411 = vld [vmem:[%s3 + $0x150] sm:$0xf]
    %v2412 = vld [vmem:[%s3 + $0x154] sm:$0xf]
    %v2413 = vld [vmem:[%s3 + $0x158] sm:$0xf]
    %v2414 = vld [vmem:[%s3 + $0x15c] sm:$0xf]
    %v2415 = vld [vmem:[%s3 + $0x160] sm:$0xf]
    %v2416 = vld [vmem:[%s3 + $0x164] sm:$0xf]
    %v2417 = vld [vmem:[%s3 + $0x168] sm:$0xf]
    %v2418 = vld [vmem:[%s3 + $0x16c] sm:$0xf]
    %v2419 = vld [vmem:[%s3 + $0x170] sm:$0xf]
    %v2420 = vld [vmem:[%s3 + $0x174] sm:$0xf]
    %v2421 = vld [vmem:[%s3 + $0x178] sm:$0xf]
    %v2422 = vld [vmem:[%s3 + $0x17c] sm:$0xf]
    %v2423 = vld [vmem:[%s3 + $0x180] sm:$0xf]
    %v2424 = vld [vmem:[%s3 + $0x184] sm:$0xf]
    %v2425 = vld [vmem:[%s3 + $0x188] sm:$0xf]
    %v2426 = vld [vmem:[%s3 + $0x18c] sm:$0xf]
    %v2427 = vld [vmem:[%s3 + $0x190] sm:$0xf]
    %v2428 = vld [vmem:[%s3 + $0x194] sm:$0xf]
    %v2429 = vld [vmem:[%s3 + $0x198] sm:$0xf]
    %v2430 = vld [vmem:[%s3 + $0x19c] sm:$0xf]
    %v2431 = vld [vmem:[%s3 + $0x1a0] sm:$0xf]
    %v2432 = vld [vmem:[%s3 + $0x1a4] sm:$0xf]
    %v2433 = vld [vmem:[%s3 + $0x1a8] sm:$0xf]
    %v2434 = vld [vmem:[%s3 + $0x1ac] sm:$0xf]
    %v2435 = vld [vmem:[%s3 + $0x1b0] sm:$0xf]
    %v2436 = vld [vmem:[%s3 + $0x1b4] sm:$0xf]
    %v2437 = vld [vmem:[%s3 + $0x1b8] sm:$0xf]
    %v2438 = vld [vmem:[%s3 + $0x1bc] sm:$0xf]
    %v2439 = vld [vmem:[%s3 + $0x1c0] sm:$0xf]
    %v2440 = vld [vmem:[%s3 + $0x1c4] sm:$0xf]
    %v2441 = vld [vmem:[%s3 + $0x1c8] sm:$0xf]
    %v2442 = vld [vmem:[%s3 + $0x1cc] sm:$0xf]
    %v2443 = vld [vmem:[%s3 + $0x1d0] sm:$0xf]
    %v2444 = vld [vmem:[%s3 + $0x1d4] sm:$0xf]
    %v2445 = vld [vmem:[%s3 + $0x1d8] sm:$0xf]
    %v2446 = vld [vmem:[%s3 + $0x1dc] sm:$0xf]
    %v2447 = vld [vmem:[%s3 + $0x1e0] sm:$0xf]
    %v2448 = vld [vmem:[%s3 + $0x1e4] sm:$0xf]
    %v2449 = vld [vmem:[%s3 + $0x1e8] sm:$0xf]
    %v2450 = vld [vmem:[%s3 + $0x1ec] sm:$0xf]
    %v2451 = vld [vmem:[%s3 + $0x1f0] sm:$0xf]
    %v2452 = vld [vmem:[%s3 + $0x1f4] sm:$0xf]
    %v2453 = vld [vmem:[%s3 + $0x1f8] sm:$0xf]
    %v2454 = vld [vmem:[%s3 + $0x1fc] sm:$0xf]
    %v2455 = vld [vmem:[%s3 + $0x200] sm:$0xf]
    %v2456 = vld [vmem:[%s3 + $0x204] sm:$0xf]
    %v2457 = vld [vmem:[%s3 + $0x208] sm:$0xf]
    %v2458 = vld [vmem:[%s3 + $0x20c] sm:$0xf]
    %v2459 = vld [vmem:[%s3 + $0x210] sm:$0xf]
    %v2460 = vld [vmem:[%s3 + $0x214] sm:$0xf]
    %v2461 = vld [vmem:[%s3 + $0x218] sm:$0xf]
    %v2462 = vld [vmem:[%s3 + $0x21c] sm:$0xf]
    %v2463 = vld [vmem:[%s3 + $0x220] sm:$0xf]
    %v2464 = vld [vmem:[%s3 + $0x224] sm:$0xf]
    %v2465 = vld [vmem:[%s3 + $0x228] sm:$0xf]
    %v2466 = vld [vmem:[%s3 + $0x22c] sm:$0xf]
    %v2467 = vld [vmem:[%s3 + $0x230] sm:$0xf]
    %v2468 = vld [vmem:[%s3 + $0x234] sm:$0xf]
    %v2469 = vld [vmem:[%s3 + $0x238] sm:$0xf]
    %v2470 = vld [vmem:[%s3 + $0x23c] sm:$0xf]
    %v2471 = vld [vmem:[%s3 + $0x240] sm:$0xf]
    %v2472 = vld [vmem:[%s3 + $0x244] sm:$0xf]
    %v2473 = vld [vmem:[%s3 + $0x248] sm:$0xf]
    %v2474 = vld [vmem:[%s3 + $0x24c] sm:$0xf]
    %v2475 = vld [vmem:[%s3 + $0x250] sm:$0xf]
    %v2476 = vld [vmem:[%s3 + $0x254] sm:$0xf]
    %v2477 = vld [vmem:[%s3 + $0x258] sm:$0xf]
    %v2478 = vld [vmem:[%s3 + $0x25c] sm:$0xf]
    %v2479 = vld [vmem:[%s3 + $0x260] sm:$0xf]
    %v2480 = vld [vmem:[%s3 + $0x264] sm:$0xf]
    %v2481 = vld [vmem:[%s3 + $0x268] sm:$0xf]
    %v2482 = vld [vmem:[%s3 + $0x26c] sm:$0xf]
    %v2483 = vld [vmem:[%s3 + $0x270] sm:$0xf]
    %v2484 = vld [vmem:[%s3 + $0x274] sm:$0xf]
    %v2485 = vld [vmem:[%s3 + $0x278] sm:$0xf]
    %v2486 = vld [vmem:[%s3 + $0x27c] sm:$0xf]
    %v2487 = vld [vmem:[%s3 + $0x280] sm:$0xf]
    %v2488 = vld [vmem:[%s3 + $0x284] sm:$0xf]
    %v2489 = vld [vmem:[%s3 + $0x288] sm:$0xf]
    %v2490 = vld [vmem:[%s3 + $0x28c] sm:$0xf]
    %v2491 = vld [vmem:[%s3 + $0x290] sm:$0xf]
    %v2492 = vld [vmem:[%s3 + $0x294] sm:$0xf]
    %v2493 = vld [vmem:[%s3 + $0x298] sm:$0xf]
    %v2494 = vld [vmem:[%s3 + $0x29c] sm:$0xf]
    %v2495 = vld [vmem:[%s3 + $0x2a0] sm:$0xf]
    %v2496 = vld [vmem:[%s3 + $0x2a4] sm:$0xf]
    %v2497 = vld [vmem:[%s3 + $0x2a8] sm:$0xf]
    %v2498 = vld [vmem:[%s3 + $0x2ac] sm:$0xf]
    %v2499 = vld [vmem:[%s3 + $0x2b0] sm:$0xf]
    %v2500 = vld [vmem:[%s3 + $0x2b4] sm:$0xf]
    %v2501 = vld [vmem:[%s3 + $0x2b8] sm:$0xf]
    %v2502 = vld [vmem:[%s3 + $0x2bc] sm:$0xf]
    %v2503 = vld [vmem:[%s3 + $0x2c0] sm:$0xf]
    %v2504 = vld [vmem:[%s3 + $0x2c4] sm:$0xf]
    %v2505 = vld [vmem:[%s3 + $0x2c8] sm:$0xf]
    %v2506 = vld [vmem:[%s3 + $0x2cc] sm:$0xf]
    %v2507 = vld [vmem:[%s3 + $0x2d0] sm:$0xf]
    %v2508 = vld [vmem:[%s3 + $0x2d4] sm:$0xf]
    %v2509 = vld [vmem:[%s3 + $0x2d8] sm:$0xf]
    %v2510 = vld [vmem:[%s3 + $0x2dc] sm:$0xf]
    %v2511 = vld [vmem:[%s3 + $0x2e0] sm:$0xf]
    %v2512 = vld [vmem:[%s3 + $0x2e4] sm:$0xf]
    %v2513 = vld [vmem:[%s3 + $0x2e8] sm:$0xf]
    %v2514 = vld [vmem:[%s3 + $0x2ec] sm:$0xf]
    %v2515 = vld [vmem:[%s3 + $0x2f0] sm:$0xf]
    %v2516 = vld [vmem:[%s3 + $0x2f4] sm:$0xf]
    %v2517 = vld [vmem:[%s3 + $0x2f8] sm:$0xf]
    %v2518 = vld [vmem:[%s3 + $0x2fc] sm:$0xf]
    %v2519 = vld [vmem:[%s3 + $0x300] sm:$0xf]
    %v2520 = vld [vmem:[%s3 + $0x304] sm:$0xf]
    %v2521 = vld [vmem:[%s3 + $0x308] sm:$0xf]
    %v2522 = vld [vmem:[%s3 + $0x30c] sm:$0xf]
    %v2523 = vld [vmem:[%s3 + $0x310] sm:$0xf]
    %v2524 = vld [vmem:[%s3 + $0x314] sm:$0xf]
    %v2525 = vld [vmem:[%s3 + $0x318] sm:$0xf]
    %v2526 = vld [vmem:[%s3 + $0x31c] sm:$0xf]
    %v2527 = vld [vmem:[%s3 + $0x320] sm:$0xf]
    %v2528 = vld [vmem:[%s3 + $0x324] sm:$0xf]
    %v2529 = vld [vmem:[%s3 + $0x328] sm:$0xf]
    %v2530 = vld [vmem:[%s3 + $0x32c] sm:$0xf]
    %v2531 = vld [vmem:[%s3 + $0x330] sm:$0xf]
    %v2532 = vld [vmem:[%s3 + $0x334] sm:$0xf]
    %v2533 = vld [vmem:[%s3 + $0x338] sm:$0xf]
    %v2534 = vld [vmem:[%s3 + $0x33c] sm:$0xf]
    %v2535 = vld [vmem:[%s3 + $0x340] sm:$0xf]
    %v2536 = vld [vmem:[%s3 + $0x344] sm:$0xf]
    %v2537 = vld [vmem:[%s3 + $0x348] sm:$0xf]
    %v2538 = vld [vmem:[%s3 + $0x34c] sm:$0xf]
    %v2539 = vld [vmem:[%s3 + $0x350] sm:$0xf]
    %v2540 = vld [vmem:[%s3 + $0x354] sm:$0xf]
    %v2541 = vld [vmem:[%s3 + $0x358] sm:$0xf]
    %v2542 = vld [vmem:[%s3 + $0x35c] sm:$0xf]
    %v2543 = vld [vmem:[%s3 + $0x360] sm:$0xf]
    %v2544 = vld [vmem:[%s3 + $0x364] sm:$0xf]
    %v2545 = vld [vmem:[%s3 + $0x368] sm:$0xf]
    %v2546 = vld [vmem:[%s3 + $0x36c] sm:$0xf]
    %v2547 = vld [vmem:[%s3 + $0x370] sm:$0xf]
    %v2548 = vld [vmem:[%s3 + $0x374] sm:$0xf]
    %v2549 = vld [vmem:[%s3 + $0x378] sm:$0xf]
    %v2550 = vld [vmem:[%s3 + $0x37c] sm:$0xf]
    %v2551 = vld [vmem:[%s3 + $0x380] sm:$0xf]
    %v2552 = vld [vmem:[%s3 + $0x384] sm:$0xf]
    %v2553 = vld [vmem:[%s3 + $0x388] sm:$0xf]
    %v2554 = vld [vmem:[%s3 + $0x38c] sm:$0xf]
    %v2555 = vld [vmem:[%s3 + $0x390] sm:$0xf]
    %v2556 = vld [vmem:[%s3 + $0x394] sm:$0xf]
    %v2557 = vld [vmem:[%s3 + $0x398] sm:$0xf]
    %v2558 = vld [vmem:[%s3 + $0x39c] sm:$0xf]
    %v2559 = vld [vmem:[%s3 + $0x3a0] sm:$0xf]
    %v2560 = vld [vmem:[%s3 + $0x3a4] sm:$0xf]
    %v2561 = vld [vmem:[%s3 + $0x3a8] sm:$0xf]
    %v2562 = vld [vmem:[%s3 + $0x3ac] sm:$0xf]
    %v2563 = vld [vmem:[%s3 + $0x3b0] sm:$0xf]
    %v2564 = vld [vmem:[%s3 + $0x3b4] sm:$0xf]
    %v2565 = vld [vmem:[%s3 + $0x3b8] sm:$0xf]
    %v2566 = vld [vmem:[%s3 + $0x3bc] sm:$0xf]
    %v2567 = vld [vmem:[%s3 + $0x3c0] sm:$0xf]
    %v2568 = vld [vmem:[%s3 + $0x3c4] sm:$0xf]
    %v2569 = vld [vmem:[%s3 + $0x3c8] sm:$0xf]
    %v2570 = vld [vmem:[%s3 + $0x3cc] sm:$0xf]
    %v2571 = vld [vmem:[%s3 + $0x3d0] sm:$0xf]
    %v2572 = vld [vmem:[%s3 + $0x3d4] sm:$0xf]
    %v2573 = vld [vmem:[%s3 + $0x3d8] sm:$0xf]
    %v2574 = vld [vmem:[%s3 + $0x3dc] sm:$0xf]
    %v2575 = vld [vmem:[%s3 + $0x3e0] sm:$0xf]
    %v2576 = vld [vmem:[%s3 + $0x3e4] sm:$0xf]
    %v2577 = vld [vmem:[%s3 + $0x3e8] sm:$0xf]
    %v2578 = vld [vmem:[%s3 + $0x3ec] sm:$0xf]
    %v2579 = vld [vmem:[%s3 + $0x3f0] sm:$0xf]
    %v2580 = vld [vmem:[%s3 + $0x3f4] sm:$0xf]
    %v2581 = vld [vmem:[%s3 + $0x3f8] sm:$0xf]
    %v2582 = vld [vmem:[%s3 + $0x3fc] sm:$0xf]
    %v2583 = vld [vmem:[%s3 + $0x400] sm:$0xf]
    %v2584 = vld [vmem:[%s3 + $0x404] sm:$0xf]
    %v2585 = vld [vmem:[%s3 + $0x408] sm:$0xf]
    %v2586 = vld [vmem:[%s3 + $0x40c] sm:$0xf]
    %v2587 = vld [vmem:[%s3 + $0x410] sm:$0xf]
    %v2588 = vld [vmem:[%s3 + $0x414] sm:$0xf]
    %v2589 = vld [vmem:[%s3 + $0x418] sm:$0xf]
    %v2590 = vld [vmem:[%s3 + $0x41c] sm:$0xf]
    %v2591 = vld [vmem:[%s3 + $0x420] sm:$0xf]
    %v2592 = vld [vmem:[%s3 + $0x424] sm:$0xf]
    %v2593 = vld [vmem:[%s3 + $0x428] sm:$0xf]
    %v2594 = vld [vmem:[%s3 + $0x42c] sm:$0xf]
    %v2595 = vld [vmem:[%s3 + $0x430] sm:$0xf]
    %v2596 = vld [vmem:[%s3 + $0x434] sm:$0xf]
    %v2597 = vld [vmem:[%s3 + $0x438] sm:$0xf]
    %v2598 = vld [vmem:[%s3 + $0x43c] sm:$0xf]
    %v2599 = vld [vmem:[%s3 + $0x440] sm:$0xf]
    %v2600 = vld [vmem:[%s3 + $0x444] sm:$0xf]
    %v2601 = vld [vmem:[%s3 + $0x448] sm:$0xf]
    %v2602 = vld [vmem:[%s3 + $0x44c] sm:$0xf]
    %v2603 = vld [vmem:[%s3 + $0x450] sm:$0xf]
    %v2604 = vld [vmem:[%s3 + $0x454] sm:$0xf]
    %v2605 = vld [vmem:[%s3 + $0x458] sm:$0xf]
    %v2606 = vld [vmem:[%s3 + $0x45c] sm:$0xf]
    %v2607 = vld [vmem:[%s3 + $0x460] sm:$0xf]
    %v2608 = vld [vmem:[%s3 + $0x464] sm:$0xf]
    %v2609 = vld [vmem:[%s3 + $0x468] sm:$0xf]
    %v2610 = vld [vmem:[%s3 + $0x46c] sm:$0xf]
    %v2611 = vld [vmem:[%s3 + $0x470] sm:$0xf]
    %v2612 = vld [vmem:[%s3 + $0x474] sm:$0xf]
    %v2613 = vld [vmem:[%s3 + $0x478] sm:$0xf]
    %v2614 = vld [vmem:[%s3 + $0x47c] sm:$0xf]
    %v2615 = vld [vmem:[%s3 + $0x480] sm:$0xf]
    %v2616 = vld [vmem:[%s3 + $0x484] sm:$0xf]
    %v2617 = vld [vmem:[%s3 + $0x488] sm:$0xf]
    %v2618 = vld [vmem:[%s3 + $0x48c] sm:$0xf]
    %v2619 = vld [vmem:[%s3 + $0x490] sm:$0xf]
    %v2620 = vld [vmem:[%s3 + $0x494] sm:$0xf]
    %v2621 = vld [vmem:[%s3 + $0x498] sm:$0xf]
    %v2622 = vld [vmem:[%s3 + $0x49c] sm:$0xf]
    %v2623 = vld [vmem:[%s3 + $0x4a0] sm:$0xf]
    %v2624 = vld [vmem:[%s3 + $0x4a4] sm:$0xf]
    %v2625 = vld [vmem:[%s3 + $0x4a8] sm:$0xf]
    %v2626 = vld [vmem:[%s3 + $0x4ac] sm:$0xf]
    %v2627 = vld [vmem:[%s3 + $0x4b0] sm:$0xf]
    %v2628 = vld [vmem:[%s3 + $0x4b4] sm:$0xf]
    %v2629 = vld [vmem:[%s3 + $0x4b8] sm:$0xf]
    %v2630 = vld [vmem:[%s3 + $0x4bc] sm:$0xf]
    %v2631 = vld [vmem:[%s3 + $0x4c0] sm:$0xf]
    %v2632 = vld [vmem:[%s3 + $0x4c4] sm:$0xf]
    %v2633 = vld [vmem:[%s3 + $0x4c8] sm:$0xf]
    %v2634 = vld [vmem:[%s3 + $0x4cc] sm:$0xf]
    %v2635 = vld [vmem:[%s3 + $0x4d0] sm:$0xf]
    %v2636 = vld [vmem:[%s3 + $0x4d4] sm:$0xf]
    %v2637 = vld [vmem:[%s3 + $0x4d8] sm:$0xf]
    %v2638 = vld [vmem:[%s3 + $0x4dc] sm:$0xf]
    %v2639 = vld [vmem:[%s3 + $0x4e0] sm:$0xf]
    %v2640 = vld [vmem:[%s3 + $0x4e4] sm:$0xf]
    %v2641 = vld [vmem:[%s3 + $0x4e8] sm:$0xf]
    %v2642 = vld [vmem:[%s3 + $0x4ec] sm:$0xf]
    %v2643 = vld [vmem:[%s3 + $0x4f0] sm:$0xf]
    %v2644 = vld [vmem:[%s3 + $0x4f4] sm:$0xf]
    %v2645 = vld [vmem:[%s3 + $0x4f8] sm:$0xf]
    %v2646 = vld [vmem:[%s3 + $0x4fc] sm:$0xf]
    %v2647 = vld [vmem:[%s3 + $0x500] sm:$0xf]
    %v2648 = vld [vmem:[%s3 + $0x504] sm:$0xf]
    %v2649 = vld [vmem:[%s3 + $0x508] sm:$0xf]
    %v2650 = vld [vmem:[%s3 + $0x50c] sm:$0xf]
    %v2651 = vld [vmem:[%s3 + $0x510] sm:$0xf]
    %v2652 = vld [vmem:[%s3 + $0x514] sm:$0xf]
    %v2653 = vld [vmem:[%s3 + $0x518] sm:$0xf]
    %v2654 = vld [vmem:[%s3 + $0x51c] sm:$0xf]
    %v2655 = vld [vmem:[%s3 + $0x520] sm:$0xf]
    %v2656 = vld [vmem:[%s3 + $0x524] sm:$0xf]
    %v2657 = vld [vmem:[%s3 + $0x528] sm:$0xf]
    %v2658 = vld [vmem:[%s3 + $0x52c] sm:$0xf]
    %v2659 = vld [vmem:[%s3 + $0x530] sm:$0xf]
    %v2660 = vld [vmem:[%s3 + $0x534] sm:$0xf]
    %v2661 = vld [vmem:[%s3 + $0x538] sm:$0xf]
    %v2662 = vld [vmem:[%s3 + $0x53c] sm:$0xf]
    %v2663 = vld [vmem:[%s3 + $0x540] sm:$0xf]
    %v2664 = vld [vmem:[%s3 + $0x544] sm:$0xf]
    %v2665 = vld [vmem:[%s3 + $0x548] sm:$0xf]
    %v2666 = vld [vmem:[%s3 + $0x54c] sm:$0xf]
    %v2667 = vld [vmem:[%s3 + $0x550] sm:$0xf]
    %v2668 = vld [vmem:[%s3 + $0x554] sm:$0xf]
    %v2669 = vld [vmem:[%s3 + $0x558] sm:$0xf]
    %v2670 = vld [vmem:[%s3 + $0x55c] sm:$0xf]
    %v2671 = vld [vmem:[%s3 + $0x560] sm:$0xf]
    %v2672 = vld [vmem:[%s3 + $0x564] sm:$0xf]
    %v2673 = vld [vmem:[%s3 + $0x568] sm:$0xf]
    %v2674 = vld [vmem:[%s3 + $0x56c] sm:$0xf]
    %v2675 = vld [vmem:[%s3 + $0x570] sm:$0xf]
    %v2676 = vld [vmem:[%s3 + $0x574] sm:$0xf]
    %v2677 = vld [vmem:[%s3 + $0x578] sm:$0xf]
    %v2678 = vld [vmem:[%s3 + $0x57c] sm:$0xf]
    %v2679 = vld [vmem:[%s3 + $0x580] sm:$0xf]
    %v2680 = vld [vmem:[%s3 + $0x584] sm:$0xf]
    %v2681 = vld [vmem:[%s3 + $0x588] sm:$0xf]
    %v2682 = vld [vmem:[%s3 + $0x58c] sm:$0xf]
    %v2683 = vld [vmem:[%s3 + $0x590] sm:$0xf]
    %v2684 = vld [vmem:[%s3 + $0x594] sm:$0xf]
    %v2685 = vld [vmem:[%s3 + $0x598] sm:$0xf]
    %v2686 = vld [vmem:[%s3 + $0x59c] sm:$0xf]
    %v2687 = vld [vmem:[%s3 + $0x5a0] sm:$0xf]
    %v2688 = vld [vmem:[%s3 + $0x5a4] sm:$0xf]
    %v2689 = vld [vmem:[%s3 + $0x5a8] sm:$0xf]
    %v2690 = vld [vmem:[%s3 + $0x5ac] sm:$0xf]
    %v2691 = vld [vmem:[%s3 + $0x5b0] sm:$0xf]
    %v2692 = vld [vmem:[%s3 + $0x5b4] sm:$0xf]
    %v2693 = vld [vmem:[%s3 + $0x5b8] sm:$0xf]
    %v2694 = vld [vmem:[%s3 + $0x5bc] sm:$0xf]
    %v2695 = vld [vmem:[%s3 + $0x5c0] sm:$0xf]
    %v2696 = vld [vmem:[%s3 + $0x5c4] sm:$0xf]
    %v2697 = vld [vmem:[%s3 + $0x5c8] sm:$0xf]
    %v2698 = vld [vmem:[%s3 + $0x5cc] sm:$0xf]
    %v2699 = vld [vmem:[%s3 + $0x5d0] sm:$0xf]
    %v2700 = vld [vmem:[%s3 + $0x5d4] sm:$0xf]
    %v2701 = vld [vmem:[%s3 + $0x5d8] sm:$0xf]
    %v2702 = vld [vmem:[%s3 + $0x5dc] sm:$0xf]
    %v2703 = vld [vmem:[%s3 + $0x5e0] sm:$0xf]
    %v2704 = vld [vmem:[%s3 + $0x5e4] sm:$0xf]
    %v2705 = vld [vmem:[%s3 + $0x5e8] sm:$0xf]
    %v2706 = vld [vmem:[%s3 + $0x5ec] sm:$0xf]
    %v2707 = vld [vmem:[%s3 + $0x5f0] sm:$0xf]
    %v2708 = vld [vmem:[%s3 + $0x5f4] sm:$0xf]
    %v2709 = vld [vmem:[%s3 + $0x5f8] sm:$0xf]
    %v2710 = vld [vmem:[%s3 + $0x5fc] sm:$0xf]
    %v2711 = vld [vmem:[%s3 + $0x600] sm:$0xf]
    %v2712 = vld [vmem:[%s3 + $0x604] sm:$0xf]
    %v2713 = vld [vmem:[%s3 + $0x608] sm:$0xf]
    %v2714 = vld [vmem:[%s3 + $0x60c] sm:$0xf]
    %v2715 = vld [vmem:[%s3 + $0x610] sm:$0xf]
    %v2716 = vld [vmem:[%s3 + $0x614] sm:$0xf]
    %v2717 = vld [vmem:[%s3 + $0x618] sm:$0xf]
    %v2718 = vld [vmem:[%s3 + $0x61c] sm:$0xf]
    %v2719 = vld [vmem:[%s4] sm:$0x1]
    %v2721 = vlaneseq
    %v2722 = vshrl.u32 %v2721, 7
    %v2723 = vsub.s32 0, %v2722
    %v2724 = vrot.slane %v2719, %v2723
    %v3118 = vunpack.c.l.b16 %v2327
    %v3119 = vunpack.c.l.b16 %v2328
    %v3120 = vunpack.c.l.b16 %v2329
    %v3121 = vunpack.c.l.b16 %v2330
    %v3122 = vunpack.c.l.b16 %v2331
    %v3123 = vunpack.c.l.b16 %v2332
    %v3124 = vunpack.c.l.b16 %v2333
    %v3125 = vunpack.c.l.b16 %v2334
    %v3126 = vunpack.c.l.b16 %v2335
    %v3127 = vunpack.c.l.b16 %v2336
    %v3128 = vunpack.c.l.b16 %v2337
    %v3129 = vunpack.c.l.b16 %v2338
    %v3130 = vunpack.c.l.b16 %v2339
    %v3131 = vunpack.c.l.b16 %v2340
    %v3132 = vunpack.c.l.b16 %v2341
    %v3133 = vunpack.c.l.b16 %v2342
    %v3134 = vunpack.c.l.b16 %v2343
    %v3135 = vunpack.c.l.b16 %v2344
    %v3136 = vunpack.c.l.b16 %v2345
    %v3137 = vunpack.c.l.b16 %v2346
    %v3138 = vunpack.c.l.b16 %v2347
    %v3139 = vunpack.c.l.b16 %v2348
    %v3140 = vunpack.c.l.b16 %v2349
    %v3141 = vunpack.c.l.b16 %v2350
    %v3142 = vunpack.c.l.b16 %v2351
    %v3143 = vunpack.c.l.b16 %v2352
    %v3144 = vunpack.c.l.b16 %v2353
    %v3145 = vunpack.c.l.b16 %v2354
    %v3146 = vunpack.c.l.b16 %v2355
    %v3147 = vunpack.c.l.b16 %v2356
    %v3148 = vunpack.c.l.b16 %v2357
    %v3149 = vunpack.c.l.b16 %v2358
    %v3150 = vunpack.c.l.b16 %v2359
    %v3151 = vunpack.c.l.b16 %v2360
    %v3152 = vunpack.c.l.b16 %v2361
    %v3153 = vunpack.c.l.b16 %v2362
    %v3154 = vunpack.c.l.b16 %v2363
    %v3155 = vunpack.c.l.b16 %v2364
    %v3156 = vunpack.c.l.b16 %v2365
    %v3157 = vunpack.c.l.b16 %v2366
    %v3158 = vunpack.c.l.b16 %v2367
    %v3159 = vunpack.c.l.b16 %v2368
    %v3160 = vunpack.c.l.b16 %v2369
    %v3161 = vunpack.c.l.b16 %v2370
    %v3162 = vunpack.c.l.b16 %v2371
    %v3163 = vunpack.c.l.b16 %v2372
    %v3164 = vunpack.c.l.b16 %v2373
    %v3165 = vunpack.c.l.b16 %v2374
    %v3166 = vunpack.c.l.b16 %v2375
    %v3167 = vunpack.c.l.b16 %v2376
    %v3168 = vunpack.c.l.b16 %v2377
    %v3169 = vunpack.c.l.b16 %v2378
    %v3170 = vunpack.c.l.b16 %v2379
    %v3171 = vunpack.c.l.b16 %v2380
    %v3172 = vunpack.c.l.b16 %v2381
    %v3173 = vunpack.c.l.b16 %v2382
    %v3174 = vunpack.c.l.b16 %v2383
    %v3175 = vunpack.c.l.b16 %v2384
    %v3176 = vunpack.c.l.b16 %v2385
    %v3177 = vunpack.c.l.b16 %v2386
    %v3178 = vunpack.c.l.b16 %v2387
    %v3179 = vunpack.c.l.b16 %v2388
    %v3180 = vunpack.c.l.b16 %v2389
    %v3181 = vunpack.c.l.b16 %v2390
    %v3182 = vunpack.c.l.b16 %v2391
    %v3183 = vunpack.c.l.b16 %v2392
    %v3184 = vunpack.c.l.b16 %v2393
    %v3185 = vunpack.c.l.b16 %v2394
    %v3186 = vunpack.c.l.b16 %v2395
    %v3187 = vunpack.c.l.b16 %v2396
    %v3188 = vunpack.c.l.b16 %v2397
    %v3189 = vunpack.c.l.b16 %v2398
    %v3190 = vunpack.c.l.b16 %v2399
    %v3191 = vunpack.c.l.b16 %v2400
    %v3192 = vunpack.c.l.b16 %v2401
    %v3193 = vunpack.c.l.b16 %v2402
    %v3194 = vunpack.c.l.b16 %v2403
    %v3195 = vunpack.c.l.b16 %v2404
    %v3196 = vunpack.c.l.b16 %v2405
    %v3197 = vunpack.c.l.b16 %v2406
    %v3198 = vunpack.c.l.b16 %v2407
    %v3199 = vunpack.c.l.b16 %v2408
    %v3200 = vunpack.c.l.b16 %v2409
    %v3201 = vunpack.c.l.b16 %v2410
    %v3202 = vunpack.c.l.b16 %v2411
    %v3203 = vunpack.c.l.b16 %v2412
    %v3204 = vunpack.c.l.b16 %v2413
    %v3205 = vunpack.c.l.b16 %v2414
    %v3206 = vunpack.c.l.b16 %v2415
    %v3207 = vunpack.c.l.b16 %v2416
    %v3208 = vunpack.c.l.b16 %v2417
    %v3209 = vunpack.c.l.b16 %v2418
    %v3210 = vunpack.c.l.b16 %v2419
    %v3211 = vunpack.c.l.b16 %v2420
    %v3212 = vunpack.c.l.b16 %v2421
    %v3213 = vunpack.c.l.b16 %v2422
    %v3214 = vunpack.c.l.b16 %v2423
    %v3215 = vunpack.c.l.b16 %v2424
    %v3216 = vunpack.c.l.b16 %v2425
    %v3217 = vunpack.c.l.b16 %v2426
    %v3218 = vunpack.c.l.b16 %v2427
    %v3219 = vunpack.c.l.b16 %v2428
    %v3220 = vunpack.c.l.b16 %v2429
    %v3221 = vunpack.c.l.b16 %v2430
    %v3222 = vunpack.c.l.b16 %v2431
    %v3223 = vunpack.c.l.b16 %v2432
    %v3224 = vunpack.c.l.b16 %v2433
    %v3225 = vunpack.c.l.b16 %v2434
    %v3226 = vunpack.c.l.b16 %v2435
    %v3227 = vunpack.c.l.b16 %v2436
    %v3228 = vunpack.c.l.b16 %v2437
    %v3229 = vunpack.c.l.b16 %v2438
    %v3230 = vunpack.c.l.b16 %v2439
    %v3231 = vunpack.c.l.b16 %v2440
    %v3232 = vunpack.c.l.b16 %v2441
    %v3233 = vunpack.c.l.b16 %v2442
    %v3234 = vunpack.c.l.b16 %v2443
    %v3235 = vunpack.c.l.b16 %v2444
    %v3236 = vunpack.c.l.b16 %v2445
    %v3237 = vunpack.c.l.b16 %v2446
    %v3238 = vunpack.c.l.b16 %v2447
    %v3239 = vunpack.c.l.b16 %v2448
    %v3240 = vunpack.c.l.b16 %v2449
    %v3241 = vunpack.c.l.b16 %v2450
    %v3242 = vunpack.c.l.b16 %v2451
    %v3243 = vunpack.c.l.b16 %v2452
    %v3244 = vunpack.c.l.b16 %v2453
    %v3245 = vunpack.c.l.b16 %v2454
    %v3246 = vunpack.c.l.b16 %v2455
    %v3247 = vunpack.c.l.b16 %v2456
    %v3248 = vunpack.c.l.b16 %v2457
    %v3249 = vunpack.c.l.b16 %v2458
    %v3250 = vunpack.c.l.b16 %v2459
    %v3251 = vunpack.c.l.b16 %v2460
    %v3252 = vunpack.c.l.b16 %v2461
    %v3253 = vunpack.c.l.b16 %v2462
    %v3254 = vunpack.c.l.b16 %v2463
    %v3255 = vunpack.c.l.b16 %v2464
    %v3256 = vunpack.c.l.b16 %v2465
    %v3257 = vunpack.c.l.b16 %v2466
    %v3258 = vunpack.c.l.b16 %v2467
    %v3259 = vunpack.c.l.b16 %v2468
    %v3260 = vunpack.c.l.b16 %v2469
    %v3261 = vunpack.c.l.b16 %v2470
    %v3262 = vunpack.c.l.b16 %v2471
    %v3263 = vunpack.c.l.b16 %v2472
    %v3264 = vunpack.c.l.b16 %v2473
    %v3265 = vunpack.c.l.b16 %v2474
    %v3266 = vunpack.c.l.b16 %v2475
    %v3267 = vunpack.c.l.b16 %v2476
    %v3268 = vunpack.c.l.b16 %v2477
    %v3269 = vunpack.c.l.b16 %v2478
    %v3270 = vunpack.c.l.b16 %v2479
    %v3271 = vunpack.c.l.b16 %v2480
    %v3272 = vunpack.c.l.b16 %v2481
    %v3273 = vunpack.c.l.b16 %v2482
    %v3274 = vunpack.c.l.b16 %v2483
    %v3275 = vunpack.c.l.b16 %v2484
    %v3276 = vunpack.c.l.b16 %v2485
    %v3277 = vunpack.c.l.b16 %v2486
    %v3278 = vunpack.c.l.b16 %v2487
    %v3279 = vunpack.c.l.b16 %v2488
    %v3280 = vunpack.c.l.b16 %v2489
    %v3281 = vunpack.c.l.b16 %v2490
    %v3282 = vunpack.c.l.b16 %v2491
    %v3283 = vunpack.c.l.b16 %v2492
    %v3284 = vunpack.c.l.b16 %v2493
    %v3285 = vunpack.c.l.b16 %v2494
    %v3286 = vunpack.c.l.b16 %v2495
    %v3287 = vunpack.c.l.b16 %v2496
    %v3288 = vunpack.c.l.b16 %v2497
    %v3289 = vunpack.c.l.b16 %v2498
    %v3290 = vunpack.c.l.b16 %v2499
    %v3291 = vunpack.c.l.b16 %v2500
    %v3292 = vunpack.c.l.b16 %v2501
    %v3293 = vunpack.c.l.b16 %v2502
    %v3294 = vunpack.c.l.b16 %v2503
    %v3295 = vunpack.c.l.b16 %v2504
    %v3296 = vunpack.c.l.b16 %v2505
    %v3297 = vunpack.c.l.b16 %v2506
    %v3298 = vunpack.c.l.b16 %v2507
    %v3299 = vunpack.c.l.b16 %v2508
    %v3300 = vunpack.c.l.b16 %v2509
    %v3301 = vunpack.c.l.b16 %v2510
    %v3302 = vunpack.c.l.b16 %v2511
    %v3303 = vunpack.c.l.b16 %v2512
    %v3304 = vunpack.c.l.b16 %v2513
    %v3305 = vunpack.c.l.b16 %v2514
    %v3306 = vunpack.c.l.b16 %v2515
    %v3307 = vunpack.c.l.b16 %v2516
    %v3308 = vunpack.c.l.b16 %v2517
    %v3309 = vunpack.c.l.b16 %v2518
    %v3310 = vunpack.c.l.b16 %v2519
    %v3311 = vunpack.c.l.b16 %v2520
    %v3312 = vunpack.c.l.b16 %v2521
    %v3313 = vunpack.c.l.b16 %v2522
    %v3314 = vunpack.c.l.b16 %v2523
    %v3315 = vunpack.c.l.b16 %v2524
    %v3316 = vunpack.c.l.b16 %v2525
    %v3317 = vunpack.c.l.b16 %v2526
    %v3318 = vunpack.c.l.b16 %v2527
    %v3319 = vunpack.c.l.b16 %v2528
    %v3320 = vunpack.c.l.b16 %v2529
    %v3321 = vunpack.c.l.b16 %v2530
    %v3322 = vunpack.c.l.b16 %v2531
    %v3323 = vunpack.c.l.b16 %v2532
    %v3324 = vunpack.c.l.b16 %v2533
    %v3325 = vunpack.c.l.b16 %v2534
    %v3326 = vunpack.c.l.b16 %v2535
    %v3327 = vunpack.c.l.b16 %v2536
    %v3328 = vunpack.c.l.b16 %v2537
    %v3329 = vunpack.c.l.b16 %v2538
    %v3330 = vunpack.c.l.b16 %v2539
    %v3331 = vunpack.c.l.b16 %v2540
    %v3332 = vunpack.c.l.b16 %v2541
    %v3333 = vunpack.c.l.b16 %v2542
    %v3334 = vunpack.c.l.b16 %v2543
    %v3335 = vunpack.c.l.b16 %v2544
    %v3336 = vunpack.c.l.b16 %v2545
    %v3337 = vunpack.c.l.b16 %v2546
    %v3338 = vunpack.c.l.b16 %v2547
    %v3339 = vunpack.c.l.b16 %v2548
    %v3340 = vunpack.c.l.b16 %v2549
    %v3341 = vunpack.c.l.b16 %v2550
    %v3342 = vunpack.c.l.b16 %v2551
    %v3343 = vunpack.c.l.b16 %v2552
    %v3344 = vunpack.c.l.b16 %v2553
    %v3345 = vunpack.c.l.b16 %v2554
    %v3346 = vunpack.c.l.b16 %v2555
    %v3347 = vunpack.c.l.b16 %v2556
    %v3348 = vunpack.c.l.b16 %v2557
    %v3349 = vunpack.c.l.b16 %v2558
    %v3350 = vunpack.c.l.b16 %v2559
    %v3351 = vunpack.c.l.b16 %v2560
    %v3352 = vunpack.c.l.b16 %v2561
    %v3353 = vunpack.c.l.b16 %v2562
    %v3354 = vunpack.c.l.b16 %v2563
    %v3355 = vunpack.c.l.b16 %v2564
    %v3356 = vunpack.c.l.b16 %v2565
    %v3357 = vunpack.c.l.b16 %v2566
    %v3358 = vunpack.c.l.b16 %v2567
    %v3359 = vunpack.c.l.b16 %v2568
    %v3360 = vunpack.c.l.b16 %v2569
    %v3361 = vunpack.c.l.b16 %v2570
    %v3362 = vunpack.c.l.b16 %v2571
    %v3363 = vunpack.c.l.b16 %v2572
    %v3364 = vunpack.c.l.b16 %v2573
    %v3365 = vunpack.c.l.b16 %v2574
    %v3366 = vunpack.c.l.b16 %v2575
    %v3367 = vunpack.c.l.b16 %v2576
    %v3368 = vunpack.c.l.b16 %v2577
    %v3369 = vunpack.c.l.b16 %v2578
    %v3370 = vunpack.c.l.b16 %v2579
    %v3371 = vunpack.c.l.b16 %v2580
    %v3372 = vunpack.c.l.b16 %v2581
    %v3373 = vunpack.c.l.b16 %v2582
    %v3374 = vunpack.c.l.b16 %v2583
    %v3375 = vunpack.c.l.b16 %v2584
    %v3376 = vunpack.c.l.b16 %v2585
    %v3377 = vunpack.c.l.b16 %v2586
    %v3378 = vunpack.c.l.b16 %v2587
    %v3379 = vunpack.c.l.b16 %v2588
    %v3380 = vunpack.c.l.b16 %v2589
    %v3381 = vunpack.c.l.b16 %v2590
    %v3382 = vunpack.c.l.b16 %v2591
    %v3383 = vunpack.c.l.b16 %v2592
    %v3384 = vunpack.c.l.b16 %v2593
    %v3385 = vunpack.c.l.b16 %v2594
    %v3386 = vunpack.c.l.b16 %v2595
    %v3387 = vunpack.c.l.b16 %v2596
    %v3388 = vunpack.c.l.b16 %v2597
    %v3389 = vunpack.c.l.b16 %v2598
    %v3390 = vunpack.c.l.b16 %v2599
    %v3391 = vunpack.c.l.b16 %v2600
    %v3392 = vunpack.c.l.b16 %v2601
    %v3393 = vunpack.c.l.b16 %v2602
    %v3394 = vunpack.c.l.b16 %v2603
    %v3395 = vunpack.c.l.b16 %v2604
    %v3396 = vunpack.c.l.b16 %v2605
    %v3397 = vunpack.c.l.b16 %v2606
    %v3398 = vunpack.c.l.b16 %v2607
    %v3399 = vunpack.c.l.b16 %v2608
    %v3400 = vunpack.c.l.b16 %v2609
    %v3401 = vunpack.c.l.b16 %v2610
    %v3402 = vunpack.c.l.b16 %v2611
    %v3403 = vunpack.c.l.b16 %v2612
    %v3404 = vunpack.c.l.b16 %v2613
    %v3405 = vunpack.c.l.b16 %v2614
    %v3406 = vunpack.c.l.b16 %v2615
    %v3407 = vunpack.c.l.b16 %v2616
    %v3408 = vunpack.c.l.b16 %v2617
    %v3409 = vunpack.c.l.b16 %v2618
    %v3410 = vunpack.c.l.b16 %v2619
    %v3411 = vunpack.c.l.b16 %v2620
    %v3412 = vunpack.c.l.b16 %v2621
    %v3413 = vunpack.c.l.b16 %v2622
    %v3414 = vunpack.c.l.b16 %v2623
    %v3415 = vunpack.c.l.b16 %v2624
    %v3416 = vunpack.c.l.b16 %v2625
    %v3417 = vunpack.c.l.b16 %v2626
    %v3418 = vunpack.c.l.b16 %v2627
    %v3419 = vunpack.c.l.b16 %v2628
    %v3420 = vunpack.c.l.b16 %v2629
    %v3421 = vunpack.c.l.b16 %v2630
    %v3422 = vunpack.c.l.b16 %v2631
    %v3423 = vunpack.c.l.b16 %v2632
    %v3424 = vunpack.c.l.b16 %v2633
    %v3425 = vunpack.c.l.b16 %v2634
    %v3426 = vunpack.c.l.b16 %v2635
    %v3427 = vunpack.c.l.b16 %v2636
    %v3428 = vunpack.c.l.b16 %v2637
    %v3429 = vunpack.c.l.b16 %v2638
    %v3430 = vunpack.c.l.b16 %v2639
    %v3431 = vunpack.c.l.b16 %v2640
    %v3432 = vunpack.c.l.b16 %v2641
    %v3433 = vunpack.c.l.b16 %v2642
    %v3434 = vunpack.c.l.b16 %v2643
    %v3435 = vunpack.c.l.b16 %v2644
    %v3436 = vunpack.c.l.b16 %v2645
    %v3437 = vunpack.c.l.b16 %v2646
    %v3438 = vunpack.c.l.b16 %v2647
    %v3439 = vunpack.c.l.b16 %v2648
    %v3440 = vunpack.c.l.b16 %v2649
    %v3441 = vunpack.c.l.b16 %v2650
    %v3442 = vunpack.c.l.b16 %v2651
    %v3443 = vunpack.c.l.b16 %v2652
    %v3444 = vunpack.c.l.b16 %v2653
    %v3445 = vunpack.c.l.b16 %v2654
    %v3446 = vunpack.c.l.b16 %v2655
    %v3447 = vunpack.c.l.b16 %v2656
    %v3448 = vunpack.c.l.b16 %v2657
    %v3449 = vunpack.c.l.b16 %v2658
    %v3450 = vunpack.c.l.b16 %v2659
    %v3451 = vunpack.c.l.b16 %v2660
    %v3452 = vunpack.c.l.b16 %v2661
    %v3453 = vunpack.c.l.b16 %v2662
    %v3454 = vunpack.c.l.b16 %v2663
    %v3455 = vunpack.c.l.b16 %v2664
    %v3456 = vunpack.c.l.b16 %v2665
    %v3457 = vunpack.c.l.b16 %v2666
    %v3458 = vunpack.c.l.b16 %v2667
    %v3459 = vunpack.c.l.b16 %v2668
    %v3460 = vunpack.c.l.b16 %v2669
    %v3461 = vunpack.c.l.b16 %v2670
    %v3462 = vunpack.c.l.b16 %v2671
    %v3463 = vunpack.c.l.b16 %v2672
    %v3464 = vunpack.c.l.b16 %v2673
    %v3465 = vunpack.c.l.b16 %v2674
    %v3466 = vunpack.c.l.b16 %v2675
    %v3467 = vunpack.c.l.b16 %v2676
    %v3468 = vunpack.c.l.b16 %v2677
    %v3469 = vunpack.c.l.b16 %v2678
    %v3470 = vunpack.c.l.b16 %v2679
    %v3471 = vunpack.c.l.b16 %v2680
    %v3472 = vunpack.c.l.b16 %v2681
    %v3473 = vunpack.c.l.b16 %v2682
    %v3474 = vunpack.c.l.b16 %v2683
    %v3475 = vunpack.c.l.b16 %v2684
    %v3476 = vunpack.c.l.b16 %v2685
    %v3477 = vunpack.c.l.b16 %v2686
    %v3478 = vunpack.c.l.b16 %v2687
    %v3479 = vunpack.c.l.b16 %v2688
    %v3480 = vunpack.c.l.b16 %v2689
    %v3481 = vunpack.c.l.b16 %v2690
    %v3482 = vunpack.c.l.b16 %v2691
    %v3483 = vunpack.c.l.b16 %v2692
    %v3484 = vunpack.c.l.b16 %v2693
    %v3485 = vunpack.c.l.b16 %v2694
    %v3486 = vunpack.c.l.b16 %v2695
    %v3487 = vunpack.c.l.b16 %v2696
    %v3488 = vunpack.c.l.b16 %v2697
    %v3489 = vunpack.c.l.b16 %v2698
    %v3490 = vunpack.c.l.b16 %v2699
    %v3491 = vunpack.c.l.b16 %v2700
    %v3492 = vunpack.c.l.b16 %v2701
    %v3493 = vunpack.c.l.b16 %v2702
    %v3494 = vunpack.c.l.b16 %v2703
    %v3495 = vunpack.c.l.b16 %v2704
    %v3496 = vunpack.c.l.b16 %v2705
    %v3497 = vunpack.c.l.b16 %v2706
    %v3498 = vunpack.c.l.b16 %v2707
    %v3499 = vunpack.c.l.b16 %v2708
    %v3500 = vunpack.c.l.b16 %v2709
    %v3501 = vunpack.c.l.b16 %v2710
    %v3502 = vunpack.c.l.b16 %v2711
    %v3503 = vunpack.c.l.b16 %v2712
    %v3504 = vunpack.c.l.b16 %v2713
    %v3505 = vunpack.c.l.b16 %v2714
    %v3506 = vunpack.c.l.b16 %v2715
    %v3507 = vunpack.c.l.b16 %v2716
    %v3508 = vunpack.c.l.b16 %v2717
    %v3509 = vunpack.c.l.b16 %v2718
    %v3510 = vpack.c.b16 %v3119, %v3118
    %v3511 = vpack.c.b16 %v3121, %v3120
    %v3512 = vpack.c.b16 %v3123, %v3122
    %v3513 = vpack.c.b16 %v3125, %v3124
    %v3514 = vpack.c.b16 %v3127, %v3126
    %v3515 = vpack.c.b16 %v3129, %v3128
    %v3516 = vpack.c.b16 %v3131, %v3130
    %v3517 = vpack.c.b16 %v3133, %v3132
    %v3518 = vpack.c.b16 %v3135, %v3134
    %v3519 = vpack.c.b16 %v3137, %v3136
    %v3520 = vpack.c.b16 %v3139, %v3138
    %v3521 = vpack.c.b16 %v3141, %v3140
    %v3522 = vpack.c.b16 %v3143, %v3142
    %v3523 = vpack.c.b16 %v3145, %v3144
    %v3524 = vpack.c.b16 %v3147, %v3146
    %v3525 = vpack.c.b16 %v3149, %v3148
    %v3526 = vpack.c.b16 %v3151, %v3150
    %v3527 = vpack.c.b16 %v3153, %v3152
    %v3528 = vpack.c.b16 %v3155, %v3154
    %v3529 = vpack.c.b16 %v3157, %v3156
    %v3530 = vpack.c.b16 %v3159, %v3158
    %v3531 = vpack.c.b16 %v3161, %v3160
    %v3532 = vpack.c.b16 %v3163, %v3162
    %v3533 = vpack.c.b16 %v3165, %v3164
    %v3534 = vpack.c.b16 %v3167, %v3166
    %v3535 = vpack.c.b16 %v3169, %v3168
    %v3536 = vpack.c.b16 %v3171, %v3170
    %v3537 = vpack.c.b16 %v3173, %v3172
    %v3538 = vpack.c.b16 %v3175, %v3174
    %v3539 = vpack.c.b16 %v3177, %v3176
    %v3540 = vpack.c.b16 %v3179, %v3178
    %v3541 = vpack.c.b16 %v3181, %v3180
    %v3542 = vpack.c.b16 %v3183, %v3182
    %v3543 = vpack.c.b16 %v3185, %v3184
    %v3544 = vpack.c.b16 %v3187, %v3186
    %v3545 = vpack.c.b16 %v3189, %v3188
    %v3546 = vpack.c.b16 %v3191, %v3190
    %v3547 = vpack.c.b16 %v3193, %v3192
    %v3548 = vpack.c.b16 %v3195, %v3194
    %v3549 = vpack.c.b16 %v3197, %v3196
    %v3550 = vpack.c.b16 %v3199, %v3198
    %v3551 = vpack.c.b16 %v3201, %v3200
    %v3552 = vpack.c.b16 %v3203, %v3202
    %v3553 = vpack.c.b16 %v3205, %v3204
    %v3554 = vpack.c.b16 %v3207, %v3206
    %v3555 = vpack.c.b16 %v3209, %v3208
    %v3556 = vpack.c.b16 %v3211, %v3210
    %v3557 = vpack.c.b16 %v3213, %v3212
    %v3558 = vpack.c.b16 %v3215, %v3214
    %v3559 = vpack.c.b16 %v3217, %v3216
    %v3560 = vpack.c.b16 %v3219, %v3218
    %v3561 = vpack.c.b16 %v3221, %v3220
    %v3562 = vpack.c.b16 %v3223, %v3222
    %v3563 = vpack.c.b16 %v3225, %v3224
    %v3564 = vpack.c.b16 %v3227, %v3226
    %v3565 = vpack.c.b16 %v3229, %v3228
    %v3566 = vpack.c.b16 %v3231, %v3230
    %v3567 = vpack.c.b16 %v3233, %v3232
    %v3568 = vpack.c.b16 %v3235, %v3234
    %v3569 = vpack.c.b16 %v3237, %v3236
    %v3570 = vpack.c.b16 %v3239, %v3238
    %v3571 = vpack.c.b16 %v3241, %v3240
    %v3572 = vpack.c.b16 %v3243, %v3242
    %v3573 = vpack.c.b16 %v3245, %v3244
    %v3574 = vpack.c.b16 %v3247, %v3246
    %v3575 = vpack.c.b16 %v3249, %v3248
    %v3576 = vpack.c.b16 %v3251, %v3250
    %v3577 = vpack.c.b16 %v3253, %v3252
    %v3578 = vpack.c.b16 %v3255, %v3254
    %v3579 = vpack.c.b16 %v3257, %v3256
    %v3580 = vpack.c.b16 %v3259, %v3258
    %v3581 = vpack.c.b16 %v3261, %v3260
    %v3582 = vpack.c.b16 %v3263, %v3262
    %v3583 = vpack.c.b16 %v3265, %v3264
    %v3584 = vpack.c.b16 %v3267, %v3266
    %v3585 = vpack.c.b16 %v3269, %v3268
    %v3586 = vpack.c.b16 %v3271, %v3270
    %v3587 = vpack.c.b16 %v3273, %v3272
    %v3588 = vpack.c.b16 %v3275, %v3274
    %v3589 = vpack.c.b16 %v3277, %v3276
    %v3590 = vpack.c.b16 %v3279, %v3278
    %v3591 = vpack.c.b16 %v3281, %v3280
    %v3592 = vpack.c.b16 %v3283, %v3282
    %v3593 = vpack.c.b16 %v3285, %v3284
    %v3594 = vpack.c.b16 %v3287, %v3286
    %v3595 = vpack.c.b16 %v3289, %v3288
    %v3596 = vpack.c.b16 %v3291, %v3290
    %v3597 = vpack.c.b16 %v3293, %v3292
    %v3598 = vpack.c.b16 %v3295, %v3294
    %v3599 = vpack.c.b16 %v3297, %v3296
    %v3600 = vpack.c.b16 %v3299, %v3298
    %v3601 = vpack.c.b16 %v3301, %v3300
    %v3602 = vpack.c.b16 %v3303, %v3302
    %v3603 = vpack.c.b16 %v3305, %v3304
    %v3604 = vpack.c.b16 %v3307, %v3306
    %v3605 = vpack.c.b16 %v3309, %v3308
    %v3606 = vpack.c.b16 %v3311, %v3310
    %v3607 = vpack.c.b16 %v3313, %v3312
    %v3608 = vpack.c.b16 %v3315, %v3314
    %v3609 = vpack.c.b16 %v3317, %v3316
    %v3610 = vpack.c.b16 %v3319, %v3318
    %v3611 = vpack.c.b16 %v3321, %v3320
    %v3612 = vpack.c.b16 %v3323, %v3322
    %v3613 = vpack.c.b16 %v3325, %v3324
    %v3614 = vpack.c.b16 %v3327, %v3326
    %v3615 = vpack.c.b16 %v3329, %v3328
    %v3616 = vpack.c.b16 %v3331, %v3330
    %v3617 = vpack.c.b16 %v3333, %v3332
    %v3618 = vpack.c.b16 %v3335, %v3334
    %v3619 = vpack.c.b16 %v3337, %v3336
    %v3620 = vpack.c.b16 %v3339, %v3338
    %v3621 = vpack.c.b16 %v3341, %v3340
    %v3622 = vpack.c.b16 %v3343, %v3342
    %v3623 = vpack.c.b16 %v3345, %v3344
    %v3624 = vpack.c.b16 %v3347, %v3346
    %v3625 = vpack.c.b16 %v3349, %v3348
    %v3626 = vpack.c.b16 %v3351, %v3350
    %v3627 = vpack.c.b16 %v3353, %v3352
    %v3628 = vpack.c.b16 %v3355, %v3354
    %v3629 = vpack.c.b16 %v3357, %v3356
    %v3630 = vpack.c.b16 %v3359, %v3358
    %v3631 = vpack.c.b16 %v3361, %v3360
    %v3632 = vpack.c.b16 %v3363, %v3362
    %v3633 = vpack.c.b16 %v3365, %v3364
    %v3634 = vpack.c.b16 %v3367, %v3366
    %v3635 = vpack.c.b16 %v3369, %v3368
    %v3636 = vpack.c.b16 %v3371, %v3370
    %v3637 = vpack.c.b16 %v3373, %v3372
    %v3638 = vpack.c.b16 %v3375, %v3374
    %v3639 = vpack.c.b16 %v3377, %v3376
    %v3640 = vpack.c.b16 %v3379, %v3378
    %v3641 = vpack.c.b16 %v3381, %v3380
    %v3642 = vpack.c.b16 %v3383, %v3382
    %v3643 = vpack.c.b16 %v3385, %v3384
    %v3644 = vpack.c.b16 %v3387, %v3386
    %v3645 = vpack.c.b16 %v3389, %v3388
    %v3646 = vpack.c.b16 %v3391, %v3390
    %v3647 = vpack.c.b16 %v3393, %v3392
    %v3648 = vpack.c.b16 %v3395, %v3394
    %v3649 = vpack.c.b16 %v3397, %v3396
    %v3650 = vpack.c.b16 %v3399, %v3398
    %v3651 = vpack.c.b16 %v3401, %v3400
    %v3652 = vpack.c.b16 %v3403, %v3402
    %v3653 = vpack.c.b16 %v3405, %v3404
    %v3654 = vpack.c.b16 %v3407, %v3406
    %v3655 = vpack.c.b16 %v3409, %v3408
    %v3656 = vpack.c.b16 %v3411, %v3410
    %v3657 = vpack.c.b16 %v3413, %v3412
    %v3658 = vpack.c.b16 %v3415, %v3414
    %v3659 = vpack.c.b16 %v3417, %v3416
    %v3660 = vpack.c.b16 %v3419, %v3418
    %v3661 = vpack.c.b16 %v3421, %v3420
    %v3662 = vpack.c.b16 %v3423, %v3422
    %v3663 = vpack.c.b16 %v3425, %v3424
    %v3664 = vpack.c.b16 %v3427, %v3426
    %v3665 = vpack.c.b16 %v3429, %v3428
    %v3666 = vpack.c.b16 %v3431, %v3430
    %v3667 = vpack.c.b16 %v3433, %v3432
    %v3668 = vpack.c.b16 %v3435, %v3434
    %v3669 = vpack.c.b16 %v3437, %v3436
    %v3670 = vpack.c.b16 %v3439, %v3438
    %v3671 = vpack.c.b16 %v3441, %v3440
    %v3672 = vpack.c.b16 %v3443, %v3442
    %v3673 = vpack.c.b16 %v3445, %v3444
    %v3674 = vpack.c.b16 %v3447, %v3446
    %v3675 = vpack.c.b16 %v3449, %v3448
    %v3676 = vpack.c.b16 %v3451, %v3450
    %v3677 = vpack.c.b16 %v3453, %v3452
    %v3678 = vpack.c.b16 %v3455, %v3454
    %v3679 = vpack.c.b16 %v3457, %v3456
    %v3680 = vpack.c.b16 %v3459, %v3458
    %v3681 = vpack.c.b16 %v3461, %v3460
    %v3682 = vpack.c.b16 %v3463, %v3462
    %v3683 = vpack.c.b16 %v3465, %v3464
    %v3684 = vpack.c.b16 %v3467, %v3466
    %v3685 = vpack.c.b16 %v3469, %v3468
    %v3686 = vpack.c.b16 %v3471, %v3470
    %v3687 = vpack.c.b16 %v3473, %v3472
    %v3688 = vpack.c.b16 %v3475, %v3474
    %v3689 = vpack.c.b16 %v3477, %v3476
    %v3690 = vpack.c.b16 %v3479, %v3478
    %v3691 = vpack.c.b16 %v3481, %v3480
    %v3692 = vpack.c.b16 %v3483, %v3482
    %v3693 = vpack.c.b16 %v3485, %v3484
    %v3694 = vpack.c.b16 %v3487, %v3486
    %v3695 = vpack.c.b16 %v3489, %v3488
    %v3696 = vpack.c.b16 %v3491, %v3490
    %v3697 = vpack.c.b16 %v3493, %v3492
    %v3698 = vpack.c.b16 %v3495, %v3494
    %v3699 = vpack.c.b16 %v3497, %v3496
    %v3700 = vpack.c.b16 %v3499, %v3498
    %v3701 = vpack.c.b16 %v3501, %v3500
    %v3702 = vpack.c.b16 %v3503, %v3502
    %v3703 = vpack.c.b16 %v3505, %v3504
    %v3704 = vpack.c.b16 %v3507, %v3506
    %v3705 = vpack.c.b16 %v3509, %v3508
    %3902 = vmatprep.subr.bf16.mxu0 0
    %3903 = vmatpush1.bf16.msra.mxu0 %v3510
    %3904 = vmatprep.subr.bf16.mxu0 0
    %3905 = vmatpush1.bf16.msra.mxu0 %v3511
    %3906 = vmatprep.subr.bf16.mxu0 0
    %3907 = vmatpush1.bf16.msra.mxu0 %v3512
    %3908 = vmatprep.subr.bf16.mxu0 0
    %3909 = vmatpush1.bf16.msra.mxu0 %v3513
    %3910 = vmatprep.subr.bf16.mxu0 0
    %3911 = vmatpush1.bf16.msra.mxu0 %v3514
    %3912 = vmatprep.subr.bf16.mxu0 0
    %3913 = vmatpush1.bf16.msra.mxu0 %v3515
    %3914 = vmatprep.subr.bf16.mxu0 0
    %3915 = vmatpush1.bf16.msra.mxu0 %v3516
    %3916 = vmatprep.subr.bf16.mxu0 0
    %3917 = vmatpush1.bf16.msra.mxu0 %v3517
    %3918 = vmatprep.subr.bf16.mxu0 0
    %3919 = vmatpush1.bf16.msra.mxu0 %v3518
    %3920 = vmatprep.subr.bf16.mxu0 0
    %3921 = vmatpush1.bf16.msra.mxu0 %v3519
    %3922 = vmatprep.subr.bf16.mxu0 0
    %3923 = vmatpush1.bf16.msra.mxu0 %v3520
    %3924 = vmatprep.subr.bf16.mxu0 0
    %3925 = vmatpush1.bf16.msra.mxu0 %v3521
    %3926 = vmatprep.subr.bf16.mxu0 0
    %3927 = vmatpush1.bf16.msra.mxu0 %v3522
    %3928 = vmatprep.subr.bf16.mxu0 0
    %3929 = vmatpush1.bf16.msra.mxu0 %v3523
    %3930 = vmatprep.subr.bf16.mxu0 0
    %3931 = vmatpush1.bf16.msra.mxu0 %v3524
    %3932 = vmatprep.subr.bf16.mxu0 0
    %3933 = vmatpush1.bf16.msra.mxu0 %v3525
    %3934 = vmatprep.mubr.bf16.mxu0 %v479
    %3935 = vmatmul.mubr.bf16.gmra.mrb[0].mxu0 %v465
    %v3936 = vpop.f32.mrb[0].mxu0
    %v3937 = vadd.f32 %v2724, %v3936
    %v3938 = vpop.f32.mrb[0].mxu0
    %v3939 = vpop.f32.mrb[0].mxu0
    %v3940 = vpop.f32.mrb[0].mxu0
    %3941 = vdwg.mxu0
    %3942 = vmatprep.subr.bf16.mxu0 0
    %3943 = vmatpush1.bf16.msra.mxu0 %v3526
    %3944 = vmatprep.subr.bf16.mxu0 0
    %3945 = vmatpush1.bf16.msra.mxu0 %v3527
    %3946 = vmatprep.subr.bf16.mxu0 0
    %3947 = vmatpush1.bf16.msra.mxu0 %v3528
    %3948 = vmatprep.subr.bf16.mxu0 0
    %3949 = vmatpush1.bf16.msra.mxu0 %v3529
    %3950 = vmatprep.subr.bf16.mxu0 0
    %3951 = vmatpush1.bf16.msra.mxu0 %v3530
    %3952 = vmatprep.subr.bf16.mxu0 0
    %3953 = vmatpush1.bf16.msra.mxu0 %v3531
    %3954 = vmatprep.subr.bf16.mxu0 0
    %3955 = vmatpush1.bf16.msra.mxu0 %v3532
    %3956 = vmatprep.subr.bf16.mxu0 0
    %3957 = vmatpush1.bf16.msra.mxu0 %v3533
    %3958 = vmatprep.subr.bf16.mxu0 0
    %3959 = vmatpush1.bf16.msra.mxu0 %v3534
    %3960 = vmatprep.subr.bf16.mxu0 0
    %3961 = vmatpush1.bf16.msra.mxu0 %v3535
    %3962 = vmatprep.subr.bf16.mxu0 0
    %3963 = vmatpush1.bf16.msra.mxu0 %v3536
    %3964 = vmatprep.subr.bf16.mxu0 0
    %3965 = vmatpush1.bf16.msra.mxu0 %v3537
    %3966 = vmatprep.subr.bf16.mxu0 0
    %3967 = vmatpush1.bf16.msra.mxu0 %v3538
    %3968 = vmatprep.subr.bf16.mxu0 0
    %3969 = vmatpush1.bf16.msra.mxu0 %v3539
    %3970 = vmatprep.subr.bf16.mxu0 0
    %3971 = vmatpush1.bf16.msra.mxu0 %v3540
    %3972 = vmatprep.subr.bf16.mxu0 0
    %3973 = vmatpush1.bf16.msra.mxu0 %v3541
    %3974 = vmatprep.mubr.bf16.mxu0 %v489
    %3975 = vmatmul.mubr.bf16.gmra.mrb[0].mxu0 %v487
    %v3976 = vpop.f32.mrb[0].mxu0
    %v3977 = vadd.f32 %v3937, %v3976
    %v3978 = vpop.f32.mrb[0].mxu0
    %v3979 = vpop.f32.mrb[0].mxu0
    %v3980 = vpop.f32.mrb[0].mxu0
    %3981 = vdwg.mxu0
    %3982 = vmatprep.subr.bf16.mxu0 0
    %3983 = vmatpush1.bf16.msra.mxu0 %v3542
    %3984 = vmatprep.subr.bf16.mxu0 0
    %3985 = vmatpush1.bf16.msra.mxu0 %v3543
    %3986 = vmatprep.subr.bf16.mxu0 0
    %3987 = vmatpush1.bf16.msra.mxu0 %v3544
    %3988 = vmatprep.subr.bf16.mxu0 0
    %3989 = vmatpush1.bf16.msra.mxu0 %v3545
    %3990 = vmatprep.subr.bf16.mxu0 0
    %3991 = vmatpush1.bf16.msra.mxu0 %v3546
    %3992 = vmatprep.subr.bf16.mxu0 0
    %3993 = vmatpush1.bf16.msra.mxu0 %v3547
    %3994 = vmatprep.subr.bf16.mxu0 0
    %3995 = vmatpush1.bf16.msra.mxu0 %v3548
    %3996 = vmatprep.subr.bf16.mxu0 0
    %3997 = vmatpush1.bf16.msra.mxu0 %v3549
    %3998 = vmatprep.subr.bf16.mxu0 0
    %3999 = vmatpush1.bf16.msra.mxu0 %v3550
    %4000 = vmatprep.subr.bf16.mxu0 0
    %4001 = vmatpush1.bf16.msra.mxu0 %v3551
    %4002 = vmatprep.subr.bf16.mxu0 0
    %4003 = vmatpush1.bf16.msra.mxu0 %v3552
    %4004 = vmatprep.subr.bf16.mxu0 0
    %4005 = vmatpush1.bf16.msra.mxu0 %v3553
    %4006 = vmatprep.subr.bf16.mxu0 0
    %4007 = vmatpush1.bf16.msra.mxu0 %v3554
    %4008 = vmatprep.subr.bf16.mxu0 0
    %4009 = vmatpush1.bf16.msra.mxu0 %v3555
    %4010 = vmatprep.subr.bf16.mxu0 0
    %4011 = vmatpush1.bf16.msra.mxu0 %v3556
    %4012 = vmatprep.subr.bf16.mxu0 0
    %4013 = vmatpush1.bf16.msra.mxu0 %v3557
    %4014 = vmatprep.mubr.bf16.mxu0 %v486
    %4015 = vmatmul.mubr.bf16.gmra.mrb[0].mxu0 %v472
    %v4016 = vpop.f32.mrb[0].mxu0
    %v4017 = vadd.f32 %v3977, %v4016
    %v4018 = vpop.f32.mrb[0].mxu0
    %v4019 = vpop.f32.mrb[0].mxu0
    %v4020 = vpop.f32.mrb[0].mxu0
    %4021 = vdwg.mxu0
    %4022 = vmatprep.subr.bf16.mxu0 0
    %4023 = vmatpush1.bf16.msra.mxu0 %v3558
    %4024 = vmatprep.subr.bf16.mxu0 0
    %4025 = vmatpush1.bf16.msra.mxu0 %v3559
    %4026 = vmatprep.subr.bf16.mxu0 0
    %4027 = vmatpush1.bf16.msra.mxu0 %v3560
    %4028 = vmatprep.subr.bf16.mxu0 0
    %4029 = vmatpush1.bf16.msra.mxu0 %v3561
    %4030 = vmatprep.subr.bf16.mxu0 0
    %4031 = vmatpush1.bf16.msra.mxu0 %v3562
    %4032 = vmatprep.subr.bf16.mxu0 0
    %4033 = vmatpush1.bf16.msra.mxu0 %v3563
    %4034 = vmatprep.subr.bf16.mxu0 0
    %4035 = vmatpush1.bf16.msra.mxu0 %v3564
    %4036 = vmatprep.subr.bf16.mxu0 0
    %4037 = vmatpush1.bf16.msra.mxu0 %v3565
    %4038 = vmatprep.subr.bf16.mxu0 0
    %4039 = vmatpush1.bf16.msra.mxu0 %v3566
    %4040 = vmatprep.subr.bf16.mxu0 0
    %4041 = vmatpush1.bf16.msra.mxu0 %v3567
    %4042 = vmatprep.subr.bf16.mxu0 0
    %4043 = vmatpush1.bf16.msra.mxu0 %v3568
    %4044 = vmatprep.subr.bf16.mxu0 0
    %4045 = vmatpush1.bf16.msra.mxu0 %v3569
    %4046 = vmatprep.subr.bf16.mxu0 0
    %4047 = vmatpush1.bf16.msra.mxu0 %v3570
    %4048 = vmatprep.subr.bf16.mxu0 0
    %4049 = vmatpush1.bf16.msra.mxu0 %v3571
    %4050 = vmatprep.subr.bf16.mxu0 0
    %4051 = vmatpush1.bf16.msra.mxu0 %v3572
    %4052 = vmatprep.subr.bf16.mxu0 0
    %4053 = vmatpush1.bf16.msra.mxu0 %v3573
    %4054 = vmatprep.mubr.bf16.mxu0 %v490
    %4055 = vmatmul.mubr.bf16.gmra.mrb[0].mxu0 %v488
    %v4056 = vpop.f32.mrb[0].mxu0
    %v4057 = vadd.f32 %v4017, %v4056
    %v4058 = vpop.f32.mrb[0].mxu0
    %v4059 = vpop.f32.mrb[0].mxu0
    %v4060 = vpop.f32.mrb[0].mxu0
    %4061 = vdwg.mxu0
    %4062 = vmatprep.subr.bf16.mxu0 0
    %4063 = vmatpush1.bf16.msra.mxu0 %v3574
    %4064 = vmatprep.subr.bf16.mxu0 0
    %4065 = vmatpush1.bf16.msra.mxu0 %v3575
    %4066 = vmatprep.subr.bf16.mxu0 0
    %4067 = vmatpush1.bf16.msra.mxu0 %v3576
    %4068 = vmatprep.subr.bf16.mxu0 0
    %4069 = vmatpush1.bf16.msra.mxu0 %v3577
    %4070 = vmatprep.subr.bf16.mxu0 0
    %4071 = vmatpush1.bf16.msra.mxu0 %v3578
    %4072 = vmatprep.subr.bf16.mxu0 0
    %4073 = vmatpush1.bf16.msra.mxu0 %v3579
    %4074 = vmatprep.subr.bf16.mxu0 0
    %4075 = vmatpush1.bf16.msra.mxu0 %v3580
    %4076 = vmatprep.subr.bf16.mxu0 0
    %4077 = vmatpush1.bf16.msra.mxu0 %v3581
    %4078 = vmatprep.subr.bf16.mxu0 0
    %4079 = vmatpush1.bf16.msra.mxu0 %v3582
    %4080 = vmatprep.subr.bf16.mxu0 0
    %4081 = vmatpush1.bf16.msra.mxu0 %v3583
    %4082 = vmatprep.subr.bf16.mxu0 0
    %4083 = vmatpush1.bf16.msra.mxu0 %v3584
    %4084 = vmatprep.subr.bf16.mxu0 0
    %4085 = vmatpush1.bf16.msra.mxu0 %v3585
    %4086 = vmatprep.subr.bf16.mxu0 0
    %4087 = vmatpush1.bf16.msra.mxu0 %v3586
    %4088 = vmatprep.subr.bf16.mxu0 0
    %4089 = vmatpush1.bf16.msra.mxu0 %v3587
    %4090 = vmatprep.subr.bf16.mxu0 0
    %4091 = vmatpush1.bf16.msra.mxu0 %v3588
    %4092 = vmatprep.subr.bf16.mxu0 0
    %4093 = vmatpush1.bf16.msra.mxu0 %v3589
    %4094 = vmatprep.mubr.bf16.mxu0 %v528
    %4095 = vmatmul.mubr.bf16.gmra.mrb[0].mxu0 %v514
    %v4096 = vpop.f32.mrb[0].mxu0
    %v4097 = vadd.f32 %v4057, %v4096
    %v4098 = vpop.f32.mrb[0].mxu0
    %v4099 = vpop.f32.mrb[0].mxu0
    %v4100 = vpop.f32.mrb[0].mxu0
    %4101 = vdwg.mxu0
    %4102 = vmatprep.subr.bf16.mxu0 0
    %4103 = vmatpush1.bf16.msra.mxu0 %v3590
    %4104 = vmatprep.subr.bf16.mxu0 0
    %4105 = vmatpush1.bf16.msra.mxu0 %v3591
    %4106 = vmatprep.subr.bf16.mxu0 0
    %4107 = vmatpush1.bf16.msra.mxu0 %v3592
    %4108 = vmatprep.subr.bf16.mxu0 0
    %4109 = vmatpush1.bf16.msra.mxu0 %v3593
    %4110 = vmatprep.subr.bf16.mxu0 0
    %4111 = vmatpush1.bf16.msra.mxu0 %v3594
    %4112 = vmatprep.subr.bf16.mxu0 0
    %4113 = vmatpush1.bf16.msra.mxu0 %v3595
    %4114 = vmatprep.subr.bf16.mxu0 0
    %4115 = vmatpush1.bf16.msra.mxu0 %v3596
    %4116 = vmatprep.subr.bf16.mxu0 0
    %4117 = vmatpush1.bf16.msra.mxu0 %v3597
    %4118 = vmatprep.subr.bf16.mxu0 0
    %4119 = vmatpush1.bf16.msra.mxu0 %v3598
    %4120 = vmatprep.subr.bf16.mxu0 0
    %4121 = vmatpush1.bf16.msra.mxu0 %v3599
    %4122 = vmatprep.subr.bf16.mxu0 0
    %4123 = vmatpush1.bf16.msra.mxu0 %v3600
    %4124 = vmatprep.subr.bf16.mxu0 0
    %4125 = vmatpush1.bf16.msra.mxu0 %v3601
    %4126 = vmatprep.subr.bf16.mxu0 0
    %4127 = vmatpush1.bf16.msra.mxu0 %v3602
    %4128 = vmatprep.subr.bf16.mxu0 0
    %4129 = vmatpush1.bf16.msra.mxu0 %v3603
    %4130 = vmatprep.subr.bf16.mxu0 0
    %4131 = vmatpush1.bf16.msra.mxu0 %v3604
    %4132 = vmatprep.subr.bf16.mxu0 0
    %4133 = vmatpush1.bf16.msra.mxu0 %v3605
    %4134 = vmatprep.mubr.bf16.mxu0 %v538
    %4135 = vmatmul.mubr.bf16.gmra.mrb[0].mxu0 %v536
    %v4136 = vpop.f32.mrb[0].mxu0
    %v4137 = vadd.f32 %v4097, %v4136
    %v4138 = vpop.f32.mrb[0].mxu0
    %v4139 = vpop.f32.mrb[0].mxu0
    %v4140 = vpop.f32.mrb[0].mxu0
    %4141 = vdwg.mxu0
    %4142 = vmatprep.subr.bf16.mxu0 0
    %4143 = vmatpush1.bf16.msra.mxu0 %v3606
    %4144 = vmatprep.subr.bf16.mxu0 0
    %4145 = vmatpush1.bf16.msra.mxu0 %v3607
    %4146 = vmatprep.subr.bf16.mxu0 0
    %4147 = vmatpush1.bf16.msra.mxu0 %v3608
    %4148 = vmatprep.subr.bf16.mxu0 0
    %4149 = vmatpush1.bf16.msra.mxu0 %v3609
    %4150 = vmatprep.subr.bf16.mxu0 0
    %4151 = vmatpush1.bf16.msra.mxu0 %v3610
    %4152 = vmatprep.subr.bf16.mxu0 0
    %4153 = vmatpush1.bf16.msra.mxu0 %v3611
    %4154 = vmatprep.subr.bf16.mxu0 0
    %4155 = vmatpush1.bf16.msra.mxu0 %v3612
    %4156 = vmatprep.subr.bf16.mxu0 0
    %4157 = vmatpush1.bf16.msra.mxu0 %v3613
    %4158 = vmatprep.subr.bf16.mxu0 0
    %4159 = vmatpush1.bf16.msra.mxu0 %v3614
    %4160 = vmatprep.subr.bf16.mxu0 0
    %4161 = vmatpush1.bf16.msra.mxu0 %v3615
    %4162 = vmatprep.subr.bf16.mxu0 0
    %4163 = vmatpush1.bf16.msra.mxu0 %v3616
    %4164 = vmatprep.subr.bf16.mxu0 0
    %4165 = vmatpush1.bf16.msra.mxu0 %v3617
    %4166 = vmatprep.subr.bf16.mxu0 0
    %4167 = vmatpush1.bf16.msra.mxu0 %v3618
    %4168 = vmatprep.subr.bf16.mxu0 0
    %4169 = vmatpush1.bf16.msra.mxu0 %v3619
    %4170 = vmatprep.subr.bf16.mxu0 0
    %4171 = vmatpush1.bf16.msra.mxu0 %v3620
    %4172 = vmatprep.subr.bf16.mxu0 0
    %4173 = vmatpush1.bf16.msra.mxu0 %v3621
    %4174 = vmatprep.mubr.bf16.mxu0 %v535
    %4175 = vmatmul.mubr.bf16.gmra.mrb[0].mxu0 %v521
    %v4176 = vpop.f32.mrb[0].mxu0
    %v4177 = vadd.f32 %v4137, %v4176
    %v4178 = vpop.f32.mrb[0].mxu0
    %v4179 = vpop.f32.mrb[0].mxu0
    %v4180 = vpop.f32.mrb[0].mxu0
    %4181 = vdwg.mxu0
    %4182 = vmatprep.subr.bf16.mxu0 0
    %4183 = vmatpush1.bf16.msra.mxu0 %v3622
    %4184 = vmatprep.subr.bf16.mxu0 0
    %4185 = vmatpush1.bf16.msra.mxu0 %v3623
    %4186 = vmatprep.subr.bf16.mxu0 0
    %4187 = vmatpush1.bf16.msra.mxu0 %v3624
    %4188 = vmatprep.subr.bf16.mxu0 0
    %4189 = vmatpush1.bf16.msra.mxu0 %v3625
    %4190 = vmatprep.subr.bf16.mxu0 0
    %4191 = vmatpush1.bf16.msra.mxu0 %v3626
    %4192 = vmatprep.subr.bf16.mxu0 0
    %4193 = vmatpush1.bf16.msra.mxu0 %v3627
    %4194 = vmatprep.subr.bf16.mxu0 0
    %4195 = vmatpush1.bf16.msra.mxu0 %v3628
    %4196 = vmatprep.subr.bf16.mxu0 0
    %4197 = vmatpush1.bf16.msra.mxu0 %v3629
    %4198 = vmatprep.subr.bf16.mxu0 0
    %4199 = vmatpush1.bf16.msra.mxu0 %v3630
    %4200 = vmatprep.subr.bf16.mxu0 0
    %4201 = vmatpush1.bf16.msra.mxu0 %v3631
    %4202 = vmatprep.subr.bf16.mxu0 0
    %4203 = vmatpush1.bf16.msra.mxu0 %v3632
    %4204 = vmatprep.subr.bf16.mxu0 0
    %4205 = vmatpush1.bf16.msra.mxu0 %v3633
    %4206 = vmatprep.subr.bf16.mxu0 0
    %4207 = vmatpush1.bf16.msra.mxu0 %v3634
    %4208 = vmatprep.subr.bf16.mxu0 0
    %4209 = vmatpush1.bf16.msra.mxu0 %v3635
    %4210 = vmatprep.subr.bf16.mxu0 0
    %4211 = vmatpush1.bf16.msra.mxu0 %v3636
    %4212 = vmatprep.subr.bf16.mxu0 0
    %4213 = vmatpush1.bf16.msra.mxu0 %v3637
    %4214 = vmatprep.mubr.bf16.mxu0 %v539
    %4215 = vmatmul.mubr.bf16.gmra.mrb[0].mxu0 %v537
    %v4216 = vpop.f32.mrb[0].mxu0
    %v4217 = vadd.f32 %v4177, %v4216
    %v4218 = vpop.f32.mrb[0].mxu0
    %v4219 = vpop.f32.mrb[0].mxu0
    %v4220 = vpop.f32.mrb[0].mxu0
    %4221 = vdwg.mxu0
    %4222 = vmatprep.subr.bf16.mxu0 0
    %4223 = vmatpush1.bf16.msra.mxu0 %v3638
    %4224 = vmatprep.subr.bf16.mxu0 0
    %4225 = vmatpush1.bf16.msra.mxu0 %v3639
    %4226 = vmatprep.subr.bf16.mxu0 0
    %4227 = vmatpush1.bf16.msra.mxu0 %v3640
    %4228 = vmatprep.subr.bf16.mxu0 0
    %4229 = vmatpush1.bf16.msra.mxu0 %v3641
    %4230 = vmatprep.subr.bf16.mxu0 0
    %4231 = vmatpush1.bf16.msra.mxu0 %v3642
    %4232 = vmatprep.subr.bf16.mxu0 0
    %4233 = vmatpush1.bf16.msra.mxu0 %v3643
    %4234 = vmatprep.subr.bf16.mxu0 0
    %4235 = vmatpush1.bf16.msra.mxu0 %v3644
    %4236 = vmatprep.subr.bf16.mxu0 0
    %4237 = vmatpush1.bf16.msra.mxu0 %v3645
    %4238 = vmatprep.subr.bf16.mxu0 0
    %4239 = vmatpush1.bf16.msra.mxu0 %v3646
    %4240 = vmatprep.subr.bf16.mxu0 0
    %4241 = vmatpush1.bf16.msra.mxu0 %v3647
    %4242 = vmatprep.subr.bf16.mxu0 0
    %4243 = vmatpush1.bf16.msra.mxu0 %v3648
    %4244 = vmatprep.subr.bf16.mxu0 0
    %4245 = vmatpush1.bf16.msra.mxu0 %v3649
    %4246 = vmatprep.subr.bf16.mxu0 0
    %4247 = vmatpush1.bf16.msra.mxu0 %v3650
    %4248 = vmatprep.subr.bf16.mxu0 0
    %4249 = vmatpush1.bf16.msra.mxu0 %v3651
    %4250 = vmatprep.subr.bf16.mxu0 0
    %4251 = vmatpush1.bf16.msra.mxu0 %v3652
    %4252 = vmatprep.subr.bf16.mxu0 0
    %4253 = vmatpush1.bf16.msra.mxu0 %v3653
    %4254 = vmatprep.mubr.bf16.mxu0 %v577
    %4255 = vmatmul.mubr.bf16.gmra.mrb[0].mxu0 %v563
    %v4256 = vpop.f32.mrb[0].mxu0
    %v4257 = vadd.f32 %v4217, %v4256
    %v4258 = vpop.f32.mrb[0].mxu0
    %v4259 = vpop.f32.mrb[0].mxu0
    %v4260 = vpop.f32.mrb[0].mxu0
    %4261 = vdwg.mxu0
    %4262 = vmatprep.subr.bf16.mxu0 0
    %4263 = vmatpush1.bf16.msra.mxu0 %v3654
    %4264 = vmatprep.subr.bf16.mxu0 0
    %4265 = vmatpush1.bf16.msra.mxu0 %v3655
    %4266 = vmatprep.subr.bf16.mxu0 0
    %4267 = vmatpush1.bf16.msra.mxu0 %v3656
    %4268 = vmatprep.subr.bf16.mxu0 0
    %4269 = vmatpush1.bf16.msra.mxu0 %v3657
    %4270 = vmatprep.subr.bf16.mxu0 0
    %4271 = vmatpush1.bf16.msra.mxu0 %v3658
    %4272 = vmatprep.subr.bf16.mxu0 0
    %4273 = vmatpush1.bf16.msra.mxu0 %v3659
    %4274 = vmatprep.subr.bf16.mxu0 0
    %4275 = vmatpush1.bf16.msra.mxu0 %v3660
    %4276 = vmatprep.subr.bf16.mxu0 0
    %4277 = vmatpush1.bf16.msra.mxu0 %v3661
    %4278 = vmatprep.subr.bf16.mxu0 0
    %4279 = vmatpush1.bf16.msra.mxu0 %v3662
    %4280 = vmatprep.subr.bf16.mxu0 0
    %4281 = vmatpush1.bf16.msra.mxu0 %v3663
    %4282 = vmatprep.subr.bf16.mxu0 0
    %4283 = vmatpush1.bf16.msra.mxu0 %v3664
    %4284 = vmatprep.subr.bf16.mxu0 0
    %4285 = vmatpush1.bf16.msra.mxu0 %v3665
    %4286 = vmatprep.subr.bf16.mxu0 0
    %4287 = vmatpush1.bf16.msra.mxu0 %v3666
    %4288 = vmatprep.subr.bf16.mxu0 0
    %4289 = vmatpush1.bf16.msra.mxu0 %v3667
    %4290 = vmatprep.subr.bf16.mxu0 0
    %4291 = vmatpush1.bf16.msra.mxu0 %v3668
    %4292 = vmatprep.subr.bf16.mxu0 0
    %4293 = vmatpush1.bf16.msra.mxu0 %v3669
    %4294 = vmatprep.mubr.bf16.mxu0 %v587
    %4295 = vmatmul.mubr.bf16.gmra.mrb[0].mxu0 %v585
    %v4296 = vpop.f32.mrb[0].mxu0
    %v4297 = vadd.f32 %v4257, %v4296
    %v4298 = vpop.f32.mrb[0].mxu0
    %v4299 = vpop.f32.mrb[0].mxu0
    %v4300 = vpop.f32.mrb[0].mxu0
    %4301 = vdwg.mxu0
    %4302 = vmatprep.subr.bf16.mxu0 0
    %4303 = vmatpush1.bf16.msra.mxu0 %v3670
    %4304 = vmatprep.subr.bf16.mxu0 0
    %4305 = vmatpush1.bf16.msra.mxu0 %v3671
    %4306 = vmatprep.subr.bf16.mxu0 0
    %4307 = vmatpush1.bf16.msra.mxu0 %v3672
    %4308 = vmatprep.subr.bf16.mxu0 0
    %4309 = vmatpush1.bf16.msra.mxu0 %v3673
    %4310 = vmatprep.subr.bf16.mxu0 0
    %4311 = vmatpush1.bf16.msra.mxu0 %v3674
    %4312 = vmatprep.subr.bf16.mxu0 0
    %4313 = vmatpush1.bf16.msra.mxu0 %v3675
    %4314 = vmatprep.subr.bf16.mxu0 0
    %4315 = vmatpush1.bf16.msra.mxu0 %v3676
    %4316 = vmatprep.subr.bf16.mxu0 0
    %4317 = vmatpush1.bf16.msra.mxu0 %v3677
    %4318 = vmatprep.subr.bf16.mxu0 0
    %4319 = vmatpush1.bf16.msra.mxu0 %v3678
    %4320 = vmatprep.subr.bf16.mxu0 0
    %4321 = vmatpush1.bf16.msra.mxu0 %v3679
    %4322 = vmatprep.subr.bf16.mxu0 0
    %4323 = vmatpush1.bf16.msra.mxu0 %v3680
    %4324 = vmatprep.subr.bf16.mxu0 0
    %4325 = vmatpush1.bf16.msra.mxu0 %v3681
    %4326 = vmatprep.subr.bf16.mxu0 0
    %4327 = vmatpush1.bf16.msra.mxu0 %v3682
    %4328 = vmatprep.subr.bf16.mxu0 0
    %4329 = vmatpush1.bf16.msra.mxu0 %v3683
    %4330 = vmatprep.subr.bf16.mxu0 0
    %4331 = vmatpush1.bf16.msra.mxu0 %v3684
    %4332 = vmatprep.subr.bf16.mxu0 0
    %4333 = vmatpush1.bf16.msra.mxu0 %v3685
    %4334 = vmatprep.mubr.bf16.mxu0 %v584
    %4335 = vmatmul.mubr.bf16.gmra.mrb[0].mxu0 %v570
    %v4336 = vpop.f32.mrb[0].mxu0
    %v4337 = vadd.f32 %v4297, %v4336
    %v4338 = vpop.f32.mrb[0].mxu0
    %v4339 = vpop.f32.mrb[0].mxu0
    %v4340 = vpop.f32.mrb[0].mxu0
    %4341 = vdwg.mxu0
    %4342 = vmatprep.subr.bf16.mxu0 0
    %4343 = vmatpush1.bf16.msra.mxu0 %v3686
    %4344 = vmatprep.subr.bf16.mxu0 0
    %4345 = vmatpush1.bf16.msra.mxu0 %v3687
    %4346 = vmatprep.subr.bf16.mxu0 0
    %4347 = vmatpush1.bf16.msra.mxu0 %v3688
    %4348 = vmatprep.subr.bf16.mxu0 0
    %4349 = vmatpush1.bf16.msra.mxu0 %v3689
    %4350 = vmatprep.subr.bf16.mxu0 0
    %4351 = vmatpush1.bf16.msra.mxu0 %v3690
    %4352 = vmatprep.subr.bf16.mxu0 0
    %4353 = vmatpush1.bf16.msra.mxu0 %v3691
    %4354 = vmatprep.subr.bf16.mxu0 0
    %4355 = vmatpush1.bf16.msra.mxu0 %v3692
    %4356 = vmatprep.subr.bf16.mxu0 0
    %4357 = vmatpush1.bf16.msra.mxu0 %v3693
    %4358 = vmatprep.subr.bf16.mxu0 0
    %4359 = vmatpush1.bf16.msra.mxu0 %v3694
    %4360 = vmatprep.subr.bf16.mxu0 0
    %4361 = vmatpush1.bf16.msra.mxu0 %v3695
    %4362 = vmatprep.subr.bf16.mxu0 0
    %4363 = vmatpush1.bf16.msra.mxu0 %v3696
    %4364 = vmatprep.subr.bf16.mxu0 0
    %4365 = vmatpush1.bf16.msra.mxu0 %v3697
    %4366 = vmatprep.subr.bf16.mxu0 0
    %4367 = vmatpush1.bf16.msra.mxu0 %v3698
    %4368 = vmatprep.subr.bf16.mxu0 0
    %4369 = vmatpush1.bf16.msra.mxu0 %v3699
    %4370 = vmatprep.subr.bf16.mxu0 0
    %4371 = vmatpush1.bf16.msra.mxu0 %v3700
    %4372 = vmatprep.subr.bf16.mxu0 0
    %4373 = vmatpush1.bf16.msra.mxu0 %v3701
    %4374 = vmatprep.mubr.bf16.mxu0 %v588
    %4375 = vmatmul.mubr.bf16.gmra.mrb[0].mxu0 %v586
    %v4376 = vpop.f32.mrb[0].mxu0
    %v4377 = vadd.f32 %v4337, %v4376
    %v4378 = vpop.f32.mrb[0].mxu0
    %v4379 = vpop.f32.mrb[0].mxu0
    %v4380 = vpop.f32.mrb[0].mxu0
    %4381 = vdwg.mxu0
    %4382 = vmatprep.subr.bf16.mxu0 0
    %4383 = vmatpush1.bf16.msra.mxu0 %v3702
    %4384 = vmatprep.subr.bf16.mxu0 0
    %4385 = vmatpush1.bf16.msra.mxu0 %v3703
    %4386 = vmatprep.subr.bf16.mxu0 0
    %4387 = vmatpush1.bf16.msra.mxu0 %v3704
    %4388 = vmatprep.subr.bf16.mxu0 0
    %4389 = vmatpush1.bf16.msra.mxu0 %v3705
    %4390 = vmatprep.subr.bf16.mxu0 0
    %4391 = vmatpush1.bf16.msra.mxu0 0
    %4392 = vmatprep.subr.bf16.mxu0 0
    %4393 = vmatpush1.bf16.msra.mxu0 0
    %4394 = vmatprep.subr.bf16.mxu0 0
    %4395 = vmatpush1.bf16.msra.mxu0 0
    %4396 = vmatprep.subr.bf16.mxu0 0
    %4397 = vmatpush1.bf16.msra.mxu0 0
    %4398 = vmatprep.subr.bf16.mxu0 0
    %4399 = vmatpush1.bf16.msra.mxu0 0
    %4400 = vmatprep.subr.bf16.mxu0 0
    %4401 = vmatpush1.bf16.msra.mxu0 0
    %4402 = vmatprep.subr.bf16.mxu0 0
    %4403 = vmatpush1.bf16.msra.mxu0 0
    %4404 = vmatprep.subr.bf16.mxu0 0
    %4405 = vmatpush1.bf16.msra.mxu0 0
    %4406 = vmatprep.subr.bf16.mxu0 0
    %4407 = vmatpush1.bf16.msra.mxu0 0
    %4408 = vmatprep.subr.bf16.mxu0 0
    %4409 = vmatpush1.bf16.msra.mxu0 0
    %4410 = vmatprep.subr.bf16.mxu0 0
    %4411 = vmatpush1.bf16.msra.mxu0 0
    %4412 = vmatprep.subr.bf16.mxu0 0
    %4413 = vmatpush1.bf16.msra.mxu0 0
    %4414 = vmatprep.mubr.bf16.mxu0 0
    %4415 = vmatmul.mubr.bf16.gmra.mrb[0].mxu0 %v1805
    %v4416 = vpop.f32.mrb[0].mxu0
    %v4417 = vadd.f32 %v4377, %v4416
    %v4418 = vpop.f32.mrb[0].mxu0
    %v4419 = vpop.f32.mrb[0].mxu0
    %v4420 = vpop.f32.mrb[0].mxu0
    %4421 = vdwg.mxu0
    %vm4422 = vcmask 58368
    %4423 = vst.msk [vmem:[#allocation2] sm:$0x3] %vm4422, %v2322
    %4424 = vst.msk [vmem:[#allocation4] sm:$0x3] %vm4422, %v4417
    %v4425 = vmul.f32 %v4417, 0.5
    %v4426 = vmul.f32 %v4425, 1.442695
    %v4427 = vpow.pop %v4426
    %v4428 = vld [vmem:[%s5] sm:$0x3]
    %v4429 = vmul.f32 %v4427, %v4428
    %v4430 = vadd.f32 %v2322, %v4429
    %v4431 = vpack.c.bf16 %v4430, %v4430
    %v4432 = vld [vmem:[%s6] sm:$0xff]
    %v4433 = vld [vmem:[%s6 + $0x8] sm:$0xff]
    %v4434 = vld [vmem:[%s6 + $0x10] sm:$0xff]
    %v4435 = vld [vmem:[%s6 + $0x18] sm:$0xff]
    %v4436 = vld [vmem:[%s6 + $0x20] sm:$0xff]
    %v4437 = vld [vmem:[%s6 + $0x28] sm:$0xff]
    %v4438 = vld [vmem:[%s6 + $0x30] sm:$0xff]
    %v4439 = vld [vmem:[%s6 + $0x38] sm:$0xff]
    %v4440 = vld [vmem:[%s6 + $0x40] sm:$0xff]
    %v4441 = vld [vmem:[%s6 + $0x48] sm:$0xff]
    %v4442 = vld [vmem:[%s6 + $0x50] sm:$0xff]
    %v4443 = vld [vmem:[%s6 + $0x58] sm:$0xff]
    %v4444 = vld [vmem:[%s6 + $0x60] sm:$0xf]
    %v4445 = vld [vmem:[%s7] sm:$0xff]
    %v4446 = vld [vmem:[%s7 + $0x8] sm:$0xff]
    %v4447 = vld [vmem:[%s7 + $0x10] sm:$0xff]
    %v4448 = vld [vmem:[%s7 + $0x18] sm:$0x1]
    %v4453 = vlaneseq
    %v4454 = vshrl.u32 %v4453, 7
    %v4455 = vsub.s32 0, %v4454
    %v4456 = vrot.slane %v4445, %v4455
    %v4457 = vlaneseq
    %v4458 = vshrl.u32 %v4457, 7
    %v4459 = vsub.s32 1, %v4458
    %v4460 = vrot.slane %v4445, %v4459
    %v4461 = vlaneseq
    %v4462 = vshrl.u32 %v4461, 7
    %v4463 = vsub.s32 2, %v4462
    %v4464 = vrot.slane %v4445, %v4463
    %v4465 = vlaneseq
    %v4466 = vshrl.u32 %v4465, 7
    %v4467 = vsub.s32 3, %v4466
    %v4468 = vrot.slane %v4445, %v4467
    %v4469 = vlaneseq
    %v4470 = vshrl.u32 %v4469, 7
    %v4471 = vsub.s32 4, %v4470
    %v4472 = vrot.slane %v4445, %v4471
    %v4473 = vlaneseq
    %v4474 = vshrl.u32 %v4473, 7
    %v4475 = vsub.s32 5, %v4474
    %v4476 = vrot.slane %v4445, %v4475
    %v4477 = vlaneseq
    %v4478 = vshrl.u32 %v4477, 7
    %v4479 = vsub.s32 6, %v4478
    %v4480 = vrot.slane %v4445, %v4479
    %v4481 = vlaneseq
    %v4482 = vshrl.u32 %v4481, 7
    %v4483 = vsub.s32 7, %v4482
    %v4484 = vrot.slane %v4445, %v4483
    %v4485 = vlaneseq
    %v4486 = vshrl.u32 %v4485, 7
    %v4487 = vsub.s32 0, %v4486
    %v4488 = vrot.slane %v4446, %v4487
    %v4489 = vlaneseq
    %v4490 = vshrl.u32 %v4489, 7
    %v4491 = vsub.s32 1, %v4490
    %v4492 = vrot.slane %v4446, %v4491
    %v4493 = vlaneseq
    %v4494 = vshrl.u32 %v4493, 7
    %v4495 = vsub.s32 2, %v4494
    %v4496 = vrot.slane %v4446, %v4495
    %v4497 = vlaneseq
    %v4498 = vshrl.u32 %v4497, 7
    %v4499 = vsub.s32 3, %v4498
    %v4500 = vrot.slane %v4446, %v4499
    %v4501 = vlaneseq
    %v4502 = vshrl.u32 %v4501, 7
    %v4503 = vsub.s32 4, %v4502
    %v4504 = vrot.slane %v4446, %v4503
    %v4505 = vlaneseq
    %v4506 = vshrl.u32 %v4505, 7
    %v4507 = vsub.s32 5, %v4506
    %v4508 = vrot.slane %v4446, %v4507
    %v4509 = vlaneseq
    %v4510 = vshrl.u32 %v4509, 7
    %v4511 = vsub.s32 6, %v4510
    %v4512 = vrot.slane %v4446, %v4511
    %v4513 = vlaneseq
    %v4514 = vshrl.u32 %v4513, 7
    %v4515 = vsub.s32 7, %v4514
    %v4516 = vrot.slane %v4446, %v4515
    %v4517 = vlaneseq
    %v4518 = vshrl.u32 %v4517, 7
    %v4519 = vsub.s32 0, %v4518
    %v4520 = vrot.slane %v4447, %v4519
    %v4521 = vlaneseq
    %v4522 = vshrl.u32 %v4521, 7
    %v4523 = vsub.s32 1, %v4522
    %v4524 = vrot.slane %v4447, %v4523
    %v4525 = vlaneseq
    %v4526 = vshrl.u32 %v4525, 7
    %v4527 = vsub.s32 2, %v4526
    %v4528 = vrot.slane %v4447, %v4527
    %v4529 = vlaneseq
    %v4530 = vshrl.u32 %v4529, 7
    %v4531 = vsub.s32 3, %v4530
    %v4532 = vrot.slane %v4447, %v4531
    %v4533 = vlaneseq
    %v4534 = vshrl.u32 %v4533, 7
    %v4535 = vsub.s32 4, %v4534
    %v4536 = vrot.slane %v4447, %v4535
    %v4537 = vlaneseq
    %v4538 = vshrl.u32 %v4537, 7
    %v4539 = vsub.s32 5, %v4538
    %v4540 = vrot.slane %v4447, %v4539
    %v4541 = vlaneseq
    %v4542 = vshrl.u32 %v4541, 7
    %v4543 = vsub.s32 6, %v4542
    %v4544 = vrot.slane %v4447, %v4543
    %v4545 = vlaneseq
    %v4546 = vshrl.u32 %v4545, 7
    %v4547 = vsub.s32 7, %v4546
    %v4548 = vrot.slane %v4447, %v4547
    %v4549 = vlaneseq
    %v4550 = vshrl.u32 %v4549, 7
    %v4551 = vsub.s32 0, %v4550
    %v4552 = vrot.slane %v4448, %v4551
    %v4591 = vunpack.c.l.b16 %v4432
    %v4592 = vunpack.c.h.b16 %v4432
    %v4593 = vunpack.c.l.b16 %v4433
    %v4594 = vunpack.c.h.b16 %v4433
    %v4595 = vunpack.c.l.b16 %v4434
    %v4596 = vunpack.c.h.b16 %v4434
    %v4597 = vunpack.c.l.b16 %v4435
    %v4598 = vunpack.c.h.b16 %v4435
    %v4599 = vunpack.c.l.b16 %v4436
    %v4600 = vunpack.c.h.b16 %v4436
    %v4601 = vunpack.c.l.b16 %v4437
    %v4602 = vunpack.c.h.b16 %v4437
    %v4603 = vunpack.c.l.b16 %v4438
    %v4604 = vunpack.c.h.b16 %v4438
    %v4605 = vunpack.c.l.b16 %v4439
    %v4606 = vunpack.c.h.b16 %v4439
    %v4607 = vunpack.c.l.b16 %v4440
    %v4608 = vunpack.c.h.b16 %v4440
    %v4609 = vunpack.c.l.b16 %v4441
    %v4610 = vunpack.c.h.b16 %v4441
    %v4611 = vunpack.c.l.b16 %v4442
    %v4612 = vunpack.c.h.b16 %v4442
    %v4613 = vunpack.c.l.b16 %v4443
    %v4614 = vunpack.c.h.b16 %v4443
    %v4615 = vunpack.c.l.b16 %v4444
    %v4616 = vpack.c.b16 %v4591, %v4591
    %v4617 = vpack.c.b16 %v4592, %v4592
    %v4618 = vpack.c.b16 %v4593, %v4593
    %v4619 = vpack.c.b16 %v4594, %v4594
    %v4620 = vpack.c.b16 %v4595, %v4595
    %v4621 = vpack.c.b16 %v4596, %v4596
    %v4622 = vpack.c.b16 %v4597, %v4597
    %v4623 = vpack.c.b16 %v4598, %v4598
    %v4624 = vpack.c.b16 %v4599, %v4599
    %v4625 = vpack.c.b16 %v4600, %v4600
    %v4626 = vpack.c.b16 %v4601, %v4601
    %v4627 = vpack.c.b16 %v4602, %v4602
    %v4628 = vpack.c.b16 %v4603, %v4603
    %v4629 = vpack.c.b16 %v4604, %v4604
    %v4630 = vpack.c.b16 %v4605, %v4605
    %v4631 = vpack.c.b16 %v4606, %v4606
    %v4632 = vpack.c.b16 %v4607, %v4607
    %v4633 = vpack.c.b16 %v4608, %v4608
    %v4634 = vpack.c.b16 %v4609, %v4609
    %v4635 = vpack.c.b16 %v4610, %v4610
    %v4636 = vpack.c.b16 %v4611, %v4611
    %v4637 = vpack.c.b16 %v4612, %v4612
    %v4638 = vpack.c.b16 %v4613, %v4613
    %v4639 = vpack.c.b16 %v4614, %v4614
    %v4640 = vpack.c.b16 %v4615, %v4615
    %vm4641 = vcmask 64512
    %v4643 = vsel %vm4641, %v4431, 0
    %vm4645 = vcmask 1043456
    %v4647 = vsel %vm4645, %v4616, 0
    %v4650 = vsel %vm4645, %v4617, 0
    %v4653 = vsel %vm4645, %v4618, 0
    %v4656 = vsel %vm4645, %v4619, 0
    %v4659 = vsel %vm4645, %v4620, 0
    %v4662 = vsel %vm4645, %v4621, 0
    %v4665 = vsel %vm4645, %v4622, 0
    %v4668 = vsel %vm4645, %v4623, 0
    %v4671 = vsel %vm4645, %v4624, 0
    %v4674 = vsel %vm4645, %v4625, 0
    %v4677 = vsel %vm4645, %v4626, 0
    %v4680 = vsel %vm4645, %v4627, 0
    %v4683 = vsel %vm4645, %v4628, 0
    %v4686 = vsel %vm4645, %v4629, 0
    %v4689 = vsel %vm4645, %v4630, 0
    %v4692 = vsel %vm4645, %v4631, 0
    %v4695 = vsel %vm4645, %v4632, 0
    %v4698 = vsel %vm4645, %v4633, 0
    %v4701 = vsel %vm4645, %v4634, 0
    %v4704 = vsel %vm4645, %v4635, 0
    %v4707 = vsel %vm4645, %v4636, 0
    %v4710 = vsel %vm4645, %v4637, 0
    %v4713 = vsel %vm4645, %v4638, 0
    %v4716 = vsel %vm4645, %v4639, 0
    %v4719 = vsel %vm4645, %v4640, 0
    %4721 = vmatprep.subr.bf16.mxu0 %v4650
    %4722 = vmatpush1.bf16.msra.mxu0 %v4647
    %4723 = vmatprep.subr.bf16.mxu0 0
    %4724 = vmatpush1.bf16.msra.mxu0 0
    %4725 = vmatprep.subr.bf16.mxu0 0
    %4726 = vmatpush1.bf16.msra.mxu0 0
    %4727 = vmatprep.subr.bf16.mxu0 0
    %4728 = vmatpush1.bf16.msra.mxu0 0
    %4729 = vmatprep.subr.bf16.mxu0 0
    %4730 = vmatpush1.bf16.msra.mxu0 0
    %4731 = vmatprep.subr.bf16.mxu0 0
    %4732 = vmatpush1.bf16.msra.mxu0 0
    %4733 = vmatprep.subr.bf16.mxu0 0
    %4734 = vmatpush1.bf16.msra.mxu0 0
    %4735 = vmatprep.subr.bf16.mxu0 0
    %4736 = vmatpush1.bf16.msra.mxu0 0
    %4737 = vmatprep.subr.bf16.mxu0 0
    %4738 = vmatpush1.bf16.msra.mxu0 0
    %4739 = vmatprep.subr.bf16.mxu0 0
    %4740 = vmatpush1.bf16.msra.mxu0 0
    %4741 = vmatprep.subr.bf16.mxu0 0
    %4742 = vmatpush1.bf16.msra.mxu0 0
    %4743 = vmatprep.subr.bf16.mxu0 0
    %4744 = vmatpush1.bf16.msra.mxu0 0
    %4745 = vmatprep.subr.bf16.mxu0 0
    %4746 = vmatpush1.bf16.msra.mxu0 0
    %4747 = vmatprep.subr.bf16.mxu0 0
    %4748 = vmatpush1.bf16.msra.mxu0 0
    %4749 = vmatprep.subr.bf16.mxu0 0
    %4750 = vmatpush1.bf16.msra.mxu0 0
    %4751 = vmatprep.subr.bf16.mxu0 0
    %4752 = vmatpush1.bf16.msra.mxu0 0
    %4753 = vmatprep.mubr.bf16.mxu0 0
    %4754 = vmatmul.mubr.bf16.gmra.mrb[0].mxu0 %v4643
    %v4755 = vpop.f32.mrb[0].mxu0
    %v4756 = vadd.f32 %v4456, %v4755
    %v4757 = vpop.f32.mrb[0].mxu0
    %v4758 = vadd.f32 %v4460, %v4757
    %v4759 = vpop.f32.mrb[0].mxu0
    %v4760 = vpop.f32.mrb[0].mxu0
    %4761 = vdwg.mxu0
    %4762 = vmatprep.subr.bf16.mxu0 %v4656
    %4763 = vmatpush1.bf16.msra.mxu0 %v4653
    %4764 = vmatprep.subr.bf16.mxu0 0
    %4765 = vmatpush1.bf16.msra.mxu0 0
    %4766 = vmatprep.subr.bf16.mxu0 0
    %4767 = vmatpush1.bf16.msra.mxu0 0
    %4768 = vmatprep.subr.bf16.mxu0 0
    %4769 = vmatpush1.bf16.msra.mxu0 0
    %4770 = vmatprep.subr.bf16.mxu0 0
    %4771 = vmatpush1.bf16.msra.mxu0 0
    %4772 = vmatprep.subr.bf16.mxu0 0
    %4773 = vmatpush1.bf16.msra.mxu0 0
    %4774 = vmatprep.subr.bf16.mxu0 0
    %4775 = vmatpush1.bf16.msra.mxu0 0
    %4776 = vmatprep.subr.bf16.mxu0 0
    %4777 = vmatpush1.bf16.msra.mxu0 0
    %4778 = vmatprep.subr.bf16.mxu0 0
    %4779 = vmatpush1.bf16.msra.mxu0 0
    %4780 = vmatprep.subr.bf16.mxu0 0
    %4781 = vmatpush1.bf16.msra.mxu0 0
    %4782 = vmatprep.subr.bf16.mxu0 0
    %4783 = vmatpush1.bf16.msra.mxu0 0
    %4784 = vmatprep.subr.bf16.mxu0 0
    %4785 = vmatpush1.bf16.msra.mxu0 0
    %4786 = vmatprep.subr.bf16.mxu0 0
    %4787 = vmatpush1.bf16.msra.mxu0 0
    %4788 = vmatprep.subr.bf16.mxu0 0
    %4789 = vmatpush1.bf16.msra.mxu0 0
    %4790 = vmatprep.subr.bf16.mxu0 0
    %4791 = vmatpush1.bf16.msra.mxu0 0
    %4792 = vmatprep.subr.bf16.mxu0 0
    %4793 = vmatpush1.bf16.msra.mxu0 0
    %4794 = vmatprep.mubr.bf16.mxu0 0
    %4795 = vmatmul.mubr.bf16.gmra.mrb[0].mxu0 %v4643
    %v4796 = vpop.f32.mrb[0].mxu0
    %v4797 = vadd.f32 %v4464, %v4796
    %v4798 = vpop.f32.mrb[0].mxu0
    %v4799 = vadd.f32 %v4468, %v4798
    %v4800 = vpop.f32.mrb[0].mxu0
    %v4801 = vpop.f32.mrb[0].mxu0
    %4802 = vdwg.mxu0
    %4803 = vmatprep.subr.bf16.mxu0 %v4662
    %4804 = vmatpush1.bf16.msra.mxu0 %v4659
    %4805 = vmatprep.subr.bf16.mxu0 0
    %4806 = vmatpush1.bf16.msra.mxu0 0
    %4807 = vmatprep.subr.bf16.mxu0 0
    %4808 = vmatpush1.bf16.msra.mxu0 0
    %4809 = vmatprep.subr.bf16.mxu0 0
    %4810 = vmatpush1.bf16.msra.mxu0 0
    %4811 = vmatprep.subr.bf16.mxu0 0
    %4812 = vmatpush1.bf16.msra.mxu0 0
    %4813 = vmatprep.subr.bf16.mxu0 0
    %4814 = vmatpush1.bf16.msra.mxu0 0
    %4815 = vmatprep.subr.bf16.mxu0 0
    %4816 = vmatpush1.bf16.msra.mxu0 0
    %4817 = vmatprep.subr.bf16.mxu0 0
    %4818 = vmatpush1.bf16.msra.mxu0 0
    %4819 = vmatprep.subr.bf16.mxu0 0
    %4820 = vmatpush1.bf16.msra.mxu0 0
    %4821 = vmatprep.subr.bf16.mxu0 0
    %4822 = vmatpush1.bf16.msra.mxu0 0
    %4823 = vmatprep.subr.bf16.mxu0 0
    %4824 = vmatpush1.bf16.msra.mxu0 0
    %4825 = vmatprep.subr.bf16.mxu0 0
    %4826 = vmatpush1.bf16.msra.mxu0 0
    %4827 = vmatprep.subr.bf16.mxu0 0
    %4828 = vmatpush1.bf16.msra.mxu0 0
    %4829 = vmatprep.subr.bf16.mxu0 0
    %4830 = vmatpush1.bf16.msra.mxu0 0
    %4831 = vmatprep.subr.bf16.mxu0 0
    %4832 = vmatpush1.bf16.msra.mxu0 0
    %4833 = vmatprep.subr.bf16.mxu0 0
    %4834 = vmatpush1.bf16.msra.mxu0 0
    %4835 = vmatprep.mubr.bf16.mxu0 0
    %4836 = vmatmul.mubr.bf16.gmra.mrb[0].mxu0 %v4643
    %v4837 = vpop.f32.mrb[0].mxu0
    %v4838 = vadd.f32 %v4472, %v4837
    %v4839 = vpop.f32.mrb[0].mxu0
    %v4840 = vadd.f32 %v4476, %v4839
    %v4841 = vpop.f32.mrb[0].mxu0
    %v4842 = vpop.f32.mrb[0].mxu0
    %4843 = vdwg.mxu0
    %4844 = vmatprep.subr.bf16.mxu0 %v4668
    %4845 = vmatpush1.bf16.msra.mxu0 %v4665
    %4846 = vmatprep.subr.bf16.mxu0 0
    %4847 = vmatpush1.bf16.msra.mxu0 0
    %4848 = vmatprep.subr.bf16.mxu0 0
    %4849 = vmatpush1.bf16.msra.mxu0 0
    %4850 = vmatprep.subr.bf16.mxu0 0
    %4851 = vmatpush1.bf16.msra.mxu0 0
    %4852 = vmatprep.subr.bf16.mxu0 0
    %4853 = vmatpush1.bf16.msra.mxu0 0
    %4854 = vmatprep.subr.bf16.mxu0 0
    %4855 = vmatpush1.bf16.msra.mxu0 0
    %4856 = vmatprep.subr.bf16.mxu0 0
    %4857 = vmatpush1.bf16.msra.mxu0 0
    %4858 = vmatprep.subr.bf16.mxu0 0
    %4859 = vmatpush1.bf16.msra.mxu0 0
    %4860 = vmatprep.subr.bf16.mxu0 0
    %4861 = vmatpush1.bf16.msra.mxu0 0
    %4862 = vmatprep.subr.bf16.mxu0 0
    %4863 = vmatpush1.bf16.msra.mxu0 0
    %4864 = vmatprep.subr.bf16.mxu0 0
    %4865 = vmatpush1.bf16.msra.mxu0 0
    %4866 = vmatprep.subr.bf16.mxu0 0
    %4867 = vmatpush1.bf16.msra.mxu0 0
    %4868 = vmatprep.subr.bf16.mxu0 0
    %4869 = vmatpush1.bf16.msra.mxu0 0
    %4870 = vmatprep.subr.bf16.mxu0 0
    %4871 = vmatpush1.bf16.msra.mxu0 0
    %4872 = vmatprep.subr.bf16.mxu0 0
    %4873 = vmatpush1.bf16.msra.mxu0 0
    %4874 = vmatprep.subr.bf16.mxu0 0
    %4875 = vmatpush1.bf16.msra.mxu0 0
    %4876 = vmatprep.mubr.bf16.mxu0 0
    %4877 = vmatmul.mubr.bf16.gmra.mrb[0].mxu0 %v4643
    %v4878 = vpop.f32.mrb[0].mxu0
    %v4879 = vadd.f32 %v4480, %v4878
    %v4880 = vpop.f32.mrb[0].mxu0
    %v4881 = vadd.f32 %v4484, %v4880
    %v4882 = vpop.f32.mrb[0].mxu0
    %v4883 = vpop.f32.mrb[0].mxu0
    %4884 = vdwg.mxu0
    %4885 = vmatprep.subr.bf16.mxu0 %v4674
    %4886 = vmatpush1.bf16.msra.mxu0 %v4671
    %4887 = vmatprep.subr.bf16.mxu0 0
    %4888 = vmatpush1.bf16.msra.mxu0 0
    %4889 = vmatprep.subr.bf16.mxu0 0
    %4890 = vmatpush1.bf16.msra.mxu0 0
    %4891 = vmatprep.subr.bf16.mxu0 0
    %4892 = vmatpush1.bf16.msra.mxu0 0
    %4893 = vmatprep.subr.bf16.mxu0 0
    %4894 = vmatpush1.bf16.msra.mxu0 0
    %4895 = vmatprep.subr.bf16.mxu0 0
    %4896 = vmatpush1.bf16.msra.mxu0 0
    %4897 = vmatprep.subr.bf16.mxu0 0
    %4898 = vmatpush1.bf16.msra.mxu0 0
    %4899 = vmatprep.subr.bf16.mxu0 0
    %4900 = vmatpush1.bf16.msra.mxu0 0
    %4901 = vmatprep.subr.bf16.mxu0 0
    %4902 = vmatpush1.bf16.msra.mxu0 0
    %4903 = vmatprep.subr.bf16.mxu0 0
    %4904 = vmatpush1.bf16.msra.mxu0 0
    %4905 = vmatprep.subr.bf16.mxu0 0
    %4906 = vmatpush1.bf16.msra.mxu0 0
    %4907 = vmatprep.subr.bf16.mxu0 0
    %4908 = vmatpush1.bf16.msra.mxu0 0
    %4909 = vmatprep.subr.bf16.mxu0 0
    %4910 = vmatpush1.bf16.msra.mxu0 0
    %4911 = vmatprep.subr.bf16.mxu0 0
    %4912 = vmatpush1.bf16.msra.mxu0 0
    %4913 = vmatprep.subr.bf16.mxu0 0
    %4914 = vmatpush1.bf16.msra.mxu0 0
    %4915 = vmatprep.subr.bf16.mxu0 0
    %4916 = vmatpush1.bf16.msra.mxu0 0
    %4917 = vmatprep.mubr.bf16.mxu0 0
    %4918 = vmatmul.mubr.bf16.gmra.mrb[0].mxu0 %v4643
    %v4919 = vpop.f32.mrb[0].mxu0
    %v4920 = vadd.f32 %v4488, %v4919
    %v4921 = vpop.f32.mrb[0].mxu0
    %v4922 = vadd.f32 %v4492, %v4921
    %v4923 = vpop.f32.mrb[0].mxu0
    %v4924 = vpop.f32.mrb[0].mxu0
    %4925 = vdwg.mxu0
    %4926 = vmatprep.subr.bf16.mxu0 %v4680
    %4927 = vmatpush1.bf16.msra.mxu0 %v4677
    %4928 = vmatprep.subr.bf16.mxu0 0
    %4929 = vmatpush1.bf16.msra.mxu0 0
    %4930 = vmatprep.subr.bf16.mxu0 0
    %4931 = vmatpush1.bf16.msra.mxu0 0
    %4932 = vmatprep.subr.bf16.mxu0 0
    %4933 = vmatpush1.bf16.msra.mxu0 0
    %4934 = vmatprep.subr.bf16.mxu0 0
    %4935 = vmatpush1.bf16.msra.mxu0 0
    %4936 = vmatprep.subr.bf16.mxu0 0
    %4937 = vmatpush1.bf16.msra.mxu0 0
    %4938 = vmatprep.subr.bf16.mxu0 0
    %4939 = vmatpush1.bf16.msra.mxu0 0
    %4940 = vmatprep.subr.bf16.mxu0 0
    %4941 = vmatpush1.bf16.msra.mxu0 0
    %4942 = vmatprep.subr.bf16.mxu0 0
    %4943 = vmatpush1.bf16.msra.mxu0 0
    %4944 = vmatprep.subr.bf16.mxu0 0
    %4945 = vmatpush1.bf16.msra.mxu0 0
    %4946 = vmatprep.subr.bf16.mxu0 0
    %4947 = vmatpush1.bf16.msra.mxu0 0
    %4948 = vmatprep.subr.bf16.mxu0 0
    %4949 = vmatpush1.bf16.msra.mxu0 0
    %4950 = vmatprep.subr.bf16.mxu0 0
    %4951 = vmatpush1.bf16.msra.mxu0 0
    %4952 = vmatprep.subr.bf16.mxu0 0
    %4953 = vmatpush1.bf16.msra.mxu0 0
    %4954 = vmatprep.subr.bf16.mxu0 0
    %4955 = vmatpush1.bf16.msra.mxu0 0
    %4956 = vmatprep.subr.bf16.mxu0 0
    %4957 = vmatpush1.bf16.msra.mxu0 0
    %4958 = vmatprep.mubr.bf16.mxu0 0
    %4959 = vmatmul.mubr.bf16.gmra.mrb[0].mxu0 %v4643
    %v4960 = vpop.f32.mrb[0].mxu0
    %v4961 = vadd.f32 %v4496, %v4960
    %v4962 = vpop.f32.mrb[0].mxu0
    %v4963 = vadd.f32 %v4500, %v4962
    %v4964 = vpop.f32.mrb[0].mxu0
    %v4965 = vpop.f32.mrb[0].mxu0
    %4966 = vdwg.mxu0
    %4967 = vmatprep.subr.bf16.mxu0 %v4686
    %4968 = vmatpush1.bf16.msra.mxu0 %v4683
    %4969 = vmatprep.subr.bf16.mxu0 0
    %4970 = vmatpush1.bf16.msra.mxu0 0
    %4971 = vmatprep.subr.bf16.mxu0 0
    %4972 = vmatpush1.bf16.msra.mxu0 0
    %4973 = vmatprep.subr.bf16.mxu0 0
    %4974 = vmatpush1.bf16.msra.mxu0 0
    %4975 = vmatprep.subr.bf16.mxu0 0
    %4976 = vmatpush1.bf16.msra.mxu0 0
    %4977 = vmatprep.subr.bf16.mxu0 0
    %4978 = vmatpush1.bf16.msra.mxu0 0
    %4979 = vmatprep.subr.bf16.mxu0 0
    %4980 = vmatpush1.bf16.msra.mxu0 0
    %4981 = vmatprep.subr.bf16.mxu0 0
    %4982 = vmatpush1.bf16.msra.mxu0 0
    %4983 = vmatprep.subr.bf16.mxu0 0
    %4984 = vmatpush1.bf16.msra.mxu0 0
    %4985 = vmatprep.subr.bf16.mxu0 0
    %4986 = vmatpush1.bf16.msra.mxu0 0
    %4987 = vmatprep.subr.bf16.mxu0 0
    %4988 = vmatpush1.bf16.msra.mxu0 0
    %4989 = vmatprep.subr.bf16.mxu0 0
    %4990 = vmatpush1.bf16.msra.mxu0 0
    %4991 = vmatprep.subr.bf16.mxu0 0
    %4992 = vmatpush1.bf16.msra.mxu0 0
    %4993 = vmatprep.subr.bf16.mxu0 0
    %4994 = vmatpush1.bf16.msra.mxu0 0
    %4995 = vmatprep.subr.bf16.mxu0 0
    %4996 = vmatpush1.bf16.msra.mxu0 0
    %4997 = vmatprep.subr.bf16.mxu0 0
    %4998 = vmatpush1.bf16.msra.mxu0 0
    %4999 = vmatprep.mubr.bf16.mxu0 0
    %5000 = vmatmul.mubr.bf16.gmra.mrb[0].mxu0 %v4643
    %v5001 = vpop.f32.mrb[0].mxu0
    %v5002 = vadd.f32 %v4504, %v5001
    %v5003 = vpop.f32.mrb[0].mxu0
    %v5004 = vadd.f32 %v4508, %v5003
    %v5005 = vpop.f32.mrb[0].mxu0
    %v5006 = vpop.f32.mrb[0].mxu0
    %5007 = vdwg.mxu0
    %5008 = vmatprep.subr.bf16.mxu0 %v4692
    %5009 = vmatpush1.bf16.msra.mxu0 %v4689
    %5010 = vmatprep.subr.bf16.mxu0 0
    %5011 = vmatpush1.bf16.msra.mxu0 0
    %5012 = vmatprep.subr.bf16.mxu0 0
    %5013 = vmatpush1.bf16.msra.mxu0 0
    %5014 = vmatprep.subr.bf16.mxu0 0
    %5015 = vmatpush1.bf16.msra.mxu0 0
    %5016 = vmatprep.subr.bf16.mxu0 0
    %5017 = vmatpush1.bf16.msra.mxu0 0
    %5018 = vmatprep.subr.bf16.mxu0 0
    %5019 = vmatpush1.bf16.msra.mxu0 0
    %5020 = vmatprep.subr.bf16.mxu0 0
    %5021 = vmatpush1.bf16.msra.mxu0 0
    %5022 = vmatprep.subr.bf16.mxu0 0
    %5023 = vmatpush1.bf16.msra.mxu0 0
    %5024 = vmatprep.subr.bf16.mxu0 0
    %5025 = vmatpush1.bf16.msra.mxu0 0
    %5026 = vmatprep.subr.bf16.mxu0 0
    %5027 = vmatpush1.bf16.msra.mxu0 0
    %5028 = vmatprep.subr.bf16.mxu0 0
    %5029 = vmatpush1.bf16.msra.mxu0 0
    %5030 = vmatprep.subr.bf16.mxu0 0
    %5031 = vmatpush1.bf16.msra.mxu0 0
    %5032 = vmatprep.subr.bf16.mxu0 0
    %5033 = vmatpush1.bf16.msra.mxu0 0
    %5034 = vmatprep.subr.bf16.mxu0 0
    %5035 = vmatpush1.bf16.msra.mxu0 0
    %5036 = vmatprep.subr.bf16.mxu0 0
    %5037 = vmatpush1.bf16.msra.mxu0 0
    %5038 = vmatprep.subr.bf16.mxu0 0
    %5039 = vmatpush1.bf16.msra.mxu0 0
    %5040 = vmatprep.mubr.bf16.mxu0 0
    %5041 = vmatmul.mubr.bf16.gmra.mrb[0].mxu0 %v4643
    %v5042 = vpop.f32.mrb[0].mxu0
    %v5043 = vadd.f32 %v4512, %v5042
    %v5044 = vpop.f32.mrb[0].mxu0
    %v5045 = vadd.f32 %v4516, %v5044
    %v5046 = vpop.f32.mrb[0].mxu0
    %v5047 = vpop.f32.mrb[0].mxu0
    %5048 = vdwg.mxu0
    %5049 = vmatprep.subr.bf16.mxu0 %v4698
    %5050 = vmatpush1.bf16.msra.mxu0 %v4695
    %5051 = vmatprep.subr.bf16.mxu0 0
    %5052 = vmatpush1.bf16.msra.mxu0 0
    %5053 = vmatprep.subr.bf16.mxu0 0
    %5054 = vmatpush1.bf16.msra.mxu0 0
    %5055 = vmatprep.subr.bf16.mxu0 0
    %5056 = vmatpush1.bf16.msra.mxu0 0
    %5057 = vmatprep.subr.bf16.mxu0 0
    %5058 = vmatpush1.bf16.msra.mxu0 0
    %5059 = vmatprep.subr.bf16.mxu0 0
    %5060 = vmatpush1.bf16.msra.mxu0 0
    %5061 = vmatprep.subr.bf16.mxu0 0
    %5062 = vmatpush1.bf16.msra.mxu0 0
    %5063 = vmatprep.subr.bf16.mxu0 0
    %5064 = vmatpush1.bf16.msra.mxu0 0
    %5065 = vmatprep.subr.bf16.mxu0 0
    %5066 = vmatpush1.bf16.msra.mxu0 0
    %5067 = vmatprep.subr.bf16.mxu0 0
    %5068 = vmatpush1.bf16.msra.mxu0 0
    %5069 = vmatprep.subr.bf16.mxu0 0
    %5070 = vmatpush1.bf16.msra.mxu0 0
    %5071 = vmatprep.subr.bf16.mxu0 0
    %5072 = vmatpush1.bf16.msra.mxu0 0
    %5073 = vmatprep.subr.bf16.mxu0 0
    %5074 = vmatpush1.bf16.msra.mxu0 0
    %5075 = vmatprep.subr.bf16.mxu0 0
    %5076 = vmatpush1.bf16.msra.mxu0 0
    %5077 = vmatprep.subr.bf16.mxu0 0
    %5078 = vmatpush1.bf16.msra.mxu0 0
    %5079 = vmatprep.subr.bf16.mxu0 0
    %5080 = vmatpush1.bf16.msra.mxu0 0
    %5081 = vmatprep.mubr.bf16.mxu0 0
    %5082 = vmatmul.mubr.bf16.gmra.mrb[0].mxu0 %v4643
    %v5083 = vpop.f32.mrb[0].mxu0
    %v5084 = vadd.f32 %v4520, %v5083
    %v5085 = vpop.f32.mrb[0].mxu0
    %v5086 = vadd.f32 %v4524, %v5085
    %v5087 = vpop.f32.mrb[0].mxu0
    %v5088 = vpop.f32.mrb[0].mxu0
    %5089 = vdwg.mxu0
    %5090 = vmatprep.subr.bf16.mxu0 %v4704
    %5091 = vmatpush1.bf16.msra.mxu0 %v4701
    %5092 = vmatprep.subr.bf16.mxu0 0
    %5093 = vmatpush1.bf16.msra.mxu0 0
    %5094 = vmatprep.subr.bf16.mxu0 0
    %5095 = vmatpush1.bf16.msra.mxu0 0
    %5096 = vmatprep.subr.bf16.mxu0 0
    %5097 = vmatpush1.bf16.msra.mxu0 0
    %5098 = vmatprep.subr.bf16.mxu0 0
    %5099 = vmatpush1.bf16.msra.mxu0 0
    %5100 = vmatprep.subr.bf16.mxu0 0
    %5101 = vmatpush1.bf16.msra.mxu0 0
    %5102 = vmatprep.subr.bf16.mxu0 0
    %5103 = vmatpush1.bf16.msra.mxu0 0
    %5104 = vmatprep.subr.bf16.mxu0 0
    %5105 = vmatpush1.bf16.msra.mxu0 0
    %5106 = vmatprep.subr.bf16.mxu0 0
    %5107 = vmatpush1.bf16.msra.mxu0 0
    %5108 = vmatprep.subr.bf16.mxu0 0
    %5109 = vmatpush1.bf16.msra.mxu0 0
    %5110 = vmatprep.subr.bf16.mxu0 0
    %5111 = vmatpush1.bf16.msra.mxu0 0
    %5112 = vmatprep.subr.bf16.mxu0 0
    %5113 = vmatpush1.bf16.msra.mxu0 0
    %5114 = vmatprep.subr.bf16.mxu0 0
    %5115 = vmatpush1.bf16.msra.mxu0 0
    %5116 = vmatprep.subr.bf16.mxu0 0
    %5117 = vmatpush1.bf16.msra.mxu0 0
    %5118 = vmatprep.subr.bf16.mxu0 0
    %5119 = vmatpush1.bf16.msra.mxu0 0
    %5120 = vmatprep.subr.bf16.mxu0 0
    %5121 = vmatpush1.bf16.msra.mxu0 0
    %5122 = vmatprep.mubr.bf16.mxu0 0
    %5123 = vmatmul.mubr.bf16.gmra.mrb[0].mxu0 %v4643
    %v5124 = vpop.f32.mrb[0].mxu0
    %v5125 = vadd.f32 %v4528, %v5124
    %v5126 = vpop.f32.mrb[0].mxu0
    %v5127 = vadd.f32 %v4532, %v5126
    %v5128 = vpop.f32.mrb[0].mxu0
    %v5129 = vpop.f32.mrb[0].mxu0
    %5130 = vdwg.mxu0
    %5131 = vmatprep.subr.bf16.mxu0 %v4710
    %5132 = vmatpush1.bf16.msra.mxu0 %v4707
    %5133 = vmatprep.subr.bf16.mxu0 0
    %5134 = vmatpush1.bf16.msra.mxu0 0
    %5135 = vmatprep.subr.bf16.mxu0 0
    %5136 = vmatpush1.bf16.msra.mxu0 0
    %5137 = vmatprep.subr.bf16.mxu0 0
    %5138 = vmatpush1.bf16.msra.mxu0 0
    %5139 = vmatprep.subr.bf16.mxu0 0
    %5140 = vmatpush1.bf16.msra.mxu0 0
    %5141 = vmatprep.subr.bf16.mxu0 0
    %5142 = vmatpush1.bf16.msra.mxu0 0
    %5143 = vmatprep.subr.bf16.mxu0 0
    %5144 = vmatpush1.bf16.msra.mxu0 0
    %5145 = vmatprep.subr.bf16.mxu0 0
    %5146 = vmatpush1.bf16.msra.mxu0 0
    %5147 = vmatprep.subr.bf16.mxu0 0
    %5148 = vmatpush1.bf16.msra.mxu0 0
    %5149 = vmatprep.subr.bf16.mxu0 0
    %5150 = vmatpush1.bf16.msra.mxu0 0
    %5151 = vmatprep.subr.bf16.mxu0 0
    %5152 = vmatpush1.bf16.msra.mxu0 0
    %5153 = vmatprep.subr.bf16.mxu0 0
    %5154 = vmatpush1.bf16.msra.mxu0 0
    %5155 = vmatprep.subr.bf16.mxu0 0
    %5156 = vmatpush1.bf16.msra.mxu0 0
    %5157 = vmatprep.subr.bf16.mxu0 0
    %5158 = vmatpush1.bf16.msra.mxu0 0
    %5159 = vmatprep.subr.bf16.mxu0 0
    %5160 = vmatpush1.bf16.msra.mxu0 0
    %5161 = vmatprep.subr.bf16.mxu0 0
    %5162 = vmatpush1.bf16.msra.mxu0 0
    %5163 = vmatprep.mubr.bf16.mxu0 0
    %5164 = vmatmul.mubr.bf16.gmra.mrb[0].mxu0 %v4643
    %v5165 = vpop.f32.mrb[0].mxu0
    %v5166 = vadd.f32 %v4536, %v5165
    %v5167 = vpop.f32.mrb[0].mxu0
    %v5168 = vadd.f32 %v4540, %v5167
    %v5169 = vpop.f32.mrb[0].mxu0
    %v5170 = vpop.f32.mrb[0].mxu0
    %5171 = vdwg.mxu0
    %5172 = vmatprep.subr.bf16.mxu0 %v4716
    %5173 = vmatpush1.bf16.msra.mxu0 %v4713
    %5174 = vmatprep.subr.bf16.mxu0 0
    %5175 = vmatpush1.bf16.msra.mxu0 0
    %5176 = vmatprep.subr.bf16.mxu0 0
    %5177 = vmatpush1.bf16.msra.mxu0 0
    %5178 = vmatprep.subr.bf16.mxu0 0
    %5179 = vmatpush1.bf16.msra.mxu0 0
    %5180 = vmatprep.subr.bf16.mxu0 0
    %5181 = vmatpush1.bf16.msra.mxu0 0
    %5182 = vmatprep.subr.bf16.mxu0 0
    %5183 = vmatpush1.bf16.msra.mxu0 0
    %5184 = vmatprep.subr.bf16.mxu0 0
    %5185 = vmatpush1.bf16.msra.mxu0 0
    %5186 = vmatprep.subr.bf16.mxu0 0
    %5187 = vmatpush1.bf16.msra.mxu0 0
    %5188 = vmatprep.subr.bf16.mxu0 0
    %5189 = vmatpush1.bf16.msra.mxu0 0
    %5190 = vmatprep.subr.bf16.mxu0 0
    %5191 = vmatpush1.bf16.msra.mxu0 0
    %5192 = vmatprep.subr.bf16.mxu0 0
    %5193 = vmatpush1.bf16.msra.mxu0 0
    %5194 = vmatprep.subr.bf16.mxu0 0
    %5195 = vmatpush1.bf16.msra.mxu0 0
    %5196 = vmatprep.subr.bf16.mxu0 0
    %5197 = vmatpush1.bf16.msra.mxu0 0
    %5198 = vmatprep.subr.bf16.mxu0 0
    %5199 = vmatpush1.bf16.msra.mxu0 0
    %5200 = vmatprep.subr.bf16.mxu0 0
    %5201 = vmatpush1.bf16.msra.mxu0 0
    %5202 = vmatprep.subr.bf16.mxu0 0
    %5203 = vmatpush1.bf16.msra.mxu0 0
    %5204 = vmatprep.mubr.bf16.mxu0 0
    %5205 = vmatmul.mubr.bf16.gmra.mrb[0].mxu0 %v4643
    %v5206 = vpop.f32.mrb[0].mxu0
    %v5207 = vadd.f32 %v4544, %v5206
    %v5208 = vpop.f32.mrb[0].mxu0
    %v5209 = vadd.f32 %v4548, %v5208
    %v5210 = vpop.f32.mrb[0].mxu0
    %v5211 = vpop.f32.mrb[0].mxu0
    %5212 = vdwg.mxu0
    %5213 = vmatprep.subr.bf16.mxu0 0
    %5214 = vmatpush1.bf16.msra.mxu0 %v4719
    %5215 = vmatprep.subr.bf16.mxu0 0
    %5216 = vmatpush1.bf16.msra.mxu0 0
    %5217 = vmatprep.subr.bf16.mxu0 0
    %5218 = vmatpush1.bf16.msra.mxu0 0
    %5219 = vmatprep.subr.bf16.mxu0 0
    %5220 = vmatpush1.bf16.msra.mxu0 0
    %5221 = vmatprep.subr.bf16.mxu0 0
    %5222 = vmatpush1.bf16.msra.mxu0 0
    %5223 = vmatprep.subr.bf16.mxu0 0
    %5224 = vmatpush1.bf16.msra.mxu0 0
    %5225 = vmatprep.subr.bf16.mxu0 0
    %5226 = vmatpush1.bf16.msra.mxu0 0
    %5227 = vmatprep.subr.bf16.mxu0 0
    %5228 = vmatpush1.bf16.msra.mxu0 0
    %5229 = vmatprep.subr.bf16.mxu0 0
    %5230 = vmatpush1.bf16.msra.mxu0 0
    %5231 = vmatprep.subr.bf16.mxu0 0
    %5232 = vmatpush1.bf16.msra.mxu0 0
    %5233 = vmatprep.subr.bf16.mxu0 0
    %5234 = vmatpush1.bf16.msra.mxu0 0
    %5235 = vmatprep.subr.bf16.mxu0 0
    %5236 = vmatpush1.bf16.msra.mxu0 0
    %5237 = vmatprep.subr.bf16.mxu0 0
    %5238 = vmatpush1.bf16.msra.mxu0 0
    %5239 = vmatprep.subr.bf16.mxu0 0
    %5240 = vmatpush1.bf16.msra.mxu0 0
    %5241 = vmatprep.subr.bf16.mxu0 0
    %5242 = vmatpush1.bf16.msra.mxu0 0
    %5243 = vmatprep.subr.bf16.mxu0 0
    %5244 = vmatpush1.bf16.msra.mxu0 0
    %5245 = vmatprep.mubr.bf16.mxu0 0
    %5246 = vmatmul.mubr.bf16.gmra.mrb[0].mxu0 %v4643
    %v5247 = vpop.f32.mrb[0].mxu0
    %v5248 = vadd.f32 %v4552, %v5247
    %v5249 = vpop.f32.mrb[0].mxu0
    %v5250 = vpop.f32.mrb[0].mxu0
    %v5251 = vpop.f32.mrb[0].mxu0
    %5252 = vdwg.mxu0
    %vm5253 = vcmp.ge.f32.partialorder %v4756, 0.0
    %vm5254 = vcmp.ge.f32.partialorder %v4758, 0.0
    %vm5255 = vcmp.ge.f32.partialorder %v4797, 0.0
    %vm5256 = vcmp.ge.f32.partialorder %v4799, 0.0
    %vm5257 = vcmp.ge.f32.partialorder %v4838, 0.0
    %vm5258 = vcmp.ge.f32.partialorder %v4840, 0.0
    %vm5259 = vcmp.ge.f32.partialorder %v4879, 0.0
    %vm5260 = vcmp.ge.f32.partialorder %v4881, 0.0
    %vm5261 = vcmp.ge.f32.partialorder %v4920, 0.0
    %vm5262 = vcmp.ge.f32.partialorder %v4922, 0.0
    %vm5263 = vcmp.ge.f32.partialorder %v4961, 0.0
    %vm5264 = vcmp.ge.f32.partialorder %v4963, 0.0
    %vm5265 = vcmp.ge.f32.partialorder %v5002, 0.0
    %vm5266 = vcmp.ge.f32.partialorder %v5004, 0.0
    %vm5267 = vcmp.ge.f32.partialorder %v5043, 0.0
    %vm5268 = vcmp.ge.f32.partialorder %v5045, 0.0
    %vm5269 = vcmp.ge.f32.partialorder %v5084, 0.0
    %vm5270 = vcmp.ge.f32.partialorder %v5086, 0.0
    %vm5271 = vcmp.ge.f32.partialorder %v5125, 0.0
    %vm5272 = vcmp.ge.f32.partialorder %v5127, 0.0
    %vm5273 = vcmp.ge.f32.partialorder %v5166, 0.0
    %vm5274 = vcmp.ge.f32.partialorder %v5168, 0.0
    %vm5275 = vcmp.ge.f32.partialorder %v5207, 0.0
    %vm5276 = vcmp.ge.f32.partialorder %v5209, 0.0
    %vm5277 = vcmp.ge.f32.partialorder %v5248, 0.0
    %v5278 = vmul.f32 %v4756, 0.2
    %v5279 = vmul.f32 %v4758, 0.2
    %v5280 = vmul.f32 %v4797, 0.2
    %v5281 = vmul.f32 %v4799, 0.2
    %v5282 = vmul.f32 %v4838, 0.2
    %v5283 = vmul.f32 %v4840, 0.2
    %v5284 = vmul.f32 %v4879, 0.2
    %v5285 = vmul.f32 %v4881, 0.2
    %v5286 = vmul.f32 %v4920, 0.2
    %v5287 = vmul.f32 %v4922, 0.2
    %v5288 = vmul.f32 %v4961, 0.2
    %v5289 = vmul.f32 %v4963, 0.2
    %v5290 = vmul.f32 %v5002, 0.2
    %v5291 = vmul.f32 %v5004, 0.2
    %v5292 = vmul.f32 %v5043, 0.2
    %v5293 = vmul.f32 %v5045, 0.2
    %v5294 = vmul.f32 %v5084, 0.2
    %v5295 = vmul.f32 %v5086, 0.2
    %v5296 = vmul.f32 %v5125, 0.2
    %v5297 = vmul.f32 %v5127, 0.2
    %v5298 = vmul.f32 %v5166, 0.2
    %v5299 = vmul.f32 %v5168, 0.2
    %v5300 = vmul.f32 %v5207, 0.2
    %v5301 = vmul.f32 %v5209, 0.2
    %v5302 = vmul.f32 %v5248, 0.2
    %v5303 = vsel %vm5253, %v4756, %v5278
    %v5304 = vsel %vm5254, %v4758, %v5279
    %v5305 = vsel %vm5255, %v4797, %v5280
    %v5306 = vsel %vm5256, %v4799, %v5281
    %v5307 = vsel %vm5257, %v4838, %v5282
    %v5308 = vsel %vm5258, %v4840, %v5283
    %v5309 = vsel %vm5259, %v4879, %v5284
    %v5310 = vsel %vm5260, %v4881, %v5285
    %v5311 = vsel %vm5261, %v4920, %v5286
    %v5312 = vsel %vm5262, %v4922, %v5287
    %v5313 = vsel %vm5263, %v4961, %v5288
    %v5314 = vsel %vm5264, %v4963, %v5289
    %v5315 = vsel %vm5265, %v5002, %v5290
    %v5316 = vsel %vm5266, %v5004, %v5291
    %v5317 = vsel %vm5267, %v5043, %v5292
    %v5318 = vsel %vm5268, %v5045, %v5293
    %v5319 = vsel %vm5269, %v5084, %v5294
    %v5320 = vsel %vm5270, %v5086, %v5295
    %v5321 = vsel %vm5271, %v5125, %v5296
    %v5322 = vsel %vm5272, %v5127, %v5297
    %v5323 = vsel %vm5273, %v5166, %v5298
    %v5324 = vsel %vm5274, %v5168, %v5299
    %v5325 = vsel %vm5275, %v5207, %v5300
    %v5326 = vsel %vm5276, %v5209, %v5301
    %v5327 = vsel %vm5277, %v5248, %v5302
    %v5328 = vpack.c.bf16 %v5303, %v5303
    %v5329 = vpack.c.bf16 %v5304, %v5304
    %v5330 = vpack.c.bf16 %v5305, %v5305
    %v5331 = vpack.c.bf16 %v5306, %v5306
    %v5332 = vpack.c.bf16 %v5307, %v5307
    %v5333 = vpack.c.bf16 %v5308, %v5308
    %v5334 = vpack.c.bf16 %v5309, %v5309
    %v5335 = vpack.c.bf16 %v5310, %v5310
    %v5336 = vpack.c.bf16 %v5311, %v5311
    %v5337 = vpack.c.bf16 %v5312, %v5312
    %v5338 = vpack.c.bf16 %v5313, %v5313
    %v5339 = vpack.c.bf16 %v5314, %v5314
    %v5340 = vpack.c.bf16 %v5315, %v5315
    %v5341 = vpack.c.bf16 %v5316, %v5316
    %v5342 = vpack.c.bf16 %v5317, %v5317
    %v5343 = vpack.c.bf16 %v5318, %v5318
    %v5344 = vpack.c.bf16 %v5319, %v5319
    %v5345 = vpack.c.bf16 %v5320, %v5320
    %v5346 = vpack.c.bf16 %v5321, %v5321
    %v5347 = vpack.c.bf16 %v5322, %v5322
    %v5348 = vpack.c.bf16 %v5323, %v5323
    %v5349 = vpack.c.bf16 %v5324, %v5324
    %v5350 = vpack.c.bf16 %v5325, %v5325
    %v5351 = vpack.c.bf16 %v5326, %v5326
    %v5352 = vpack.c.bf16 %v5327, %v5327
    %v5378 = vcombine.low %v5328, %v5329
    %v5379 = vcombine.low %v5330, %v5331
    %v5380 = vcombine.low %v5332, %v5333
    %v5381 = vcombine.low %v5334, %v5335
    %v5383 = vunpack.c.l.s4 1966171168
    %v5384 = vunpack.c.0.s8 %v5383
    %v5385 = vlaneseq
    %v5386 = vshrl.u32 %v5385, 7
    %v5387 = vsub.s32 %v5384, %v5386
    %v5388 = vrot.slane %v5378, %v5387
    %v5390 = vunpack.c.l.s4 1966171168
    %v5391 = vunpack.c.0.s8 %v5390
    %v5392 = vlaneseq
    %v5393 = vshrl.u32 %v5392, 7
    %v5394 = vsub.s32 %v5391, %v5393
    %v5395 = vrot.slane %v5379, %v5394
    %v5397 = vunpack.c.l.s4 1966171168
    %v5398 = vunpack.c.0.s8 %v5397
    %v5399 = vlaneseq
    %v5400 = vshrl.u32 %v5399, 7
    %v5401 = vsub.s32 %v5398, %v5400
    %v5402 = vrot.slane %v5380, %v5401
    %v5404 = vunpack.c.l.s4 1966171168
    %v5405 = vunpack.c.0.s8 %v5404
    %v5406 = vlaneseq
    %v5407 = vshrl.u32 %v5406, 7
    %v5408 = vsub.s32 %v5405, %v5407
    %v5409 = vrot.slane %v5381, %v5408
    %v5410 = vcombine.low %v5388, %v5395
    %v5411 = vcombine.low %v5402, %v5409
    %v5413 = vunpack.c.l.s4 1966171168
    %v5414 = vunpack.c.0.s8 %v5413
    %v5415 = vlaneseq
    %v5416 = vshrl.u32 %v5415, 7
    %v5417 = vsub.s32 %v5414, %v5416
    %v5418 = vrot.slane %v5410, %v5417
    %v5420 = vunpack.c.l.s4 1966171168
    %v5421 = vunpack.c.0.s8 %v5420
    %v5422 = vlaneseq
    %v5423 = vshrl.u32 %v5422, 7
    %v5424 = vsub.s32 %v5421, %v5423
    %v5425 = vrot.slane %v5411, %v5424
    %v5426 = vcombine.low %v5418, %v5425
    %v5427 = vcombine.low %v5336, %v5337
    %v5428 = vcombine.low %v5338, %v5339
    %v5429 = vcombine.low %v5340, %v5341
    %v5430 = vcombine.low %v5342, %v5343
    %v5432 = vunpack.c.l.s4 1966171168
    %v5433 = vunpack.c.0.s8 %v5432
    %v5434 = vlaneseq
    %v5435 = vshrl.u32 %v5434, 7
    %v5436 = vsub.s32 %v5433, %v5435
    %v5437 = vrot.slane %v5427, %v5436
    %v5439 = vunpack.c.l.s4 1966171168
    %v5440 = vunpack.c.0.s8 %v5439
    %v5441 = vlaneseq
    %v5442 = vshrl.u32 %v5441, 7
    %v5443 = vsub.s32 %v5440, %v5442
    %v5444 = vrot.slane %v5428, %v5443
    %v5446 = vunpack.c.l.s4 1966171168
    %v5447 = vunpack.c.0.s8 %v5446
    %v5448 = vlaneseq
    %v5449 = vshrl.u32 %v5448, 7
    %v5450 = vsub.s32 %v5447, %v5449
    %v5451 = vrot.slane %v5429, %v5450
    %v5453 = vunpack.c.l.s4 1966171168
    %v5454 = vunpack.c.0.s8 %v5453
    %v5455 = vlaneseq
    %v5456 = vshrl.u32 %v5455, 7
    %v5457 = vsub.s32 %v5454, %v5456
    %v5458 = vrot.slane %v5430, %v5457
    %v5459 = vcombine.low %v5437, %v5444
    %v5460 = vcombine.low %v5451, %v5458
    %v5462 = vunpack.c.l.s4 1966171168
    %v5463 = vunpack.c.0.s8 %v5462
    %v5464 = vlaneseq
    %v5465 = vshrl.u32 %v5464, 7
    %v5466 = vsub.s32 %v5463, %v5465
    %v5467 = vrot.slane %v5459, %v5466
    %v5469 = vunpack.c.l.s4 1966171168
    %v5470 = vunpack.c.0.s8 %v5469
    %v5471 = vlaneseq
    %v5472 = vshrl.u32 %v5471, 7
    %v5473 = vsub.s32 %v5470, %v5472
    %v5474 = vrot.slane %v5460, %v5473
    %v5475 = vcombine.low %v5467, %v5474
    %v5476 = vcombine.low %v5344, %v5345
    %v5477 = vcombine.low %v5346, %v5347
    %v5478 = vcombine.low %v5348, %v5349
    %v5479 = vcombine.low %v5350, %v5351
    %v5481 = vunpack.c.l.s4 1966171168
    %v5482 = vunpack.c.0.s8 %v5481
    %v5483 = vlaneseq
    %v5484 = vshrl.u32 %v5483, 7
    %v5485 = vsub.s32 %v5482, %v5484
    %v5486 = vrot.slane %v5476, %v5485
    %v5488 = vunpack.c.l.s4 1966171168
    %v5489 = vunpack.c.0.s8 %v5488
    %v5490 = vlaneseq
    %v5491 = vshrl.u32 %v5490, 7
    %v5492 = vsub.s32 %v5489, %v5491
    %v5493 = vrot.slane %v5477, %v5492
    %v5495 = vunpack.c.l.s4 1966171168
    %v5496 = vunpack.c.0.s8 %v5495
    %v5497 = vlaneseq
    %v5498 = vshrl.u32 %v5497, 7
    %v5499 = vsub.s32 %v5496, %v5498
    %v5500 = vrot.slane %v5478, %v5499
    %v5502 = vunpack.c.l.s4 1966171168
    %v5503 = vunpack.c.0.s8 %v5502
    %v5504 = vlaneseq
    %v5505 = vshrl.u32 %v5504, 7
    %v5506 = vsub.s32 %v5503, %v5505
    %v5507 = vrot.slane %v5479, %v5506
    %v5508 = vcombine.low %v5486, %v5493
    %v5509 = vcombine.low %v5500, %v5507
    %v5511 = vunpack.c.l.s4 1966171168
    %v5512 = vunpack.c.0.s8 %v5511
    %v5513 = vlaneseq
    %v5514 = vshrl.u32 %v5513, 7
    %v5515 = vsub.s32 %v5512, %v5514
    %v5516 = vrot.slane %v5508, %v5515
    %v5518 = vunpack.c.l.s4 1966171168
    %v5519 = vunpack.c.0.s8 %v5518
    %v5520 = vlaneseq
    %v5521 = vshrl.u32 %v5520, 7
    %v5522 = vsub.s32 %v5519, %v5521
    %v5523 = vrot.slane %v5509, %v5522
    %v5524 = vcombine.low %v5516, %v5523
    %v5526 = vunpack.c.l.s4 1966171168
    %v5527 = vunpack.c.0.s8 %v5526
    %v5528 = vlaneseq
    %v5529 = vshrl.u32 %v5528, 7
    %v5530 = vsub.s32 %v5527, %v5529
    %v5531 = vrot.slane %v5352, %v5530
    %v5533 = vunpack.c.l.s4 1966171168
    %v5534 = vunpack.c.0.s8 %v5533
    %v5535 = vlaneseq
    %v5536 = vshrl.u32 %v5535, 7
    %v5537 = vsub.s32 %v5534, %v5536
    %v5538 = vrot.slane %v5531, %v5537
    %5543 = vst [vmem:[%s10] sm:$0xff] %v5426
    %5544 = vst [vmem:[%s10 + $0x8] sm:$0xff] %v5475
    %5545 = vst [vmem:[%s10 + $0x10] sm:$0xff] %v5524
    %vm5546 = vcmask 516096
    %5547 = vst.msk [vmem:[%s10 + $0x18] sm:$0x1] %vm5546, %v5538
    // Predicated region
    $region34: #{vae_forward.7} parent=1 // pred_check
      _
    $region35: #{vae_forward.7} parent=1 // pred_check_branch
      %5549 = sbr.rel (0) target = $region37
    $region36: #{vae_forward.7} parent=1 // pred_region
      %s5551 = ssub.s32 32, 32
      %5552 = vsyncadd [#allocation3], %s5551
      %s5554 = sshll.u32 [#allocation2], 4
      %s5555 = int_to_ptr.vmem [resolvable:$true] %s5554
      %5557 = dma.vmem_to_hbm [thread:$0]  %s5555, 32, %s8, [#allocation3]
    $region37: #{vae_forward.7} parent=1 // pred_fallthru
      _
    // Predicated region
    $region38: #{vae_forward.7} parent=1 // pred_check
      _
    $region39: #{vae_forward.7} parent=1 // pred_check_branch
      %5559 = sbr.rel (0) target = $region41
    $region40: #{vae_forward.7} parent=1 // pred_region
      %s5561 = ssub.s32 32, 32
      %5562 = vsyncadd [#allocation5], %s5561
      %s5564 = sshll.u32 [#allocation4], 4
      %s5565 = int_to_ptr.vmem [resolvable:$true] %s5564
      %5567 = dma.vmem_to_hbm [thread:$0]  %s5565, 32, %s9, [#allocation5]
    $region41: #{vae_forward.7} parent=1 // pred_fallthru
      _
    // Predicated region
    $region42: #{vae_forward.7} parent=1 // pred_check
      _
    $region43: #{vae_forward.7} parent=1 // pred_check_branch
      %5569 = sbr.rel (0) target = $region45
    $region44: #{vae_forward.7} parent=1 // pred_region
      _
    $region45: #{vae_forward.7} parent=1 // pred_fallthru
      _
    // Predicated region
    $region46: #{vae_forward.7} parent=1 // pred_check
      _
    $region47: #{vae_forward.7} parent=1 // pred_check_branch
      %5571 = sbr.rel (0) target = $region49
    $region48: #{vae_forward.7} parent=1 // pred_region
      %5572 = dma.done [#allocation3], 32
    $region49: #{vae_forward.7} parent=1 // pred_fallthru
      _
    // Predicated region
    $region50: #{vae_forward.7} parent=1 // pred_check
      _
    $region51: #{vae_forward.7} parent=1 // pred_check_branch
      %5574 = sbr.rel (0) target = $region53
    $region52: #{vae_forward.7} parent=1 // pred_region
      %5575 = dma.done [#allocation5], 32
    $region53: #{vae_forward.7} parent=1 // pred_fallthru
      _
    // Predicated region
    $region54: #{vae_forward.7} parent=1 // pred_check
      _
    $region55: #{vae_forward.7} parent=1 // pred_check_branch
      %5577 = sbr.rel (0) target = $region57
    $region56: #{vae_forward.7} parent=1 // pred_region
      _
    $region57: #{vae_forward.7} parent=1 // pred_fallthru
      _
    %5578 = vsyncpa [#allocation3], 1
    %5579 = vsyncpa [#allocation5], 1

// kernel: vae_forward.9
$region0: #{vae_forward.9}
  #allocation0 [shape = 'u32[]', space=smem, size = 0x4, offset = 0x4, fixed_abs, tag = 'smem constant byte address 0x4 - core index']
  #allocation1 [shape = 'u32[144,128]{1,0:T(1,128)}', space=vmem, size = 0x12000, scoped, tag = 'internal scratch']
  %s0 = inlined_call_operand.vmem [shape: bf16[400,288], index: 0, kind: input, shape index: {}]
  %s1 = inlined_call_operand.vmem [shape: bf16[288,4], index: 1, kind: input, shape index: {}]
  %s2 = inlined_call_operand.vmem [shape: f32[1,4], index: 2, kind: input, shape index: {}]
  %s3 = inlined_call_operand.vmem [shape: f32[400,4], index: 3, kind: output, shape index: {}]
  %s4 = sld [smem:[#allocation0]]
  $region22: #{vae_forward.9} parent=0
    _
  %s6 = ssub.s32 1, %s4
  %s7 = scalar_select 0, %s6, %s4
  // Predicated region
  $region2: #{vae_forward.9} parent=0 // pred_check
    _
  $region3: #{vae_forward.9} parent=0 // pred_check_branch
    %9 = sbr.rel (0) target = $region5
  $region4: #{vae_forward.9} parent=0 // pred_region
    _
  $region5: #{vae_forward.9} parent=0 // pred_fallthru
    _
  // Predicated region
  $region6: #{vae_forward.9} parent=0 // pred_check
    _
  $region7: #{vae_forward.9} parent=0 // pred_check_branch
    %11 = sbr.rel (0) target = $region9
  $region8: #{vae_forward.9} parent=0 // pred_region
    _
  $region9: #{vae_forward.9} parent=0 // pred_fallthru
    _
  // Predicated region
  $region10: #{vae_forward.9} parent=0 // pred_check
    _
  $region11: #{vae_forward.9} parent=0 // pred_check_branch
    %13 = sbr.rel (0) target = $region13
  $region12: #{vae_forward.9} parent=0 // pred_region
    _
  $region13: #{vae_forward.9} parent=0 // pred_fallthru
    _
  %v15 = vld [vmem:[%s0] sm:$0xff]
  %v16 = vld [vmem:[%s0 + $0x8] sm:$0xf]
  %v17 = vld [vmem:[%s0 + $0xc] sm:$0xff]
  %v18 = vld [vmem:[%s0 + $0x14] sm:$0xf]
  %v19 = vld [vmem:[%s0 + $0x18] sm:$0xff]
  %v20 = vld [vmem:[%s0 + $0x20] sm:$0xf]
  %v21 = vld [vmem:[%s0 + $0x24] sm:$0xff]
  %v22 = vld [vmem:[%s0 + $0x2c] sm:$0xf]
  %v23 = vld [vmem:[%s0 + $0x30] sm:$0xff]
  %v24 = vld [vmem:[%s0 + $0x38] sm:$0xf]
  %v25 = vld [vmem:[%s0 + $0x3c] sm:$0xff]
  %v26 = vld [vmem:[%s0 + $0x44] sm:$0xf]
  %v27 = vld [vmem:[%s0 + $0x48] sm:$0xff]
  %v28 = vld [vmem:[%s0 + $0x50] sm:$0xf]
  %v29 = vld [vmem:[%s0 + $0x54] sm:$0xff]
  %v30 = vld [vmem:[%s0 + $0x5c] sm:$0xf]
  %v31 = vld [vmem:[%s0 + $0x60] sm:$0xff]
  %v32 = vld [vmem:[%s0 + $0x68] sm:$0xf]
  %v33 = vld [vmem:[%s0 + $0x6c] sm:$0xff]
  %v34 = vld [vmem:[%s0 + $0x74] sm:$0xf]
  %v35 = vld [vmem:[%s0 + $0x78] sm:$0xff]
  %v36 = vld [vmem:[%s0 + $0x80] sm:$0xf]
  %v37 = vld [vmem:[%s0 + $0x84] sm:$0xff]
  %v38 = vld [vmem:[%s0 + $0x8c] sm:$0xf]
  %v39 = vld [vmem:[%s0 + $0x90] sm:$0xff]
  %v40 = vld [vmem:[%s0 + $0x98] sm:$0xf]
  %v41 = vld [vmem:[%s0 + $0x9c] sm:$0xff]
  %v42 = vld [vmem:[%s0 + $0xa4] sm:$0xf]
  %v43 = vld [vmem:[%s0 + $0xa8] sm:$0xff]
  %v44 = vld [vmem:[%s0 + $0xb0] sm:$0xf]
  %v45 = vld [vmem:[%s0 + $0xb4] sm:$0xff]
  %v46 = vld [vmem:[%s0 + $0xbc] sm:$0xf]
  %v47 = vld [vmem:[%s0 + $0xc0] sm:$0xff]
  %v48 = vld [vmem:[%s0 + $0xc8] sm:$0xf]
  %v49 = vld [vmem:[%s0 + $0xcc] sm:$0xff]
  %v50 = vld [vmem:[%s0 + $0xd4] sm:$0xf]
  %v51 = vld [vmem:[%s0 + $0xd8] sm:$0xff]
  %v52 = vld [vmem:[%s0 + $0xe0] sm:$0xf]
  %v53 = vld [vmem:[%s0 + $0xe4] sm:$0xff]
  %v54 = vld [vmem:[%s0 + $0xec] sm:$0xf]
  %v55 = vld [vmem:[%s0 + $0xf0] sm:$0xff]
  %v56 = vld [vmem:[%s0 + $0xf8] sm:$0xf]
  %v57 = vld [vmem:[%s0 + $0xfc] sm:$0xff]
  %v58 = vld [vmem:[%s0 + $0x104] sm:$0xf]
  %v59 = vld [vmem:[%s0 + $0x108] sm:$0xff]
  %v60 = vld [vmem:[%s0 + $0x110] sm:$0xf]
  %v61 = vld [vmem:[%s0 + $0x114] sm:$0xff]
  %v62 = vld [vmem:[%s0 + $0x11c] sm:$0xf]
  %v63 = vld [vmem:[%s0 + $0x120] sm:$0xff]
  %v64 = vld [vmem:[%s0 + $0x128] sm:$0xf]
  %v65 = vld [vmem:[%s0 + $0x12c] sm:$0xff]
  %v66 = vld [vmem:[%s0 + $0x134] sm:$0xf]
  %v67 = vld [vmem:[%s0 + $0x138] sm:$0xff]
  %v68 = vld [vmem:[%s0 + $0x140] sm:$0xf]
  %v69 = vld [vmem:[%s0 + $0x144] sm:$0xff]
  %v70 = vld [vmem:[%s0 + $0x14c] sm:$0xf]
  %v71 = vld [vmem:[%s0 + $0x150] sm:$0xff]
  %v72 = vld [vmem:[%s0 + $0x158] sm:$0xf]
  %v73 = vld [vmem:[%s0 + $0x15c] sm:$0xff]
  %v74 = vld [vmem:[%s0 + $0x164] sm:$0xf]
  %v75 = vld [vmem:[%s0 + $0x168] sm:$0xff]
  %v76 = vld [vmem:[%s0 + $0x170] sm:$0xf]
  %v77 = vld [vmem:[%s0 + $0x174] sm:$0xff]
  %v78 = vld [vmem:[%s0 + $0x17c] sm:$0xf]
  %v79 = vld [vmem:[%s0 + $0x180] sm:$0xff]
  %v80 = vld [vmem:[%s0 + $0x188] sm:$0xf]
  %v81 = vld [vmem:[%s0 + $0x18c] sm:$0xff]
  %v82 = vld [vmem:[%s0 + $0x194] sm:$0xf]
  %v83 = vld [vmem:[%s0 + $0x198] sm:$0xff]
  %v84 = vld [vmem:[%s0 + $0x1a0] sm:$0xf]
  %v85 = vld [vmem:[%s0 + $0x1a4] sm:$0xff]
  %v86 = vld [vmem:[%s0 + $0x1ac] sm:$0xf]
  %v87 = vld [vmem:[%s0 + $0x1b0] sm:$0xff]
  %v88 = vld [vmem:[%s0 + $0x1b8] sm:$0xf]
  %v89 = vld [vmem:[%s0 + $0x1bc] sm:$0xff]
  %v90 = vld [vmem:[%s0 + $0x1c4] sm:$0xf]
  %v91 = vld [vmem:[%s0 + $0x1c8] sm:$0xff]
  %v92 = vld [vmem:[%s0 + $0x1d0] sm:$0xf]
  %v93 = vld [vmem:[%s0 + $0x1d4] sm:$0xff]
  %v94 = vld [vmem:[%s0 + $0x1dc] sm:$0xf]
  %v95 = vld [vmem:[%s0 + $0x1e0] sm:$0xff]
  %v96 = vld [vmem:[%s0 + $0x1e8] sm:$0xf]
  %v97 = vld [vmem:[%s0 + $0x1ec] sm:$0xff]
  %v98 = vld [vmem:[%s0 + $0x1f4] sm:$0xf]
  %v99 = vld [vmem:[%s0 + $0x1f8] sm:$0xff]
  %v100 = vld [vmem:[%s0 + $0x200] sm:$0xf]
  %v101 = vld [vmem:[%s0 + $0x204] sm:$0xff]
  %v102 = vld [vmem:[%s0 + $0x20c] sm:$0xf]
  %v103 = vld [vmem:[%s0 + $0x210] sm:$0xff]
  %v104 = vld [vmem:[%s0 + $0x218] sm:$0xf]
  %v105 = vld [vmem:[%s0 + $0x21c] sm:$0xff]
  %v106 = vld [vmem:[%s0 + $0x224] sm:$0xf]
  %v107 = vld [vmem:[%s0 + $0x228] sm:$0xff]
  %v108 = vld [vmem:[%s0 + $0x230] sm:$0xf]
  %v109 = vld [vmem:[%s0 + $0x234] sm:$0xff]
  %v110 = vld [vmem:[%s0 + $0x23c] sm:$0xf]
  %v111 = vld [vmem:[%s0 + $0x240] sm:$0xff]
  %v112 = vld [vmem:[%s0 + $0x248] sm:$0xf]
  %v113 = vld [vmem:[%s0 + $0x24c] sm:$0xff]
  %v114 = vld [vmem:[%s0 + $0x254] sm:$0xf]
  %v115 = vld [vmem:[%s1] sm:$0xf]
  %v116 = vld [vmem:[%s1 + $0x4] sm:$0xf]
  %v117 = vld [vmem:[%s1 + $0x8] sm:$0xf]
  %v118 = vld [vmem:[%s1 + $0xc] sm:$0xf]
  %v119 = vld [vmem:[%s1 + $0x10] sm:$0xf]
  %v120 = vld [vmem:[%s1 + $0x14] sm:$0xf]
  %v121 = vld [vmem:[%s1 + $0x18] sm:$0xf]
  %v122 = vld [vmem:[%s1 + $0x1c] sm:$0xf]
  %v123 = vld [vmem:[%s1 + $0x20] sm:$0xf]
  %v124 = vld [vmem:[%s1 + $0x24] sm:$0xf]
  %v125 = vld [vmem:[%s1 + $0x28] sm:$0xf]
  %v126 = vld [vmem:[%s1 + $0x2c] sm:$0xf]
  %v127 = vld [vmem:[%s1 + $0x30] sm:$0xf]
  %v128 = vld [vmem:[%s1 + $0x34] sm:$0xf]
  %v129 = vld [vmem:[%s1 + $0x38] sm:$0xf]
  %v130 = vld [vmem:[%s1 + $0x3c] sm:$0xf]
  %v131 = vld [vmem:[%s1 + $0x40] sm:$0xf]
  %v132 = vld [vmem:[%s1 + $0x44] sm:$0xf]
  %v133 = vld [vmem:[%s1 + $0x48] sm:$0xf]
  %v134 = vld [vmem:[%s1 + $0x4c] sm:$0xf]
  %v135 = vld [vmem:[%s1 + $0x50] sm:$0xf]
  %v136 = vld [vmem:[%s1 + $0x54] sm:$0xf]
  %v137 = vld [vmem:[%s1 + $0x58] sm:$0xf]
  %v138 = vld [vmem:[%s1 + $0x5c] sm:$0xf]
  %v139 = vld [vmem:[%s1 + $0x60] sm:$0xf]
  %v140 = vld [vmem:[%s1 + $0x64] sm:$0xf]
  %v141 = vld [vmem:[%s1 + $0x68] sm:$0xf]
  %v142 = vld [vmem:[%s1 + $0x6c] sm:$0xf]
  %v143 = vld [vmem:[%s1 + $0x70] sm:$0xf]
  %v144 = vld [vmem:[%s1 + $0x74] sm:$0xf]
  %v145 = vld [vmem:[%s1 + $0x78] sm:$0xf]
  %v146 = vld [vmem:[%s1 + $0x7c] sm:$0xf]
  %v147 = vld [vmem:[%s1 + $0x80] sm:$0xf]
  %v148 = vld [vmem:[%s1 + $0x84] sm:$0xf]
  %v149 = vld [vmem:[%s1 + $0x88] sm:$0xf]
  %v150 = vld [vmem:[%s1 + $0x8c] sm:$0xf]
  %v151 = vld [vmem:[%s2] sm:$0x1]
  %v153 = vlaneseq
  %v154 = vshrl.u32 %v153, 7
  %v155 = vsub.s32 0, %v154
  %v156 = vrot.slane %v151, %v155
  %v258 = vunpack.c.l.b16 %v15
  %v259 = vunpack.c.h.b16 %v15
  %v260 = vunpack.c.l.b16 %v16
  %v261 = vunpack.c.l.b16 %v17
  %v262 = vunpack.c.h.b16 %v17
  %v263 = vunpack.c.l.b16 %v18
  %v264 = vunpack.c.l.b16 %v19
  %v265 = vunpack.c.h.b16 %v19
  %v266 = vunpack.c.l.b16 %v20
  %v267 = vunpack.c.l.b16 %v21
  %v268 = vunpack.c.h.b16 %v21
  %v269 = vunpack.c.l.b16 %v22
  %v270 = vunpack.c.l.b16 %v23
  %v271 = vunpack.c.h.b16 %v23
  %v272 = vunpack.c.l.b16 %v24
  %v273 = vunpack.c.l.b16 %v25
  %v274 = vunpack.c.h.b16 %v25
  %v275 = vunpack.c.l.b16 %v26
  %v276 = vunpack.c.l.b16 %v27
  %v277 = vunpack.c.h.b16 %v27
  %v278 = vunpack.c.l.b16 %v28
  %v279 = vunpack.c.l.b16 %v29
  %v280 = vunpack.c.h.b16 %v29
  %v281 = vunpack.c.l.b16 %v30
  %v282 = vunpack.c.l.b16 %v31
  %v283 = vunpack.c.h.b16 %v31
  %v284 = vunpack.c.l.b16 %v32
  %v285 = vunpack.c.l.b16 %v33
  %v286 = vunpack.c.h.b16 %v33
  %v287 = vunpack.c.l.b16 %v34
  %v288 = vunpack.c.l.b16 %v35
  %v289 = vunpack.c.h.b16 %v35
  %v290 = vunpack.c.l.b16 %v36
  %v291 = vunpack.c.l.b16 %v37
  %v292 = vunpack.c.h.b16 %v37
  %v293 = vunpack.c.l.b16 %v38
  %v294 = vunpack.c.l.b16 %v39
  %v295 = vunpack.c.h.b16 %v39
  %v296 = vunpack.c.l.b16 %v40
  %v297 = vunpack.c.l.b16 %v41
  %v298 = vunpack.c.h.b16 %v41
  %v299 = vunpack.c.l.b16 %v42
  %v300 = vunpack.c.l.b16 %v43
  %v301 = vunpack.c.h.b16 %v43
  %v302 = vunpack.c.l.b16 %v44
  %v303 = vunpack.c.l.b16 %v45
  %v304 = vunpack.c.h.b16 %v45
  %v305 = vunpack.c.l.b16 %v46
  %v306 = vunpack.c.l.b16 %v47
  %v307 = vunpack.c.h.b16 %v47
  %v308 = vunpack.c.l.b16 %v48
  %v309 = vunpack.c.l.b16 %v49
  %v310 = vunpack.c.h.b16 %v49
  %v311 = vunpack.c.l.b16 %v50
  %v312 = vunpack.c.l.b16 %v51
  %v313 = vunpack.c.h.b16 %v51
  %v314 = vunpack.c.l.b16 %v52
  %v315 = vunpack.c.l.b16 %v53
  %v316 = vunpack.c.h.b16 %v53
  %v317 = vunpack.c.l.b16 %v54
  %v318 = vunpack.c.l.b16 %v55
  %v319 = vunpack.c.h.b16 %v55
  %v320 = vunpack.c.l.b16 %v56
  %v321 = vunpack.c.l.b16 %v57
  %v322 = vunpack.c.h.b16 %v57
  %v323 = vunpack.c.l.b16 %v58
  %v324 = vunpack.c.l.b16 %v59
  %v325 = vunpack.c.h.b16 %v59
  %v326 = vunpack.c.l.b16 %v60
  %v327 = vunpack.c.l.b16 %v61
  %v328 = vunpack.c.h.b16 %v61
  %v329 = vunpack.c.l.b16 %v62
  %v330 = vunpack.c.l.b16 %v63
  %v331 = vunpack.c.h.b16 %v63
  %v332 = vunpack.c.l.b16 %v64
  %v333 = vunpack.c.l.b16 %v65
  %v334 = vunpack.c.h.b16 %v65
  %v335 = vunpack.c.l.b16 %v66
  %v336 = vunpack.c.l.b16 %v67
  %v337 = vunpack.c.h.b16 %v67
  %v338 = vunpack.c.l.b16 %v68
  %v339 = vunpack.c.l.b16 %v69
  %v340 = vunpack.c.h.b16 %v69
  %v341 = vunpack.c.l.b16 %v70
  %v342 = vunpack.c.l.b16 %v71
  %v343 = vunpack.c.h.b16 %v71
  %v344 = vunpack.c.l.b16 %v72
  %v345 = vunpack.c.l.b16 %v73
  %v346 = vunpack.c.h.b16 %v73
  %v347 = vunpack.c.l.b16 %v74
  %v348 = vunpack.c.l.b16 %v75
  %v349 = vunpack.c.h.b16 %v75
  %v350 = vunpack.c.l.b16 %v76
  %v351 = vunpack.c.l.b16 %v77
  %v352 = vunpack.c.h.b16 %v77
  %v353 = vunpack.c.l.b16 %v78
  %v354 = vunpack.c.l.b16 %v79
  %v355 = vunpack.c.h.b16 %v79
  %v356 = vunpack.c.l.b16 %v80
  %v357 = vunpack.c.l.b16 %v81
  %v358 = vunpack.c.h.b16 %v81
  %v359 = vunpack.c.l.b16 %v82
  %v360 = vunpack.c.l.b16 %v83
  %v361 = vunpack.c.h.b16 %v83
  %v362 = vunpack.c.l.b16 %v84
  %v363 = vunpack.c.l.b16 %v85
  %v364 = vunpack.c.h.b16 %v85
  %v365 = vunpack.c.l.b16 %v86
  %v366 = vunpack.c.l.b16 %v87
  %v367 = vunpack.c.h.b16 %v87
  %v368 = vunpack.c.l.b16 %v88
  %v369 = vunpack.c.l.b16 %v89
  %v370 = vunpack.c.h.b16 %v89
  %v371 = vunpack.c.l.b16 %v90
  %v372 = vunpack.c.l.b16 %v91
  %v373 = vunpack.c.h.b16 %v91
  %v374 = vunpack.c.l.b16 %v92
  %v375 = vunpack.c.l.b16 %v93
  %v376 = vunpack.c.h.b16 %v93
  %v377 = vunpack.c.l.b16 %v94
  %v378 = vunpack.c.l.b16 %v95
  %v379 = vunpack.c.h.b16 %v95
  %v380 = vunpack.c.l.b16 %v96
  %v381 = vunpack.c.l.b16 %v97
  %v382 = vunpack.c.h.b16 %v97
  %v383 = vunpack.c.l.b16 %v98
  %v384 = vunpack.c.l.b16 %v99
  %v385 = vunpack.c.h.b16 %v99
  %v386 = vunpack.c.l.b16 %v100
  %v387 = vunpack.c.l.b16 %v101
  %v388 = vunpack.c.h.b16 %v101
  %v389 = vunpack.c.l.b16 %v102
  %v390 = vunpack.c.l.b16 %v103
  %v391 = vunpack.c.h.b16 %v103
  %v392 = vunpack.c.l.b16 %v104
  %v393 = vunpack.c.l.b16 %v105
  %v394 = vunpack.c.h.b16 %v105
  %v395 = vunpack.c.l.b16 %v106
  %v396 = vunpack.c.l.b16 %v107
  %v397 = vunpack.c.h.b16 %v107
  %v398 = vunpack.c.l.b16 %v108
  %v399 = vunpack.c.l.b16 %v109
  %v400 = vunpack.c.h.b16 %v109
  %v401 = vunpack.c.l.b16 %v110
  %v402 = vunpack.c.l.b16 %v111
  %v403 = vunpack.c.h.b16 %v111
  %v404 = vunpack.c.l.b16 %v112
  %v405 = vunpack.c.l.b16 %v113
  %v406 = vunpack.c.h.b16 %v113
  %v407 = vunpack.c.l.b16 %v114
  %v408 = vpack.c.b16 %v261, %v258
  %v409 = vpack.c.b16 %v262, %v259
  %v410 = vpack.c.b16 %v263, %v260
  %v411 = vpack.c.b16 %v267, %v264
  %v412 = vpack.c.b16 %v268, %v265
  %v413 = vpack.c.b16 %v269, %v266
  %v414 = vpack.c.b16 %v273, %v270
  %v415 = vpack.c.b16 %v274, %v271
  %v416 = vpack.c.b16 %v275, %v272
  %v417 = vpack.c.b16 %v279, %v276
  %v418 = vpack.c.b16 %v280, %v277
  %v419 = vpack.c.b16 %v281, %v278
  %v420 = vpack.c.b16 %v285, %v282
  %v421 = vpack.c.b16 %v286, %v283
  %v422 = vpack.c.b16 %v287, %v284
  %v423 = vpack.c.b16 %v291, %v288
  %v424 = vpack.c.b16 %v292, %v289
  %v425 = vpack.c.b16 %v293, %v290
  %v426 = vpack.c.b16 %v297, %v294
  %v427 = vpack.c.b16 %v298, %v295
  %v428 = vpack.c.b16 %v299, %v296
  %v429 = vpack.c.b16 %v303, %v300
  %v430 = vpack.c.b16 %v304, %v301
  %v431 = vpack.c.b16 %v305, %v302
  %v432 = vpack.c.b16 %v309, %v306
  %v433 = vpack.c.b16 %v310, %v307
  %v434 = vpack.c.b16 %v311, %v308
  %v435 = vpack.c.b16 %v315, %v312
  %v436 = vpack.c.b16 %v316, %v313
  %v437 = vpack.c.b16 %v317, %v314
  %v438 = vpack.c.b16 %v321, %v318
  %v439 = vpack.c.b16 %v322, %v319
  %v440 = vpack.c.b16 %v323, %v320
  %v441 = vpack.c.b16 %v327, %v324
  %v442 = vpack.c.b16 %v328, %v325
  %v443 = vpack.c.b16 %v329, %v326
  %v444 = vpack.c.b16 %v333, %v330
  %v445 = vpack.c.b16 %v334, %v331
  %v446 = vpack.c.b16 %v335, %v332
  %v447 = vpack.c.b16 %v339, %v336
  %v448 = vpack.c.b16 %v340, %v337
  %v449 = vpack.c.b16 %v341, %v338
  %v450 = vpack.c.b16 %v345, %v342
  %v451 = vpack.c.b16 %v346, %v343
  %v452 = vpack.c.b16 %v347, %v344
  %v453 = vpack.c.b16 %v351, %v348
  %v454 = vpack.c.b16 %v352, %v349
  %v455 = vpack.c.b16 %v353, %v350
  %v456 = vpack.c.b16 %v357, %v354
  %v457 = vpack.c.b16 %v358, %v355
  %v458 = vpack.c.b16 %v359, %v356
  %v459 = vpack.c.b16 %v363, %v360
  %v460 = vpack.c.b16 %v364, %v361
  %v461 = vpack.c.b16 %v365, %v362
  %v462 = vpack.c.b16 %v369, %v366
  %v463 = vpack.c.b16 %v370, %v367
  %v464 = vpack.c.b16 %v371, %v368
  %v465 = vpack.c.b16 %v375, %v372
  %v466 = vpack.c.b16 %v376, %v373
  %v467 = vpack.c.b16 %v377, %v374
  %v468 = vpack.c.b16 %v381, %v378
  %v469 = vpack.c.b16 %v382, %v379
  %v470 = vpack.c.b16 %v383, %v380
  %v471 = vpack.c.b16 %v387, %v384
  %v472 = vpack.c.b16 %v388, %v385
  %v473 = vpack.c.b16 %v389, %v386
  %v474 = vpack.c.b16 %v393, %v390
  %v475 = vpack.c.b16 %v394, %v391
  %v476 = vpack.c.b16 %v395, %v392
  %v477 = vpack.c.b16 %v399, %v396
  %v478 = vpack.c.b16 %v400, %v397
  %v479 = vpack.c.b16 %v401, %v398
  %v480 = vpack.c.b16 %v405, %v402
  %v481 = vpack.c.b16 %v406, %v403
  %v482 = vpack.c.b16 %v407, %v404
  %v569 = vunpack.c.l.b16 %v115
  %v570 = vunpack.c.l.b16 %v116
  %v571 = vunpack.c.l.b16 %v117
  %v572 = vunpack.c.l.b16 %v118
  %v573 = vunpack.c.l.b16 %v119
  %v574 = vunpack.c.l.b16 %v120
  %v575 = vunpack.c.l.b16 %v121
  %v576 = vunpack.c.l.b16 %v122
  %v577 = vunpack.c.l.b16 %v123
  %v578 = vunpack.c.l.b16 %v124
  %v579 = vunpack.c.l.b16 %v125
  %v580 = vunpack.c.l.b16 %v126
  %v581 = vunpack.c.l.b16 %v127
  %v582 = vunpack.c.l.b16 %v128
  %v583 = vunpack.c.l.b16 %v129
  %v584 = vunpack.c.l.b16 %v130
  %v585 = vunpack.c.l.b16 %v131
  %v586 = vunpack.c.l.b16 %v132
  %v587 = vunpack.c.l.b16 %v133
  %v588 = vunpack.c.l.b16 %v134
  %v589 = vunpack.c.l.b16 %v135
  %v590 = vunpack.c.l.b16 %v136
  %v591 = vunpack.c.l.b16 %v137
  %v592 = vunpack.c.l.b16 %v138
  %v593 = vunpack.c.l.b16 %v139
  %v594 = vunpack.c.l.b16 %v140
  %v595 = vunpack.c.l.b16 %v141
  %v596 = vunpack.c.l.b16 %v142
  %v597 = vunpack.c.l.b16 %v143
  %v598 = vunpack.c.l.b16 %v144
  %v599 = vunpack.c.l.b16 %v145
  %v600 = vunpack.c.l.b16 %v146
  %v601 = vunpack.c.l.b16 %v147
  %v602 = vunpack.c.l.b16 %v148
  %v603 = vunpack.c.l.b16 %v149
  %v604 = vunpack.c.l.b16 %v150
  %v605 = vpack.c.b16 %v570, %v569
  %v606 = vpack.c.b16 %v572, %v571
  %v607 = vpack.c.b16 %v574, %v573
  %v608 = vpack.c.b16 %v576, %v575
  %v609 = vpack.c.b16 %v578, %v577
  %v610 = vpack.c.b16 %v580, %v579
  %v611 = vpack.c.b16 %v582, %v581
  %v612 = vpack.c.b16 %v584, %v583
  %v613 = vpack.c.b16 %v586, %v585
  %v614 = vpack.c.b16 %v588, %v587
  %v615 = vpack.c.b16 %v590, %v589
  %v616 = vpack.c.b16 %v592, %v591
  %v617 = vpack.c.b16 %v594, %v593
  %v618 = vpack.c.b16 %v596, %v595
  %v619 = vpack.c.b16 %v598, %v597
  %v620 = vpack.c.b16 %v600, %v599
  %v621 = vpack.c.b16 %v602, %v601
  %v622 = vpack.c.b16 %v604, %v603
  %vm641 = vcmask 261120
  %v643 = vsel %vm641, %v410, 0
  %v646 = vsel %vm641, %v413, 0
  %v649 = vsel %vm641, %v416, 0
  %v652 = vsel %vm641, %v419, 0
  %v655 = vsel %vm641, %v422, 0
  %v658 = vsel %vm641, %v425, 0
  %v661 = vsel %vm641, %v428, 0
  %v664 = vsel %vm641, %v431, 0
  %v667 = vsel %vm641, %v434, 0
  %v670 = vsel %vm641, %v437, 0
  %v673 = vsel %vm641, %v440, 0
  %v676 = vsel %vm641, %v443, 0
  %v679 = vsel %vm641, %v446, 0
  %v682 = vsel %vm641, %v449, 0
  %v685 = vsel %vm641, %v452, 0
  %v688 = vsel %vm641, %v455, 0
  %v691 = vsel %vm641, %v458, 0
  %v694 = vsel %vm641, %v461, 0
  %v697 = vsel %vm641, %v464, 0
  %v700 = vsel %vm641, %v467, 0
  %v703 = vsel %vm641, %v470, 0
  %v706 = vsel %vm641, %v473, 0
  %v709 = vsel %vm641, %v476, 0
  %v712 = vsel %vm641, %v479, 0
  %v715 = vsel %vm641, %v482, 0
  %717 = vmatprep.subr.bf16.mxu0 0
  %718 = vmatpush1.bf16.msra.mxu0 %v605
  %719 = vmatprep.subr.bf16.mxu0 0
  %720 = vmatpush1.bf16.msra.mxu0 %v606
  %721 = vmatprep.subr.bf16.mxu0 0
  %722 = vmatpush1.bf16.msra.mxu0 %v607
  %723 = vmatprep.subr.bf16.mxu0 0
  %724 = vmatpush1.bf16.msra.mxu0 %v608
  %725 = vmatprep.subr.bf16.mxu0 0
  %726 = vmatpush1.bf16.msra.mxu0 %v609
  %727 = vmatprep.subr.bf16.mxu0 0
  %728 = vmatpush1.bf16.msra.mxu0 %v610
  %729 = vmatprep.subr.bf16.mxu0 0
  %730 = vmatpush1.bf16.msra.mxu0 %v611
  %731 = vmatprep.subr.bf16.mxu0 0
  %732 = vmatpush1.bf16.msra.mxu0 %v612
  %733 = vmatprep.subr.bf16.mxu0 0
  %734 = vmatpush1.bf16.msra.mxu0 %v613
  %735 = vmatprep.subr.bf16.mxu0 0
  %736 = vmatpush1.bf16.msra.mxu0 %v614
  %737 = vmatprep.subr.bf16.mxu0 0
  %738 = vmatpush1.bf16.msra.mxu0 %v615
  %739 = vmatprep.subr.bf16.mxu0 0
  %740 = vmatpush1.bf16.msra.mxu0 %v616
  %741 = vmatprep.subr.bf16.mxu0 0
  %742 = vmatpush1.bf16.msra.mxu0 %v617
  %743 = vmatprep.subr.bf16.mxu0 0
  %744 = vmatpush1.bf16.msra.mxu0 %v618
  %745 = vmatprep.subr.bf16.mxu0 0
  %746 = vmatpush1.bf16.msra.mxu0 %v619
  %747 = vmatprep.subr.bf16.mxu0 0
  %748 = vmatpush1.bf16.msra.mxu0 %v620
  %749 = vmatprep.mubr.bf16.mxu0 %v409
  %750 = vmatmul.mubr.bf16.gmra.mrb[0].mxu0 %v408
  %v751 = vpop.f32.mrb[0].mxu0
  %v752 = vadd.f32 %v156, %v751
  %v753 = vpop.f32.mrb[0].mxu0
  %v754 = vpop.f32.mrb[0].mxu0
  %v755 = vadd.f32 %v156, %v754
  %v756 = vpop.f32.mrb[0].mxu0
  %757 = vmatprep.mubr.bf16.mxu0 %v412
  %758 = vmatmul.mubr.bf16.gmra.mrb[0].mxu0 %v411
  %v759 = vpop.f32.mrb[0].mxu0
  %v760 = vadd.f32 %v156, %v759
  %v761 = vpop.f32.mrb[0].mxu0
  %v762 = vpop.f32.mrb[0].mxu0
  %v763 = vadd.f32 %v156, %v762
  %v764 = vpop.f32.mrb[0].mxu0
  %765 = vmatprep.mubr.bf16.mxu0 %v415
  %766 = vmatmul.mubr.bf16.gmra.mrb[0].mxu0 %v414
  %v767 = vpop.f32.mrb[0].mxu0
  %v768 = vadd.f32 %v156, %v767
  %v769 = vpop.f32.mrb[0].mxu0
  %v770 = vpop.f32.mrb[0].mxu0
  %v771 = vadd.f32 %v156, %v770
  %v772 = vpop.f32.mrb[0].mxu0
  %773 = vmatprep.mubr.bf16.mxu0 %v418
  %774 = vmatmul.mubr.bf16.gmra.mrb[0].mxu0 %v417
  %v775 = vpop.f32.mrb[0].mxu0
  %v776 = vadd.f32 %v156, %v775
  %v777 = vpop.f32.mrb[0].mxu0
  %v778 = vpop.f32.mrb[0].mxu0
  %v779 = vadd.f32 %v156, %v778
  %v780 = vpop.f32.mrb[0].mxu0
  %781 = vmatprep.mubr.bf16.mxu0 %v421
  %782 = vmatmul.mubr.bf16.gmra.mrb[0].mxu0 %v420
  %v783 = vpop.f32.mrb[0].mxu0
  %v784 = vadd.f32 %v156, %v783
  %v785 = vpop.f32.mrb[0].mxu0
  %v786 = vpop.f32.mrb[0].mxu0
  %v787 = vadd.f32 %v156, %v786
  %v788 = vpop.f32.mrb[0].mxu0
  %789 = vmatprep.mubr.bf16.mxu0 %v424
  %790 = vmatmul.mubr.bf16.gmra.mrb[0].mxu0 %v423
  %v791 = vpop.f32.mrb[0].mxu0
  %v792 = vadd.f32 %v156, %v791
  %v793 = vpop.f32.mrb[0].mxu0
  %v794 = vpop.f32.mrb[0].mxu0
  %v795 = vadd.f32 %v156, %v794
  %v796 = vpop.f32.mrb[0].mxu0
  %797 = vmatprep.mubr.bf16.mxu0 %v427
  %798 = vmatmul.mubr.bf16.gmra.mrb[0].mxu0 %v426
  %v799 = vpop.f32.mrb[0].mxu0
  %v800 = vadd.f32 %v156, %v799
  %v801 = vpop.f32.mrb[0].mxu0
  %v802 = vpop.f32.mrb[0].mxu0
  %v803 = vadd.f32 %v156, %v802
  %v804 = vpop.f32.mrb[0].mxu0
  %805 = vmatprep.mubr.bf16.mxu0 %v430
  %806 = vmatmul.mubr.bf16.gmra.mrb[0].mxu0 %v429
  %v807 = vpop.f32.mrb[0].mxu0
  %v808 = vadd.f32 %v156, %v807
  %v809 = vpop.f32.mrb[0].mxu0
  %v810 = vpop.f32.mrb[0].mxu0
  %v811 = vadd.f32 %v156, %v810
  %v812 = vpop.f32.mrb[0].mxu0
  %813 = vmatprep.mubr.bf16.mxu0 %v433
  %814 = vmatmul.mubr.bf16.gmra.mrb[0].mxu0 %v432
  %v815 = vpop.f32.mrb[0].mxu0
  %v816 = vadd.f32 %v156, %v815
  %v817 = vpop.f32.mrb[0].mxu0
  %v818 = vpop.f32.mrb[0].mxu0
  %v819 = vadd.f32 %v156, %v818
  %v820 = vpop.f32.mrb[0].mxu0
  %821 = vmatprep.mubr.bf16.mxu0 %v436
  %822 = vmatmul.mubr.bf16.gmra.mrb[0].mxu0 %v435
  %v823 = vpop.f32.mrb[0].mxu0
  %v824 = vadd.f32 %v156, %v823
  %v825 = vpop.f32.mrb[0].mxu0
  %v826 = vpop.f32.mrb[0].mxu0
  %v827 = vadd.f32 %v156, %v826
  %v828 = vpop.f32.mrb[0].mxu0
  %829 = vmatprep.mubr.bf16.mxu0 %v439
  %830 = vmatmul.mubr.bf16.gmra.mrb[0].mxu0 %v438
  %v831 = vpop.f32.mrb[0].mxu0
  %v832 = vadd.f32 %v156, %v831
  %v833 = vpop.f32.mrb[0].mxu0
  %v834 = vpop.f32.mrb[0].mxu0
  %v835 = vadd.f32 %v156, %v834
  %v836 = vpop.f32.mrb[0].mxu0
  %837 = vmatprep.mubr.bf16.mxu0 %v442
  %838 = vmatmul.mubr.bf16.gmra.mrb[0].mxu0 %v441
  %v839 = vpop.f32.mrb[0].mxu0
  %v840 = vadd.f32 %v156, %v839
  %v841 = vpop.f32.mrb[0].mxu0
  %v842 = vpop.f32.mrb[0].mxu0
  %v843 = vadd.f32 %v156, %v842
  %v844 = vpop.f32.mrb[0].mxu0
  %845 = vmatprep.mubr.bf16.mxu0 %v445
  %846 = vmatmul.mubr.bf16.gmra.mrb[0].mxu0 %v444
  %v847 = vpop.f32.mrb[0].mxu0
  %v848 = vadd.f32 %v156, %v847
  %v849 = vpop.f32.mrb[0].mxu0
  %v850 = vpop.f32.mrb[0].mxu0
  %v851 = vadd.f32 %v156, %v850
  %v852 = vpop.f32.mrb[0].mxu0
  %853 = vmatprep.mubr.bf16.mxu0 %v448
  %854 = vmatmul.mubr.bf16.gmra.mrb[0].mxu0 %v447
  %v855 = vpop.f32.mrb[0].mxu0
  %v856 = vadd.f32 %v156, %v855
  %v857 = vpop.f32.mrb[0].mxu0
  %v858 = vpop.f32.mrb[0].mxu0
  %v859 = vadd.f32 %v156, %v858
  %v860 = vpop.f32.mrb[0].mxu0
  %861 = vmatprep.mubr.bf16.mxu0 %v451
  %862 = vmatmul.mubr.bf16.gmra.mrb[0].mxu0 %v450
  %v863 = vpop.f32.mrb[0].mxu0
  %v864 = vadd.f32 %v156, %v863
  %v865 = vpop.f32.mrb[0].mxu0
  %v866 = vpop.f32.mrb[0].mxu0
  %v867 = vadd.f32 %v156, %v866
  %v868 = vpop.f32.mrb[0].mxu0
  %869 = vmatprep.mubr.bf16.mxu0 %v454
  %870 = vmatmul.mubr.bf16.gmra.mrb[0].mxu0 %v453
  %v871 = vpop.f32.mrb[0].mxu0
  %v872 = vadd.f32 %v156, %v871
  %v873 = vpop.f32.mrb[0].mxu0
  %v874 = vpop.f32.mrb[0].mxu0
  %v875 = vadd.f32 %v156, %v874
  %v876 = vpop.f32.mrb[0].mxu0
  %877 = vmatprep.mubr.bf16.mxu0 %v457
  %878 = vmatmul.mubr.bf16.gmra.mrb[0].mxu0 %v456
  %v879 = vpop.f32.mrb[0].mxu0
  %v880 = vadd.f32 %v156, %v879
  %v881 = vpop.f32.mrb[0].mxu0
  %v882 = vpop.f32.mrb[0].mxu0
  %v883 = vadd.f32 %v156, %v882
  %v884 = vpop.f32.mrb[0].mxu0
  %885 = vmatprep.mubr.bf16.mxu0 %v460
  %886 = vmatmul.mubr.bf16.gmra.mrb[0].mxu0 %v459
  %v887 = vpop.f32.mrb[0].mxu0
  %v888 = vadd.f32 %v156, %v887
  %v889 = vpop.f32.mrb[0].mxu0
  %v890 = vpop.f32.mrb[0].mxu0
  %v891 = vadd.f32 %v156, %v890
  %v892 = vpop.f32.mrb[0].mxu0
  %893 = vmatprep.mubr.bf16.mxu0 %v463
  %894 = vmatmul.mubr.bf16.gmra.mrb[0].mxu0 %v462
  %v895 = vpop.f32.mrb[0].mxu0
  %v896 = vadd.f32 %v156, %v895
  %v897 = vpop.f32.mrb[0].mxu0
  %v898 = vpop.f32.mrb[0].mxu0
  %v899 = vadd.f32 %v156, %v898
  %v900 = vpop.f32.mrb[0].mxu0
  %901 = vmatprep.mubr.bf16.mxu0 %v466
  %902 = vmatmul.mubr.bf16.gmra.mrb[0].mxu0 %v465
  %v903 = vpop.f32.mrb[0].mxu0
  %v904 = vadd.f32 %v156, %v903
  %v905 = vpop.f32.mrb[0].mxu0
  %v906 = vpop.f32.mrb[0].mxu0
  %v907 = vadd.f32 %v156, %v906
  %v908 = vpop.f32.mrb[0].mxu0
  %909 = vmatprep.mubr.bf16.mxu0 %v469
  %910 = vmatmul.mubr.bf16.gmra.mrb[0].mxu0 %v468
  %v911 = vpop.f32.mrb[0].mxu0
  %v912 = vadd.f32 %v156, %v911
  %v913 = vpop.f32.mrb[0].mxu0
  %v914 = vpop.f32.mrb[0].mxu0
  %v915 = vadd.f32 %v156, %v914
  %v916 = vpop.f32.mrb[0].mxu0
  %917 = vmatprep.mubr.bf16.mxu0 %v472
  %918 = vmatmul.mubr.bf16.gmra.mrb[0].mxu0 %v471
  %v919 = vpop.f32.mrb[0].mxu0
  %v920 = vadd.f32 %v156, %v919
  %v921 = vpop.f32.mrb[0].mxu0
  %v922 = vpop.f32.mrb[0].mxu0
  %v923 = vadd.f32 %v156, %v922
  %v924 = vpop.f32.mrb[0].mxu0
  %925 = vmatprep.mubr.bf16.mxu0 %v475
  %926 = vmatmul.mubr.bf16.gmra.mrb[0].mxu0 %v474
  %v927 = vpop.f32.mrb[0].mxu0
  %v928 = vadd.f32 %v156, %v927
  %v929 = vpop.f32.mrb[0].mxu0
  %v930 = vpop.f32.mrb[0].mxu0
  %v931 = vadd.f32 %v156, %v930
  %v932 = vpop.f32.mrb[0].mxu0
  %933 = vmatprep.mubr.bf16.mxu0 %v478
  %934 = vmatmul.mubr.bf16.gmra.mrb[0].mxu0 %v477
  %v935 = vpop.f32.mrb[0].mxu0
  %v936 = vadd.f32 %v156, %v935
  %v937 = vpop.f32.mrb[0].mxu0
  %v938 = vpop.f32.mrb[0].mxu0
  %v939 = vadd.f32 %v156, %v938
  %v940 = vpop.f32.mrb[0].mxu0
  %941 = vmatprep.mubr.bf16.mxu0 %v481
  %942 = vmatmul.mubr.bf16.gmra.mrb[0].mxu0 %v480
  %v943 = vpop.f32.mrb[0].mxu0
  %v944 = vadd.f32 %v156, %v943
  %v945 = vpop.f32.mrb[0].mxu0
  %v946 = vpop.f32.mrb[0].mxu0
  %v947 = vadd.f32 %v156, %v946
  %v948 = vpop.f32.mrb[0].mxu0
  %949 = vdwg.mxu0
  %950 = vmatprep.subr.bf16.mxu0 0
  %951 = vmatpush1.bf16.msra.mxu0 %v621
  %952 = vmatprep.subr.bf16.mxu0 0
  %953 = vmatpush1.bf16.msra.mxu0 %v622
  %954 = vmatprep.subr.bf16.mxu0 0
  %955 = vmatpush1.bf16.msra.mxu0 0
  %956 = vmatprep.subr.bf16.mxu0 0
  %957 = vmatpush1.bf16.msra.mxu0 0
  %958 = vmatprep.subr.bf16.mxu0 0
  %959 = vmatpush1.bf16.msra.mxu0 0
  %960 = vmatprep.subr.bf16.mxu0 0
  %961 = vmatpush1.bf16.msra.mxu0 0
  %962 = vmatprep.subr.bf16.mxu0 0
  %963 = vmatpush1.bf16.msra.mxu0 0
  %964 = vmatprep.subr.bf16.mxu0 0
  %965 = vmatpush1.bf16.msra.mxu0 0
  %966 = vmatprep.subr.bf16.mxu0 0
  %967 = vmatpush1.bf16.msra.mxu0 0
  %968 = vmatprep.subr.bf16.mxu0 0
  %969 = vmatpush1.bf16.msra.mxu0 0
  %970 = vmatprep.subr.bf16.mxu0 0
  %971 = vmatpush1.bf16.msra.mxu0 0
  %972 = vmatprep.subr.bf16.mxu0 0
  %973 = vmatpush1.bf16.msra.mxu0 0
  %974 = vmatprep.subr.bf16.mxu0 0
  %975 = vmatpush1.bf16.msra.mxu0 0
  %976 = vmatprep.subr.bf16.mxu0 0
  %977 = vmatpush1.bf16.msra.mxu0 0
  %978 = vmatprep.subr.bf16.mxu0 0
  %979 = vmatpush1.bf16.msra.mxu0 0
  %980 = vmatprep.subr.bf16.mxu0 0
  %981 = vmatpush1.bf16.msra.mxu0 0
  %982 = vmatprep.mubr.bf16.mxu0 0
  %983 = vmatmul.mubr.bf16.gmra.mrb[0].mxu0 %v643
  %v984 = vpop.f32.mrb[0].mxu0
  %v985 = vadd.f32 %v752, %v984
  %v986 = vpop.f32.mrb[0].mxu0
  %v987 = vpop.f32.mrb[0].mxu0
  %v988 = vadd.f32 %v755, %v987
  %v989 = vpop.f32.mrb[0].mxu0
  %990 = vmatprep.mubr.bf16.mxu0 0
  %991 = vmatmul.mubr.bf16.gmra.mrb[0].mxu0 %v646
  %v992 = vpop.f32.mrb[0].mxu0
  %v993 = vadd.f32 %v760, %v992
  %v994 = vpop.f32.mrb[0].mxu0
  %v995 = vpop.f32.mrb[0].mxu0
  %v996 = vadd.f32 %v763, %v995
  %v997 = vpop.f32.mrb[0].mxu0
  %998 = vmatprep.mubr.bf16.mxu0 0
  %999 = vmatmul.mubr.bf16.gmra.mrb[0].mxu0 %v649
  %v1000 = vpop.f32.mrb[0].mxu0
  %v1001 = vadd.f32 %v768, %v1000
  %v1002 = vpop.f32.mrb[0].mxu0
  %v1003 = vpop.f32.mrb[0].mxu0
  %v1004 = vadd.f32 %v771, %v1003
  %v1005 = vpop.f32.mrb[0].mxu0
  %1006 = vmatprep.mubr.bf16.mxu0 0
  %1007 = vmatmul.mubr.bf16.gmra.mrb[0].mxu0 %v652
  %v1008 = vpop.f32.mrb[0].mxu0
  %v1009 = vadd.f32 %v776, %v1008
  %v1010 = vpop.f32.mrb[0].mxu0
  %v1011 = vpop.f32.mrb[0].mxu0
  %v1012 = vadd.f32 %v779, %v1011
  %v1013 = vpop.f32.mrb[0].mxu0
  %1014 = vmatprep.mubr.bf16.mxu0 0
  %1015 = vmatmul.mubr.bf16.gmra.mrb[0].mxu0 %v655
  %v1016 = vpop.f32.mrb[0].mxu0
  %v1017 = vadd.f32 %v784, %v1016
  %v1018 = vpop.f32.mrb[0].mxu0
  %v1019 = vpop.f32.mrb[0].mxu0
  %v1020 = vadd.f32 %v787, %v1019
  %v1021 = vpop.f32.mrb[0].mxu0
  %1022 = vmatprep.mubr.bf16.mxu0 0
  %1023 = vmatmul.mubr.bf16.gmra.mrb[0].mxu0 %v658
  %v1024 = vpop.f32.mrb[0].mxu0
  %v1025 = vadd.f32 %v792, %v1024
  %v1026 = vpop.f32.mrb[0].mxu0
  %v1027 = vpop.f32.mrb[0].mxu0
  %v1028 = vadd.f32 %v795, %v1027
  %v1029 = vpop.f32.mrb[0].mxu0
  %1030 = vmatprep.mubr.bf16.mxu0 0
  %1031 = vmatmul.mubr.bf16.gmra.mrb[0].mxu0 %v661
  %v1032 = vpop.f32.mrb[0].mxu0
  %v1033 = vadd.f32 %v800, %v1032
  %v1034 = vpop.f32.mrb[0].mxu0
  %v1035 = vpop.f32.mrb[0].mxu0
  %v1036 = vadd.f32 %v803, %v1035
  %v1037 = vpop.f32.mrb[0].mxu0
  %1038 = vmatprep.mubr.bf16.mxu0 0
  %1039 = vmatmul.mubr.bf16.gmra.mrb[0].mxu0 %v664
  %v1040 = vpop.f32.mrb[0].mxu0
  %v1041 = vadd.f32 %v808, %v1040
  %v1042 = vpop.f32.mrb[0].mxu0
  %v1043 = vpop.f32.mrb[0].mxu0
  %v1044 = vadd.f32 %v811, %v1043
  %v1045 = vpop.f32.mrb[0].mxu0
  %1046 = vmatprep.mubr.bf16.mxu0 0
  %1047 = vmatmul.mubr.bf16.gmra.mrb[0].mxu0 %v667
  %v1048 = vpop.f32.mrb[0].mxu0
  %v1049 = vadd.f32 %v816, %v1048
  %v1050 = vpop.f32.mrb[0].mxu0
  %v1051 = vpop.f32.mrb[0].mxu0
  %v1052 = vadd.f32 %v819, %v1051
  %v1053 = vpop.f32.mrb[0].mxu0
  %1054 = vmatprep.mubr.bf16.mxu0 0
  %1055 = vmatmul.mubr.bf16.gmra.mrb[0].mxu0 %v670
  %v1056 = vpop.f32.mrb[0].mxu0
  %v1057 = vadd.f32 %v824, %v1056
  %v1058 = vpop.f32.mrb[0].mxu0
  %v1059 = vpop.f32.mrb[0].mxu0
  %v1060 = vadd.f32 %v827, %v1059
  %v1061 = vpop.f32.mrb[0].mxu0
  %1062 = vmatprep.mubr.bf16.mxu0 0
  %1063 = vmatmul.mubr.bf16.gmra.mrb[0].mxu0 %v673
  %v1064 = vpop.f32.mrb[0].mxu0
  %v1065 = vadd.f32 %v832, %v1064
  %v1066 = vpop.f32.mrb[0].mxu0
  %v1067 = vpop.f32.mrb[0].mxu0
  %v1068 = vadd.f32 %v835, %v1067
  %v1069 = vpop.f32.mrb[0].mxu0
  %1070 = vmatprep.mubr.bf16.mxu0 0
  %1071 = vmatmul.mubr.bf16.gmra.mrb[0].mxu0 %v676
  %v1072 = vpop.f32.mrb[0].mxu0
  %v1073 = vadd.f32 %v840, %v1072
  %v1074 = vpop.f32.mrb[0].mxu0
  %v1075 = vpop.f32.mrb[0].mxu0
  %v1076 = vadd.f32 %v843, %v1075
  %v1077 = vpop.f32.mrb[0].mxu0
  %1078 = vmatprep.mubr.bf16.mxu0 0
  %1079 = vmatmul.mubr.bf16.gmra.mrb[0].mxu0 %v679
  %v1080 = vpop.f32.mrb[0].mxu0
  %v1081 = vadd.f32 %v848, %v1080
  %v1082 = vpop.f32.mrb[0].mxu0
  %v1083 = vpop.f32.mrb[0].mxu0
  %v1084 = vadd.f32 %v851, %v1083
  %v1085 = vpop.f32.mrb[0].mxu0
  %1086 = vmatprep.mubr.bf16.mxu0 0
  %1087 = vmatmul.mubr.bf16.gmra.mrb[0].mxu0 %v682
  %v1088 = vpop.f32.mrb[0].mxu0
  %v1089 = vadd.f32 %v856, %v1088
  %v1090 = vpop.f32.mrb[0].mxu0
  %v1091 = vpop.f32.mrb[0].mxu0
  %v1092 = vadd.f32 %v859, %v1091
  %v1093 = vpop.f32.mrb[0].mxu0
  %1094 = vmatprep.mubr.bf16.mxu0 0
  %1095 = vmatmul.mubr.bf16.gmra.mrb[0].mxu0 %v685
  %v1096 = vpop.f32.mrb[0].mxu0
  %v1097 = vadd.f32 %v864, %v1096
  %v1098 = vpop.f32.mrb[0].mxu0
  %v1099 = vpop.f32.mrb[0].mxu0
  %v1100 = vadd.f32 %v867, %v1099
  %v1101 = vpop.f32.mrb[0].mxu0
  %1102 = vmatprep.mubr.bf16.mxu0 0
  %1103 = vmatmul.mubr.bf16.gmra.mrb[0].mxu0 %v688
  %v1104 = vpop.f32.mrb[0].mxu0
  %v1105 = vadd.f32 %v872, %v1104
  %v1106 = vpop.f32.mrb[0].mxu0
  %v1107 = vpop.f32.mrb[0].mxu0
  %v1108 = vadd.f32 %v875, %v1107
  %v1109 = vpop.f32.mrb[0].mxu0
  %1110 = vmatprep.mubr.bf16.mxu0 0
  %1111 = vmatmul.mubr.bf16.gmra.mrb[0].mxu0 %v691
  %v1112 = vpop.f32.mrb[0].mxu0
  %v1113 = vadd.f32 %v880, %v1112
  %v1114 = vpop.f32.mrb[0].mxu0
  %v1115 = vpop.f32.mrb[0].mxu0
  %v1116 = vadd.f32 %v883, %v1115
  %v1117 = vpop.f32.mrb[0].mxu0
  %1118 = vmatprep.mubr.bf16.mxu0 0
  %1119 = vmatmul.mubr.bf16.gmra.mrb[0].mxu0 %v694
  %v1120 = vpop.f32.mrb[0].mxu0
  %v1121 = vadd.f32 %v888, %v1120
  %v1122 = vpop.f32.mrb[0].mxu0
  %v1123 = vpop.f32.mrb[0].mxu0
  %v1124 = vadd.f32 %v891, %v1123
  %v1125 = vpop.f32.mrb[0].mxu0
  %1126 = vmatprep.mubr.bf16.mxu0 0
  %1127 = vmatmul.mubr.bf16.gmra.mrb[0].mxu0 %v697
  %v1128 = vpop.f32.mrb[0].mxu0
  %v1129 = vadd.f32 %v896, %v1128
  %v1130 = vpop.f32.mrb[0].mxu0
  %v1131 = vpop.f32.mrb[0].mxu0
  %v1132 = vadd.f32 %v899, %v1131
  %v1133 = vpop.f32.mrb[0].mxu0
  %1134 = vmatprep.mubr.bf16.mxu0 0
  %1135 = vmatmul.mubr.bf16.gmra.mrb[0].mxu0 %v700
  %v1136 = vpop.f32.mrb[0].mxu0
  %v1137 = vadd.f32 %v904, %v1136
  %v1138 = vpop.f32.mrb[0].mxu0
  %v1139 = vpop.f32.mrb[0].mxu0
  %v1140 = vadd.f32 %v907, %v1139
  %v1141 = vpop.f32.mrb[0].mxu0
  %1142 = vmatprep.mubr.bf16.mxu0 0
  %1143 = vmatmul.mubr.bf16.gmra.mrb[0].mxu0 %v703
  %v1144 = vpop.f32.mrb[0].mxu0
  %v1145 = vadd.f32 %v912, %v1144
  %v1146 = vpop.f32.mrb[0].mxu0
  %v1147 = vpop.f32.mrb[0].mxu0
  %v1148 = vadd.f32 %v915, %v1147
  %v1149 = vpop.f32.mrb[0].mxu0
  %1150 = vmatprep.mubr.bf16.mxu0 0
  %1151 = vmatmul.mubr.bf16.gmra.mrb[0].mxu0 %v706
  %v1152 = vpop.f32.mrb[0].mxu0
  %v1153 = vadd.f32 %v920, %v1152
  %v1154 = vpop.f32.mrb[0].mxu0
  %v1155 = vpop.f32.mrb[0].mxu0
  %v1156 = vadd.f32 %v923, %v1155
  %v1157 = vpop.f32.mrb[0].mxu0
  %1158 = vmatprep.mubr.bf16.mxu0 0
  %1159 = vmatmul.mubr.bf16.gmra.mrb[0].mxu0 %v709
  %v1160 = vpop.f32.mrb[0].mxu0
  %v1161 = vadd.f32 %v928, %v1160
  %v1162 = vpop.f32.mrb[0].mxu0
  %v1163 = vpop.f32.mrb[0].mxu0
  %v1164 = vadd.f32 %v931, %v1163
  %v1165 = vpop.f32.mrb[0].mxu0
  %1166 = vmatprep.mubr.bf16.mxu0 0
  %1167 = vmatmul.mubr.bf16.gmra.mrb[0].mxu0 %v712
  %v1168 = vpop.f32.mrb[0].mxu0
  %v1169 = vadd.f32 %v936, %v1168
  %v1170 = vpop.f32.mrb[0].mxu0
  %v1171 = vpop.f32.mrb[0].mxu0
  %v1172 = vadd.f32 %v939, %v1171
  %v1173 = vpop.f32.mrb[0].mxu0
  %1174 = vmatprep.mubr.bf16.mxu0 0
  %1175 = vmatmul.mubr.bf16.gmra.mrb[0].mxu0 %v715
  %v1176 = vpop.f32.mrb[0].mxu0
  %v1177 = vadd.f32 %v944, %v1176
  %v1178 = vpop.f32.mrb[0].mxu0
  %v1179 = vpop.f32.mrb[0].mxu0
  %v1180 = vadd.f32 %v947, %v1179
  %v1181 = vpop.f32.mrb[0].mxu0
  %1182 = vdwg.mxu0
  %v1183 = vsub.f32 0.0, %v985
  %v1184 = vsub.f32 0.0, %v988
  %v1185 = vsub.f32 0.0, %v993
  %v1186 = vsub.f32 0.0, %v996
  %v1187 = vsub.f32 0.0, %v1001
  %v1188 = vsub.f32 0.0, %v1004
  %v1189 = vsub.f32 0.0, %v1009
  %v1190 = vsub.f32 0.0, %v1012
  %v1191 = vsub.f32 0.0, %v1017
  %v1192 = vsub.f32 0.0, %v1020
  %v1193 = vsub.f32 0.0, %v1025
  %v1194 = vsub.f32 0.0, %v1028
  %v1195 = vsub.f32 0.0, %v1033
  %v1196 = vsub.f32 0.0, %v1036
  %v1197 = vsub.f32 0.0, %v1041
  %v1198 = vsub.f32 0.0, %v1044
  %v1199 = vsub.f32 0.0, %v1049
  %v1200 = vsub.f32 0.0, %v1052
  %v1201 = vsub.f32 0.0, %v1057
  %v1202 = vsub.f32 0.0, %v1060
  %v1203 = vsub.f32 0.0, %v1065
  %v1204 = vsub.f32 0.0, %v1068
  %v1205 = vsub.f32 0.0, %v1073
  %v1206 = vsub.f32 0.0, %v1076
  %v1207 = vsub.f32 0.0, %v1081
  %v1208 = vsub.f32 0.0, %v1084
  %v1209 = vsub.f32 0.0, %v1089
  %v1210 = vsub.f32 0.0, %v1092
  %v1211 = vsub.f32 0.0, %v1097
  %v1212 = vsub.f32 0.0, %v1100
  %v1213 = vsub.f32 0.0, %v1105
  %v1214 = vsub.f32 0.0, %v1108
  %v1215 = vsub.f32 0.0, %v1113
  %v1216 = vsub.f32 0.0, %v1116
  %v1217 = vsub.f32 0.0, %v1121
  %v1218 = vsub.f32 0.0, %v1124
  %v1219 = vsub.f32 0.0, %v1129
  %v1220 = vsub.f32 0.0, %v1132
  %v1221 = vsub.f32 0.0, %v1137
  %v1222 = vsub.f32 0.0, %v1140
  %v1223 = vsub.f32 0.0, %v1145
  %v1224 = vsub.f32 0.0, %v1148
  %v1225 = vsub.f32 0.0, %v1153
  %v1226 = vsub.f32 0.0, %v1156
  %v1227 = vsub.f32 0.0, %v1161
  %v1228 = vsub.f32 0.0, %v1164
  %v1229 = vsub.f32 0.0, %v1169
  %v1230 = vsub.f32 0.0, %v1172
  %v1231 = vsub.f32 0.0, %v1177
  %v1232 = vsub.f32 0.0, %v1180
  %v1233 = vmul.f32 %v1183, 1.442695
  %v1234 = vpow.pop %v1233
  %v1235 = vmul.f32 %v1184, 1.442695
  %v1236 = vpow.pop %v1235
  %v1237 = vmul.f32 %v1185, 1.442695
  %v1238 = vpow.pop %v1237
  %v1239 = vmul.f32 %v1186, 1.442695
  %v1240 = vpow.pop %v1239
  %v1241 = vmul.f32 %v1187, 1.442695
  %v1242 = vpow.pop %v1241
  %v1243 = vmul.f32 %v1188, 1.442695
  %v1244 = vpow.pop %v1243
  %v1245 = vmul.f32 %v1189, 1.442695
  %v1246 = vpow.pop %v1245
  %v1247 = vmul.f32 %v1190, 1.442695
  %v1248 = vpow.pop %v1247
  %v1249 = vmul.f32 %v1191, 1.442695
  %v1250 = vpow.pop %v1249
  %v1251 = vmul.f32 %v1192, 1.442695
  %v1252 = vpow.pop %v1251
  %v1253 = vmul.f32 %v1193, 1.442695
  %v1254 = vpow.pop %v1253
  %v1255 = vmul.f32 %v1194, 1.442695
  %v1256 = vpow.pop %v1255
  %v1257 = vmul.f32 %v1195, 1.442695
  %v1258 = vpow.pop %v1257
  %v1259 = vmul.f32 %v1196, 1.442695
  %v1260 = vpow.pop %v1259
  %v1261 = vmul.f32 %v1197, 1.442695
  %v1262 = vpow.pop %v1261
  %v1263 = vmul.f32 %v1198, 1.442695
  %v1264 = vpow.pop %v1263
  %v1265 = vmul.f32 %v1199, 1.442695
  %v1266 = vpow.pop %v1265
  %v1267 = vmul.f32 %v1200, 1.442695
  %v1268 = vpow.pop %v1267
  %v1269 = vmul.f32 %v1201, 1.442695
  %v1270 = vpow.pop %v1269
  %v1271 = vmul.f32 %v1202, 1.442695
  %v1272 = vpow.pop %v1271
  %v1273 = vmul.f32 %v1203, 1.442695
  %v1274 = vpow.pop %v1273
  %v1275 = vmul.f32 %v1204, 1.442695
  %v1276 = vpow.pop %v1275
  %v1277 = vmul.f32 %v1205, 1.442695
  %v1278 = vpow.pop %v1277
  %v1279 = vmul.f32 %v1206, 1.442695
  %v1280 = vpow.pop %v1279
  %v1281 = vmul.f32 %v1207, 1.442695
  %v1282 = vpow.pop %v1281
  %v1283 = vmul.f32 %v1208, 1.442695
  %v1284 = vpow.pop %v1283
  %v1285 = vmul.f32 %v1209, 1.442695
  %v1286 = vpow.pop %v1285
  %v1287 = vmul.f32 %v1210, 1.442695
  %v1288 = vpow.pop %v1287
  %v1289 = vmul.f32 %v1211, 1.442695
  %v1290 = vpow.pop %v1289
  %v1291 = vmul.f32 %v1212, 1.442695
  %v1292 = vpow.pop %v1291
  %v1293 = vmul.f32 %v1213, 1.442695
  %v1294 = vpow.pop %v1293
  %v1295 = vmul.f32 %v1214, 1.442695
  %v1296 = vpow.pop %v1295
  %v1297 = vmul.f32 %v1215, 1.442695
  %v1298 = vpow.pop %v1297
  %v1299 = vmul.f32 %v1216, 1.442695
  %v1300 = vpow.pop %v1299
  %v1301 = vmul.f32 %v1217, 1.442695
  %v1302 = vpow.pop %v1301
  %v1303 = vmul.f32 %v1218, 1.442695
  %v1304 = vpow.pop %v1303
  %v1305 = vmul.f32 %v1219, 1.442695
  %v1306 = vpow.pop %v1305
  %v1307 = vmul.f32 %v1220, 1.442695
  %v1308 = vpow.pop %v1307
  %v1309 = vmul.f32 %v1221, 1.442695
  %v1310 = vpow.pop %v1309
  %v1311 = vmul.f32 %v1222, 1.442695
  %v1312 = vpow.pop %v1311
  %v1313 = vmul.f32 %v1223, 1.442695
  %v1314 = vpow.pop %v1313
  %v1315 = vmul.f32 %v1224, 1.442695
  %v1316 = vpow.pop %v1315
  %v1317 = vmul.f32 %v1225, 1.442695
  %v1318 = vpow.pop %v1317
  %v1319 = vmul.f32 %v1226, 1.442695
  %v1320 = vpow.pop %v1319
  %v1321 = vmul.f32 %v1227, 1.442695
  %v1322 = vpow.pop %v1321
  %v1323 = vmul.f32 %v1228, 1.442695
  %v1324 = vpow.pop %v1323
  %v1325 = vmul.f32 %v1229, 1.442695
  %v1326 = vpow.pop %v1325
  %v1327 = vmul.f32 %v1230, 1.442695
  %v1328 = vpow.pop %v1327
  %v1329 = vmul.f32 %v1231, 1.442695
  %v1330 = vpow.pop %v1329
  %v1331 = vmul.f32 %v1232, 1.442695
  %v1332 = vpow.pop %v1331
  %v1333 = vadd.f32 %v1234, 1.0
  %v1334 = vadd.f32 %v1236, 1.0
  %v1335 = vadd.f32 %v1238, 1.0
  %v1336 = vadd.f32 %v1240, 1.0
  %v1337 = vadd.f32 %v1242, 1.0
  %v1338 = vadd.f32 %v1244, 1.0
  %v1339 = vadd.f32 %v1246, 1.0
  %v1340 = vadd.f32 %v1248, 1.0
  %v1341 = vadd.f32 %v1250, 1.0
  %v1342 = vadd.f32 %v1252, 1.0
  %v1343 = vadd.f32 %v1254, 1.0
  %v1344 = vadd.f32 %v1256, 1.0
  %v1345 = vadd.f32 %v1258, 1.0
  %v1346 = vadd.f32 %v1260, 1.0
  %v1347 = vadd.f32 %v1262, 1.0
  %v1348 = vadd.f32 %v1264, 1.0
  %v1349 = vadd.f32 %v1266, 1.0
  %v1350 = vadd.f32 %v1268, 1.0
  %v1351 = vadd.f32 %v1270, 1.0
  %v1352 = vadd.f32 %v1272, 1.0
  %v1353 = vadd.f32 %v1274, 1.0
  %v1354 = vadd.f32 %v1276, 1.0
  %v1355 = vadd.f32 %v1278, 1.0
  %v1356 = vadd.f32 %v1280, 1.0
  %v1357 = vadd.f32 %v1282, 1.0
  %v1358 = vadd.f32 %v1284, 1.0
  %v1359 = vadd.f32 %v1286, 1.0
  %v1360 = vadd.f32 %v1288, 1.0
  %v1361 = vadd.f32 %v1290, 1.0
  %v1362 = vadd.f32 %v1292, 1.0
  %v1363 = vadd.f32 %v1294, 1.0
  %v1364 = vadd.f32 %v1296, 1.0
  %v1365 = vadd.f32 %v1298, 1.0
  %v1366 = vadd.f32 %v1300, 1.0
  %v1367 = vadd.f32 %v1302, 1.0
  %v1368 = vadd.f32 %v1304, 1.0
  %v1369 = vadd.f32 %v1306, 1.0
  %v1370 = vadd.f32 %v1308, 1.0
  %v1371 = vadd.f32 %v1310, 1.0
  %v1372 = vadd.f32 %v1312, 1.0
  %v1373 = vadd.f32 %v1314, 1.0
  %v1374 = vadd.f32 %v1316, 1.0
  %v1375 = vadd.f32 %v1318, 1.0
  %v1376 = vadd.f32 %v1320, 1.0
  %v1377 = vadd.f32 %v1322, 1.0
  %v1378 = vadd.f32 %v1324, 1.0
  %v1379 = vadd.f32 %v1326, 1.0
  %v1380 = vadd.f32 %v1328, 1.0
  %v1381 = vadd.f32 %v1330, 1.0
  %v1382 = vadd.f32 %v1332, 1.0
  %v1383 = vrcp.pop %v1333
  %v1384 = vmul.f32 1.0, %v1383
  %v1385 = vrcp.pop %v1334
  %v1386 = vmul.f32 1.0, %v1385
  %v1387 = vrcp.pop %v1335
  %v1388 = vmul.f32 1.0, %v1387
  %v1389 = vrcp.pop %v1336
  %v1390 = vmul.f32 1.0, %v1389
  %v1391 = vrcp.pop %v1337
  %v1392 = vmul.f32 1.0, %v1391
  %v1393 = vrcp.pop %v1338
  %v1394 = vmul.f32 1.0, %v1393
  %v1395 = vrcp.pop %v1339
  %v1396 = vmul.f32 1.0, %v1395
  %v1397 = vrcp.pop %v1340
  %v1398 = vmul.f32 1.0, %v1397
  %v1399 = vrcp.pop %v1341
  %v1400 = vmul.f32 1.0, %v1399
  %v1401 = vrcp.pop %v1342
  %v1402 = vmul.f32 1.0, %v1401
  %v1403 = vrcp.pop %v1343
  %v1404 = vmul.f32 1.0, %v1403
  %v1405 = vrcp.pop %v1344
  %v1406 = vmul.f32 1.0, %v1405
  %v1407 = vrcp.pop %v1345
  %v1408 = vmul.f32 1.0, %v1407
  %v1409 = vrcp.pop %v1346
  %v1410 = vmul.f32 1.0, %v1409
  %v1411 = vrcp.pop %v1347
  %v1412 = vmul.f32 1.0, %v1411
  %v1413 = vrcp.pop %v1348
  %v1414 = vmul.f32 1.0, %v1413
  %v1415 = vrcp.pop %v1349
  %v1416 = vmul.f32 1.0, %v1415
  %v1417 = vrcp.pop %v1350
  %v1418 = vmul.f32 1.0, %v1417
  %v1419 = vrcp.pop %v1351
  %v1420 = vmul.f32 1.0, %v1419
  %v1421 = vrcp.pop %v1352
  %v1422 = vmul.f32 1.0, %v1421
  %v1423 = vrcp.pop %v1353
  %v1424 = vmul.f32 1.0, %v1423
  %v1425 = vrcp.pop %v1354
  %v1426 = vmul.f32 1.0, %v1425
  %v1427 = vrcp.pop %v1355
  %v1428 = vmul.f32 1.0, %v1427
  %v1429 = vrcp.pop %v1356
  %v1430 = vmul.f32 1.0, %v1429
  %v1431 = vrcp.pop %v1357
  %v1432 = vmul.f32 1.0, %v1431
  %v1433 = vrcp.pop %v1358
  %v1434 = vmul.f32 1.0, %v1433
  %v1435 = vrcp.pop %v1359
  %v1436 = vmul.f32 1.0, %v1435
  %v1437 = vrcp.pop %v1360
  %v1438 = vmul.f32 1.0, %v1437
  %v1439 = vrcp.pop %v1361
  %v1440 = vmul.f32 1.0, %v1439
  %v1441 = vrcp.pop %v1362
  %v1442 = vmul.f32 1.0, %v1441
  %v1443 = vrcp.pop %v1363
  %v1444 = vmul.f32 1.0, %v1443
  %v1445 = vrcp.pop %v1364
  %v1446 = vmul.f32 1.0, %v1445
  %v1447 = vrcp.pop %v1365
  %v1448 = vmul.f32 1.0, %v1447
  %v1449 = vrcp.pop %v1366
  %v1450 = vmul.f32 1.0, %v1449
  %v1451 = vrcp.pop %v1367
  %v1452 = vmul.f32 1.0, %v1451
  %v1453 = vrcp.pop %v1368
  %v1454 = vmul.f32 1.0, %v1453
  %v1455 = vrcp.pop %v1369
  %v1456 = vmul.f32 1.0, %v1455
  %v1457 = vrcp.pop %v1370
  %v1458 = vmul.f32 1.0, %v1457
  %v1459 = vrcp.pop %v1371
  %v1460 = vmul.f32 1.0, %v1459
  %v1461 = vrcp.pop %v1372
  %v1462 = vmul.f32 1.0, %v1461
  %v1463 = vrcp.pop %v1373
  %v1464 = vmul.f32 1.0, %v1463
  %v1465 = vrcp.pop %v1374
  %v1466 = vmul.f32 1.0, %v1465
  %v1467 = vrcp.pop %v1375
  %v1468 = vmul.f32 1.0, %v1467
  %v1469 = vrcp.pop %v1376
  %v1470 = vmul.f32 1.0, %v1469
  %v1471 = vrcp.pop %v1377
  %v1472 = vmul.f32 1.0, %v1471
  %v1473 = vrcp.pop %v1378
  %v1474 = vmul.f32 1.0, %v1473
  %v1475 = vrcp.pop %v1379
  %v1476 = vmul.f32 1.0, %v1475
  %v1477 = vrcp.pop %v1380
  %v1478 = vmul.f32 1.0, %v1477
  %v1479 = vrcp.pop %v1381
  %v1480 = vmul.f32 1.0, %v1479
  %v1481 = vrcp.pop %v1382
  %v1482 = vmul.f32 1.0, %v1481
  %vm1483 = vcmask 31744
  %1484 = vst.msk [vmem:[%s3] sm:$0xff] %vm1483, %v1384
  %1485 = vst.msk [vmem:[%s3 + $0x8] sm:$0xff] %vm1483, %v1386
  %1486 = vst.msk [vmem:[%s3 + $0x10] sm:$0xff] %vm1483, %v1388
  %1487 = vst.msk [vmem:[%s3 + $0x18] sm:$0xff] %vm1483, %v1390
  %1488 = vst.msk [vmem:[%s3 + $0x20] sm:$0xff] %vm1483, %v1392
  %1489 = vst.msk [vmem:[%s3 + $0x28] sm:$0xff] %vm1483, %v1394
  %1490 = vst.msk [vmem:[%s3 + $0x30] sm:$0xff] %vm1483, %v1396
  %1491 = vst.msk [vmem:[%s3 + $0x38] sm:$0xff] %vm1483, %v1398
  %1492 = vst.msk [vmem:[%s3 + $0x40] sm:$0xff] %vm1483, %v1400
  %1493 = vst.msk [vmem:[%s3 + $0x48] sm:$0xff] %vm1483, %v1402
  %1494 = vst.msk [vmem:[%s3 + $0x50] sm:$0xff] %vm1483, %v1404
  %1495 = vst.msk [vmem:[%s3 + $0x58] sm:$0xff] %vm1483, %v1406
  %1496 = vst.msk [vmem:[%s3 + $0x60] sm:$0xff] %vm1483, %v1408
  %1497 = vst.msk [vmem:[%s3 + $0x68] sm:$0xff] %vm1483, %v1410
  %1498 = vst.msk [vmem:[%s3 + $0x70] sm:$0xff] %vm1483, %v1412
  %1499 = vst.msk [vmem:[%s3 + $0x78] sm:$0xff] %vm1483, %v1414
  %1500 = vst.msk [vmem:[%s3 + $0x80] sm:$0xff] %vm1483, %v1416
  %1501 = vst.msk [vmem:[%s3 + $0x88] sm:$0xff] %vm1483, %v1418
  %1502 = vst.msk [vmem:[%s3 + $0x90] sm:$0xff] %vm1483, %v1420
  %1503 = vst.msk [vmem:[%s3 + $0x98] sm:$0xff] %vm1483, %v1422
  %1504 = vst.msk [vmem:[%s3 + $0xa0] sm:$0xff] %vm1483, %v1424
  %1505 = vst.msk [vmem:[%s3 + $0xa8] sm:$0xff] %vm1483, %v1426
  %1506 = vst.msk [vmem:[%s3 + $0xb0] sm:$0xff] %vm1483, %v1428
  %1507 = vst.msk [vmem:[%s3 + $0xb8] sm:$0xff] %vm1483, %v1430
  %1508 = vst.msk [vmem:[%s3 + $0xc0] sm:$0xff] %vm1483, %v1432
  %1509 = vst.msk [vmem:[%s3 + $0xc8] sm:$0xff] %vm1483, %v1434
  %1510 = vst.msk [vmem:[%s3 + $0xd0] sm:$0xff] %vm1483, %v1436
  %1511 = vst.msk [vmem:[%s3 + $0xd8] sm:$0xff] %vm1483, %v1438
  %1512 = vst.msk [vmem:[%s3 + $0xe0] sm:$0xff] %vm1483, %v1440
  %1513 = vst.msk [vmem:[%s3 + $0xe8] sm:$0xff] %vm1483, %v1442
  %1514 = vst.msk [vmem:[%s3 + $0xf0] sm:$0xff] %vm1483, %v1444
  %1515 = vst.msk [vmem:[%s3 + $0xf8] sm:$0xff] %vm1483, %v1446
  %1516 = vst.msk [vmem:[%s3 + $0x100] sm:$0xff] %vm1483, %v1448
  %1517 = vst.msk [vmem:[%s3 + $0x108] sm:$0xff] %vm1483, %v1450
  %1518 = vst.msk [vmem:[%s3 + $0x110] sm:$0xff] %vm1483, %v1452
  %1519 = vst.msk [vmem:[%s3 + $0x118] sm:$0xff] %vm1483, %v1454
  %1520 = vst.msk [vmem:[%s3 + $0x120] sm:$0xff] %vm1483, %v1456
  %1521 = vst.msk [vmem:[%s3 + $0x128] sm:$0xff] %vm1483, %v1458
  %1522 = vst.msk [vmem:[%s3 + $0x130] sm:$0xff] %vm1483, %v1460
  %1523 = vst.msk [vmem:[%s3 + $0x138] sm:$0xff] %vm1483, %v1462
  %1524 = vst.msk [vmem:[%s3 + $0x140] sm:$0xff] %vm1483, %v1464
  %1525 = vst.msk [vmem:[%s3 + $0x148] sm:$0xff] %vm1483, %v1466
  %1526 = vst.msk [vmem:[%s3 + $0x150] sm:$0xff] %vm1483, %v1468
  %1527 = vst.msk [vmem:[%s3 + $0x158] sm:$0xff] %vm1483, %v1470
  %1528 = vst.msk [vmem:[%s3 + $0x160] sm:$0xff] %vm1483, %v1472
  %1529 = vst.msk [vmem:[%s3 + $0x168] sm:$0xff] %vm1483, %v1474
  %1530 = vst.msk [vmem:[%s3 + $0x170] sm:$0xff] %vm1483, %v1476
  %1531 = vst.msk [vmem:[%s3 + $0x178] sm:$0xff] %vm1483, %v1478
  %1532 = vst.msk [vmem:[%s3 + $0x180] sm:$0xff] %vm1483, %v1480
  %1533 = vst.msk [vmem:[%s3 + $0x188] sm:$0xff] %vm1483, %v1482
  // Predicated region
  $region14: #{vae_forward.9} parent=0 // pred_check
    _
  $region15: #{vae_forward.9} parent=0 // pred_check_branch
    %1535 = sbr.rel (0) target = $region17
  $region16: #{vae_forward.9} parent=0 // pred_region
    _
  $region17: #{vae_forward.9} parent=0 // pred_fallthru
    _
  // Predicated region
  $region18: #{vae_forward.9} parent=0 // pred_check
    _
  $region19: #{vae_forward.9} parent=0 // pred_check_branch
    %1537 = sbr.rel (0) target = $region21
  $region20: #{vae_forward.9} parent=0 // pred_region
    _
  $region21: #{vae_forward.9} parent=0 // pred_fallthru
    _

</llo_original>
